<compile_context>
chip_gen: v5e
topology: v5e:2x2
jax: 0.10.0
libtpu: 0.0.40
codegen_flags: <defaults>
</compile_context>

<pallas_src>
import jax
import jax.numpy as jnp
from jax.experimental import pallas as pl
from jax.experimental.pallas import tpu as pltpu

IN_DIM = 2048     # fc1_{x,y} input features
HID_DIM = 512     # fc1_{x,y} output / fc2 input features
OUT_DIM = 1       # fc2 output features
NEG_SLOPE = 0.01  # F.leaky_relu default negative_slope


def mine_kernel(x_ref, y_ref, w1x_ref, w1y_ref, b1_ref, w2_ref, b2_ref, out_ref):
    # f32 activation tiles cast to bf16 in-kernel; bf16 MXU matmuls with a
    # shared f32 accumulator.
    h = jnp.dot(x_ref[...].astype(jnp.bfloat16), w1x_ref[...],
                preferred_element_type=jnp.float32)
    h = h + jnp.dot(y_ref[...].astype(jnp.bfloat16), w1y_ref[...],
                    preferred_element_type=jnp.float32)
    h = h + b1_ref[...]                      # fused bias b1x + b1y
    # leaky_relu: single VALU max (valid because 0 < NEG_SLOPE < 1)
    h = jnp.maximum(h, NEG_SLOPE * h)
    # fc2 with out_features == 1: VPU multiply + lane reduce instead of an
    # N=1 MXU matmul (which would pad to the full MXU width for <1% util).
    out_ref[...] = jnp.sum(h * w2_ref[...], axis=-1, keepdims=True) + b2_ref[...]


def _round_up(n, m):
    return ((n + m - 1) // m) * m


def _choose_batch_tile(B):
    """Batch tile: >=2 grid steps for mid-size batches (v7x megacore),
    512-row tiles for large batches, full batch when tiny."""
    if B <= 8:
        return B                       # full extent (satisfies layout rule)
    if B >= 1024:
        return 512
    # Aim for at least 2 grid steps so ("parallel",) can shard across 2 TCs.
    return min(256, _round_up(pl.cdiv(B, 2), 8))


def prepare_params(params):
    """One-time conversion of f32 Linear params to kernel-ready arrays.
    Do this at init, NOT per forward call (weight casts dominate HBM traffic).

    params: (w1x[2048,512], b1x[1,512], w1y[2048,512], b1y[1,512],
             w2[512,1], b2[1,1])  -- fc1 weights already [in, out].
    """
    w1x, b1x, w1y, b1y, w2, b2 = params
    w1x_bf = w1x.astype(jnp.bfloat16)                           # [2048, 512]
    w1y_bf = w1y.astype(jnp.bfloat16)                           # [2048, 512]
    b1 = (b1x + b1y).astype(jnp.float32)                        # [1, 512]
    w2_row = jnp.reshape(w2, (1, HID_DIM)).astype(jnp.float32)  # [1, 512]
    b2 = jnp.reshape(b2, (1, OUT_DIM)).astype(jnp.float32)      # [1, 1]
    return (w1x_bf, w1y_bf, b1, w2_row, b2)


def mine_forward(x, y, prepared_params):
    """x, y: [B, 2048] float32; prepared_params from prepare_params().
    Returns [B, 1] float32."""
    w1x_bf, w1y_bf, b1, w2_row, b2 = prepared_params
    B = x.shape[0]

    TB = _choose_batch_tile(B)
    nb = pl.cdiv(B, TB)

    resident = dict(pipeline_mode=pl.Buffered(1))  # constant index_map inputs

    return pl.pallas_call(
        mine_kernel,
        out_shape=jax.ShapeDtypeStruct((B, OUT_DIM), jnp.float32),
        grid=(nb,),
        in_specs=[
            pl.BlockSpec((TB, IN_DIM), lambda i: (i, 0)),       # x tile (f32)
            pl.BlockSpec((TB, IN_DIM), lambda i: (i, 0)),       # y tile (f32)
            pl.BlockSpec((IN_DIM, HID_DIM), lambda i: (0, 0), **resident),  # W1x
            pl.BlockSpec((IN_DIM, HID_DIM), lambda i: (0, 0), **resident),  # W1y
            pl.BlockSpec((1, HID_DIM), lambda i: (0, 0), **resident),       # b1
            pl.BlockSpec((1, HID_DIM), lambda i: (0, 0), **resident),       # w2 row
            pl.BlockSpec((1, OUT_DIM), lambda i: (0, 0), **resident),       # b2
        ],
        out_specs=pl.BlockSpec((TB, OUT_DIM), lambda i: (i, 0)),
        compiler_params=pltpu.CompilerParams(
            dimension_semantics=("parallel",),   # batch axis -> megacore
            vmem_limit_bytes=32 << 20,           # safe on all of v5e/v6e/v7x
        ),
    )(x, y, w1x_bf, w1y_bf, b1, w2_row, b2)


def init_params(key):
    """Deterministic synthetic parameters matching the nn.Linear shapes."""
    k = jax.random.split(key, 6)
    # stored as [in, out] (transposed relative to PyTorch's [out, in])
    w1x = jax.random.normal(k[0], (IN_DIM, HID_DIM), jnp.float32) * 0.02
    b1x = jax.random.normal(k[1], (1, HID_DIM), jnp.float32) * 0.02
    w1y = jax.random.normal(k[2], (IN_DIM, HID_DIM), jnp.float32) * 0.02
    b1y = jax.random.normal(k[3], (1, HID_DIM), jnp.float32) * 0.02
    w2 = jax.random.normal(k[4], (HID_DIM, OUT_DIM), jnp.float32) * 0.02
    b2 = jax.random.normal(k[5], (1, OUT_DIM), jnp.float32) * 0.02
    return (w1x, b1x, w1y, b1y, w2, b2)


def mine_reference(x, y, params, *, match_bf16=True):
    """Pure-JAX reference. With match_bf16=True the fc1 inputs/weights are
    rounded to bf16 (then upcast) so numerics match the kernel's bf16 MXU
    products with f32 accumulation."""
    w1x, b1x, w1y, b1y, w2, b2 = params
    if match_bf16:
        x = x.astype(jnp.bfloat16).astype(jnp.float32)
        y = y.astype(jnp.bfloat16).astype(jnp.float32)
        w1x = w1x.astype(jnp.bfloat16).astype(jnp.float32)
        w1y = w1y.astype(jnp.bfloat16).astype(jnp.float32)
    h = x @ w1x + y @ w1y + (b1x + b1y)
    h = jnp.maximum(h, NEG_SLOPE * h)
    return h @ w2 + b2


if __name__ == "__main__":
    key = jax.random.PRNGKey(0)
    kx, ky, kp = jax.random.split(key, 3)

    B = 8
    x = jax.random.normal(kx, (B, IN_DIM), jnp.float32)
    y = jax.random.normal(ky, (B, IN_DIM), jnp.float32)
    params = init_params(kp)
    prepared = prepare_params(params)   # one-time bf16 / fused-bias conversion

    out = mine_forward(x, y, prepared)
    out = jax.block_until_ready(out)

    ref = mine_reference(x, y, params, match_bf16=True)
    assert out.shape == (B, OUT_DIM)
    assert jnp.allclose(out, ref, atol=1e-3, rtol=1e-3), \
        f"max abs err = {jnp.max(jnp.abs(out - ref))}"

    print("KERNEL_OK")
</pallas_src>

<mosaic_0001>
module attributes {stable_mosaic.version = 11 : i64} {
  func.func @mine_kernel(%arg0: i32, %arg1: memref<8x2048xf32, #tpu.memory_space<vmem>>, %arg2: memref<8x2048xf32, #tpu.memory_space<vmem>>, %arg3: memref<2048x512xbf16, #tpu.memory_space<vmem>>, %arg4: memref<2048x512xbf16, #tpu.memory_space<vmem>>, %arg5: memref<1x512xf32, #tpu.memory_space<vmem>>, %arg6: memref<1x512xf32, #tpu.memory_space<vmem>>, %arg7: memref<1x1xf32, #tpu.memory_space<vmem>>, %arg8: memref<8x1xf32, #tpu.memory_space<vmem>>) attributes {dimension_semantics = [#tpu.dimension_semantics<parallel>], iteration_bounds = array<i64: 1>, scalar_prefetch = 0 : i64, scratch_operands = 0 : i64, tpu.core_type = #tpu.core_type<tc>, window_params = [{transform_indices = @transform_0, window_bounds = array<i64: 8, 2048>}, {transform_indices = @transform_1, window_bounds = array<i64: 8, 2048>}, {pipeline_mode = #tpu.pipeline_mode<synchronous>, transform_indices = @transform_2, window_bounds = array<i64: 2048, 512>}, {pipeline_mode = #tpu.pipeline_mode<synchronous>, transform_indices = @transform_3, window_bounds = array<i64: 2048, 512>}, {pipeline_mode = #tpu.pipeline_mode<synchronous>, transform_indices = @transform_4, window_bounds = array<i64: 1, 512>}, {pipeline_mode = #tpu.pipeline_mode<synchronous>, transform_indices = @transform_5, window_bounds = array<i64: 1, 512>}, {pipeline_mode = #tpu.pipeline_mode<synchronous>, transform_indices = @transform_6, window_bounds = array<i64: 1, 1>}, {transform_indices = @transform_7, window_bounds = array<i64: 8, 1>}]} {
    %c0 = arith.constant 0 : index
    %c0_0 = arith.constant 0 : index
    %0 = vector.load %arg1[%c0, %c0_0] : memref<8x2048xf32, #tpu.memory_space<vmem>>, vector<8x2048xf32>
    %1 = arith.truncf %0 : vector<8x2048xf32> to vector<8x2048xbf16>
    %c0_1 = arith.constant 0 : index
    %c0_2 = arith.constant 0 : index
    %2 = vector.load %arg3[%c0_1, %c0_2] : memref<2048x512xbf16, #tpu.memory_space<vmem>>, vector<2048x512xbf16>
    %cst = arith.constant dense<0.000000e+00> : vector<8x512xf32>
    %3 = tpu.matmul %1, %2, %cst {dimension_numbers = #tpu.dot_dimension_numbers<[1], [0], [0], [1], [0, 0, 1, 1], [], []>} : vector<8x2048xbf16>, vector<2048x512xbf16>, vector<8x512xf32> -> vector<8x512xf32>
    %c0_3 = arith.constant 0 : index
    %c0_4 = arith.constant 0 : index
    %4 = vector.load %arg2[%c0_3, %c0_4] : memref<8x2048xf32, #tpu.memory_space<vmem>>, vector<8x2048xf32>
    %5 = arith.truncf %4 : vector<8x2048xf32> to vector<8x2048xbf16>
    %c0_5 = arith.constant 0 : index
    %c0_6 = arith.constant 0 : index
    %6 = vector.load %arg4[%c0_5, %c0_6] : memref<2048x512xbf16, #tpu.memory_space<vmem>>, vector<2048x512xbf16>
    %cst_7 = arith.constant dense<0.000000e+00> : vector<8x512xf32>
    %7 = tpu.matmul %5, %6, %cst_7 {dimension_numbers = #tpu.dot_dimension_numbers<[1], [0], [0], [1], [0, 0, 1, 1], [], []>} : vector<8x2048xbf16>, vector<2048x512xbf16>, vector<8x512xf32> -> vector<8x512xf32>
    %8 = arith.addf %3, %7 : vector<8x512xf32>
    %c0_8 = arith.constant 0 : index
    %c0_9 = arith.constant 0 : index
    %9 = vector.load %arg5[%c0_8, %c0_9] : memref<1x512xf32, #tpu.memory_space<vmem>>, vector<1x512xf32>
    %10 = vector.broadcast %9 : vector<1x512xf32> to vector<8x512xf32>
    %11 = arith.addf %8, %10 : vector<8x512xf32>
    %cst_10 = arith.constant 0.00999999977 : f32
    %12 = vector.broadcast %cst_10 : f32 to vector<8x512xf32>
    %13 = arith.mulf %12, %11 : vector<8x512xf32>
    %14 = arith.maximumf %11, %13 : vector<8x512xf32>
    %c0_11 = arith.constant 0 : index
    %c0_12 = arith.constant 0 : index
    %15 = vector.load %arg6[%c0_11, %c0_12] : memref<1x512xf32, #tpu.memory_space<vmem>>, vector<1x512xf32>
    %16 = vector.broadcast %15 : vector<1x512xf32> to vector<8x512xf32>
    %17 = arith.mulf %14, %16 : vector<8x512xf32>
    %cst_13 = arith.constant dense<0.000000e+00> : vector<8xf32>
    %18 = vector.multi_reduction <add>, %17, %cst_13 [1] : vector<8x512xf32> to vector<8xf32>
    %19 = vector.shape_cast %18 : vector<8xf32> to vector<8x1xf32>
    %c0_14 = arith.constant 0 : index
    %c0_15 = arith.constant 0 : index
    %20 = vector.load %arg7[%c0_14, %c0_15] : memref<1x1xf32, #tpu.memory_space<vmem>>, vector<1x1xf32>
    %21 = vector.broadcast %20 : vector<1x1xf32> to vector<8x1xf32>
    %22 = arith.addf %19, %21 : vector<8x1xf32>
    %c0_16 = arith.constant 0 : index
    %c0_17 = arith.constant 0 : index
    %23 = vector.load %arg8[%c0_16, %c0_17] : memref<8x1xf32, #tpu.memory_space<vmem>>, vector<8x1xf32>
    tpu.vector_store %arg8[%c0_16, %c0_17], %22 {strides = array<i32>} : memref<8x1xf32, #tpu.memory_space<vmem>>, vector<8x1xf32>,
    return
  }
  func.func @transform_0(%arg0: i32) -> (i32, i32) {
    %c0_i32 = arith.constant 0 : i32
    %c0_i32_0 = arith.constant 0 : i32
    return %arg0, %c0_i32 : i32, i32
  }
  func.func @transform_1(%arg0: i32) -> (i32, i32) {
    %c0_i32 = arith.constant 0 : i32
    %c0_i32_0 = arith.constant 0 : i32
    return %arg0, %c0_i32 : i32, i32
  }
  func.func @transform_2(%arg0: i32) -> (i32, i32) {
    %c0_i32 = arith.constant 0 : i32
    %c0_i32_0 = arith.constant 0 : i32
    %c0_i32_1 = arith.constant 0 : i32
    return %c0_i32, %c0_i32_0 : i32, i32
  }
  func.func @transform_3(%arg0: i32) -> (i32, i32) {
    %c0_i32 = arith.constant 0 : i32
    %c0_i32_0 = arith.constant 0 : i32
    %c0_i32_1 = arith.constant 0 : i32
    return %c0_i32, %c0_i32_0 : i32, i32
  }
  func.func @transform_4(%arg0: i32) -> (i32, i32) {
    %c0_i32 = arith.constant 0 : i32
    %c0_i32_0 = arith.constant 0 : i32
    %c0_i32_1 = arith.constant 0 : i32
    return %c0_i32, %c0_i32_0 : i32, i32
  }
  func.func @transform_5(%arg0: i32) -> (i32, i32) {
    %c0_i32 = arith.constant 0 : i32
    %c0_i32_0 = arith.constant 0 : i32
    %c0_i32_1 = arith.constant 0 : i32
    return %c0_i32, %c0_i32_0 : i32, i32
  }
  func.func @transform_6(%arg0: i32) -> (i32, i32) {
    %c0_i32 = arith.constant 0 : i32
    %c0_i32_0 = arith.constant 0 : i32
    %c0_i32_1 = arith.constant 0 : i32
    return %c0_i32, %c0_i32_0 : i32, i32
  }
  func.func @transform_7(%arg0: i32) -> (i32, i32) {
    %c0_i32 = arith.constant 0 : i32
    %c0_i32_0 = arith.constant 0 : i32
    return %arg0, %c0_i32 : i32, i32
  }
}

</mosaic_0001>

<llo_original>
// kernel: tpu_custom_call.1
$region0: #{tpu_custom_call.1}
  #allocation0 [shape = 'u32[]', space=smem, size = 0x4, offset = 0x4, fixed_abs, tag = 'smem constant byte address 0x4 - core index']
  #allocation1 [shape = 'u32[72,128]{1,0:T(1,128)}', space=vmem, size = 0x9000, scoped, tag = 'internal scratch']
  #allocation2 [shape = 'f32[1,1]{1,0:T(1,128)S(1)}', space=vmem, size = 0x200, scoped, tag = 'scoped memory for tpu_custom_call.1']
  %s0 = inlined_call_operand.hbm [shape: f32[8,2048], index: 0, kind: input, shape index: {}]
  %s1 = inlined_call_operand.hbm [shape: f32[8,2048], index: 1, kind: input, shape index: {}]
  %s2 = inlined_call_operand.hbm [shape: bf16[2048,512], index: 2, kind: input, shape index: {}]
  %s3 = inlined_call_operand.hbm [shape: bf16[2048,512], index: 3, kind: input, shape index: {}]
  %s4 = inlined_call_operand.hbm [shape: f32[1,512], index: 4, kind: input, shape index: {}]
  %s5 = inlined_call_operand.hbm [shape: f32[1,512], index: 5, kind: input, shape index: {}]
  %s6 = inlined_call_operand.<no memory space> [shape: f32[1,1], index: 6, kind: input, shape index: {}]
  %s7 = inlined_call_operand.vmem [shape: f32[8,1], index: 7, kind: output, shape index: {}]
  %s8 = sld [smem:[#allocation0]]
  $region62: #{tpu_custom_call.1} parent=0
    _
  %s10 = ssub.s32 1, %s8
  %s11 = scalar_select 0, %s10, %s8
  %v12 = vstv %s6
  %13 = vst [vmem:[#allocation2] sm:$0x1] %v12
  $region1: #{tpu_custom_call.1} parent=0
    #allocation3 [shape = 'u8[65536]{0}', space=vmem, size = 0x10000, scoped, tag = 'input window, operand 0, single buffered']
    #allocation4 [shape = 's32[1]{0}', space=sflag, size = 0x4, scoped, tag = 'scoped memory for tpu_custom_call.1']
    #allocation5 [shape = 'u8[65536]{0}', space=vmem, size = 0x10000, scoped, tag = 'input window, operand 1, single buffered']
    #allocation6 [shape = 's32[1]{0}', space=sflag, size = 0x4, scoped, tag = 'scoped memory for tpu_custom_call.1']
    #allocation7 [shape = 'u8[2097152]{0}', space=vmem, size = 0x200000, scoped, tag = 'input window, operand 2, single buffered']
    #allocation8 [shape = 'u8[2097152]{0}', space=vmem, size = 0x200000, scoped, tag = 'input window, operand 3, single buffered']
    #allocation9 [shape = 's32[1]{0}', space=sflag, size = 0x4, scoped, tag = 'scoped memory for tpu_custom_call.1']
    #allocation10 [shape = 'u8[2048]{0}', space=vmem, size = 0x800, scoped, tag = 'input window, operand 4, single buffered']
    #allocation11 [shape = 'u8[2048]{0}', space=vmem, size = 0x800, scoped, tag = 'input window, operand 5, single buffered']
    #allocation12 [shape = 's32[1]{0}', space=sflag, size = 0x4, scoped, tag = 'scoped memory for tpu_custom_call.1']
    %14 = vsyncpa [#allocation4], 0
    %15 = vsyncpa [#allocation6], 0
    %16 = vsyncpa [#allocation9], 0
    %17 = vsyncpa [#allocation12], 0
    // Predicated region
    $region2: #{tpu_custom_call.1} parent=1 // pred_check
      _
    $region3: #{tpu_custom_call.1} parent=1 // pred_check_branch
      %19 = sbr.rel (0) target = $region5
    $region4: #{tpu_custom_call.1} parent=1 // pred_region
      %21 = vsyncadd [#allocation4], 0
      %s23 = sshll.u32 %s0, 4
      %s24 = int_to_ptr.hbm [resolvable:$true] %s23
      %s25 = sshll.u32 [#allocation3], 4
      %s26 = int_to_ptr.vmem [resolvable:$true] %s25
      %28 = dma.hbm_to_vmem [thread:$0]  %s24, 2048, %s26, [#allocation4]
    $region5: #{tpu_custom_call.1} parent=1 // pred_fallthru
      _
    // Predicated region
    $region6: #{tpu_custom_call.1} parent=1 // pred_check
      _
    $region7: #{tpu_custom_call.1} parent=1 // pred_check_branch
      %30 = sbr.rel (0) target = $region9
    $region8: #{tpu_custom_call.1} parent=1 // pred_region
      %32 = vsyncadd [#allocation6], 0
      %s34 = sshll.u32 %s1, 4
      %s35 = int_to_ptr.hbm [resolvable:$true] %s34
      %s36 = sshll.u32 [#allocation5], 4
      %s37 = int_to_ptr.vmem [resolvable:$true] %s36
      %39 = dma.hbm_to_vmem [thread:$0]  %s35, 2048, %s37, [#allocation6]
    $region9: #{tpu_custom_call.1} parent=1 // pred_fallthru
      _
    // Predicated region
    $region10: #{tpu_custom_call.1} parent=1 // pred_check
      _
    $region11: #{tpu_custom_call.1} parent=1 // pred_check_branch
      %41 = sbr.rel (0) target = $region13
    $region12: #{tpu_custom_call.1} parent=1 // pred_region
      %43 = vsyncadd [#allocation6], 0
      %s44 = sshll.u32 %s2, 4
      %s45 = int_to_ptr.hbm [resolvable:$true] %s44
      %s46 = sshll.u32 [#allocation7], 4
      %s47 = int_to_ptr.vmem [resolvable:$true] %s46
      %52 = dma.hbm_to_vmem [thread:$0]  %s45, 65536, %s47, [#allocation6], 256, 256, 16
    $region13: #{tpu_custom_call.1} parent=1 // pred_fallthru
      _
    // Predicated region
    $region14: #{tpu_custom_call.1} parent=1 // pred_check
      _
    $region15: #{tpu_custom_call.1} parent=1 // pred_check_branch
      %54 = sbr.rel (0) target = $region17
    $region16: #{tpu_custom_call.1} parent=1 // pred_region
      %56 = vsyncadd [#allocation9], 0
      %s57 = sshll.u32 %s3, 4
      %s58 = int_to_ptr.hbm [resolvable:$true] %s57
      %s59 = sshll.u32 [#allocation8], 4
      %s60 = int_to_ptr.vmem [resolvable:$true] %s59
      %65 = dma.hbm_to_vmem [thread:$0]  %s58, 65536, %s60, [#allocation9], 256, 256, 16
    $region17: #{tpu_custom_call.1} parent=1 // pred_fallthru
      _
    // Predicated region
    $region18: #{tpu_custom_call.1} parent=1 // pred_check
      _
    $region19: #{tpu_custom_call.1} parent=1 // pred_check_branch
      %67 = sbr.rel (0) target = $region21
    $region20: #{tpu_custom_call.1} parent=1 // pred_region
      %69 = vsyncadd [#allocation9], 0
      %s71 = sshll.u32 %s4, 4
      %s72 = int_to_ptr.hbm [resolvable:$true] %s71
      %s73 = sshll.u32 [#allocation10], 4
      %s74 = int_to_ptr.vmem [resolvable:$true] %s73
      %76 = dma.hbm_to_vmem [thread:$0]  %s72, 64, %s74, [#allocation9]
    $region21: #{tpu_custom_call.1} parent=1 // pred_fallthru
      _
    // Predicated region
    $region22: #{tpu_custom_call.1} parent=1 // pred_check
      _
    $region23: #{tpu_custom_call.1} parent=1 // pred_check_branch
      %78 = sbr.rel (0) target = $region25
    $region24: #{tpu_custom_call.1} parent=1 // pred_region
      %80 = vsyncadd [#allocation12], 0
      %s82 = sshll.u32 %s5, 4
      %s83 = int_to_ptr.hbm [resolvable:$true] %s82
      %s84 = sshll.u32 [#allocation11], 4
      %s85 = int_to_ptr.vmem [resolvable:$true] %s84
      %87 = dma.hbm_to_vmem [thread:$0]  %s83, 64, %s85, [#allocation12]
    $region25: #{tpu_custom_call.1} parent=1 // pred_fallthru
      _
    // Predicated region
    $region26: #{tpu_custom_call.1} parent=1 // pred_check
      _
    $region27: #{tpu_custom_call.1} parent=1 // pred_check_branch
      %89 = sbr.rel (0) target = $region29
    $region28: #{tpu_custom_call.1} parent=1 // pred_region
      _
    $region29: #{tpu_custom_call.1} parent=1 // pred_fallthru
      _
    // Predicated region
    $region30: #{tpu_custom_call.1} parent=1 // pred_check
      _
    $region31: #{tpu_custom_call.1} parent=1 // pred_check_branch
      %91 = sbr.rel (0) target = $region33
    $region32: #{tpu_custom_call.1} parent=1 // pred_region
      %93 = dma.done [#allocation4], 2048
    $region33: #{tpu_custom_call.1} parent=1 // pred_fallthru
      _
    // Predicated region
    $region34: #{tpu_custom_call.1} parent=1 // pred_check
      _
    $region35: #{tpu_custom_call.1} parent=1 // pred_check_branch
      %95 = sbr.rel (0) target = $region37
    $region36: #{tpu_custom_call.1} parent=1 // pred_region
      %97 = dma.done [#allocation6], 2048
    $region37: #{tpu_custom_call.1} parent=1 // pred_fallthru
      _
    // Predicated region
    $region38: #{tpu_custom_call.1} parent=1 // pred_check
      _
    $region39: #{tpu_custom_call.1} parent=1 // pred_check_branch
      %99 = sbr.rel (0) target = $region41
    $region40: #{tpu_custom_call.1} parent=1 // pred_region
      %101 = dma.done [#allocation6], 65536
    $region41: #{tpu_custom_call.1} parent=1 // pred_fallthru
      _
    // Predicated region
    $region42: #{tpu_custom_call.1} parent=1 // pred_check
      _
    $region43: #{tpu_custom_call.1} parent=1 // pred_check_branch
      %103 = sbr.rel (0) target = $region45
    $region44: #{tpu_custom_call.1} parent=1 // pred_region
      %105 = dma.done [#allocation9], 65536
    $region45: #{tpu_custom_call.1} parent=1 // pred_fallthru
      _
    // Predicated region
    $region46: #{tpu_custom_call.1} parent=1 // pred_check
      _
    $region47: #{tpu_custom_call.1} parent=1 // pred_check_branch
      %107 = sbr.rel (0) target = $region49
    $region48: #{tpu_custom_call.1} parent=1 // pred_region
      %109 = dma.done [#allocation9], 64
    $region49: #{tpu_custom_call.1} parent=1 // pred_fallthru
      _
    // Predicated region
    $region50: #{tpu_custom_call.1} parent=1 // pred_check
      _
    $region51: #{tpu_custom_call.1} parent=1 // pred_check_branch
      %111 = sbr.rel (0) target = $region53
    $region52: #{tpu_custom_call.1} parent=1 // pred_region
      %113 = dma.done [#allocation12], 64
    $region53: #{tpu_custom_call.1} parent=1 // pred_fallthru
      _
    %v114 = vld [vmem:[#allocation3] sm:$0xff]
    %v115 = vld [vmem:[#allocation3 + $0x8] sm:$0xff]
    %v116 = vld [vmem:[#allocation3 + $0x10] sm:$0xff]
    %v117 = vld [vmem:[#allocation3 + $0x18] sm:$0xff]
    %v118 = vld [vmem:[#allocation3 + $0x20] sm:$0xff]
    %v119 = vld [vmem:[#allocation3 + $0x28] sm:$0xff]
    %v120 = vld [vmem:[#allocation3 + $0x30] sm:$0xff]
    %v121 = vld [vmem:[#allocation3 + $0x38] sm:$0xff]
    %v122 = vld [vmem:[#allocation3 + $0x40] sm:$0xff]
    %v123 = vld [vmem:[#allocation3 + $0x48] sm:$0xff]
    %v124 = vld [vmem:[#allocation3 + $0x50] sm:$0xff]
    %v125 = vld [vmem:[#allocation3 + $0x58] sm:$0xff]
    %v126 = vld [vmem:[#allocation3 + $0x60] sm:$0xff]
    %v127 = vld [vmem:[#allocation3 + $0x68] sm:$0xff]
    %v128 = vld [vmem:[#allocation3 + $0x70] sm:$0xff]
    %v129 = vld [vmem:[#allocation3 + $0x78] sm:$0xff]
    %v130 = vpack.c.bf16 %v114, %v114
    %v131 = vpack.c.bf16 %v115, %v115
    %v132 = vpack.c.bf16 %v116, %v116
    %v133 = vpack.c.bf16 %v117, %v117
    %v134 = vpack.c.bf16 %v118, %v118
    %v135 = vpack.c.bf16 %v119, %v119
    %v136 = vpack.c.bf16 %v120, %v120
    %v137 = vpack.c.bf16 %v121, %v121
    %v138 = vpack.c.bf16 %v122, %v122
    %v139 = vpack.c.bf16 %v123, %v123
    %v140 = vpack.c.bf16 %v124, %v124
    %v141 = vpack.c.bf16 %v125, %v125
    %v142 = vpack.c.bf16 %v126, %v126
    %v143 = vpack.c.bf16 %v127, %v127
    %v144 = vpack.c.bf16 %v128, %v128
    %v145 = vpack.c.bf16 %v129, %v129
    %v146 = vld [vmem:[#allocation7] sm:$0xff]
    %v147 = vld [vmem:[#allocation7 + $0x8] sm:$0xff]
    %v148 = vld [vmem:[#allocation7 + $0x10] sm:$0xff]
    %v149 = vld [vmem:[#allocation7 + $0x18] sm:$0xff]
    %v150 = vld [vmem:[#allocation7 + $0x20] sm:$0xff]
    %v151 = vld [vmem:[#allocation7 + $0x28] sm:$0xff]
    %v152 = vld [vmem:[#allocation7 + $0x30] sm:$0xff]
    %v153 = vld [vmem:[#allocation7 + $0x38] sm:$0xff]
    %v154 = vld [vmem:[#allocation7 + $0x40] sm:$0xff]
    %v155 = vld [vmem:[#allocation7 + $0x48] sm:$0xff]
    %v156 = vld [vmem:[#allocation7 + $0x50] sm:$0xff]
    %v157 = vld [vmem:[#allocation7 + $0x58] sm:$0xff]
    %v158 = vld [vmem:[#allocation7 + $0x60] sm:$0xff]
    %v159 = vld [vmem:[#allocation7 + $0x68] sm:$0xff]
    %v160 = vld [vmem:[#allocation7 + $0x70] sm:$0xff]
    %v161 = vld [vmem:[#allocation7 + $0x78] sm:$0xff]
    %v162 = vld [vmem:[#allocation7 + $0x80] sm:$0xff]
    %v163 = vld [vmem:[#allocation7 + $0x88] sm:$0xff]
    %v164 = vld [vmem:[#allocation7 + $0x90] sm:$0xff]
    %v165 = vld [vmem:[#allocation7 + $0x98] sm:$0xff]
    %v166 = vld [vmem:[#allocation7 + $0xa0] sm:$0xff]
    %v167 = vld [vmem:[#allocation7 + $0xa8] sm:$0xff]
    %v168 = vld [vmem:[#allocation7 + $0xb0] sm:$0xff]
    %v169 = vld [vmem:[#allocation7 + $0xb8] sm:$0xff]
    %v170 = vld [vmem:[#allocation7 + $0xc0] sm:$0xff]
    %v171 = vld [vmem:[#allocation7 + $0xc8] sm:$0xff]
    %v172 = vld [vmem:[#allocation7 + $0xd0] sm:$0xff]
    %v173 = vld [vmem:[#allocation7 + $0xd8] sm:$0xff]
    %v174 = vld [vmem:[#allocation7 + $0xe0] sm:$0xff]
    %v175 = vld [vmem:[#allocation7 + $0xe8] sm:$0xff]
    %v176 = vld [vmem:[#allocation7 + $0xf0] sm:$0xff]
    %v177 = vld [vmem:[#allocation7 + $0xf8] sm:$0xff]
    %v178 = vld [vmem:[#allocation7 + $0x100] sm:$0xff]
    %v179 = vld [vmem:[#allocation7 + $0x108] sm:$0xff]
    %v180 = vld [vmem:[#allocation7 + $0x110] sm:$0xff]
    %v181 = vld [vmem:[#allocation7 + $0x118] sm:$0xff]
    %v182 = vld [vmem:[#allocation7 + $0x120] sm:$0xff]
    %v183 = vld [vmem:[#allocation7 + $0x128] sm:$0xff]
    %v184 = vld [vmem:[#allocation7 + $0x130] sm:$0xff]
    %v185 = vld [vmem:[#allocation7 + $0x138] sm:$0xff]
    %v186 = vld [vmem:[#allocation7 + $0x140] sm:$0xff]
    %v187 = vld [vmem:[#allocation7 + $0x148] sm:$0xff]
    %v188 = vld [vmem:[#allocation7 + $0x150] sm:$0xff]
    %v189 = vld [vmem:[#allocation7 + $0x158] sm:$0xff]
    %v190 = vld [vmem:[#allocation7 + $0x160] sm:$0xff]
    %v191 = vld [vmem:[#allocation7 + $0x168] sm:$0xff]
    %v192 = vld [vmem:[#allocation7 + $0x170] sm:$0xff]
    %v193 = vld [vmem:[#allocation7 + $0x178] sm:$0xff]
    %v194 = vld [vmem:[#allocation7 + $0x180] sm:$0xff]
    %v195 = vld [vmem:[#allocation7 + $0x188] sm:$0xff]
    %v196 = vld [vmem:[#allocation7 + $0x190] sm:$0xff]
    %v197 = vld [vmem:[#allocation7 + $0x198] sm:$0xff]
    %v198 = vld [vmem:[#allocation7 + $0x1a0] sm:$0xff]
    %v199 = vld [vmem:[#allocation7 + $0x1a8] sm:$0xff]
    %v200 = vld [vmem:[#allocation7 + $0x1b0] sm:$0xff]
    %v201 = vld [vmem:[#allocation7 + $0x1b8] sm:$0xff]
    %v202 = vld [vmem:[#allocation7 + $0x1c0] sm:$0xff]
    %v203 = vld [vmem:[#allocation7 + $0x1c8] sm:$0xff]
    %v204 = vld [vmem:[#allocation7 + $0x1d0] sm:$0xff]
    %v205 = vld [vmem:[#allocation7 + $0x1d8] sm:$0xff]
    %v206 = vld [vmem:[#allocation7 + $0x1e0] sm:$0xff]
    %v207 = vld [vmem:[#allocation7 + $0x1e8] sm:$0xff]
    %v208 = vld [vmem:[#allocation7 + $0x1f0] sm:$0xff]
    %v209 = vld [vmem:[#allocation7 + $0x1f8] sm:$0xff]
    %v210 = vld [vmem:[#allocation7 + $0x200] sm:$0xff]
    %v211 = vld [vmem:[#allocation7 + $0x208] sm:$0xff]
    %v212 = vld [vmem:[#allocation7 + $0x210] sm:$0xff]
    %v213 = vld [vmem:[#allocation7 + $0x218] sm:$0xff]
    %v214 = vld [vmem:[#allocation7 + $0x220] sm:$0xff]
    %v215 = vld [vmem:[#allocation7 + $0x228] sm:$0xff]
    %v216 = vld [vmem:[#allocation7 + $0x230] sm:$0xff]
    %v217 = vld [vmem:[#allocation7 + $0x238] sm:$0xff]
    %v218 = vld [vmem:[#allocation7 + $0x240] sm:$0xff]
    %v219 = vld [vmem:[#allocation7 + $0x248] sm:$0xff]
    %v220 = vld [vmem:[#allocation7 + $0x250] sm:$0xff]
    %v221 = vld [vmem:[#allocation7 + $0x258] sm:$0xff]
    %v222 = vld [vmem:[#allocation7 + $0x260] sm:$0xff]
    %v223 = vld [vmem:[#allocation7 + $0x268] sm:$0xff]
    %v224 = vld [vmem:[#allocation7 + $0x270] sm:$0xff]
    %v225 = vld [vmem:[#allocation7 + $0x278] sm:$0xff]
    %v226 = vld [vmem:[#allocation7 + $0x280] sm:$0xff]
    %v227 = vld [vmem:[#allocation7 + $0x288] sm:$0xff]
    %v228 = vld [vmem:[#allocation7 + $0x290] sm:$0xff]
    %v229 = vld [vmem:[#allocation7 + $0x298] sm:$0xff]
    %v230 = vld [vmem:[#allocation7 + $0x2a0] sm:$0xff]
    %v231 = vld [vmem:[#allocation7 + $0x2a8] sm:$0xff]
    %v232 = vld [vmem:[#allocation7 + $0x2b0] sm:$0xff]
    %v233 = vld [vmem:[#allocation7 + $0x2b8] sm:$0xff]
    %v234 = vld [vmem:[#allocation7 + $0x2c0] sm:$0xff]
    %v235 = vld [vmem:[#allocation7 + $0x2c8] sm:$0xff]
    %v236 = vld [vmem:[#allocation7 + $0x2d0] sm:$0xff]
    %v237 = vld [vmem:[#allocation7 + $0x2d8] sm:$0xff]
    %v238 = vld [vmem:[#allocation7 + $0x2e0] sm:$0xff]
    %v239 = vld [vmem:[#allocation7 + $0x2e8] sm:$0xff]
    %v240 = vld [vmem:[#allocation7 + $0x2f0] sm:$0xff]
    %v241 = vld [vmem:[#allocation7 + $0x2f8] sm:$0xff]
    %v242 = vld [vmem:[#allocation7 + $0x300] sm:$0xff]
    %v243 = vld [vmem:[#allocation7 + $0x308] sm:$0xff]
    %v244 = vld [vmem:[#allocation7 + $0x310] sm:$0xff]
    %v245 = vld [vmem:[#allocation7 + $0x318] sm:$0xff]
    %v246 = vld [vmem:[#allocation7 + $0x320] sm:$0xff]
    %v247 = vld [vmem:[#allocation7 + $0x328] sm:$0xff]
    %v248 = vld [vmem:[#allocation7 + $0x330] sm:$0xff]
    %v249 = vld [vmem:[#allocation7 + $0x338] sm:$0xff]
    %v250 = vld [vmem:[#allocation7 + $0x340] sm:$0xff]
    %v251 = vld [vmem:[#allocation7 + $0x348] sm:$0xff]
    %v252 = vld [vmem:[#allocation7 + $0x350] sm:$0xff]
    %v253 = vld [vmem:[#allocation7 + $0x358] sm:$0xff]
    %v254 = vld [vmem:[#allocation7 + $0x360] sm:$0xff]
    %v255 = vld [vmem:[#allocation7 + $0x368] sm:$0xff]
    %v256 = vld [vmem:[#allocation7 + $0x370] sm:$0xff]
    %v257 = vld [vmem:[#allocation7 + $0x378] sm:$0xff]
    %v258 = vld [vmem:[#allocation7 + $0x380] sm:$0xff]
    %v259 = vld [vmem:[#allocation7 + $0x388] sm:$0xff]
    %v260 = vld [vmem:[#allocation7 + $0x390] sm:$0xff]
    %v261 = vld [vmem:[#allocation7 + $0x398] sm:$0xff]
    %v262 = vld [vmem:[#allocation7 + $0x3a0] sm:$0xff]
    %v263 = vld [vmem:[#allocation7 + $0x3a8] sm:$0xff]
    %v264 = vld [vmem:[#allocation7 + $0x3b0] sm:$0xff]
    %v265 = vld [vmem:[#allocation7 + $0x3b8] sm:$0xff]
    %v266 = vld [vmem:[#allocation7 + $0x3c0] sm:$0xff]
    %v267 = vld [vmem:[#allocation7 + $0x3c8] sm:$0xff]
    %v268 = vld [vmem:[#allocation7 + $0x3d0] sm:$0xff]
    %v269 = vld [vmem:[#allocation7 + $0x3d8] sm:$0xff]
    %v270 = vld [vmem:[#allocation7 + $0x3e0] sm:$0xff]
    %v271 = vld [vmem:[#allocation7 + $0x3e8] sm:$0xff]
    %v272 = vld [vmem:[#allocation7 + $0x3f0] sm:$0xff]
    %v273 = vld [vmem:[#allocation7 + $0x3f8] sm:$0xff]
    %v274 = vld [vmem:[#allocation7 + $0x400] sm:$0xff]
    %v275 = vld [vmem:[#allocation7 + $0x408] sm:$0xff]
    %v276 = vld [vmem:[#allocation7 + $0x410] sm:$0xff]
    %v277 = vld [vmem:[#allocation7 + $0x418] sm:$0xff]
    %v278 = vld [vmem:[#allocation7 + $0x420] sm:$0xff]
    %v279 = vld [vmem:[#allocation7 + $0x428] sm:$0xff]
    %v280 = vld [vmem:[#allocation7 + $0x430] sm:$0xff]
    %v281 = vld [vmem:[#allocation7 + $0x438] sm:$0xff]
    %v282 = vld [vmem:[#allocation7 + $0x440] sm:$0xff]
    %v283 = vld [vmem:[#allocation7 + $0x448] sm:$0xff]
    %v284 = vld [vmem:[#allocation7 + $0x450] sm:$0xff]
    %v285 = vld [vmem:[#allocation7 + $0x458] sm:$0xff]
    %v286 = vld [vmem:[#allocation7 + $0x460] sm:$0xff]
    %v287 = vld [vmem:[#allocation7 + $0x468] sm:$0xff]
    %v288 = vld [vmem:[#allocation7 + $0x470] sm:$0xff]
    %v289 = vld [vmem:[#allocation7 + $0x478] sm:$0xff]
    %v290 = vld [vmem:[#allocation7 + $0x480] sm:$0xff]
    %v291 = vld [vmem:[#allocation7 + $0x488] sm:$0xff]
    %v292 = vld [vmem:[#allocation7 + $0x490] sm:$0xff]
    %v293 = vld [vmem:[#allocation7 + $0x498] sm:$0xff]
    %v294 = vld [vmem:[#allocation7 + $0x4a0] sm:$0xff]
    %v295 = vld [vmem:[#allocation7 + $0x4a8] sm:$0xff]
    %v296 = vld [vmem:[#allocation7 + $0x4b0] sm:$0xff]
    %v297 = vld [vmem:[#allocation7 + $0x4b8] sm:$0xff]
    %v298 = vld [vmem:[#allocation7 + $0x4c0] sm:$0xff]
    %v299 = vld [vmem:[#allocation7 + $0x4c8] sm:$0xff]
    %v300 = vld [vmem:[#allocation7 + $0x4d0] sm:$0xff]
    %v301 = vld [vmem:[#allocation7 + $0x4d8] sm:$0xff]
    %v302 = vld [vmem:[#allocation7 + $0x4e0] sm:$0xff]
    %v303 = vld [vmem:[#allocation7 + $0x4e8] sm:$0xff]
    %v304 = vld [vmem:[#allocation7 + $0x4f0] sm:$0xff]
    %v305 = vld [vmem:[#allocation7 + $0x4f8] sm:$0xff]
    %v306 = vld [vmem:[#allocation7 + $0x500] sm:$0xff]
    %v307 = vld [vmem:[#allocation7 + $0x508] sm:$0xff]
    %v308 = vld [vmem:[#allocation7 + $0x510] sm:$0xff]
    %v309 = vld [vmem:[#allocation7 + $0x518] sm:$0xff]
    %v310 = vld [vmem:[#allocation7 + $0x520] sm:$0xff]
    %v311 = vld [vmem:[#allocation7 + $0x528] sm:$0xff]
    %v312 = vld [vmem:[#allocation7 + $0x530] sm:$0xff]
    %v313 = vld [vmem:[#allocation7 + $0x538] sm:$0xff]
    %v314 = vld [vmem:[#allocation7 + $0x540] sm:$0xff]
    %v315 = vld [vmem:[#allocation7 + $0x548] sm:$0xff]
    %v316 = vld [vmem:[#allocation7 + $0x550] sm:$0xff]
    %v317 = vld [vmem:[#allocation7 + $0x558] sm:$0xff]
    %v318 = vld [vmem:[#allocation7 + $0x560] sm:$0xff]
    %v319 = vld [vmem:[#allocation7 + $0x568] sm:$0xff]
    %v320 = vld [vmem:[#allocation7 + $0x570] sm:$0xff]
    %v321 = vld [vmem:[#allocation7 + $0x578] sm:$0xff]
    %v322 = vld [vmem:[#allocation7 + $0x580] sm:$0xff]
    %v323 = vld [vmem:[#allocation7 + $0x588] sm:$0xff]
    %v324 = vld [vmem:[#allocation7 + $0x590] sm:$0xff]
    %v325 = vld [vmem:[#allocation7 + $0x598] sm:$0xff]
    %v326 = vld [vmem:[#allocation7 + $0x5a0] sm:$0xff]
    %v327 = vld [vmem:[#allocation7 + $0x5a8] sm:$0xff]
    %v328 = vld [vmem:[#allocation7 + $0x5b0] sm:$0xff]
    %v329 = vld [vmem:[#allocation7 + $0x5b8] sm:$0xff]
    %v330 = vld [vmem:[#allocation7 + $0x5c0] sm:$0xff]
    %v331 = vld [vmem:[#allocation7 + $0x5c8] sm:$0xff]
    %v332 = vld [vmem:[#allocation7 + $0x5d0] sm:$0xff]
    %v333 = vld [vmem:[#allocation7 + $0x5d8] sm:$0xff]
    %v334 = vld [vmem:[#allocation7 + $0x5e0] sm:$0xff]
    %v335 = vld [vmem:[#allocation7 + $0x5e8] sm:$0xff]
    %v336 = vld [vmem:[#allocation7 + $0x5f0] sm:$0xff]
    %v337 = vld [vmem:[#allocation7 + $0x5f8] sm:$0xff]
    %v338 = vld [vmem:[#allocation7 + $0x600] sm:$0xff]
    %v339 = vld [vmem:[#allocation7 + $0x608] sm:$0xff]
    %v340 = vld [vmem:[#allocation7 + $0x610] sm:$0xff]
    %v341 = vld [vmem:[#allocation7 + $0x618] sm:$0xff]
    %v342 = vld [vmem:[#allocation7 + $0x620] sm:$0xff]
    %v343 = vld [vmem:[#allocation7 + $0x628] sm:$0xff]
    %v344 = vld [vmem:[#allocation7 + $0x630] sm:$0xff]
    %v345 = vld [vmem:[#allocation7 + $0x638] sm:$0xff]
    %v346 = vld [vmem:[#allocation7 + $0x640] sm:$0xff]
    %v347 = vld [vmem:[#allocation7 + $0x648] sm:$0xff]
    %v348 = vld [vmem:[#allocation7 + $0x650] sm:$0xff]
    %v349 = vld [vmem:[#allocation7 + $0x658] sm:$0xff]
    %v350 = vld [vmem:[#allocation7 + $0x660] sm:$0xff]
    %v351 = vld [vmem:[#allocation7 + $0x668] sm:$0xff]
    %v352 = vld [vmem:[#allocation7 + $0x670] sm:$0xff]
    %v353 = vld [vmem:[#allocation7 + $0x678] sm:$0xff]
    %v354 = vld [vmem:[#allocation7 + $0x680] sm:$0xff]
    %v355 = vld [vmem:[#allocation7 + $0x688] sm:$0xff]
    %v356 = vld [vmem:[#allocation7 + $0x690] sm:$0xff]
    %v357 = vld [vmem:[#allocation7 + $0x698] sm:$0xff]
    %v358 = vld [vmem:[#allocation7 + $0x6a0] sm:$0xff]
    %v359 = vld [vmem:[#allocation7 + $0x6a8] sm:$0xff]
    %v360 = vld [vmem:[#allocation7 + $0x6b0] sm:$0xff]
    %v361 = vld [vmem:[#allocation7 + $0x6b8] sm:$0xff]
    %v362 = vld [vmem:[#allocation7 + $0x6c0] sm:$0xff]
    %v363 = vld [vmem:[#allocation7 + $0x6c8] sm:$0xff]
    %v364 = vld [vmem:[#allocation7 + $0x6d0] sm:$0xff]
    %v365 = vld [vmem:[#allocation7 + $0x6d8] sm:$0xff]
    %v366 = vld [vmem:[#allocation7 + $0x6e0] sm:$0xff]
    %v367 = vld [vmem:[#allocation7 + $0x6e8] sm:$0xff]
    %v368 = vld [vmem:[#allocation7 + $0x6f0] sm:$0xff]
    %v369 = vld [vmem:[#allocation7 + $0x6f8] sm:$0xff]
    %v370 = vld [vmem:[#allocation7 + $0x700] sm:$0xff]
    %v371 = vld [vmem:[#allocation7 + $0x708] sm:$0xff]
    %v372 = vld [vmem:[#allocation7 + $0x710] sm:$0xff]
    %v373 = vld [vmem:[#allocation7 + $0x718] sm:$0xff]
    %v374 = vld [vmem:[#allocation7 + $0x720] sm:$0xff]
    %v375 = vld [vmem:[#allocation7 + $0x728] sm:$0xff]
    %v376 = vld [vmem:[#allocation7 + $0x730] sm:$0xff]
    %v377 = vld [vmem:[#allocation7 + $0x738] sm:$0xff]
    %v378 = vld [vmem:[#allocation7 + $0x740] sm:$0xff]
    %v379 = vld [vmem:[#allocation7 + $0x748] sm:$0xff]
    %v380 = vld [vmem:[#allocation7 + $0x750] sm:$0xff]
    %v381 = vld [vmem:[#allocation7 + $0x758] sm:$0xff]
    %v382 = vld [vmem:[#allocation7 + $0x760] sm:$0xff]
    %v383 = vld [vmem:[#allocation7 + $0x768] sm:$0xff]
    %v384 = vld [vmem:[#allocation7 + $0x770] sm:$0xff]
    %v385 = vld [vmem:[#allocation7 + $0x778] sm:$0xff]
    %v386 = vld [vmem:[#allocation7 + $0x780] sm:$0xff]
    %v387 = vld [vmem:[#allocation7 + $0x788] sm:$0xff]
    %v388 = vld [vmem:[#allocation7 + $0x790] sm:$0xff]
    %v389 = vld [vmem:[#allocation7 + $0x798] sm:$0xff]
    %v390 = vld [vmem:[#allocation7 + $0x7a0] sm:$0xff]
    %v391 = vld [vmem:[#allocation7 + $0x7a8] sm:$0xff]
    %v392 = vld [vmem:[#allocation7 + $0x7b0] sm:$0xff]
    %v393 = vld [vmem:[#allocation7 + $0x7b8] sm:$0xff]
    %v394 = vld [vmem:[#allocation7 + $0x7c0] sm:$0xff]
    %v395 = vld [vmem:[#allocation7 + $0x7c8] sm:$0xff]
    %v396 = vld [vmem:[#allocation7 + $0x7d0] sm:$0xff]
    %v397 = vld [vmem:[#allocation7 + $0x7d8] sm:$0xff]
    %v398 = vld [vmem:[#allocation7 + $0x7e0] sm:$0xff]
    %v399 = vld [vmem:[#allocation7 + $0x7e8] sm:$0xff]
    %v400 = vld [vmem:[#allocation7 + $0x7f0] sm:$0xff]
    %v401 = vld [vmem:[#allocation7 + $0x7f8] sm:$0xff]
    %v402 = vld [vmem:[#allocation7 + $0x800] sm:$0xff]
    %v403 = vld [vmem:[#allocation7 + $0x808] sm:$0xff]
    %v404 = vld [vmem:[#allocation7 + $0x810] sm:$0xff]
    %v405 = vld [vmem:[#allocation7 + $0x818] sm:$0xff]
    %v406 = vld [vmem:[#allocation7 + $0x820] sm:$0xff]
    %v407 = vld [vmem:[#allocation7 + $0x828] sm:$0xff]
    %v408 = vld [vmem:[#allocation7 + $0x830] sm:$0xff]
    %v409 = vld [vmem:[#allocation7 + $0x838] sm:$0xff]
    %v410 = vld [vmem:[#allocation7 + $0x840] sm:$0xff]
    %v411 = vld [vmem:[#allocation7 + $0x848] sm:$0xff]
    %v412 = vld [vmem:[#allocation7 + $0x850] sm:$0xff]
    %v413 = vld [vmem:[#allocation7 + $0x858] sm:$0xff]
    %v414 = vld [vmem:[#allocation7 + $0x860] sm:$0xff]
    %v415 = vld [vmem:[#allocation7 + $0x868] sm:$0xff]
    %v416 = vld [vmem:[#allocation7 + $0x870] sm:$0xff]
    %v417 = vld [vmem:[#allocation7 + $0x878] sm:$0xff]
    %v418 = vld [vmem:[#allocation7 + $0x880] sm:$0xff]
    %v419 = vld [vmem:[#allocation7 + $0x888] sm:$0xff]
    %v420 = vld [vmem:[#allocation7 + $0x890] sm:$0xff]
    %v421 = vld [vmem:[#allocation7 + $0x898] sm:$0xff]
    %v422 = vld [vmem:[#allocation7 + $0x8a0] sm:$0xff]
    %v423 = vld [vmem:[#allocation7 + $0x8a8] sm:$0xff]
    %v424 = vld [vmem:[#allocation7 + $0x8b0] sm:$0xff]
    %v425 = vld [vmem:[#allocation7 + $0x8b8] sm:$0xff]
    %v426 = vld [vmem:[#allocation7 + $0x8c0] sm:$0xff]
    %v427 = vld [vmem:[#allocation7 + $0x8c8] sm:$0xff]
    %v428 = vld [vmem:[#allocation7 + $0x8d0] sm:$0xff]
    %v429 = vld [vmem:[#allocation7 + $0x8d8] sm:$0xff]
    %v430 = vld [vmem:[#allocation7 + $0x8e0] sm:$0xff]
    %v431 = vld [vmem:[#allocation7 + $0x8e8] sm:$0xff]
    %v432 = vld [vmem:[#allocation7 + $0x8f0] sm:$0xff]
    %v433 = vld [vmem:[#allocation7 + $0x8f8] sm:$0xff]
    %v434 = vld [vmem:[#allocation7 + $0x900] sm:$0xff]
    %v435 = vld [vmem:[#allocation7 + $0x908] sm:$0xff]
    %v436 = vld [vmem:[#allocation7 + $0x910] sm:$0xff]
    %v437 = vld [vmem:[#allocation7 + $0x918] sm:$0xff]
    %v438 = vld [vmem:[#allocation7 + $0x920] sm:$0xff]
    %v439 = vld [vmem:[#allocation7 + $0x928] sm:$0xff]
    %v440 = vld [vmem:[#allocation7 + $0x930] sm:$0xff]
    %v441 = vld [vmem:[#allocation7 + $0x938] sm:$0xff]
    %v442 = vld [vmem:[#allocation7 + $0x940] sm:$0xff]
    %v443 = vld [vmem:[#allocation7 + $0x948] sm:$0xff]
    %v444 = vld [vmem:[#allocation7 + $0x950] sm:$0xff]
    %v445 = vld [vmem:[#allocation7 + $0x958] sm:$0xff]
    %v446 = vld [vmem:[#allocation7 + $0x960] sm:$0xff]
    %v447 = vld [vmem:[#allocation7 + $0x968] sm:$0xff]
    %v448 = vld [vmem:[#allocation7 + $0x970] sm:$0xff]
    %v449 = vld [vmem:[#allocation7 + $0x978] sm:$0xff]
    %v450 = vld [vmem:[#allocation7 + $0x980] sm:$0xff]
    %v451 = vld [vmem:[#allocation7 + $0x988] sm:$0xff]
    %v452 = vld [vmem:[#allocation7 + $0x990] sm:$0xff]
    %v453 = vld [vmem:[#allocation7 + $0x998] sm:$0xff]
    %v454 = vld [vmem:[#allocation7 + $0x9a0] sm:$0xff]
    %v455 = vld [vmem:[#allocation7 + $0x9a8] sm:$0xff]
    %v456 = vld [vmem:[#allocation7 + $0x9b0] sm:$0xff]
    %v457 = vld [vmem:[#allocation7 + $0x9b8] sm:$0xff]
    %v458 = vld [vmem:[#allocation7 + $0x9c0] sm:$0xff]
    %v459 = vld [vmem:[#allocation7 + $0x9c8] sm:$0xff]
    %v460 = vld [vmem:[#allocation7 + $0x9d0] sm:$0xff]
    %v461 = vld [vmem:[#allocation7 + $0x9d8] sm:$0xff]
    %v462 = vld [vmem:[#allocation7 + $0x9e0] sm:$0xff]
    %v463 = vld [vmem:[#allocation7 + $0x9e8] sm:$0xff]
    %v464 = vld [vmem:[#allocation7 + $0x9f0] sm:$0xff]
    %v465 = vld [vmem:[#allocation7 + $0x9f8] sm:$0xff]
    %v466 = vld [vmem:[#allocation7 + $0xa00] sm:$0xff]
    %v467 = vld [vmem:[#allocation7 + $0xa08] sm:$0xff]
    %v468 = vld [vmem:[#allocation7 + $0xa10] sm:$0xff]
    %v469 = vld [vmem:[#allocation7 + $0xa18] sm:$0xff]
    %v470 = vld [vmem:[#allocation7 + $0xa20] sm:$0xff]
    %v471 = vld [vmem:[#allocation7 + $0xa28] sm:$0xff]
    %v472 = vld [vmem:[#allocation7 + $0xa30] sm:$0xff]
    %v473 = vld [vmem:[#allocation7 + $0xa38] sm:$0xff]
    %v474 = vld [vmem:[#allocation7 + $0xa40] sm:$0xff]
    %v475 = vld [vmem:[#allocation7 + $0xa48] sm:$0xff]
    %v476 = vld [vmem:[#allocation7 + $0xa50] sm:$0xff]
    %v477 = vld [vmem:[#allocation7 + $0xa58] sm:$0xff]
    %v478 = vld [vmem:[#allocation7 + $0xa60] sm:$0xff]
    %v479 = vld [vmem:[#allocation7 + $0xa68] sm:$0xff]
    %v480 = vld [vmem:[#allocation7 + $0xa70] sm:$0xff]
    %v481 = vld [vmem:[#allocation7 + $0xa78] sm:$0xff]
    %v482 = vld [vmem:[#allocation7 + $0xa80] sm:$0xff]
    %v483 = vld [vmem:[#allocation7 + $0xa88] sm:$0xff]
    %v484 = vld [vmem:[#allocation7 + $0xa90] sm:$0xff]
    %v485 = vld [vmem:[#allocation7 + $0xa98] sm:$0xff]
    %v486 = vld [vmem:[#allocation7 + $0xaa0] sm:$0xff]
    %v487 = vld [vmem:[#allocation7 + $0xaa8] sm:$0xff]
    %v488 = vld [vmem:[#allocation7 + $0xab0] sm:$0xff]
    %v489 = vld [vmem:[#allocation7 + $0xab8] sm:$0xff]
    %v490 = vld [vmem:[#allocation7 + $0xac0] sm:$0xff]
    %v491 = vld [vmem:[#allocation7 + $0xac8] sm:$0xff]
    %v492 = vld [vmem:[#allocation7 + $0xad0] sm:$0xff]
    %v493 = vld [vmem:[#allocation7 + $0xad8] sm:$0xff]
    %v494 = vld [vmem:[#allocation7 + $0xae0] sm:$0xff]
    %v495 = vld [vmem:[#allocation7 + $0xae8] sm:$0xff]
    %v496 = vld [vmem:[#allocation7 + $0xaf0] sm:$0xff]
    %v497 = vld [vmem:[#allocation7 + $0xaf8] sm:$0xff]
    %v498 = vld [vmem:[#allocation7 + $0xb00] sm:$0xff]
    %v499 = vld [vmem:[#allocation7 + $0xb08] sm:$0xff]
    %v500 = vld [vmem:[#allocation7 + $0xb10] sm:$0xff]
    %v501 = vld [vmem:[#allocation7 + $0xb18] sm:$0xff]
    %v502 = vld [vmem:[#allocation7 + $0xb20] sm:$0xff]
    %v503 = vld [vmem:[#allocation7 + $0xb28] sm:$0xff]
    %v504 = vld [vmem:[#allocation7 + $0xb30] sm:$0xff]
    %v505 = vld [vmem:[#allocation7 + $0xb38] sm:$0xff]
    %v506 = vld [vmem:[#allocation7 + $0xb40] sm:$0xff]
    %v507 = vld [vmem:[#allocation7 + $0xb48] sm:$0xff]
    %v508 = vld [vmem:[#allocation7 + $0xb50] sm:$0xff]
    %v509 = vld [vmem:[#allocation7 + $0xb58] sm:$0xff]
    %v510 = vld [vmem:[#allocation7 + $0xb60] sm:$0xff]
    %v511 = vld [vmem:[#allocation7 + $0xb68] sm:$0xff]
    %v512 = vld [vmem:[#allocation7 + $0xb70] sm:$0xff]
    %v513 = vld [vmem:[#allocation7 + $0xb78] sm:$0xff]
    %v514 = vld [vmem:[#allocation7 + $0xb80] sm:$0xff]
    %v515 = vld [vmem:[#allocation7 + $0xb88] sm:$0xff]
    %v516 = vld [vmem:[#allocation7 + $0xb90] sm:$0xff]
    %v517 = vld [vmem:[#allocation7 + $0xb98] sm:$0xff]
    %v518 = vld [vmem:[#allocation7 + $0xba0] sm:$0xff]
    %v519 = vld [vmem:[#allocation7 + $0xba8] sm:$0xff]
    %v520 = vld [vmem:[#allocation7 + $0xbb0] sm:$0xff]
    %v521 = vld [vmem:[#allocation7 + $0xbb8] sm:$0xff]
    %v522 = vld [vmem:[#allocation7 + $0xbc0] sm:$0xff]
    %v523 = vld [vmem:[#allocation7 + $0xbc8] sm:$0xff]
    %v524 = vld [vmem:[#allocation7 + $0xbd0] sm:$0xff]
    %v525 = vld [vmem:[#allocation7 + $0xbd8] sm:$0xff]
    %v526 = vld [vmem:[#allocation7 + $0xbe0] sm:$0xff]
    %v527 = vld [vmem:[#allocation7 + $0xbe8] sm:$0xff]
    %v528 = vld [vmem:[#allocation7 + $0xbf0] sm:$0xff]
    %v529 = vld [vmem:[#allocation7 + $0xbf8] sm:$0xff]
    %v530 = vld [vmem:[#allocation7 + $0xc00] sm:$0xff]
    %v531 = vld [vmem:[#allocation7 + $0xc08] sm:$0xff]
    %v532 = vld [vmem:[#allocation7 + $0xc10] sm:$0xff]
    %v533 = vld [vmem:[#allocation7 + $0xc18] sm:$0xff]
    %v534 = vld [vmem:[#allocation7 + $0xc20] sm:$0xff]
    %v535 = vld [vmem:[#allocation7 + $0xc28] sm:$0xff]
    %v536 = vld [vmem:[#allocation7 + $0xc30] sm:$0xff]
    %v537 = vld [vmem:[#allocation7 + $0xc38] sm:$0xff]
    %v538 = vld [vmem:[#allocation7 + $0xc40] sm:$0xff]
    %v539 = vld [vmem:[#allocation7 + $0xc48] sm:$0xff]
    %v540 = vld [vmem:[#allocation7 + $0xc50] sm:$0xff]
    %v541 = vld [vmem:[#allocation7 + $0xc58] sm:$0xff]
    %v542 = vld [vmem:[#allocation7 + $0xc60] sm:$0xff]
    %v543 = vld [vmem:[#allocation7 + $0xc68] sm:$0xff]
    %v544 = vld [vmem:[#allocation7 + $0xc70] sm:$0xff]
    %v545 = vld [vmem:[#allocation7 + $0xc78] sm:$0xff]
    %v546 = vld [vmem:[#allocation7 + $0xc80] sm:$0xff]
    %v547 = vld [vmem:[#allocation7 + $0xc88] sm:$0xff]
    %v548 = vld [vmem:[#allocation7 + $0xc90] sm:$0xff]
    %v549 = vld [vmem:[#allocation7 + $0xc98] sm:$0xff]
    %v550 = vld [vmem:[#allocation7 + $0xca0] sm:$0xff]
    %v551 = vld [vmem:[#allocation7 + $0xca8] sm:$0xff]
    %v552 = vld [vmem:[#allocation7 + $0xcb0] sm:$0xff]
    %v553 = vld [vmem:[#allocation7 + $0xcb8] sm:$0xff]
    %v554 = vld [vmem:[#allocation7 + $0xcc0] sm:$0xff]
    %v555 = vld [vmem:[#allocation7 + $0xcc8] sm:$0xff]
    %v556 = vld [vmem:[#allocation7 + $0xcd0] sm:$0xff]
    %v557 = vld [vmem:[#allocation7 + $0xcd8] sm:$0xff]
    %v558 = vld [vmem:[#allocation7 + $0xce0] sm:$0xff]
    %v559 = vld [vmem:[#allocation7 + $0xce8] sm:$0xff]
    %v560 = vld [vmem:[#allocation7 + $0xcf0] sm:$0xff]
    %v561 = vld [vmem:[#allocation7 + $0xcf8] sm:$0xff]
    %v562 = vld [vmem:[#allocation7 + $0xd00] sm:$0xff]
    %v563 = vld [vmem:[#allocation7 + $0xd08] sm:$0xff]
    %v564 = vld [vmem:[#allocation7 + $0xd10] sm:$0xff]
    %v565 = vld [vmem:[#allocation7 + $0xd18] sm:$0xff]
    %v566 = vld [vmem:[#allocation7 + $0xd20] sm:$0xff]
    %v567 = vld [vmem:[#allocation7 + $0xd28] sm:$0xff]
    %v568 = vld [vmem:[#allocation7 + $0xd30] sm:$0xff]
    %v569 = vld [vmem:[#allocation7 + $0xd38] sm:$0xff]
    %v570 = vld [vmem:[#allocation7 + $0xd40] sm:$0xff]
    %v571 = vld [vmem:[#allocation7 + $0xd48] sm:$0xff]
    %v572 = vld [vmem:[#allocation7 + $0xd50] sm:$0xff]
    %v573 = vld [vmem:[#allocation7 + $0xd58] sm:$0xff]
    %v574 = vld [vmem:[#allocation7 + $0xd60] sm:$0xff]
    %v575 = vld [vmem:[#allocation7 + $0xd68] sm:$0xff]
    %v576 = vld [vmem:[#allocation7 + $0xd70] sm:$0xff]
    %v577 = vld [vmem:[#allocation7 + $0xd78] sm:$0xff]
    %v578 = vld [vmem:[#allocation7 + $0xd80] sm:$0xff]
    %v579 = vld [vmem:[#allocation7 + $0xd88] sm:$0xff]
    %v580 = vld [vmem:[#allocation7 + $0xd90] sm:$0xff]
    %v581 = vld [vmem:[#allocation7 + $0xd98] sm:$0xff]
    %v582 = vld [vmem:[#allocation7 + $0xda0] sm:$0xff]
    %v583 = vld [vmem:[#allocation7 + $0xda8] sm:$0xff]
    %v584 = vld [vmem:[#allocation7 + $0xdb0] sm:$0xff]
    %v585 = vld [vmem:[#allocation7 + $0xdb8] sm:$0xff]
    %v586 = vld [vmem:[#allocation7 + $0xdc0] sm:$0xff]
    %v587 = vld [vmem:[#allocation7 + $0xdc8] sm:$0xff]
    %v588 = vld [vmem:[#allocation7 + $0xdd0] sm:$0xff]
    %v589 = vld [vmem:[#allocation7 + $0xdd8] sm:$0xff]
    %v590 = vld [vmem:[#allocation7 + $0xde0] sm:$0xff]
    %v591 = vld [vmem:[#allocation7 + $0xde8] sm:$0xff]
    %v592 = vld [vmem:[#allocation7 + $0xdf0] sm:$0xff]
    %v593 = vld [vmem:[#allocation7 + $0xdf8] sm:$0xff]
    %v594 = vld [vmem:[#allocation7 + $0xe00] sm:$0xff]
    %v595 = vld [vmem:[#allocation7 + $0xe08] sm:$0xff]
    %v596 = vld [vmem:[#allocation7 + $0xe10] sm:$0xff]
    %v597 = vld [vmem:[#allocation7 + $0xe18] sm:$0xff]
    %v598 = vld [vmem:[#allocation7 + $0xe20] sm:$0xff]
    %v599 = vld [vmem:[#allocation7 + $0xe28] sm:$0xff]
    %v600 = vld [vmem:[#allocation7 + $0xe30] sm:$0xff]
    %v601 = vld [vmem:[#allocation7 + $0xe38] sm:$0xff]
    %v602 = vld [vmem:[#allocation7 + $0xe40] sm:$0xff]
    %v603 = vld [vmem:[#allocation7 + $0xe48] sm:$0xff]
    %v604 = vld [vmem:[#allocation7 + $0xe50] sm:$0xff]
    %v605 = vld [vmem:[#allocation7 + $0xe58] sm:$0xff]
    %v606 = vld [vmem:[#allocation7 + $0xe60] sm:$0xff]
    %v607 = vld [vmem:[#allocation7 + $0xe68] sm:$0xff]
    %v608 = vld [vmem:[#allocation7 + $0xe70] sm:$0xff]
    %v609 = vld [vmem:[#allocation7 + $0xe78] sm:$0xff]
    %v610 = vld [vmem:[#allocation7 + $0xe80] sm:$0xff]
    %v611 = vld [vmem:[#allocation7 + $0xe88] sm:$0xff]
    %v612 = vld [vmem:[#allocation7 + $0xe90] sm:$0xff]
    %v613 = vld [vmem:[#allocation7 + $0xe98] sm:$0xff]
    %v614 = vld [vmem:[#allocation7 + $0xea0] sm:$0xff]
    %v615 = vld [vmem:[#allocation7 + $0xea8] sm:$0xff]
    %v616 = vld [vmem:[#allocation7 + $0xeb0] sm:$0xff]
    %v617 = vld [vmem:[#allocation7 + $0xeb8] sm:$0xff]
    %v618 = vld [vmem:[#allocation7 + $0xec0] sm:$0xff]
    %v619 = vld [vmem:[#allocation7 + $0xec8] sm:$0xff]
    %v620 = vld [vmem:[#allocation7 + $0xed0] sm:$0xff]
    %v621 = vld [vmem:[#allocation7 + $0xed8] sm:$0xff]
    %v622 = vld [vmem:[#allocation7 + $0xee0] sm:$0xff]
    %v623 = vld [vmem:[#allocation7 + $0xee8] sm:$0xff]
    %v624 = vld [vmem:[#allocation7 + $0xef0] sm:$0xff]
    %v625 = vld [vmem:[#allocation7 + $0xef8] sm:$0xff]
    %v626 = vld [vmem:[#allocation7 + $0xf00] sm:$0xff]
    %v627 = vld [vmem:[#allocation7 + $0xf08] sm:$0xff]
    %v628 = vld [vmem:[#allocation7 + $0xf10] sm:$0xff]
    %v629 = vld [vmem:[#allocation7 + $0xf18] sm:$0xff]
    %v630 = vld [vmem:[#allocation7 + $0xf20] sm:$0xff]
    %v631 = vld [vmem:[#allocation7 + $0xf28] sm:$0xff]
    %v632 = vld [vmem:[#allocation7 + $0xf30] sm:$0xff]
    %v633 = vld [vmem:[#allocation7 + $0xf38] sm:$0xff]
    %v634 = vld [vmem:[#allocation7 + $0xf40] sm:$0xff]
    %v635 = vld [vmem:[#allocation7 + $0xf48] sm:$0xff]
    %v636 = vld [vmem:[#allocation7 + $0xf50] sm:$0xff]
    %v637 = vld [vmem:[#allocation7 + $0xf58] sm:$0xff]
    %v638 = vld [vmem:[#allocation7 + $0xf60] sm:$0xff]
    %v639 = vld [vmem:[#allocation7 + $0xf68] sm:$0xff]
    %v640 = vld [vmem:[#allocation7 + $0xf70] sm:$0xff]
    %v641 = vld [vmem:[#allocation7 + $0xf78] sm:$0xff]
    %v642 = vld [vmem:[#allocation7 + $0xf80] sm:$0xff]
    %v643 = vld [vmem:[#allocation7 + $0xf88] sm:$0xff]
    %v644 = vld [vmem:[#allocation7 + $0xf90] sm:$0xff]
    %v645 = vld [vmem:[#allocation7 + $0xf98] sm:$0xff]
    %v646 = vld [vmem:[#allocation7 + $0xfa0] sm:$0xff]
    %v647 = vld [vmem:[#allocation7 + $0xfa8] sm:$0xff]
    %v648 = vld [vmem:[#allocation7 + $0xfb0] sm:$0xff]
    %v649 = vld [vmem:[#allocation7 + $0xfb8] sm:$0xff]
    %v650 = vld [vmem:[#allocation7 + $0xfc0] sm:$0xff]
    %v651 = vld [vmem:[#allocation7 + $0xfc8] sm:$0xff]
    %v652 = vld [vmem:[#allocation7 + $0xfd0] sm:$0xff]
    %v653 = vld [vmem:[#allocation7 + $0xfd8] sm:$0xff]
    %v654 = vld [vmem:[#allocation7 + $0xfe0] sm:$0xff]
    %v655 = vld [vmem:[#allocation7 + $0xfe8] sm:$0xff]
    %v656 = vld [vmem:[#allocation7 + $0xff0] sm:$0xff]
    %v657 = vld [vmem:[#allocation7 + $0xff8] sm:$0xff]
    %v658 = vld [vmem:[#allocation5] sm:$0xff]
    %v659 = vld [vmem:[#allocation5 + $0x8] sm:$0xff]
    %v660 = vld [vmem:[#allocation5 + $0x10] sm:$0xff]
    %v661 = vld [vmem:[#allocation5 + $0x18] sm:$0xff]
    %v662 = vld [vmem:[#allocation5 + $0x20] sm:$0xff]
    %v663 = vld [vmem:[#allocation5 + $0x28] sm:$0xff]
    %v664 = vld [vmem:[#allocation5 + $0x30] sm:$0xff]
    %v665 = vld [vmem:[#allocation5 + $0x38] sm:$0xff]
    %v666 = vld [vmem:[#allocation5 + $0x40] sm:$0xff]
    %v667 = vld [vmem:[#allocation5 + $0x48] sm:$0xff]
    %v668 = vld [vmem:[#allocation5 + $0x50] sm:$0xff]
    %v669 = vld [vmem:[#allocation5 + $0x58] sm:$0xff]
    %v670 = vld [vmem:[#allocation5 + $0x60] sm:$0xff]
    %v671 = vld [vmem:[#allocation5 + $0x68] sm:$0xff]
    %v672 = vld [vmem:[#allocation5 + $0x70] sm:$0xff]
    %v673 = vld [vmem:[#allocation5 + $0x78] sm:$0xff]
    %v674 = vpack.c.bf16 %v658, %v658
    %v675 = vpack.c.bf16 %v659, %v659
    %v676 = vpack.c.bf16 %v660, %v660
    %v677 = vpack.c.bf16 %v661, %v661
    %v678 = vpack.c.bf16 %v662, %v662
    %v679 = vpack.c.bf16 %v663, %v663
    %v680 = vpack.c.bf16 %v664, %v664
    %v681 = vpack.c.bf16 %v665, %v665
    %v682 = vpack.c.bf16 %v666, %v666
    %v683 = vpack.c.bf16 %v667, %v667
    %v684 = vpack.c.bf16 %v668, %v668
    %v685 = vpack.c.bf16 %v669, %v669
    %v686 = vpack.c.bf16 %v670, %v670
    %v687 = vpack.c.bf16 %v671, %v671
    %v688 = vpack.c.bf16 %v672, %v672
    %v689 = vpack.c.bf16 %v673, %v673
    %v690 = vld [vmem:[#allocation8] sm:$0xff]
    %v691 = vld [vmem:[#allocation8 + $0x8] sm:$0xff]
    %v692 = vld [vmem:[#allocation8 + $0x10] sm:$0xff]
    %v693 = vld [vmem:[#allocation8 + $0x18] sm:$0xff]
    %v694 = vld [vmem:[#allocation8 + $0x20] sm:$0xff]
    %v695 = vld [vmem:[#allocation8 + $0x28] sm:$0xff]
    %v696 = vld [vmem:[#allocation8 + $0x30] sm:$0xff]
    %v697 = vld [vmem:[#allocation8 + $0x38] sm:$0xff]
    %v698 = vld [vmem:[#allocation8 + $0x40] sm:$0xff]
    %v699 = vld [vmem:[#allocation8 + $0x48] sm:$0xff]
    %v700 = vld [vmem:[#allocation8 + $0x50] sm:$0xff]
    %v701 = vld [vmem:[#allocation8 + $0x58] sm:$0xff]
    %v702 = vld [vmem:[#allocation8 + $0x60] sm:$0xff]
    %v703 = vld [vmem:[#allocation8 + $0x68] sm:$0xff]
    %v704 = vld [vmem:[#allocation8 + $0x70] sm:$0xff]
    %v705 = vld [vmem:[#allocation8 + $0x78] sm:$0xff]
    %v706 = vld [vmem:[#allocation8 + $0x80] sm:$0xff]
    %v707 = vld [vmem:[#allocation8 + $0x88] sm:$0xff]
    %v708 = vld [vmem:[#allocation8 + $0x90] sm:$0xff]
    %v709 = vld [vmem:[#allocation8 + $0x98] sm:$0xff]
    %v710 = vld [vmem:[#allocation8 + $0xa0] sm:$0xff]
    %v711 = vld [vmem:[#allocation8 + $0xa8] sm:$0xff]
    %v712 = vld [vmem:[#allocation8 + $0xb0] sm:$0xff]
    %v713 = vld [vmem:[#allocation8 + $0xb8] sm:$0xff]
    %v714 = vld [vmem:[#allocation8 + $0xc0] sm:$0xff]
    %v715 = vld [vmem:[#allocation8 + $0xc8] sm:$0xff]
    %v716 = vld [vmem:[#allocation8 + $0xd0] sm:$0xff]
    %v717 = vld [vmem:[#allocation8 + $0xd8] sm:$0xff]
    %v718 = vld [vmem:[#allocation8 + $0xe0] sm:$0xff]
    %v719 = vld [vmem:[#allocation8 + $0xe8] sm:$0xff]
    %v720 = vld [vmem:[#allocation8 + $0xf0] sm:$0xff]
    %v721 = vld [vmem:[#allocation8 + $0xf8] sm:$0xff]
    %v722 = vld [vmem:[#allocation8 + $0x100] sm:$0xff]
    %v723 = vld [vmem:[#allocation8 + $0x108] sm:$0xff]
    %v724 = vld [vmem:[#allocation8 + $0x110] sm:$0xff]
    %v725 = vld [vmem:[#allocation8 + $0x118] sm:$0xff]
    %v726 = vld [vmem:[#allocation8 + $0x120] sm:$0xff]
    %v727 = vld [vmem:[#allocation8 + $0x128] sm:$0xff]
    %v728 = vld [vmem:[#allocation8 + $0x130] sm:$0xff]
    %v729 = vld [vmem:[#allocation8 + $0x138] sm:$0xff]
    %v730 = vld [vmem:[#allocation8 + $0x140] sm:$0xff]
    %v731 = vld [vmem:[#allocation8 + $0x148] sm:$0xff]
    %v732 = vld [vmem:[#allocation8 + $0x150] sm:$0xff]
    %v733 = vld [vmem:[#allocation8 + $0x158] sm:$0xff]
    %v734 = vld [vmem:[#allocation8 + $0x160] sm:$0xff]
    %v735 = vld [vmem:[#allocation8 + $0x168] sm:$0xff]
    %v736 = vld [vmem:[#allocation8 + $0x170] sm:$0xff]
    %v737 = vld [vmem:[#allocation8 + $0x178] sm:$0xff]
    %v738 = vld [vmem:[#allocation8 + $0x180] sm:$0xff]
    %v739 = vld [vmem:[#allocation8 + $0x188] sm:$0xff]
    %v740 = vld [vmem:[#allocation8 + $0x190] sm:$0xff]
    %v741 = vld [vmem:[#allocation8 + $0x198] sm:$0xff]
    %v742 = vld [vmem:[#allocation8 + $0x1a0] sm:$0xff]
    %v743 = vld [vmem:[#allocation8 + $0x1a8] sm:$0xff]
    %v744 = vld [vmem:[#allocation8 + $0x1b0] sm:$0xff]
    %v745 = vld [vmem:[#allocation8 + $0x1b8] sm:$0xff]
    %v746 = vld [vmem:[#allocation8 + $0x1c0] sm:$0xff]
    %v747 = vld [vmem:[#allocation8 + $0x1c8] sm:$0xff]
    %v748 = vld [vmem:[#allocation8 + $0x1d0] sm:$0xff]
    %v749 = vld [vmem:[#allocation8 + $0x1d8] sm:$0xff]
    %v750 = vld [vmem:[#allocation8 + $0x1e0] sm:$0xff]
    %v751 = vld [vmem:[#allocation8 + $0x1e8] sm:$0xff]
    %v752 = vld [vmem:[#allocation8 + $0x1f0] sm:$0xff]
    %v753 = vld [vmem:[#allocation8 + $0x1f8] sm:$0xff]
    %v754 = vld [vmem:[#allocation8 + $0x200] sm:$0xff]
    %v755 = vld [vmem:[#allocation8 + $0x208] sm:$0xff]
    %v756 = vld [vmem:[#allocation8 + $0x210] sm:$0xff]
    %v757 = vld [vmem:[#allocation8 + $0x218] sm:$0xff]
    %v758 = vld [vmem:[#allocation8 + $0x220] sm:$0xff]
    %v759 = vld [vmem:[#allocation8 + $0x228] sm:$0xff]
    %v760 = vld [vmem:[#allocation8 + $0x230] sm:$0xff]
    %v761 = vld [vmem:[#allocation8 + $0x238] sm:$0xff]
    %v762 = vld [vmem:[#allocation8 + $0x240] sm:$0xff]
    %v763 = vld [vmem:[#allocation8 + $0x248] sm:$0xff]
    %v764 = vld [vmem:[#allocation8 + $0x250] sm:$0xff]
    %v765 = vld [vmem:[#allocation8 + $0x258] sm:$0xff]
    %v766 = vld [vmem:[#allocation8 + $0x260] sm:$0xff]
    %v767 = vld [vmem:[#allocation8 + $0x268] sm:$0xff]
    %v768 = vld [vmem:[#allocation8 + $0x270] sm:$0xff]
    %v769 = vld [vmem:[#allocation8 + $0x278] sm:$0xff]
    %v770 = vld [vmem:[#allocation8 + $0x280] sm:$0xff]
    %v771 = vld [vmem:[#allocation8 + $0x288] sm:$0xff]
    %v772 = vld [vmem:[#allocation8 + $0x290] sm:$0xff]
    %v773 = vld [vmem:[#allocation8 + $0x298] sm:$0xff]
    %v774 = vld [vmem:[#allocation8 + $0x2a0] sm:$0xff]
    %v775 = vld [vmem:[#allocation8 + $0x2a8] sm:$0xff]
    %v776 = vld [vmem:[#allocation8 + $0x2b0] sm:$0xff]
    %v777 = vld [vmem:[#allocation8 + $0x2b8] sm:$0xff]
    %v778 = vld [vmem:[#allocation8 + $0x2c0] sm:$0xff]
    %v779 = vld [vmem:[#allocation8 + $0x2c8] sm:$0xff]
    %v780 = vld [vmem:[#allocation8 + $0x2d0] sm:$0xff]
    %v781 = vld [vmem:[#allocation8 + $0x2d8] sm:$0xff]
    %v782 = vld [vmem:[#allocation8 + $0x2e0] sm:$0xff]
    %v783 = vld [vmem:[#allocation8 + $0x2e8] sm:$0xff]
    %v784 = vld [vmem:[#allocation8 + $0x2f0] sm:$0xff]
    %v785 = vld [vmem:[#allocation8 + $0x2f8] sm:$0xff]
    %v786 = vld [vmem:[#allocation8 + $0x300] sm:$0xff]
    %v787 = vld [vmem:[#allocation8 + $0x308] sm:$0xff]
    %v788 = vld [vmem:[#allocation8 + $0x310] sm:$0xff]
    %v789 = vld [vmem:[#allocation8 + $0x318] sm:$0xff]
    %v790 = vld [vmem:[#allocation8 + $0x320] sm:$0xff]
    %v791 = vld [vmem:[#allocation8 + $0x328] sm:$0xff]
    %v792 = vld [vmem:[#allocation8 + $0x330] sm:$0xff]
    %v793 = vld [vmem:[#allocation8 + $0x338] sm:$0xff]
    %v794 = vld [vmem:[#allocation8 + $0x340] sm:$0xff]
    %v795 = vld [vmem:[#allocation8 + $0x348] sm:$0xff]
    %v796 = vld [vmem:[#allocation8 + $0x350] sm:$0xff]
    %v797 = vld [vmem:[#allocation8 + $0x358] sm:$0xff]
    %v798 = vld [vmem:[#allocation8 + $0x360] sm:$0xff]
    %v799 = vld [vmem:[#allocation8 + $0x368] sm:$0xff]
    %v800 = vld [vmem:[#allocation8 + $0x370] sm:$0xff]
    %v801 = vld [vmem:[#allocation8 + $0x378] sm:$0xff]
    %v802 = vld [vmem:[#allocation8 + $0x380] sm:$0xff]
    %v803 = vld [vmem:[#allocation8 + $0x388] sm:$0xff]
    %v804 = vld [vmem:[#allocation8 + $0x390] sm:$0xff]
    %v805 = vld [vmem:[#allocation8 + $0x398] sm:$0xff]
    %v806 = vld [vmem:[#allocation8 + $0x3a0] sm:$0xff]
    %v807 = vld [vmem:[#allocation8 + $0x3a8] sm:$0xff]
    %v808 = vld [vmem:[#allocation8 + $0x3b0] sm:$0xff]
    %v809 = vld [vmem:[#allocation8 + $0x3b8] sm:$0xff]
    %v810 = vld [vmem:[#allocation8 + $0x3c0] sm:$0xff]
    %v811 = vld [vmem:[#allocation8 + $0x3c8] sm:$0xff]
    %v812 = vld [vmem:[#allocation8 + $0x3d0] sm:$0xff]
    %v813 = vld [vmem:[#allocation8 + $0x3d8] sm:$0xff]
    %v814 = vld [vmem:[#allocation8 + $0x3e0] sm:$0xff]
    %v815 = vld [vmem:[#allocation8 + $0x3e8] sm:$0xff]
    %v816 = vld [vmem:[#allocation8 + $0x3f0] sm:$0xff]
    %v817 = vld [vmem:[#allocation8 + $0x3f8] sm:$0xff]
    %v818 = vld [vmem:[#allocation8 + $0x400] sm:$0xff]
    %v819 = vld [vmem:[#allocation8 + $0x408] sm:$0xff]
    %v820 = vld [vmem:[#allocation8 + $0x410] sm:$0xff]
    %v821 = vld [vmem:[#allocation8 + $0x418] sm:$0xff]
    %v822 = vld [vmem:[#allocation8 + $0x420] sm:$0xff]
    %v823 = vld [vmem:[#allocation8 + $0x428] sm:$0xff]
    %v824 = vld [vmem:[#allocation8 + $0x430] sm:$0xff]
    %v825 = vld [vmem:[#allocation8 + $0x438] sm:$0xff]
    %v826 = vld [vmem:[#allocation8 + $0x440] sm:$0xff]
    %v827 = vld [vmem:[#allocation8 + $0x448] sm:$0xff]
    %v828 = vld [vmem:[#allocation8 + $0x450] sm:$0xff]
    %v829 = vld [vmem:[#allocation8 + $0x458] sm:$0xff]
    %v830 = vld [vmem:[#allocation8 + $0x460] sm:$0xff]
    %v831 = vld [vmem:[#allocation8 + $0x468] sm:$0xff]
    %v832 = vld [vmem:[#allocation8 + $0x470] sm:$0xff]
    %v833 = vld [vmem:[#allocation8 + $0x478] sm:$0xff]
    %v834 = vld [vmem:[#allocation8 + $0x480] sm:$0xff]
    %v835 = vld [vmem:[#allocation8 + $0x488] sm:$0xff]
    %v836 = vld [vmem:[#allocation8 + $0x490] sm:$0xff]
    %v837 = vld [vmem:[#allocation8 + $0x498] sm:$0xff]
    %v838 = vld [vmem:[#allocation8 + $0x4a0] sm:$0xff]
    %v839 = vld [vmem:[#allocation8 + $0x4a8] sm:$0xff]
    %v840 = vld [vmem:[#allocation8 + $0x4b0] sm:$0xff]
    %v841 = vld [vmem:[#allocation8 + $0x4b8] sm:$0xff]
    %v842 = vld [vmem:[#allocation8 + $0x4c0] sm:$0xff]
    %v843 = vld [vmem:[#allocation8 + $0x4c8] sm:$0xff]
    %v844 = vld [vmem:[#allocation8 + $0x4d0] sm:$0xff]
    %v845 = vld [vmem:[#allocation8 + $0x4d8] sm:$0xff]
    %v846 = vld [vmem:[#allocation8 + $0x4e0] sm:$0xff]
    %v847 = vld [vmem:[#allocation8 + $0x4e8] sm:$0xff]
    %v848 = vld [vmem:[#allocation8 + $0x4f0] sm:$0xff]
    %v849 = vld [vmem:[#allocation8 + $0x4f8] sm:$0xff]
    %v850 = vld [vmem:[#allocation8 + $0x500] sm:$0xff]
    %v851 = vld [vmem:[#allocation8 + $0x508] sm:$0xff]
    %v852 = vld [vmem:[#allocation8 + $0x510] sm:$0xff]
    %v853 = vld [vmem:[#allocation8 + $0x518] sm:$0xff]
    %v854 = vld [vmem:[#allocation8 + $0x520] sm:$0xff]
    %v855 = vld [vmem:[#allocation8 + $0x528] sm:$0xff]
    %v856 = vld [vmem:[#allocation8 + $0x530] sm:$0xff]
    %v857 = vld [vmem:[#allocation8 + $0x538] sm:$0xff]
    %v858 = vld [vmem:[#allocation8 + $0x540] sm:$0xff]
    %v859 = vld [vmem:[#allocation8 + $0x548] sm:$0xff]
    %v860 = vld [vmem:[#allocation8 + $0x550] sm:$0xff]
    %v861 = vld [vmem:[#allocation8 + $0x558] sm:$0xff]
    %v862 = vld [vmem:[#allocation8 + $0x560] sm:$0xff]
    %v863 = vld [vmem:[#allocation8 + $0x568] sm:$0xff]
    %v864 = vld [vmem:[#allocation8 + $0x570] sm:$0xff]
    %v865 = vld [vmem:[#allocation8 + $0x578] sm:$0xff]
    %v866 = vld [vmem:[#allocation8 + $0x580] sm:$0xff]
    %v867 = vld [vmem:[#allocation8 + $0x588] sm:$0xff]
    %v868 = vld [vmem:[#allocation8 + $0x590] sm:$0xff]
    %v869 = vld [vmem:[#allocation8 + $0x598] sm:$0xff]
    %v870 = vld [vmem:[#allocation8 + $0x5a0] sm:$0xff]
    %v871 = vld [vmem:[#allocation8 + $0x5a8] sm:$0xff]
    %v872 = vld [vmem:[#allocation8 + $0x5b0] sm:$0xff]
    %v873 = vld [vmem:[#allocation8 + $0x5b8] sm:$0xff]
    %v874 = vld [vmem:[#allocation8 + $0x5c0] sm:$0xff]
    %v875 = vld [vmem:[#allocation8 + $0x5c8] sm:$0xff]
    %v876 = vld [vmem:[#allocation8 + $0x5d0] sm:$0xff]
    %v877 = vld [vmem:[#allocation8 + $0x5d8] sm:$0xff]
    %v878 = vld [vmem:[#allocation8 + $0x5e0] sm:$0xff]
    %v879 = vld [vmem:[#allocation8 + $0x5e8] sm:$0xff]
    %v880 = vld [vmem:[#allocation8 + $0x5f0] sm:$0xff]
    %v881 = vld [vmem:[#allocation8 + $0x5f8] sm:$0xff]
    %v882 = vld [vmem:[#allocation8 + $0x600] sm:$0xff]
    %v883 = vld [vmem:[#allocation8 + $0x608] sm:$0xff]
    %v884 = vld [vmem:[#allocation8 + $0x610] sm:$0xff]
    %v885 = vld [vmem:[#allocation8 + $0x618] sm:$0xff]
    %v886 = vld [vmem:[#allocation8 + $0x620] sm:$0xff]
    %v887 = vld [vmem:[#allocation8 + $0x628] sm:$0xff]
    %v888 = vld [vmem:[#allocation8 + $0x630] sm:$0xff]
    %v889 = vld [vmem:[#allocation8 + $0x638] sm:$0xff]
    %v890 = vld [vmem:[#allocation8 + $0x640] sm:$0xff]
    %v891 = vld [vmem:[#allocation8 + $0x648] sm:$0xff]
    %v892 = vld [vmem:[#allocation8 + $0x650] sm:$0xff]
    %v893 = vld [vmem:[#allocation8 + $0x658] sm:$0xff]
    %v894 = vld [vmem:[#allocation8 + $0x660] sm:$0xff]
    %v895 = vld [vmem:[#allocation8 + $0x668] sm:$0xff]
    %v896 = vld [vmem:[#allocation8 + $0x670] sm:$0xff]
    %v897 = vld [vmem:[#allocation8 + $0x678] sm:$0xff]
    %v898 = vld [vmem:[#allocation8 + $0x680] sm:$0xff]
    %v899 = vld [vmem:[#allocation8 + $0x688] sm:$0xff]
    %v900 = vld [vmem:[#allocation8 + $0x690] sm:$0xff]
    %v901 = vld [vmem:[#allocation8 + $0x698] sm:$0xff]
    %v902 = vld [vmem:[#allocation8 + $0x6a0] sm:$0xff]
    %v903 = vld [vmem:[#allocation8 + $0x6a8] sm:$0xff]
    %v904 = vld [vmem:[#allocation8 + $0x6b0] sm:$0xff]
    %v905 = vld [vmem:[#allocation8 + $0x6b8] sm:$0xff]
    %v906 = vld [vmem:[#allocation8 + $0x6c0] sm:$0xff]
    %v907 = vld [vmem:[#allocation8 + $0x6c8] sm:$0xff]
    %v908 = vld [vmem:[#allocation8 + $0x6d0] sm:$0xff]
    %v909 = vld [vmem:[#allocation8 + $0x6d8] sm:$0xff]
    %v910 = vld [vmem:[#allocation8 + $0x6e0] sm:$0xff]
    %v911 = vld [vmem:[#allocation8 + $0x6e8] sm:$0xff]
    %v912 = vld [vmem:[#allocation8 + $0x6f0] sm:$0xff]
    %v913 = vld [vmem:[#allocation8 + $0x6f8] sm:$0xff]
    %v914 = vld [vmem:[#allocation8 + $0x700] sm:$0xff]
    %v915 = vld [vmem:[#allocation8 + $0x708] sm:$0xff]
    %v916 = vld [vmem:[#allocation8 + $0x710] sm:$0xff]
    %v917 = vld [vmem:[#allocation8 + $0x718] sm:$0xff]
    %v918 = vld [vmem:[#allocation8 + $0x720] sm:$0xff]
    %v919 = vld [vmem:[#allocation8 + $0x728] sm:$0xff]
    %v920 = vld [vmem:[#allocation8 + $0x730] sm:$0xff]
    %v921 = vld [vmem:[#allocation8 + $0x738] sm:$0xff]
    %v922 = vld [vmem:[#allocation8 + $0x740] sm:$0xff]
    %v923 = vld [vmem:[#allocation8 + $0x748] sm:$0xff]
    %v924 = vld [vmem:[#allocation8 + $0x750] sm:$0xff]
    %v925 = vld [vmem:[#allocation8 + $0x758] sm:$0xff]
    %v926 = vld [vmem:[#allocation8 + $0x760] sm:$0xff]
    %v927 = vld [vmem:[#allocation8 + $0x768] sm:$0xff]
    %v928 = vld [vmem:[#allocation8 + $0x770] sm:$0xff]
    %v929 = vld [vmem:[#allocation8 + $0x778] sm:$0xff]
    %v930 = vld [vmem:[#allocation8 + $0x780] sm:$0xff]
    %v931 = vld [vmem:[#allocation8 + $0x788] sm:$0xff]
    %v932 = vld [vmem:[#allocation8 + $0x790] sm:$0xff]
    %v933 = vld [vmem:[#allocation8 + $0x798] sm:$0xff]
    %v934 = vld [vmem:[#allocation8 + $0x7a0] sm:$0xff]
    %v935 = vld [vmem:[#allocation8 + $0x7a8] sm:$0xff]
    %v936 = vld [vmem:[#allocation8 + $0x7b0] sm:$0xff]
    %v937 = vld [vmem:[#allocation8 + $0x7b8] sm:$0xff]
    %v938 = vld [vmem:[#allocation8 + $0x7c0] sm:$0xff]
    %v939 = vld [vmem:[#allocation8 + $0x7c8] sm:$0xff]
    %v940 = vld [vmem:[#allocation8 + $0x7d0] sm:$0xff]
    %v941 = vld [vmem:[#allocation8 + $0x7d8] sm:$0xff]
    %v942 = vld [vmem:[#allocation8 + $0x7e0] sm:$0xff]
    %v943 = vld [vmem:[#allocation8 + $0x7e8] sm:$0xff]
    %v944 = vld [vmem:[#allocation8 + $0x7f0] sm:$0xff]
    %v945 = vld [vmem:[#allocation8 + $0x7f8] sm:$0xff]
    %v946 = vld [vmem:[#allocation8 + $0x800] sm:$0xff]
    %v947 = vld [vmem:[#allocation8 + $0x808] sm:$0xff]
    %v948 = vld [vmem:[#allocation8 + $0x810] sm:$0xff]
    %v949 = vld [vmem:[#allocation8 + $0x818] sm:$0xff]
    %v950 = vld [vmem:[#allocation8 + $0x820] sm:$0xff]
    %v951 = vld [vmem:[#allocation8 + $0x828] sm:$0xff]
    %v952 = vld [vmem:[#allocation8 + $0x830] sm:$0xff]
    %v953 = vld [vmem:[#allocation8 + $0x838] sm:$0xff]
    %v954 = vld [vmem:[#allocation8 + $0x840] sm:$0xff]
    %v955 = vld [vmem:[#allocation8 + $0x848] sm:$0xff]
    %v956 = vld [vmem:[#allocation8 + $0x850] sm:$0xff]
    %v957 = vld [vmem:[#allocation8 + $0x858] sm:$0xff]
    %v958 = vld [vmem:[#allocation8 + $0x860] sm:$0xff]
    %v959 = vld [vmem:[#allocation8 + $0x868] sm:$0xff]
    %v960 = vld [vmem:[#allocation8 + $0x870] sm:$0xff]
    %v961 = vld [vmem:[#allocation8 + $0x878] sm:$0xff]
    %v962 = vld [vmem:[#allocation8 + $0x880] sm:$0xff]
    %v963 = vld [vmem:[#allocation8 + $0x888] sm:$0xff]
    %v964 = vld [vmem:[#allocation8 + $0x890] sm:$0xff]
    %v965 = vld [vmem:[#allocation8 + $0x898] sm:$0xff]
    %v966 = vld [vmem:[#allocation8 + $0x8a0] sm:$0xff]
    %v967 = vld [vmem:[#allocation8 + $0x8a8] sm:$0xff]
    %v968 = vld [vmem:[#allocation8 + $0x8b0] sm:$0xff]
    %v969 = vld [vmem:[#allocation8 + $0x8b8] sm:$0xff]
    %v970 = vld [vmem:[#allocation8 + $0x8c0] sm:$0xff]
    %v971 = vld [vmem:[#allocation8 + $0x8c8] sm:$0xff]
    %v972 = vld [vmem:[#allocation8 + $0x8d0] sm:$0xff]
    %v973 = vld [vmem:[#allocation8 + $0x8d8] sm:$0xff]
    %v974 = vld [vmem:[#allocation8 + $0x8e0] sm:$0xff]
    %v975 = vld [vmem:[#allocation8 + $0x8e8] sm:$0xff]
    %v976 = vld [vmem:[#allocation8 + $0x8f0] sm:$0xff]
    %v977 = vld [vmem:[#allocation8 + $0x8f8] sm:$0xff]
    %v978 = vld [vmem:[#allocation8 + $0x900] sm:$0xff]
    %v979 = vld [vmem:[#allocation8 + $0x908] sm:$0xff]
    %v980 = vld [vmem:[#allocation8 + $0x910] sm:$0xff]
    %v981 = vld [vmem:[#allocation8 + $0x918] sm:$0xff]
    %v982 = vld [vmem:[#allocation8 + $0x920] sm:$0xff]
    %v983 = vld [vmem:[#allocation8 + $0x928] sm:$0xff]
    %v984 = vld [vmem:[#allocation8 + $0x930] sm:$0xff]
    %v985 = vld [vmem:[#allocation8 + $0x938] sm:$0xff]
    %v986 = vld [vmem:[#allocation8 + $0x940] sm:$0xff]
    %v987 = vld [vmem:[#allocation8 + $0x948] sm:$0xff]
    %v988 = vld [vmem:[#allocation8 + $0x950] sm:$0xff]
    %v989 = vld [vmem:[#allocation8 + $0x958] sm:$0xff]
    %v990 = vld [vmem:[#allocation8 + $0x960] sm:$0xff]
    %v991 = vld [vmem:[#allocation8 + $0x968] sm:$0xff]
    %v992 = vld [vmem:[#allocation8 + $0x970] sm:$0xff]
    %v993 = vld [vmem:[#allocation8 + $0x978] sm:$0xff]
    %v994 = vld [vmem:[#allocation8 + $0x980] sm:$0xff]
    %v995 = vld [vmem:[#allocation8 + $0x988] sm:$0xff]
    %v996 = vld [vmem:[#allocation8 + $0x990] sm:$0xff]
    %v997 = vld [vmem:[#allocation8 + $0x998] sm:$0xff]
    %v998 = vld [vmem:[#allocation8 + $0x9a0] sm:$0xff]
    %v999 = vld [vmem:[#allocation8 + $0x9a8] sm:$0xff]
    %v1000 = vld [vmem:[#allocation8 + $0x9b0] sm:$0xff]
    %v1001 = vld [vmem:[#allocation8 + $0x9b8] sm:$0xff]
    %v1002 = vld [vmem:[#allocation8 + $0x9c0] sm:$0xff]
    %v1003 = vld [vmem:[#allocation8 + $0x9c8] sm:$0xff]
    %v1004 = vld [vmem:[#allocation8 + $0x9d0] sm:$0xff]
    %v1005 = vld [vmem:[#allocation8 + $0x9d8] sm:$0xff]
    %v1006 = vld [vmem:[#allocation8 + $0x9e0] sm:$0xff]
    %v1007 = vld [vmem:[#allocation8 + $0x9e8] sm:$0xff]
    %v1008 = vld [vmem:[#allocation8 + $0x9f0] sm:$0xff]
    %v1009 = vld [vmem:[#allocation8 + $0x9f8] sm:$0xff]
    %v1010 = vld [vmem:[#allocation8 + $0xa00] sm:$0xff]
    %v1011 = vld [vmem:[#allocation8 + $0xa08] sm:$0xff]
    %v1012 = vld [vmem:[#allocation8 + $0xa10] sm:$0xff]
    %v1013 = vld [vmem:[#allocation8 + $0xa18] sm:$0xff]
    %v1014 = vld [vmem:[#allocation8 + $0xa20] sm:$0xff]
    %v1015 = vld [vmem:[#allocation8 + $0xa28] sm:$0xff]
    %v1016 = vld [vmem:[#allocation8 + $0xa30] sm:$0xff]
    %v1017 = vld [vmem:[#allocation8 + $0xa38] sm:$0xff]
    %v1018 = vld [vmem:[#allocation8 + $0xa40] sm:$0xff]
    %v1019 = vld [vmem:[#allocation8 + $0xa48] sm:$0xff]
    %v1020 = vld [vmem:[#allocation8 + $0xa50] sm:$0xff]
    %v1021 = vld [vmem:[#allocation8 + $0xa58] sm:$0xff]
    %v1022 = vld [vmem:[#allocation8 + $0xa60] sm:$0xff]
    %v1023 = vld [vmem:[#allocation8 + $0xa68] sm:$0xff]
    %v1024 = vld [vmem:[#allocation8 + $0xa70] sm:$0xff]
    %v1025 = vld [vmem:[#allocation8 + $0xa78] sm:$0xff]
    %v1026 = vld [vmem:[#allocation8 + $0xa80] sm:$0xff]
    %v1027 = vld [vmem:[#allocation8 + $0xa88] sm:$0xff]
    %v1028 = vld [vmem:[#allocation8 + $0xa90] sm:$0xff]
    %v1029 = vld [vmem:[#allocation8 + $0xa98] sm:$0xff]
    %v1030 = vld [vmem:[#allocation8 + $0xaa0] sm:$0xff]
    %v1031 = vld [vmem:[#allocation8 + $0xaa8] sm:$0xff]
    %v1032 = vld [vmem:[#allocation8 + $0xab0] sm:$0xff]
    %v1033 = vld [vmem:[#allocation8 + $0xab8] sm:$0xff]
    %v1034 = vld [vmem:[#allocation8 + $0xac0] sm:$0xff]
    %v1035 = vld [vmem:[#allocation8 + $0xac8] sm:$0xff]
    %v1036 = vld [vmem:[#allocation8 + $0xad0] sm:$0xff]
    %v1037 = vld [vmem:[#allocation8 + $0xad8] sm:$0xff]
    %v1038 = vld [vmem:[#allocation8 + $0xae0] sm:$0xff]
    %v1039 = vld [vmem:[#allocation8 + $0xae8] sm:$0xff]
    %v1040 = vld [vmem:[#allocation8 + $0xaf0] sm:$0xff]
    %v1041 = vld [vmem:[#allocation8 + $0xaf8] sm:$0xff]
    %v1042 = vld [vmem:[#allocation8 + $0xb00] sm:$0xff]
    %v1043 = vld [vmem:[#allocation8 + $0xb08] sm:$0xff]
    %v1044 = vld [vmem:[#allocation8 + $0xb10] sm:$0xff]
    %v1045 = vld [vmem:[#allocation8 + $0xb18] sm:$0xff]
    %v1046 = vld [vmem:[#allocation8 + $0xb20] sm:$0xff]
    %v1047 = vld [vmem:[#allocation8 + $0xb28] sm:$0xff]
    %v1048 = vld [vmem:[#allocation8 + $0xb30] sm:$0xff]
    %v1049 = vld [vmem:[#allocation8 + $0xb38] sm:$0xff]
    %v1050 = vld [vmem:[#allocation8 + $0xb40] sm:$0xff]
    %v1051 = vld [vmem:[#allocation8 + $0xb48] sm:$0xff]
    %v1052 = vld [vmem:[#allocation8 + $0xb50] sm:$0xff]
    %v1053 = vld [vmem:[#allocation8 + $0xb58] sm:$0xff]
    %v1054 = vld [vmem:[#allocation8 + $0xb60] sm:$0xff]
    %v1055 = vld [vmem:[#allocation8 + $0xb68] sm:$0xff]
    %v1056 = vld [vmem:[#allocation8 + $0xb70] sm:$0xff]
    %v1057 = vld [vmem:[#allocation8 + $0xb78] sm:$0xff]
    %v1058 = vld [vmem:[#allocation8 + $0xb80] sm:$0xff]
    %v1059 = vld [vmem:[#allocation8 + $0xb88] sm:$0xff]
    %v1060 = vld [vmem:[#allocation8 + $0xb90] sm:$0xff]
    %v1061 = vld [vmem:[#allocation8 + $0xb98] sm:$0xff]
    %v1062 = vld [vmem:[#allocation8 + $0xba0] sm:$0xff]
    %v1063 = vld [vmem:[#allocation8 + $0xba8] sm:$0xff]
    %v1064 = vld [vmem:[#allocation8 + $0xbb0] sm:$0xff]
    %v1065 = vld [vmem:[#allocation8 + $0xbb8] sm:$0xff]
    %v1066 = vld [vmem:[#allocation8 + $0xbc0] sm:$0xff]
    %v1067 = vld [vmem:[#allocation8 + $0xbc8] sm:$0xff]
    %v1068 = vld [vmem:[#allocation8 + $0xbd0] sm:$0xff]
    %v1069 = vld [vmem:[#allocation8 + $0xbd8] sm:$0xff]
    %v1070 = vld [vmem:[#allocation8 + $0xbe0] sm:$0xff]
    %v1071 = vld [vmem:[#allocation8 + $0xbe8] sm:$0xff]
    %v1072 = vld [vmem:[#allocation8 + $0xbf0] sm:$0xff]
    %v1073 = vld [vmem:[#allocation8 + $0xbf8] sm:$0xff]
    %v1074 = vld [vmem:[#allocation8 + $0xc00] sm:$0xff]
    %v1075 = vld [vmem:[#allocation8 + $0xc08] sm:$0xff]
    %v1076 = vld [vmem:[#allocation8 + $0xc10] sm:$0xff]
    %v1077 = vld [vmem:[#allocation8 + $0xc18] sm:$0xff]
    %v1078 = vld [vmem:[#allocation8 + $0xc20] sm:$0xff]
    %v1079 = vld [vmem:[#allocation8 + $0xc28] sm:$0xff]
    %v1080 = vld [vmem:[#allocation8 + $0xc30] sm:$0xff]
    %v1081 = vld [vmem:[#allocation8 + $0xc38] sm:$0xff]
    %v1082 = vld [vmem:[#allocation8 + $0xc40] sm:$0xff]
    %v1083 = vld [vmem:[#allocation8 + $0xc48] sm:$0xff]
    %v1084 = vld [vmem:[#allocation8 + $0xc50] sm:$0xff]
    %v1085 = vld [vmem:[#allocation8 + $0xc58] sm:$0xff]
    %v1086 = vld [vmem:[#allocation8 + $0xc60] sm:$0xff]
    %v1087 = vld [vmem:[#allocation8 + $0xc68] sm:$0xff]
    %v1088 = vld [vmem:[#allocation8 + $0xc70] sm:$0xff]
    %v1089 = vld [vmem:[#allocation8 + $0xc78] sm:$0xff]
    %v1090 = vld [vmem:[#allocation8 + $0xc80] sm:$0xff]
    %v1091 = vld [vmem:[#allocation8 + $0xc88] sm:$0xff]
    %v1092 = vld [vmem:[#allocation8 + $0xc90] sm:$0xff]
    %v1093 = vld [vmem:[#allocation8 + $0xc98] sm:$0xff]
    %v1094 = vld [vmem:[#allocation8 + $0xca0] sm:$0xff]
    %v1095 = vld [vmem:[#allocation8 + $0xca8] sm:$0xff]
    %v1096 = vld [vmem:[#allocation8 + $0xcb0] sm:$0xff]
    %v1097 = vld [vmem:[#allocation8 + $0xcb8] sm:$0xff]
    %v1098 = vld [vmem:[#allocation8 + $0xcc0] sm:$0xff]
    %v1099 = vld [vmem:[#allocation8 + $0xcc8] sm:$0xff]
    %v1100 = vld [vmem:[#allocation8 + $0xcd0] sm:$0xff]
    %v1101 = vld [vmem:[#allocation8 + $0xcd8] sm:$0xff]
    %v1102 = vld [vmem:[#allocation8 + $0xce0] sm:$0xff]
    %v1103 = vld [vmem:[#allocation8 + $0xce8] sm:$0xff]
    %v1104 = vld [vmem:[#allocation8 + $0xcf0] sm:$0xff]
    %v1105 = vld [vmem:[#allocation8 + $0xcf8] sm:$0xff]
    %v1106 = vld [vmem:[#allocation8 + $0xd00] sm:$0xff]
    %v1107 = vld [vmem:[#allocation8 + $0xd08] sm:$0xff]
    %v1108 = vld [vmem:[#allocation8 + $0xd10] sm:$0xff]
    %v1109 = vld [vmem:[#allocation8 + $0xd18] sm:$0xff]
    %v1110 = vld [vmem:[#allocation8 + $0xd20] sm:$0xff]
    %v1111 = vld [vmem:[#allocation8 + $0xd28] sm:$0xff]
    %v1112 = vld [vmem:[#allocation8 + $0xd30] sm:$0xff]
    %v1113 = vld [vmem:[#allocation8 + $0xd38] sm:$0xff]
    %v1114 = vld [vmem:[#allocation8 + $0xd40] sm:$0xff]
    %v1115 = vld [vmem:[#allocation8 + $0xd48] sm:$0xff]
    %v1116 = vld [vmem:[#allocation8 + $0xd50] sm:$0xff]
    %v1117 = vld [vmem:[#allocation8 + $0xd58] sm:$0xff]
    %v1118 = vld [vmem:[#allocation8 + $0xd60] sm:$0xff]
    %v1119 = vld [vmem:[#allocation8 + $0xd68] sm:$0xff]
    %v1120 = vld [vmem:[#allocation8 + $0xd70] sm:$0xff]
    %v1121 = vld [vmem:[#allocation8 + $0xd78] sm:$0xff]
    %v1122 = vld [vmem:[#allocation8 + $0xd80] sm:$0xff]
    %v1123 = vld [vmem:[#allocation8 + $0xd88] sm:$0xff]
    %v1124 = vld [vmem:[#allocation8 + $0xd90] sm:$0xff]
    %v1125 = vld [vmem:[#allocation8 + $0xd98] sm:$0xff]
    %v1126 = vld [vmem:[#allocation8 + $0xda0] sm:$0xff]
    %v1127 = vld [vmem:[#allocation8 + $0xda8] sm:$0xff]
    %v1128 = vld [vmem:[#allocation8 + $0xdb0] sm:$0xff]
    %v1129 = vld [vmem:[#allocation8 + $0xdb8] sm:$0xff]
    %v1130 = vld [vmem:[#allocation8 + $0xdc0] sm:$0xff]
    %v1131 = vld [vmem:[#allocation8 + $0xdc8] sm:$0xff]
    %v1132 = vld [vmem:[#allocation8 + $0xdd0] sm:$0xff]
    %v1133 = vld [vmem:[#allocation8 + $0xdd8] sm:$0xff]
    %v1134 = vld [vmem:[#allocation8 + $0xde0] sm:$0xff]
    %v1135 = vld [vmem:[#allocation8 + $0xde8] sm:$0xff]
    %v1136 = vld [vmem:[#allocation8 + $0xdf0] sm:$0xff]
    %v1137 = vld [vmem:[#allocation8 + $0xdf8] sm:$0xff]
    %v1138 = vld [vmem:[#allocation8 + $0xe00] sm:$0xff]
    %v1139 = vld [vmem:[#allocation8 + $0xe08] sm:$0xff]
    %v1140 = vld [vmem:[#allocation8 + $0xe10] sm:$0xff]
    %v1141 = vld [vmem:[#allocation8 + $0xe18] sm:$0xff]
    %v1142 = vld [vmem:[#allocation8 + $0xe20] sm:$0xff]
    %v1143 = vld [vmem:[#allocation8 + $0xe28] sm:$0xff]
    %v1144 = vld [vmem:[#allocation8 + $0xe30] sm:$0xff]
    %v1145 = vld [vmem:[#allocation8 + $0xe38] sm:$0xff]
    %v1146 = vld [vmem:[#allocation8 + $0xe40] sm:$0xff]
    %v1147 = vld [vmem:[#allocation8 + $0xe48] sm:$0xff]
    %v1148 = vld [vmem:[#allocation8 + $0xe50] sm:$0xff]
    %v1149 = vld [vmem:[#allocation8 + $0xe58] sm:$0xff]
    %v1150 = vld [vmem:[#allocation8 + $0xe60] sm:$0xff]
    %v1151 = vld [vmem:[#allocation8 + $0xe68] sm:$0xff]
    %v1152 = vld [vmem:[#allocation8 + $0xe70] sm:$0xff]
    %v1153 = vld [vmem:[#allocation8 + $0xe78] sm:$0xff]
    %v1154 = vld [vmem:[#allocation8 + $0xe80] sm:$0xff]
    %v1155 = vld [vmem:[#allocation8 + $0xe88] sm:$0xff]
    %v1156 = vld [vmem:[#allocation8 + $0xe90] sm:$0xff]
    %v1157 = vld [vmem:[#allocation8 + $0xe98] sm:$0xff]
    %v1158 = vld [vmem:[#allocation8 + $0xea0] sm:$0xff]
    %v1159 = vld [vmem:[#allocation8 + $0xea8] sm:$0xff]
    %v1160 = vld [vmem:[#allocation8 + $0xeb0] sm:$0xff]
    %v1161 = vld [vmem:[#allocation8 + $0xeb8] sm:$0xff]
    %v1162 = vld [vmem:[#allocation8 + $0xec0] sm:$0xff]
    %v1163 = vld [vmem:[#allocation8 + $0xec8] sm:$0xff]
    %v1164 = vld [vmem:[#allocation8 + $0xed0] sm:$0xff]
    %v1165 = vld [vmem:[#allocation8 + $0xed8] sm:$0xff]
    %v1166 = vld [vmem:[#allocation8 + $0xee0] sm:$0xff]
    %v1167 = vld [vmem:[#allocation8 + $0xee8] sm:$0xff]
    %v1168 = vld [vmem:[#allocation8 + $0xef0] sm:$0xff]
    %v1169 = vld [vmem:[#allocation8 + $0xef8] sm:$0xff]
    %v1170 = vld [vmem:[#allocation8 + $0xf00] sm:$0xff]
    %v1171 = vld [vmem:[#allocation8 + $0xf08] sm:$0xff]
    %v1172 = vld [vmem:[#allocation8 + $0xf10] sm:$0xff]
    %v1173 = vld [vmem:[#allocation8 + $0xf18] sm:$0xff]
    %v1174 = vld [vmem:[#allocation8 + $0xf20] sm:$0xff]
    %v1175 = vld [vmem:[#allocation8 + $0xf28] sm:$0xff]
    %v1176 = vld [vmem:[#allocation8 + $0xf30] sm:$0xff]
    %v1177 = vld [vmem:[#allocation8 + $0xf38] sm:$0xff]
    %v1178 = vld [vmem:[#allocation8 + $0xf40] sm:$0xff]
    %v1179 = vld [vmem:[#allocation8 + $0xf48] sm:$0xff]
    %v1180 = vld [vmem:[#allocation8 + $0xf50] sm:$0xff]
    %v1181 = vld [vmem:[#allocation8 + $0xf58] sm:$0xff]
    %v1182 = vld [vmem:[#allocation8 + $0xf60] sm:$0xff]
    %v1183 = vld [vmem:[#allocation8 + $0xf68] sm:$0xff]
    %v1184 = vld [vmem:[#allocation8 + $0xf70] sm:$0xff]
    %v1185 = vld [vmem:[#allocation8 + $0xf78] sm:$0xff]
    %v1186 = vld [vmem:[#allocation8 + $0xf80] sm:$0xff]
    %v1187 = vld [vmem:[#allocation8 + $0xf88] sm:$0xff]
    %v1188 = vld [vmem:[#allocation8 + $0xf90] sm:$0xff]
    %v1189 = vld [vmem:[#allocation8 + $0xf98] sm:$0xff]
    %v1190 = vld [vmem:[#allocation8 + $0xfa0] sm:$0xff]
    %v1191 = vld [vmem:[#allocation8 + $0xfa8] sm:$0xff]
    %v1192 = vld [vmem:[#allocation8 + $0xfb0] sm:$0xff]
    %v1193 = vld [vmem:[#allocation8 + $0xfb8] sm:$0xff]
    %v1194 = vld [vmem:[#allocation8 + $0xfc0] sm:$0xff]
    %v1195 = vld [vmem:[#allocation8 + $0xfc8] sm:$0xff]
    %v1196 = vld [vmem:[#allocation8 + $0xfd0] sm:$0xff]
    %v1197 = vld [vmem:[#allocation8 + $0xfd8] sm:$0xff]
    %v1198 = vld [vmem:[#allocation8 + $0xfe0] sm:$0xff]
    %v1199 = vld [vmem:[#allocation8 + $0xfe8] sm:$0xff]
    %v1200 = vld [vmem:[#allocation8 + $0xff0] sm:$0xff]
    %v1201 = vld [vmem:[#allocation8 + $0xff8] sm:$0xff]
    %v1714 = vunpack.c.l.b16 %v690
    %v1715 = vunpack.c.h.b16 %v690
    %v1716 = vunpack.c.l.b16 %v691
    %v1717 = vunpack.c.h.b16 %v691
    %v1718 = vunpack.c.l.b16 %v692
    %v1719 = vunpack.c.h.b16 %v692
    %v1720 = vunpack.c.l.b16 %v693
    %v1721 = vunpack.c.h.b16 %v693
    %v1722 = vunpack.c.l.b16 %v694
    %v1723 = vunpack.c.h.b16 %v694
    %v1724 = vunpack.c.l.b16 %v695
    %v1725 = vunpack.c.h.b16 %v695
    %v1726 = vunpack.c.l.b16 %v696
    %v1727 = vunpack.c.h.b16 %v696
    %v1728 = vunpack.c.l.b16 %v697
    %v1729 = vunpack.c.h.b16 %v697
    %v1730 = vunpack.c.l.b16 %v698
    %v1731 = vunpack.c.h.b16 %v698
    %v1732 = vunpack.c.l.b16 %v699
    %v1733 = vunpack.c.h.b16 %v699
    %v1734 = vunpack.c.l.b16 %v700
    %v1735 = vunpack.c.h.b16 %v700
    %v1736 = vunpack.c.l.b16 %v701
    %v1737 = vunpack.c.h.b16 %v701
    %v1738 = vunpack.c.l.b16 %v702
    %v1739 = vunpack.c.h.b16 %v702
    %v1740 = vunpack.c.l.b16 %v703
    %v1741 = vunpack.c.h.b16 %v703
    %v1742 = vunpack.c.l.b16 %v704
    %v1743 = vunpack.c.h.b16 %v704
    %v1744 = vunpack.c.l.b16 %v705
    %v1745 = vunpack.c.h.b16 %v705
    %v1746 = vunpack.c.l.b16 %v706
    %v1747 = vunpack.c.h.b16 %v706
    %v1748 = vunpack.c.l.b16 %v707
    %v1749 = vunpack.c.h.b16 %v707
    %v1750 = vunpack.c.l.b16 %v708
    %v1751 = vunpack.c.h.b16 %v708
    %v1752 = vunpack.c.l.b16 %v709
    %v1753 = vunpack.c.h.b16 %v709
    %v1754 = vunpack.c.l.b16 %v710
    %v1755 = vunpack.c.h.b16 %v710
    %v1756 = vunpack.c.l.b16 %v711
    %v1757 = vunpack.c.h.b16 %v711
    %v1758 = vunpack.c.l.b16 %v712
    %v1759 = vunpack.c.h.b16 %v712
    %v1760 = vunpack.c.l.b16 %v713
    %v1761 = vunpack.c.h.b16 %v713
    %v1762 = vunpack.c.l.b16 %v714
    %v1763 = vunpack.c.h.b16 %v714
    %v1764 = vunpack.c.l.b16 %v715
    %v1765 = vunpack.c.h.b16 %v715
    %v1766 = vunpack.c.l.b16 %v716
    %v1767 = vunpack.c.h.b16 %v716
    %v1768 = vunpack.c.l.b16 %v717
    %v1769 = vunpack.c.h.b16 %v717
    %v1770 = vunpack.c.l.b16 %v718
    %v1771 = vunpack.c.h.b16 %v718
    %v1772 = vunpack.c.l.b16 %v719
    %v1773 = vunpack.c.h.b16 %v719
    %v1774 = vunpack.c.l.b16 %v720
    %v1775 = vunpack.c.h.b16 %v720
    %v1776 = vunpack.c.l.b16 %v721
    %v1777 = vunpack.c.h.b16 %v721
    %v1778 = vunpack.c.l.b16 %v722
    %v1779 = vunpack.c.h.b16 %v722
    %v1780 = vunpack.c.l.b16 %v723
    %v1781 = vunpack.c.h.b16 %v723
    %v1782 = vunpack.c.l.b16 %v724
    %v1783 = vunpack.c.h.b16 %v724
    %v1784 = vunpack.c.l.b16 %v725
    %v1785 = vunpack.c.h.b16 %v725
    %v1786 = vunpack.c.l.b16 %v726
    %v1787 = vunpack.c.h.b16 %v726
    %v1788 = vunpack.c.l.b16 %v727
    %v1789 = vunpack.c.h.b16 %v727
    %v1790 = vunpack.c.l.b16 %v728
    %v1791 = vunpack.c.h.b16 %v728
    %v1792 = vunpack.c.l.b16 %v729
    %v1793 = vunpack.c.h.b16 %v729
    %v1794 = vunpack.c.l.b16 %v730
    %v1795 = vunpack.c.h.b16 %v730
    %v1796 = vunpack.c.l.b16 %v731
    %v1797 = vunpack.c.h.b16 %v731
    %v1798 = vunpack.c.l.b16 %v732
    %v1799 = vunpack.c.h.b16 %v732
    %v1800 = vunpack.c.l.b16 %v733
    %v1801 = vunpack.c.h.b16 %v733
    %v1802 = vunpack.c.l.b16 %v734
    %v1803 = vunpack.c.h.b16 %v734
    %v1804 = vunpack.c.l.b16 %v735
    %v1805 = vunpack.c.h.b16 %v735
    %v1806 = vunpack.c.l.b16 %v736
    %v1807 = vunpack.c.h.b16 %v736
    %v1808 = vunpack.c.l.b16 %v737
    %v1809 = vunpack.c.h.b16 %v737
    %v1810 = vunpack.c.l.b16 %v738
    %v1811 = vunpack.c.h.b16 %v738
    %v1812 = vunpack.c.l.b16 %v739
    %v1813 = vunpack.c.h.b16 %v739
    %v1814 = vunpack.c.l.b16 %v740
    %v1815 = vunpack.c.h.b16 %v740
    %v1816 = vunpack.c.l.b16 %v741
    %v1817 = vunpack.c.h.b16 %v741
    %v1818 = vunpack.c.l.b16 %v742
    %v1819 = vunpack.c.h.b16 %v742
    %v1820 = vunpack.c.l.b16 %v743
    %v1821 = vunpack.c.h.b16 %v743
    %v1822 = vunpack.c.l.b16 %v744
    %v1823 = vunpack.c.h.b16 %v744
    %v1824 = vunpack.c.l.b16 %v745
    %v1825 = vunpack.c.h.b16 %v745
    %v1826 = vunpack.c.l.b16 %v746
    %v1827 = vunpack.c.h.b16 %v746
    %v1828 = vunpack.c.l.b16 %v747
    %v1829 = vunpack.c.h.b16 %v747
    %v1830 = vunpack.c.l.b16 %v748
    %v1831 = vunpack.c.h.b16 %v748
    %v1832 = vunpack.c.l.b16 %v749
    %v1833 = vunpack.c.h.b16 %v749
    %v1834 = vunpack.c.l.b16 %v750
    %v1835 = vunpack.c.h.b16 %v750
    %v1836 = vunpack.c.l.b16 %v751
    %v1837 = vunpack.c.h.b16 %v751
    %v1838 = vunpack.c.l.b16 %v752
    %v1839 = vunpack.c.h.b16 %v752
    %v1840 = vunpack.c.l.b16 %v753
    %v1841 = vunpack.c.h.b16 %v753
    %v1842 = vunpack.c.l.b16 %v754
    %v1843 = vunpack.c.h.b16 %v754
    %v1844 = vunpack.c.l.b16 %v755
    %v1845 = vunpack.c.h.b16 %v755
    %v1846 = vunpack.c.l.b16 %v756
    %v1847 = vunpack.c.h.b16 %v756
    %v1848 = vunpack.c.l.b16 %v757
    %v1849 = vunpack.c.h.b16 %v757
    %v1850 = vunpack.c.l.b16 %v758
    %v1851 = vunpack.c.h.b16 %v758
    %v1852 = vunpack.c.l.b16 %v759
    %v1853 = vunpack.c.h.b16 %v759
    %v1854 = vunpack.c.l.b16 %v760
    %v1855 = vunpack.c.h.b16 %v760
    %v1856 = vunpack.c.l.b16 %v761
    %v1857 = vunpack.c.h.b16 %v761
    %v1858 = vunpack.c.l.b16 %v762
    %v1859 = vunpack.c.h.b16 %v762
    %v1860 = vunpack.c.l.b16 %v763
    %v1861 = vunpack.c.h.b16 %v763
    %v1862 = vunpack.c.l.b16 %v764
    %v1863 = vunpack.c.h.b16 %v764
    %v1864 = vunpack.c.l.b16 %v765
    %v1865 = vunpack.c.h.b16 %v765
    %v1866 = vunpack.c.l.b16 %v766
    %v1867 = vunpack.c.h.b16 %v766
    %v1868 = vunpack.c.l.b16 %v767
    %v1869 = vunpack.c.h.b16 %v767
    %v1870 = vunpack.c.l.b16 %v768
    %v1871 = vunpack.c.h.b16 %v768
    %v1872 = vunpack.c.l.b16 %v769
    %v1873 = vunpack.c.h.b16 %v769
    %v1874 = vunpack.c.l.b16 %v770
    %v1875 = vunpack.c.h.b16 %v770
    %v1876 = vunpack.c.l.b16 %v771
    %v1877 = vunpack.c.h.b16 %v771
    %v1878 = vunpack.c.l.b16 %v772
    %v1879 = vunpack.c.h.b16 %v772
    %v1880 = vunpack.c.l.b16 %v773
    %v1881 = vunpack.c.h.b16 %v773
    %v1882 = vunpack.c.l.b16 %v774
    %v1883 = vunpack.c.h.b16 %v774
    %v1884 = vunpack.c.l.b16 %v775
    %v1885 = vunpack.c.h.b16 %v775
    %v1886 = vunpack.c.l.b16 %v776
    %v1887 = vunpack.c.h.b16 %v776
    %v1888 = vunpack.c.l.b16 %v777
    %v1889 = vunpack.c.h.b16 %v777
    %v1890 = vunpack.c.l.b16 %v778
    %v1891 = vunpack.c.h.b16 %v778
    %v1892 = vunpack.c.l.b16 %v779
    %v1893 = vunpack.c.h.b16 %v779
    %v1894 = vunpack.c.l.b16 %v780
    %v1895 = vunpack.c.h.b16 %v780
    %v1896 = vunpack.c.l.b16 %v781
    %v1897 = vunpack.c.h.b16 %v781
    %v1898 = vunpack.c.l.b16 %v782
    %v1899 = vunpack.c.h.b16 %v782
    %v1900 = vunpack.c.l.b16 %v783
    %v1901 = vunpack.c.h.b16 %v783
    %v1902 = vunpack.c.l.b16 %v784
    %v1903 = vunpack.c.h.b16 %v784
    %v1904 = vunpack.c.l.b16 %v785
    %v1905 = vunpack.c.h.b16 %v785
    %v1906 = vunpack.c.l.b16 %v786
    %v1907 = vunpack.c.h.b16 %v786
    %v1908 = vunpack.c.l.b16 %v787
    %v1909 = vunpack.c.h.b16 %v787
    %v1910 = vunpack.c.l.b16 %v788
    %v1911 = vunpack.c.h.b16 %v788
    %v1912 = vunpack.c.l.b16 %v789
    %v1913 = vunpack.c.h.b16 %v789
    %v1914 = vunpack.c.l.b16 %v790
    %v1915 = vunpack.c.h.b16 %v790
    %v1916 = vunpack.c.l.b16 %v791
    %v1917 = vunpack.c.h.b16 %v791
    %v1918 = vunpack.c.l.b16 %v792
    %v1919 = vunpack.c.h.b16 %v792
    %v1920 = vunpack.c.l.b16 %v793
    %v1921 = vunpack.c.h.b16 %v793
    %v1922 = vunpack.c.l.b16 %v794
    %v1923 = vunpack.c.h.b16 %v794
    %v1924 = vunpack.c.l.b16 %v795
    %v1925 = vunpack.c.h.b16 %v795
    %v1926 = vunpack.c.l.b16 %v796
    %v1927 = vunpack.c.h.b16 %v796
    %v1928 = vunpack.c.l.b16 %v797
    %v1929 = vunpack.c.h.b16 %v797
    %v1930 = vunpack.c.l.b16 %v798
    %v1931 = vunpack.c.h.b16 %v798
    %v1932 = vunpack.c.l.b16 %v799
    %v1933 = vunpack.c.h.b16 %v799
    %v1934 = vunpack.c.l.b16 %v800
    %v1935 = vunpack.c.h.b16 %v800
    %v1936 = vunpack.c.l.b16 %v801
    %v1937 = vunpack.c.h.b16 %v801
    %v1938 = vunpack.c.l.b16 %v802
    %v1939 = vunpack.c.h.b16 %v802
    %v1940 = vunpack.c.l.b16 %v803
    %v1941 = vunpack.c.h.b16 %v803
    %v1942 = vunpack.c.l.b16 %v804
    %v1943 = vunpack.c.h.b16 %v804
    %v1944 = vunpack.c.l.b16 %v805
    %v1945 = vunpack.c.h.b16 %v805
    %v1946 = vunpack.c.l.b16 %v806
    %v1947 = vunpack.c.h.b16 %v806
    %v1948 = vunpack.c.l.b16 %v807
    %v1949 = vunpack.c.h.b16 %v807
    %v1950 = vunpack.c.l.b16 %v808
    %v1951 = vunpack.c.h.b16 %v808
    %v1952 = vunpack.c.l.b16 %v809
    %v1953 = vunpack.c.h.b16 %v809
    %v1954 = vunpack.c.l.b16 %v810
    %v1955 = vunpack.c.h.b16 %v810
    %v1956 = vunpack.c.l.b16 %v811
    %v1957 = vunpack.c.h.b16 %v811
    %v1958 = vunpack.c.l.b16 %v812
    %v1959 = vunpack.c.h.b16 %v812
    %v1960 = vunpack.c.l.b16 %v813
    %v1961 = vunpack.c.h.b16 %v813
    %v1962 = vunpack.c.l.b16 %v814
    %v1963 = vunpack.c.h.b16 %v814
    %v1964 = vunpack.c.l.b16 %v815
    %v1965 = vunpack.c.h.b16 %v815
    %v1966 = vunpack.c.l.b16 %v816
    %v1967 = vunpack.c.h.b16 %v816
    %v1968 = vunpack.c.l.b16 %v817
    %v1969 = vunpack.c.h.b16 %v817
    %v1970 = vunpack.c.l.b16 %v818
    %v1971 = vunpack.c.h.b16 %v818
    %v1972 = vunpack.c.l.b16 %v819
    %v1973 = vunpack.c.h.b16 %v819
    %v1974 = vunpack.c.l.b16 %v820
    %v1975 = vunpack.c.h.b16 %v820
    %v1976 = vunpack.c.l.b16 %v821
    %v1977 = vunpack.c.h.b16 %v821
    %v1978 = vunpack.c.l.b16 %v822
    %v1979 = vunpack.c.h.b16 %v822
    %v1980 = vunpack.c.l.b16 %v823
    %v1981 = vunpack.c.h.b16 %v823
    %v1982 = vunpack.c.l.b16 %v824
    %v1983 = vunpack.c.h.b16 %v824
    %v1984 = vunpack.c.l.b16 %v825
    %v1985 = vunpack.c.h.b16 %v825
    %v1986 = vunpack.c.l.b16 %v826
    %v1987 = vunpack.c.h.b16 %v826
    %v1988 = vunpack.c.l.b16 %v827
    %v1989 = vunpack.c.h.b16 %v827
    %v1990 = vunpack.c.l.b16 %v828
    %v1991 = vunpack.c.h.b16 %v828
    %v1992 = vunpack.c.l.b16 %v829
    %v1993 = vunpack.c.h.b16 %v829
    %v1994 = vunpack.c.l.b16 %v830
    %v1995 = vunpack.c.h.b16 %v830
    %v1996 = vunpack.c.l.b16 %v831
    %v1997 = vunpack.c.h.b16 %v831
    %v1998 = vunpack.c.l.b16 %v832
    %v1999 = vunpack.c.h.b16 %v832
    %v2000 = vunpack.c.l.b16 %v833
    %v2001 = vunpack.c.h.b16 %v833
    %v2002 = vunpack.c.l.b16 %v834
    %v2003 = vunpack.c.h.b16 %v834
    %v2004 = vunpack.c.l.b16 %v835
    %v2005 = vunpack.c.h.b16 %v835
    %v2006 = vunpack.c.l.b16 %v836
    %v2007 = vunpack.c.h.b16 %v836
    %v2008 = vunpack.c.l.b16 %v837
    %v2009 = vunpack.c.h.b16 %v837
    %v2010 = vunpack.c.l.b16 %v838
    %v2011 = vunpack.c.h.b16 %v838
    %v2012 = vunpack.c.l.b16 %v839
    %v2013 = vunpack.c.h.b16 %v839
    %v2014 = vunpack.c.l.b16 %v840
    %v2015 = vunpack.c.h.b16 %v840
    %v2016 = vunpack.c.l.b16 %v841
    %v2017 = vunpack.c.h.b16 %v841
    %v2018 = vunpack.c.l.b16 %v842
    %v2019 = vunpack.c.h.b16 %v842
    %v2020 = vunpack.c.l.b16 %v843
    %v2021 = vunpack.c.h.b16 %v843
    %v2022 = vunpack.c.l.b16 %v844
    %v2023 = vunpack.c.h.b16 %v844
    %v2024 = vunpack.c.l.b16 %v845
    %v2025 = vunpack.c.h.b16 %v845
    %v2026 = vunpack.c.l.b16 %v846
    %v2027 = vunpack.c.h.b16 %v846
    %v2028 = vunpack.c.l.b16 %v847
    %v2029 = vunpack.c.h.b16 %v847
    %v2030 = vunpack.c.l.b16 %v848
    %v2031 = vunpack.c.h.b16 %v848
    %v2032 = vunpack.c.l.b16 %v849
    %v2033 = vunpack.c.h.b16 %v849
    %v2034 = vunpack.c.l.b16 %v850
    %v2035 = vunpack.c.h.b16 %v850
    %v2036 = vunpack.c.l.b16 %v851
    %v2037 = vunpack.c.h.b16 %v851
    %v2038 = vunpack.c.l.b16 %v852
    %v2039 = vunpack.c.h.b16 %v852
    %v2040 = vunpack.c.l.b16 %v853
    %v2041 = vunpack.c.h.b16 %v853
    %v2042 = vunpack.c.l.b16 %v854
    %v2043 = vunpack.c.h.b16 %v854
    %v2044 = vunpack.c.l.b16 %v855
    %v2045 = vunpack.c.h.b16 %v855
    %v2046 = vunpack.c.l.b16 %v856
    %v2047 = vunpack.c.h.b16 %v856
    %v2048 = vunpack.c.l.b16 %v857
    %v2049 = vunpack.c.h.b16 %v857
    %v2050 = vunpack.c.l.b16 %v858
    %v2051 = vunpack.c.h.b16 %v858
    %v2052 = vunpack.c.l.b16 %v859
    %v2053 = vunpack.c.h.b16 %v859
    %v2054 = vunpack.c.l.b16 %v860
    %v2055 = vunpack.c.h.b16 %v860
    %v2056 = vunpack.c.l.b16 %v861
    %v2057 = vunpack.c.h.b16 %v861
    %v2058 = vunpack.c.l.b16 %v862
    %v2059 = vunpack.c.h.b16 %v862
    %v2060 = vunpack.c.l.b16 %v863
    %v2061 = vunpack.c.h.b16 %v863
    %v2062 = vunpack.c.l.b16 %v864
    %v2063 = vunpack.c.h.b16 %v864
    %v2064 = vunpack.c.l.b16 %v865
    %v2065 = vunpack.c.h.b16 %v865
    %v2066 = vunpack.c.l.b16 %v866
    %v2067 = vunpack.c.h.b16 %v866
    %v2068 = vunpack.c.l.b16 %v867
    %v2069 = vunpack.c.h.b16 %v867
    %v2070 = vunpack.c.l.b16 %v868
    %v2071 = vunpack.c.h.b16 %v868
    %v2072 = vunpack.c.l.b16 %v869
    %v2073 = vunpack.c.h.b16 %v869
    %v2074 = vunpack.c.l.b16 %v870
    %v2075 = vunpack.c.h.b16 %v870
    %v2076 = vunpack.c.l.b16 %v871
    %v2077 = vunpack.c.h.b16 %v871
    %v2078 = vunpack.c.l.b16 %v872
    %v2079 = vunpack.c.h.b16 %v872
    %v2080 = vunpack.c.l.b16 %v873
    %v2081 = vunpack.c.h.b16 %v873
    %v2082 = vunpack.c.l.b16 %v874
    %v2083 = vunpack.c.h.b16 %v874
    %v2084 = vunpack.c.l.b16 %v875
    %v2085 = vunpack.c.h.b16 %v875
    %v2086 = vunpack.c.l.b16 %v876
    %v2087 = vunpack.c.h.b16 %v876
    %v2088 = vunpack.c.l.b16 %v877
    %v2089 = vunpack.c.h.b16 %v877
    %v2090 = vunpack.c.l.b16 %v878
    %v2091 = vunpack.c.h.b16 %v878
    %v2092 = vunpack.c.l.b16 %v879
    %v2093 = vunpack.c.h.b16 %v879
    %v2094 = vunpack.c.l.b16 %v880
    %v2095 = vunpack.c.h.b16 %v880
    %v2096 = vunpack.c.l.b16 %v881
    %v2097 = vunpack.c.h.b16 %v881
    %v2098 = vunpack.c.l.b16 %v882
    %v2099 = vunpack.c.h.b16 %v882
    %v2100 = vunpack.c.l.b16 %v883
    %v2101 = vunpack.c.h.b16 %v883
    %v2102 = vunpack.c.l.b16 %v884
    %v2103 = vunpack.c.h.b16 %v884
    %v2104 = vunpack.c.l.b16 %v885
    %v2105 = vunpack.c.h.b16 %v885
    %v2106 = vunpack.c.l.b16 %v886
    %v2107 = vunpack.c.h.b16 %v886
    %v2108 = vunpack.c.l.b16 %v887
    %v2109 = vunpack.c.h.b16 %v887
    %v2110 = vunpack.c.l.b16 %v888
    %v2111 = vunpack.c.h.b16 %v888
    %v2112 = vunpack.c.l.b16 %v889
    %v2113 = vunpack.c.h.b16 %v889
    %v2114 = vunpack.c.l.b16 %v890
    %v2115 = vunpack.c.h.b16 %v890
    %v2116 = vunpack.c.l.b16 %v891
    %v2117 = vunpack.c.h.b16 %v891
    %v2118 = vunpack.c.l.b16 %v892
    %v2119 = vunpack.c.h.b16 %v892
    %v2120 = vunpack.c.l.b16 %v893
    %v2121 = vunpack.c.h.b16 %v893
    %v2122 = vunpack.c.l.b16 %v894
    %v2123 = vunpack.c.h.b16 %v894
    %v2124 = vunpack.c.l.b16 %v895
    %v2125 = vunpack.c.h.b16 %v895
    %v2126 = vunpack.c.l.b16 %v896
    %v2127 = vunpack.c.h.b16 %v896
    %v2128 = vunpack.c.l.b16 %v897
    %v2129 = vunpack.c.h.b16 %v897
    %v2130 = vunpack.c.l.b16 %v898
    %v2131 = vunpack.c.h.b16 %v898
    %v2132 = vunpack.c.l.b16 %v899
    %v2133 = vunpack.c.h.b16 %v899
    %v2134 = vunpack.c.l.b16 %v900
    %v2135 = vunpack.c.h.b16 %v900
    %v2136 = vunpack.c.l.b16 %v901
    %v2137 = vunpack.c.h.b16 %v901
    %v2138 = vunpack.c.l.b16 %v902
    %v2139 = vunpack.c.h.b16 %v902
    %v2140 = vunpack.c.l.b16 %v903
    %v2141 = vunpack.c.h.b16 %v903
    %v2142 = vunpack.c.l.b16 %v904
    %v2143 = vunpack.c.h.b16 %v904
    %v2144 = vunpack.c.l.b16 %v905
    %v2145 = vunpack.c.h.b16 %v905
    %v2146 = vunpack.c.l.b16 %v906
    %v2147 = vunpack.c.h.b16 %v906
    %v2148 = vunpack.c.l.b16 %v907
    %v2149 = vunpack.c.h.b16 %v907
    %v2150 = vunpack.c.l.b16 %v908
    %v2151 = vunpack.c.h.b16 %v908
    %v2152 = vunpack.c.l.b16 %v909
    %v2153 = vunpack.c.h.b16 %v909
    %v2154 = vunpack.c.l.b16 %v910
    %v2155 = vunpack.c.h.b16 %v910
    %v2156 = vunpack.c.l.b16 %v911
    %v2157 = vunpack.c.h.b16 %v911
    %v2158 = vunpack.c.l.b16 %v912
    %v2159 = vunpack.c.h.b16 %v912
    %v2160 = vunpack.c.l.b16 %v913
    %v2161 = vunpack.c.h.b16 %v913
    %v2162 = vunpack.c.l.b16 %v914
    %v2163 = vunpack.c.h.b16 %v914
    %v2164 = vunpack.c.l.b16 %v915
    %v2165 = vunpack.c.h.b16 %v915
    %v2166 = vunpack.c.l.b16 %v916
    %v2167 = vunpack.c.h.b16 %v916
    %v2168 = vunpack.c.l.b16 %v917
    %v2169 = vunpack.c.h.b16 %v917
    %v2170 = vunpack.c.l.b16 %v918
    %v2171 = vunpack.c.h.b16 %v918
    %v2172 = vunpack.c.l.b16 %v919
    %v2173 = vunpack.c.h.b16 %v919
    %v2174 = vunpack.c.l.b16 %v920
    %v2175 = vunpack.c.h.b16 %v920
    %v2176 = vunpack.c.l.b16 %v921
    %v2177 = vunpack.c.h.b16 %v921
    %v2178 = vunpack.c.l.b16 %v922
    %v2179 = vunpack.c.h.b16 %v922
    %v2180 = vunpack.c.l.b16 %v923
    %v2181 = vunpack.c.h.b16 %v923
    %v2182 = vunpack.c.l.b16 %v924
    %v2183 = vunpack.c.h.b16 %v924
    %v2184 = vunpack.c.l.b16 %v925
    %v2185 = vunpack.c.h.b16 %v925
    %v2186 = vunpack.c.l.b16 %v926
    %v2187 = vunpack.c.h.b16 %v926
    %v2188 = vunpack.c.l.b16 %v927
    %v2189 = vunpack.c.h.b16 %v927
    %v2190 = vunpack.c.l.b16 %v928
    %v2191 = vunpack.c.h.b16 %v928
    %v2192 = vunpack.c.l.b16 %v929
    %v2193 = vunpack.c.h.b16 %v929
    %v2194 = vunpack.c.l.b16 %v930
    %v2195 = vunpack.c.h.b16 %v930
    %v2196 = vunpack.c.l.b16 %v931
    %v2197 = vunpack.c.h.b16 %v931
    %v2198 = vunpack.c.l.b16 %v932
    %v2199 = vunpack.c.h.b16 %v932
    %v2200 = vunpack.c.l.b16 %v933
    %v2201 = vunpack.c.h.b16 %v933
    %v2202 = vunpack.c.l.b16 %v934
    %v2203 = vunpack.c.h.b16 %v934
    %v2204 = vunpack.c.l.b16 %v935
    %v2205 = vunpack.c.h.b16 %v935
    %v2206 = vunpack.c.l.b16 %v936
    %v2207 = vunpack.c.h.b16 %v936
    %v2208 = vunpack.c.l.b16 %v937
    %v2209 = vunpack.c.h.b16 %v937
    %v2210 = vunpack.c.l.b16 %v938
    %v2211 = vunpack.c.h.b16 %v938
    %v2212 = vunpack.c.l.b16 %v939
    %v2213 = vunpack.c.h.b16 %v939
    %v2214 = vunpack.c.l.b16 %v940
    %v2215 = vunpack.c.h.b16 %v940
    %v2216 = vunpack.c.l.b16 %v941
    %v2217 = vunpack.c.h.b16 %v941
    %v2218 = vunpack.c.l.b16 %v942
    %v2219 = vunpack.c.h.b16 %v942
    %v2220 = vunpack.c.l.b16 %v943
    %v2221 = vunpack.c.h.b16 %v943
    %v2222 = vunpack.c.l.b16 %v944
    %v2223 = vunpack.c.h.b16 %v944
    %v2224 = vunpack.c.l.b16 %v945
    %v2225 = vunpack.c.h.b16 %v945
    %v2226 = vunpack.c.l.b16 %v946
    %v2227 = vunpack.c.h.b16 %v946
    %v2228 = vunpack.c.l.b16 %v947
    %v2229 = vunpack.c.h.b16 %v947
    %v2230 = vunpack.c.l.b16 %v948
    %v2231 = vunpack.c.h.b16 %v948
    %v2232 = vunpack.c.l.b16 %v949
    %v2233 = vunpack.c.h.b16 %v949
    %v2234 = vunpack.c.l.b16 %v950
    %v2235 = vunpack.c.h.b16 %v950
    %v2236 = vunpack.c.l.b16 %v951
    %v2237 = vunpack.c.h.b16 %v951
    %v2238 = vunpack.c.l.b16 %v952
    %v2239 = vunpack.c.h.b16 %v952
    %v2240 = vunpack.c.l.b16 %v953
    %v2241 = vunpack.c.h.b16 %v953
    %v2242 = vunpack.c.l.b16 %v954
    %v2243 = vunpack.c.h.b16 %v954
    %v2244 = vunpack.c.l.b16 %v955
    %v2245 = vunpack.c.h.b16 %v955
    %v2246 = vunpack.c.l.b16 %v956
    %v2247 = vunpack.c.h.b16 %v956
    %v2248 = vunpack.c.l.b16 %v957
    %v2249 = vunpack.c.h.b16 %v957
    %v2250 = vunpack.c.l.b16 %v958
    %v2251 = vunpack.c.h.b16 %v958
    %v2252 = vunpack.c.l.b16 %v959
    %v2253 = vunpack.c.h.b16 %v959
    %v2254 = vunpack.c.l.b16 %v960
    %v2255 = vunpack.c.h.b16 %v960
    %v2256 = vunpack.c.l.b16 %v961
    %v2257 = vunpack.c.h.b16 %v961
    %v2258 = vunpack.c.l.b16 %v962
    %v2259 = vunpack.c.h.b16 %v962
    %v2260 = vunpack.c.l.b16 %v963
    %v2261 = vunpack.c.h.b16 %v963
    %v2262 = vunpack.c.l.b16 %v964
    %v2263 = vunpack.c.h.b16 %v964
    %v2264 = vunpack.c.l.b16 %v965
    %v2265 = vunpack.c.h.b16 %v965
    %v2266 = vunpack.c.l.b16 %v966
    %v2267 = vunpack.c.h.b16 %v966
    %v2268 = vunpack.c.l.b16 %v967
    %v2269 = vunpack.c.h.b16 %v967
    %v2270 = vunpack.c.l.b16 %v968
    %v2271 = vunpack.c.h.b16 %v968
    %v2272 = vunpack.c.l.b16 %v969
    %v2273 = vunpack.c.h.b16 %v969
    %v2274 = vunpack.c.l.b16 %v970
    %v2275 = vunpack.c.h.b16 %v970
    %v2276 = vunpack.c.l.b16 %v971
    %v2277 = vunpack.c.h.b16 %v971
    %v2278 = vunpack.c.l.b16 %v972
    %v2279 = vunpack.c.h.b16 %v972
    %v2280 = vunpack.c.l.b16 %v973
    %v2281 = vunpack.c.h.b16 %v973
    %v2282 = vunpack.c.l.b16 %v974
    %v2283 = vunpack.c.h.b16 %v974
    %v2284 = vunpack.c.l.b16 %v975
    %v2285 = vunpack.c.h.b16 %v975
    %v2286 = vunpack.c.l.b16 %v976
    %v2287 = vunpack.c.h.b16 %v976
    %v2288 = vunpack.c.l.b16 %v977
    %v2289 = vunpack.c.h.b16 %v977
    %v2290 = vunpack.c.l.b16 %v978
    %v2291 = vunpack.c.h.b16 %v978
    %v2292 = vunpack.c.l.b16 %v979
    %v2293 = vunpack.c.h.b16 %v979
    %v2294 = vunpack.c.l.b16 %v980
    %v2295 = vunpack.c.h.b16 %v980
    %v2296 = vunpack.c.l.b16 %v981
    %v2297 = vunpack.c.h.b16 %v981
    %v2298 = vunpack.c.l.b16 %v982
    %v2299 = vunpack.c.h.b16 %v982
    %v2300 = vunpack.c.l.b16 %v983
    %v2301 = vunpack.c.h.b16 %v983
    %v2302 = vunpack.c.l.b16 %v984
    %v2303 = vunpack.c.h.b16 %v984
    %v2304 = vunpack.c.l.b16 %v985
    %v2305 = vunpack.c.h.b16 %v985
    %v2306 = vunpack.c.l.b16 %v986
    %v2307 = vunpack.c.h.b16 %v986
    %v2308 = vunpack.c.l.b16 %v987
    %v2309 = vunpack.c.h.b16 %v987
    %v2310 = vunpack.c.l.b16 %v988
    %v2311 = vunpack.c.h.b16 %v988
    %v2312 = vunpack.c.l.b16 %v989
    %v2313 = vunpack.c.h.b16 %v989
    %v2314 = vunpack.c.l.b16 %v990
    %v2315 = vunpack.c.h.b16 %v990
    %v2316 = vunpack.c.l.b16 %v991
    %v2317 = vunpack.c.h.b16 %v991
    %v2318 = vunpack.c.l.b16 %v992
    %v2319 = vunpack.c.h.b16 %v992
    %v2320 = vunpack.c.l.b16 %v993
    %v2321 = vunpack.c.h.b16 %v993
    %v2322 = vunpack.c.l.b16 %v994
    %v2323 = vunpack.c.h.b16 %v994
    %v2324 = vunpack.c.l.b16 %v995
    %v2325 = vunpack.c.h.b16 %v995
    %v2326 = vunpack.c.l.b16 %v996
    %v2327 = vunpack.c.h.b16 %v996
    %v2328 = vunpack.c.l.b16 %v997
    %v2329 = vunpack.c.h.b16 %v997
    %v2330 = vunpack.c.l.b16 %v998
    %v2331 = vunpack.c.h.b16 %v998
    %v2332 = vunpack.c.l.b16 %v999
    %v2333 = vunpack.c.h.b16 %v999
    %v2334 = vunpack.c.l.b16 %v1000
    %v2335 = vunpack.c.h.b16 %v1000
    %v2336 = vunpack.c.l.b16 %v1001
    %v2337 = vunpack.c.h.b16 %v1001
    %v2338 = vunpack.c.l.b16 %v1002
    %v2339 = vunpack.c.h.b16 %v1002
    %v2340 = vunpack.c.l.b16 %v1003
    %v2341 = vunpack.c.h.b16 %v1003
    %v2342 = vunpack.c.l.b16 %v1004
    %v2343 = vunpack.c.h.b16 %v1004
    %v2344 = vunpack.c.l.b16 %v1005
    %v2345 = vunpack.c.h.b16 %v1005
    %v2346 = vunpack.c.l.b16 %v1006
    %v2347 = vunpack.c.h.b16 %v1006
    %v2348 = vunpack.c.l.b16 %v1007
    %v2349 = vunpack.c.h.b16 %v1007
    %v2350 = vunpack.c.l.b16 %v1008
    %v2351 = vunpack.c.h.b16 %v1008
    %v2352 = vunpack.c.l.b16 %v1009
    %v2353 = vunpack.c.h.b16 %v1009
    %v2354 = vunpack.c.l.b16 %v1010
    %v2355 = vunpack.c.h.b16 %v1010
    %v2356 = vunpack.c.l.b16 %v1011
    %v2357 = vunpack.c.h.b16 %v1011
    %v2358 = vunpack.c.l.b16 %v1012
    %v2359 = vunpack.c.h.b16 %v1012
    %v2360 = vunpack.c.l.b16 %v1013
    %v2361 = vunpack.c.h.b16 %v1013
    %v2362 = vunpack.c.l.b16 %v1014
    %v2363 = vunpack.c.h.b16 %v1014
    %v2364 = vunpack.c.l.b16 %v1015
    %v2365 = vunpack.c.h.b16 %v1015
    %v2366 = vunpack.c.l.b16 %v1016
    %v2367 = vunpack.c.h.b16 %v1016
    %v2368 = vunpack.c.l.b16 %v1017
    %v2369 = vunpack.c.h.b16 %v1017
    %v2370 = vunpack.c.l.b16 %v1018
    %v2371 = vunpack.c.h.b16 %v1018
    %v2372 = vunpack.c.l.b16 %v1019
    %v2373 = vunpack.c.h.b16 %v1019
    %v2374 = vunpack.c.l.b16 %v1020
    %v2375 = vunpack.c.h.b16 %v1020
    %v2376 = vunpack.c.l.b16 %v1021
    %v2377 = vunpack.c.h.b16 %v1021
    %v2378 = vunpack.c.l.b16 %v1022
    %v2379 = vunpack.c.h.b16 %v1022
    %v2380 = vunpack.c.l.b16 %v1023
    %v2381 = vunpack.c.h.b16 %v1023
    %v2382 = vunpack.c.l.b16 %v1024
    %v2383 = vunpack.c.h.b16 %v1024
    %v2384 = vunpack.c.l.b16 %v1025
    %v2385 = vunpack.c.h.b16 %v1025
    %v2386 = vunpack.c.l.b16 %v1026
    %v2387 = vunpack.c.h.b16 %v1026
    %v2388 = vunpack.c.l.b16 %v1027
    %v2389 = vunpack.c.h.b16 %v1027
    %v2390 = vunpack.c.l.b16 %v1028
    %v2391 = vunpack.c.h.b16 %v1028
    %v2392 = vunpack.c.l.b16 %v1029
    %v2393 = vunpack.c.h.b16 %v1029
    %v2394 = vunpack.c.l.b16 %v1030
    %v2395 = vunpack.c.h.b16 %v1030
    %v2396 = vunpack.c.l.b16 %v1031
    %v2397 = vunpack.c.h.b16 %v1031
    %v2398 = vunpack.c.l.b16 %v1032
    %v2399 = vunpack.c.h.b16 %v1032
    %v2400 = vunpack.c.l.b16 %v1033
    %v2401 = vunpack.c.h.b16 %v1033
    %v2402 = vunpack.c.l.b16 %v1034
    %v2403 = vunpack.c.h.b16 %v1034
    %v2404 = vunpack.c.l.b16 %v1035
    %v2405 = vunpack.c.h.b16 %v1035
    %v2406 = vunpack.c.l.b16 %v1036
    %v2407 = vunpack.c.h.b16 %v1036
    %v2408 = vunpack.c.l.b16 %v1037
    %v2409 = vunpack.c.h.b16 %v1037
    %v2410 = vunpack.c.l.b16 %v1038
    %v2411 = vunpack.c.h.b16 %v1038
    %v2412 = vunpack.c.l.b16 %v1039
    %v2413 = vunpack.c.h.b16 %v1039
    %v2414 = vunpack.c.l.b16 %v1040
    %v2415 = vunpack.c.h.b16 %v1040
    %v2416 = vunpack.c.l.b16 %v1041
    %v2417 = vunpack.c.h.b16 %v1041
    %v2418 = vunpack.c.l.b16 %v1042
    %v2419 = vunpack.c.h.b16 %v1042
    %v2420 = vunpack.c.l.b16 %v1043
    %v2421 = vunpack.c.h.b16 %v1043
    %v2422 = vunpack.c.l.b16 %v1044
    %v2423 = vunpack.c.h.b16 %v1044
    %v2424 = vunpack.c.l.b16 %v1045
    %v2425 = vunpack.c.h.b16 %v1045
    %v2426 = vunpack.c.l.b16 %v1046
    %v2427 = vunpack.c.h.b16 %v1046
    %v2428 = vunpack.c.l.b16 %v1047
    %v2429 = vunpack.c.h.b16 %v1047
    %v2430 = vunpack.c.l.b16 %v1048
    %v2431 = vunpack.c.h.b16 %v1048
    %v2432 = vunpack.c.l.b16 %v1049
    %v2433 = vunpack.c.h.b16 %v1049
    %v2434 = vunpack.c.l.b16 %v1050
    %v2435 = vunpack.c.h.b16 %v1050
    %v2436 = vunpack.c.l.b16 %v1051
    %v2437 = vunpack.c.h.b16 %v1051
    %v2438 = vunpack.c.l.b16 %v1052
    %v2439 = vunpack.c.h.b16 %v1052
    %v2440 = vunpack.c.l.b16 %v1053
    %v2441 = vunpack.c.h.b16 %v1053
    %v2442 = vunpack.c.l.b16 %v1054
    %v2443 = vunpack.c.h.b16 %v1054
    %v2444 = vunpack.c.l.b16 %v1055
    %v2445 = vunpack.c.h.b16 %v1055
    %v2446 = vunpack.c.l.b16 %v1056
    %v2447 = vunpack.c.h.b16 %v1056
    %v2448 = vunpack.c.l.b16 %v1057
    %v2449 = vunpack.c.h.b16 %v1057
    %v2450 = vunpack.c.l.b16 %v1058
    %v2451 = vunpack.c.h.b16 %v1058
    %v2452 = vunpack.c.l.b16 %v1059
    %v2453 = vunpack.c.h.b16 %v1059
    %v2454 = vunpack.c.l.b16 %v1060
    %v2455 = vunpack.c.h.b16 %v1060
    %v2456 = vunpack.c.l.b16 %v1061
    %v2457 = vunpack.c.h.b16 %v1061
    %v2458 = vunpack.c.l.b16 %v1062
    %v2459 = vunpack.c.h.b16 %v1062
    %v2460 = vunpack.c.l.b16 %v1063
    %v2461 = vunpack.c.h.b16 %v1063
    %v2462 = vunpack.c.l.b16 %v1064
    %v2463 = vunpack.c.h.b16 %v1064
    %v2464 = vunpack.c.l.b16 %v1065
    %v2465 = vunpack.c.h.b16 %v1065
    %v2466 = vunpack.c.l.b16 %v1066
    %v2467 = vunpack.c.h.b16 %v1066
    %v2468 = vunpack.c.l.b16 %v1067
    %v2469 = vunpack.c.h.b16 %v1067
    %v2470 = vunpack.c.l.b16 %v1068
    %v2471 = vunpack.c.h.b16 %v1068
    %v2472 = vunpack.c.l.b16 %v1069
    %v2473 = vunpack.c.h.b16 %v1069
    %v2474 = vunpack.c.l.b16 %v1070
    %v2475 = vunpack.c.h.b16 %v1070
    %v2476 = vunpack.c.l.b16 %v1071
    %v2477 = vunpack.c.h.b16 %v1071
    %v2478 = vunpack.c.l.b16 %v1072
    %v2479 = vunpack.c.h.b16 %v1072
    %v2480 = vunpack.c.l.b16 %v1073
    %v2481 = vunpack.c.h.b16 %v1073
    %v2482 = vunpack.c.l.b16 %v1074
    %v2483 = vunpack.c.h.b16 %v1074
    %v2484 = vunpack.c.l.b16 %v1075
    %v2485 = vunpack.c.h.b16 %v1075
    %v2486 = vunpack.c.l.b16 %v1076
    %v2487 = vunpack.c.h.b16 %v1076
    %v2488 = vunpack.c.l.b16 %v1077
    %v2489 = vunpack.c.h.b16 %v1077
    %v2490 = vunpack.c.l.b16 %v1078
    %v2491 = vunpack.c.h.b16 %v1078
    %v2492 = vunpack.c.l.b16 %v1079
    %v2493 = vunpack.c.h.b16 %v1079
    %v2494 = vunpack.c.l.b16 %v1080
    %v2495 = vunpack.c.h.b16 %v1080
    %v2496 = vunpack.c.l.b16 %v1081
    %v2497 = vunpack.c.h.b16 %v1081
    %v2498 = vunpack.c.l.b16 %v1082
    %v2499 = vunpack.c.h.b16 %v1082
    %v2500 = vunpack.c.l.b16 %v1083
    %v2501 = vunpack.c.h.b16 %v1083
    %v2502 = vunpack.c.l.b16 %v1084
    %v2503 = vunpack.c.h.b16 %v1084
    %v2504 = vunpack.c.l.b16 %v1085
    %v2505 = vunpack.c.h.b16 %v1085
    %v2506 = vunpack.c.l.b16 %v1086
    %v2507 = vunpack.c.h.b16 %v1086
    %v2508 = vunpack.c.l.b16 %v1087
    %v2509 = vunpack.c.h.b16 %v1087
    %v2510 = vunpack.c.l.b16 %v1088
    %v2511 = vunpack.c.h.b16 %v1088
    %v2512 = vunpack.c.l.b16 %v1089
    %v2513 = vunpack.c.h.b16 %v1089
    %v2514 = vunpack.c.l.b16 %v1090
    %v2515 = vunpack.c.h.b16 %v1090
    %v2516 = vunpack.c.l.b16 %v1091
    %v2517 = vunpack.c.h.b16 %v1091
    %v2518 = vunpack.c.l.b16 %v1092
    %v2519 = vunpack.c.h.b16 %v1092
    %v2520 = vunpack.c.l.b16 %v1093
    %v2521 = vunpack.c.h.b16 %v1093
    %v2522 = vunpack.c.l.b16 %v1094
    %v2523 = vunpack.c.h.b16 %v1094
    %v2524 = vunpack.c.l.b16 %v1095
    %v2525 = vunpack.c.h.b16 %v1095
    %v2526 = vunpack.c.l.b16 %v1096
    %v2527 = vunpack.c.h.b16 %v1096
    %v2528 = vunpack.c.l.b16 %v1097
    %v2529 = vunpack.c.h.b16 %v1097
    %v2530 = vunpack.c.l.b16 %v1098
    %v2531 = vunpack.c.h.b16 %v1098
    %v2532 = vunpack.c.l.b16 %v1099
    %v2533 = vunpack.c.h.b16 %v1099
    %v2534 = vunpack.c.l.b16 %v1100
    %v2535 = vunpack.c.h.b16 %v1100
    %v2536 = vunpack.c.l.b16 %v1101
    %v2537 = vunpack.c.h.b16 %v1101
    %v2538 = vunpack.c.l.b16 %v1102
    %v2539 = vunpack.c.h.b16 %v1102
    %v2540 = vunpack.c.l.b16 %v1103
    %v2541 = vunpack.c.h.b16 %v1103
    %v2542 = vunpack.c.l.b16 %v1104
    %v2543 = vunpack.c.h.b16 %v1104
    %v2544 = vunpack.c.l.b16 %v1105
    %v2545 = vunpack.c.h.b16 %v1105
    %v2546 = vunpack.c.l.b16 %v1106
    %v2547 = vunpack.c.h.b16 %v1106
    %v2548 = vunpack.c.l.b16 %v1107
    %v2549 = vunpack.c.h.b16 %v1107
    %v2550 = vunpack.c.l.b16 %v1108
    %v2551 = vunpack.c.h.b16 %v1108
    %v2552 = vunpack.c.l.b16 %v1109
    %v2553 = vunpack.c.h.b16 %v1109
    %v2554 = vunpack.c.l.b16 %v1110
    %v2555 = vunpack.c.h.b16 %v1110
    %v2556 = vunpack.c.l.b16 %v1111
    %v2557 = vunpack.c.h.b16 %v1111
    %v2558 = vunpack.c.l.b16 %v1112
    %v2559 = vunpack.c.h.b16 %v1112
    %v2560 = vunpack.c.l.b16 %v1113
    %v2561 = vunpack.c.h.b16 %v1113
    %v2562 = vunpack.c.l.b16 %v1114
    %v2563 = vunpack.c.h.b16 %v1114
    %v2564 = vunpack.c.l.b16 %v1115
    %v2565 = vunpack.c.h.b16 %v1115
    %v2566 = vunpack.c.l.b16 %v1116
    %v2567 = vunpack.c.h.b16 %v1116
    %v2568 = vunpack.c.l.b16 %v1117
    %v2569 = vunpack.c.h.b16 %v1117
    %v2570 = vunpack.c.l.b16 %v1118
    %v2571 = vunpack.c.h.b16 %v1118
    %v2572 = vunpack.c.l.b16 %v1119
    %v2573 = vunpack.c.h.b16 %v1119
    %v2574 = vunpack.c.l.b16 %v1120
    %v2575 = vunpack.c.h.b16 %v1120
    %v2576 = vunpack.c.l.b16 %v1121
    %v2577 = vunpack.c.h.b16 %v1121
    %v2578 = vunpack.c.l.b16 %v1122
    %v2579 = vunpack.c.h.b16 %v1122
    %v2580 = vunpack.c.l.b16 %v1123
    %v2581 = vunpack.c.h.b16 %v1123
    %v2582 = vunpack.c.l.b16 %v1124
    %v2583 = vunpack.c.h.b16 %v1124
    %v2584 = vunpack.c.l.b16 %v1125
    %v2585 = vunpack.c.h.b16 %v1125
    %v2586 = vunpack.c.l.b16 %v1126
    %v2587 = vunpack.c.h.b16 %v1126
    %v2588 = vunpack.c.l.b16 %v1127
    %v2589 = vunpack.c.h.b16 %v1127
    %v2590 = vunpack.c.l.b16 %v1128
    %v2591 = vunpack.c.h.b16 %v1128
    %v2592 = vunpack.c.l.b16 %v1129
    %v2593 = vunpack.c.h.b16 %v1129
    %v2594 = vunpack.c.l.b16 %v1130
    %v2595 = vunpack.c.h.b16 %v1130
    %v2596 = vunpack.c.l.b16 %v1131
    %v2597 = vunpack.c.h.b16 %v1131
    %v2598 = vunpack.c.l.b16 %v1132
    %v2599 = vunpack.c.h.b16 %v1132
    %v2600 = vunpack.c.l.b16 %v1133
    %v2601 = vunpack.c.h.b16 %v1133
    %v2602 = vunpack.c.l.b16 %v1134
    %v2603 = vunpack.c.h.b16 %v1134
    %v2604 = vunpack.c.l.b16 %v1135
    %v2605 = vunpack.c.h.b16 %v1135
    %v2606 = vunpack.c.l.b16 %v1136
    %v2607 = vunpack.c.h.b16 %v1136
    %v2608 = vunpack.c.l.b16 %v1137
    %v2609 = vunpack.c.h.b16 %v1137
    %v2610 = vunpack.c.l.b16 %v1138
    %v2611 = vunpack.c.h.b16 %v1138
    %v2612 = vunpack.c.l.b16 %v1139
    %v2613 = vunpack.c.h.b16 %v1139
    %v2614 = vunpack.c.l.b16 %v1140
    %v2615 = vunpack.c.h.b16 %v1140
    %v2616 = vunpack.c.l.b16 %v1141
    %v2617 = vunpack.c.h.b16 %v1141
    %v2618 = vunpack.c.l.b16 %v1142
    %v2619 = vunpack.c.h.b16 %v1142
    %v2620 = vunpack.c.l.b16 %v1143
    %v2621 = vunpack.c.h.b16 %v1143
    %v2622 = vunpack.c.l.b16 %v1144
    %v2623 = vunpack.c.h.b16 %v1144
    %v2624 = vunpack.c.l.b16 %v1145
    %v2625 = vunpack.c.h.b16 %v1145
    %v2626 = vunpack.c.l.b16 %v1146
    %v2627 = vunpack.c.h.b16 %v1146
    %v2628 = vunpack.c.l.b16 %v1147
    %v2629 = vunpack.c.h.b16 %v1147
    %v2630 = vunpack.c.l.b16 %v1148
    %v2631 = vunpack.c.h.b16 %v1148
    %v2632 = vunpack.c.l.b16 %v1149
    %v2633 = vunpack.c.h.b16 %v1149
    %v2634 = vunpack.c.l.b16 %v1150
    %v2635 = vunpack.c.h.b16 %v1150
    %v2636 = vunpack.c.l.b16 %v1151
    %v2637 = vunpack.c.h.b16 %v1151
    %v2638 = vunpack.c.l.b16 %v1152
    %v2639 = vunpack.c.h.b16 %v1152
    %v2640 = vunpack.c.l.b16 %v1153
    %v2641 = vunpack.c.h.b16 %v1153
    %v2642 = vunpack.c.l.b16 %v1154
    %v2643 = vunpack.c.h.b16 %v1154
    %v2644 = vunpack.c.l.b16 %v1155
    %v2645 = vunpack.c.h.b16 %v1155
    %v2646 = vunpack.c.l.b16 %v1156
    %v2647 = vunpack.c.h.b16 %v1156
    %v2648 = vunpack.c.l.b16 %v1157
    %v2649 = vunpack.c.h.b16 %v1157
    %v2650 = vunpack.c.l.b16 %v1158
    %v2651 = vunpack.c.h.b16 %v1158
    %v2652 = vunpack.c.l.b16 %v1159
    %v2653 = vunpack.c.h.b16 %v1159
    %v2654 = vunpack.c.l.b16 %v1160
    %v2655 = vunpack.c.h.b16 %v1160
    %v2656 = vunpack.c.l.b16 %v1161
    %v2657 = vunpack.c.h.b16 %v1161
    %v2658 = vunpack.c.l.b16 %v1162
    %v2659 = vunpack.c.h.b16 %v1162
    %v2660 = vunpack.c.l.b16 %v1163
    %v2661 = vunpack.c.h.b16 %v1163
    %v2662 = vunpack.c.l.b16 %v1164
    %v2663 = vunpack.c.h.b16 %v1164
    %v2664 = vunpack.c.l.b16 %v1165
    %v2665 = vunpack.c.h.b16 %v1165
    %v2666 = vunpack.c.l.b16 %v1166
    %v2667 = vunpack.c.h.b16 %v1166
    %v2668 = vunpack.c.l.b16 %v1167
    %v2669 = vunpack.c.h.b16 %v1167
    %v2670 = vunpack.c.l.b16 %v1168
    %v2671 = vunpack.c.h.b16 %v1168
    %v2672 = vunpack.c.l.b16 %v1169
    %v2673 = vunpack.c.h.b16 %v1169
    %v2674 = vunpack.c.l.b16 %v1170
    %v2675 = vunpack.c.h.b16 %v1170
    %v2676 = vunpack.c.l.b16 %v1171
    %v2677 = vunpack.c.h.b16 %v1171
    %v2678 = vunpack.c.l.b16 %v1172
    %v2679 = vunpack.c.h.b16 %v1172
    %v2680 = vunpack.c.l.b16 %v1173
    %v2681 = vunpack.c.h.b16 %v1173
    %v2682 = vunpack.c.l.b16 %v1174
    %v2683 = vunpack.c.h.b16 %v1174
    %v2684 = vunpack.c.l.b16 %v1175
    %v2685 = vunpack.c.h.b16 %v1175
    %v2686 = vunpack.c.l.b16 %v1176
    %v2687 = vunpack.c.h.b16 %v1176
    %v2688 = vunpack.c.l.b16 %v1177
    %v2689 = vunpack.c.h.b16 %v1177
    %v2690 = vunpack.c.l.b16 %v1178
    %v2691 = vunpack.c.h.b16 %v1178
    %v2692 = vunpack.c.l.b16 %v1179
    %v2693 = vunpack.c.h.b16 %v1179
    %v2694 = vunpack.c.l.b16 %v1180
    %v2695 = vunpack.c.h.b16 %v1180
    %v2696 = vunpack.c.l.b16 %v1181
    %v2697 = vunpack.c.h.b16 %v1181
    %v2698 = vunpack.c.l.b16 %v1182
    %v2699 = vunpack.c.h.b16 %v1182
    %v2700 = vunpack.c.l.b16 %v1183
    %v2701 = vunpack.c.h.b16 %v1183
    %v2702 = vunpack.c.l.b16 %v1184
    %v2703 = vunpack.c.h.b16 %v1184
    %v2704 = vunpack.c.l.b16 %v1185
    %v2705 = vunpack.c.h.b16 %v1185
    %v2706 = vunpack.c.l.b16 %v1186
    %v2707 = vunpack.c.h.b16 %v1186
    %v2708 = vunpack.c.l.b16 %v1187
    %v2709 = vunpack.c.h.b16 %v1187
    %v2710 = vunpack.c.l.b16 %v1188
    %v2711 = vunpack.c.h.b16 %v1188
    %v2712 = vunpack.c.l.b16 %v1189
    %v2713 = vunpack.c.h.b16 %v1189
    %v2714 = vunpack.c.l.b16 %v1190
    %v2715 = vunpack.c.h.b16 %v1190
    %v2716 = vunpack.c.l.b16 %v1191
    %v2717 = vunpack.c.h.b16 %v1191
    %v2718 = vunpack.c.l.b16 %v1192
    %v2719 = vunpack.c.h.b16 %v1192
    %v2720 = vunpack.c.l.b16 %v1193
    %v2721 = vunpack.c.h.b16 %v1193
    %v2722 = vunpack.c.l.b16 %v1194
    %v2723 = vunpack.c.h.b16 %v1194
    %v2724 = vunpack.c.l.b16 %v1195
    %v2725 = vunpack.c.h.b16 %v1195
    %v2726 = vunpack.c.l.b16 %v1196
    %v2727 = vunpack.c.h.b16 %v1196
    %v2728 = vunpack.c.l.b16 %v1197
    %v2729 = vunpack.c.h.b16 %v1197
    %v2730 = vunpack.c.l.b16 %v1198
    %v2731 = vunpack.c.h.b16 %v1198
    %v2732 = vunpack.c.l.b16 %v1199
    %v2733 = vunpack.c.h.b16 %v1199
    %v2734 = vunpack.c.l.b16 %v1200
    %v2735 = vunpack.c.h.b16 %v1200
    %v2736 = vunpack.c.l.b16 %v1201
    %v2737 = vunpack.c.h.b16 %v1201
    %v2738 = vpack.c.b16 %v1718, %v1714
    %v2739 = vpack.c.b16 %v1719, %v1715
    %v2740 = vpack.c.b16 %v1720, %v1716
    %v2741 = vpack.c.b16 %v1721, %v1717
    %v2742 = vpack.c.b16 %v1726, %v1722
    %v2743 = vpack.c.b16 %v1727, %v1723
    %v2744 = vpack.c.b16 %v1728, %v1724
    %v2745 = vpack.c.b16 %v1729, %v1725
    %v2746 = vpack.c.b16 %v1734, %v1730
    %v2747 = vpack.c.b16 %v1735, %v1731
    %v2748 = vpack.c.b16 %v1736, %v1732
    %v2749 = vpack.c.b16 %v1737, %v1733
    %v2750 = vpack.c.b16 %v1742, %v1738
    %v2751 = vpack.c.b16 %v1743, %v1739
    %v2752 = vpack.c.b16 %v1744, %v1740
    %v2753 = vpack.c.b16 %v1745, %v1741
    %v2754 = vpack.c.b16 %v1750, %v1746
    %v2755 = vpack.c.b16 %v1751, %v1747
    %v2756 = vpack.c.b16 %v1752, %v1748
    %v2757 = vpack.c.b16 %v1753, %v1749
    %v2758 = vpack.c.b16 %v1758, %v1754
    %v2759 = vpack.c.b16 %v1759, %v1755
    %v2760 = vpack.c.b16 %v1760, %v1756
    %v2761 = vpack.c.b16 %v1761, %v1757
    %v2762 = vpack.c.b16 %v1766, %v1762
    %v2763 = vpack.c.b16 %v1767, %v1763
    %v2764 = vpack.c.b16 %v1768, %v1764
    %v2765 = vpack.c.b16 %v1769, %v1765
    %v2766 = vpack.c.b16 %v1774, %v1770
    %v2767 = vpack.c.b16 %v1775, %v1771
    %v2768 = vpack.c.b16 %v1776, %v1772
    %v2769 = vpack.c.b16 %v1777, %v1773
    %v2770 = vpack.c.b16 %v1782, %v1778
    %v2771 = vpack.c.b16 %v1783, %v1779
    %v2772 = vpack.c.b16 %v1784, %v1780
    %v2773 = vpack.c.b16 %v1785, %v1781
    %v2774 = vpack.c.b16 %v1790, %v1786
    %v2775 = vpack.c.b16 %v1791, %v1787
    %v2776 = vpack.c.b16 %v1792, %v1788
    %v2777 = vpack.c.b16 %v1793, %v1789
    %v2778 = vpack.c.b16 %v1798, %v1794
    %v2779 = vpack.c.b16 %v1799, %v1795
    %v2780 = vpack.c.b16 %v1800, %v1796
    %v2781 = vpack.c.b16 %v1801, %v1797
    %v2782 = vpack.c.b16 %v1806, %v1802
    %v2783 = vpack.c.b16 %v1807, %v1803
    %v2784 = vpack.c.b16 %v1808, %v1804
    %v2785 = vpack.c.b16 %v1809, %v1805
    %v2786 = vpack.c.b16 %v1814, %v1810
    %v2787 = vpack.c.b16 %v1815, %v1811
    %v2788 = vpack.c.b16 %v1816, %v1812
    %v2789 = vpack.c.b16 %v1817, %v1813
    %v2790 = vpack.c.b16 %v1822, %v1818
    %v2791 = vpack.c.b16 %v1823, %v1819
    %v2792 = vpack.c.b16 %v1824, %v1820
    %v2793 = vpack.c.b16 %v1825, %v1821
    %v2794 = vpack.c.b16 %v1830, %v1826
    %v2795 = vpack.c.b16 %v1831, %v1827
    %v2796 = vpack.c.b16 %v1832, %v1828
    %v2797 = vpack.c.b16 %v1833, %v1829
    %v2798 = vpack.c.b16 %v1838, %v1834
    %v2799 = vpack.c.b16 %v1839, %v1835
    %v2800 = vpack.c.b16 %v1840, %v1836
    %v2801 = vpack.c.b16 %v1841, %v1837
    %v2802 = vpack.c.b16 %v1846, %v1842
    %v2803 = vpack.c.b16 %v1847, %v1843
    %v2804 = vpack.c.b16 %v1848, %v1844
    %v2805 = vpack.c.b16 %v1849, %v1845
    %v2806 = vpack.c.b16 %v1854, %v1850
    %v2807 = vpack.c.b16 %v1855, %v1851
    %v2808 = vpack.c.b16 %v1856, %v1852
    %v2809 = vpack.c.b16 %v1857, %v1853
    %v2810 = vpack.c.b16 %v1862, %v1858
    %v2811 = vpack.c.b16 %v1863, %v1859
    %v2812 = vpack.c.b16 %v1864, %v1860
    %v2813 = vpack.c.b16 %v1865, %v1861
    %v2814 = vpack.c.b16 %v1870, %v1866
    %v2815 = vpack.c.b16 %v1871, %v1867
    %v2816 = vpack.c.b16 %v1872, %v1868
    %v2817 = vpack.c.b16 %v1873, %v1869
    %v2818 = vpack.c.b16 %v1878, %v1874
    %v2819 = vpack.c.b16 %v1879, %v1875
    %v2820 = vpack.c.b16 %v1880, %v1876
    %v2821 = vpack.c.b16 %v1881, %v1877
    %v2822 = vpack.c.b16 %v1886, %v1882
    %v2823 = vpack.c.b16 %v1887, %v1883
    %v2824 = vpack.c.b16 %v1888, %v1884
    %v2825 = vpack.c.b16 %v1889, %v1885
    %v2826 = vpack.c.b16 %v1894, %v1890
    %v2827 = vpack.c.b16 %v1895, %v1891
    %v2828 = vpack.c.b16 %v1896, %v1892
    %v2829 = vpack.c.b16 %v1897, %v1893
    %v2830 = vpack.c.b16 %v1902, %v1898
    %v2831 = vpack.c.b16 %v1903, %v1899
    %v2832 = vpack.c.b16 %v1904, %v1900
    %v2833 = vpack.c.b16 %v1905, %v1901
    %v2834 = vpack.c.b16 %v1910, %v1906
    %v2835 = vpack.c.b16 %v1911, %v1907
    %v2836 = vpack.c.b16 %v1912, %v1908
    %v2837 = vpack.c.b16 %v1913, %v1909
    %v2838 = vpack.c.b16 %v1918, %v1914
    %v2839 = vpack.c.b16 %v1919, %v1915
    %v2840 = vpack.c.b16 %v1920, %v1916
    %v2841 = vpack.c.b16 %v1921, %v1917
    %v2842 = vpack.c.b16 %v1926, %v1922
    %v2843 = vpack.c.b16 %v1927, %v1923
    %v2844 = vpack.c.b16 %v1928, %v1924
    %v2845 = vpack.c.b16 %v1929, %v1925
    %v2846 = vpack.c.b16 %v1934, %v1930
    %v2847 = vpack.c.b16 %v1935, %v1931
    %v2848 = vpack.c.b16 %v1936, %v1932
    %v2849 = vpack.c.b16 %v1937, %v1933
    %v2850 = vpack.c.b16 %v1942, %v1938
    %v2851 = vpack.c.b16 %v1943, %v1939
    %v2852 = vpack.c.b16 %v1944, %v1940
    %v2853 = vpack.c.b16 %v1945, %v1941
    %v2854 = vpack.c.b16 %v1950, %v1946
    %v2855 = vpack.c.b16 %v1951, %v1947
    %v2856 = vpack.c.b16 %v1952, %v1948
    %v2857 = vpack.c.b16 %v1953, %v1949
    %v2858 = vpack.c.b16 %v1958, %v1954
    %v2859 = vpack.c.b16 %v1959, %v1955
    %v2860 = vpack.c.b16 %v1960, %v1956
    %v2861 = vpack.c.b16 %v1961, %v1957
    %v2862 = vpack.c.b16 %v1966, %v1962
    %v2863 = vpack.c.b16 %v1967, %v1963
    %v2864 = vpack.c.b16 %v1968, %v1964
    %v2865 = vpack.c.b16 %v1969, %v1965
    %v2866 = vpack.c.b16 %v1974, %v1970
    %v2867 = vpack.c.b16 %v1975, %v1971
    %v2868 = vpack.c.b16 %v1976, %v1972
    %v2869 = vpack.c.b16 %v1977, %v1973
    %v2870 = vpack.c.b16 %v1982, %v1978
    %v2871 = vpack.c.b16 %v1983, %v1979
    %v2872 = vpack.c.b16 %v1984, %v1980
    %v2873 = vpack.c.b16 %v1985, %v1981
    %v2874 = vpack.c.b16 %v1990, %v1986
    %v2875 = vpack.c.b16 %v1991, %v1987
    %v2876 = vpack.c.b16 %v1992, %v1988
    %v2877 = vpack.c.b16 %v1993, %v1989
    %v2878 = vpack.c.b16 %v1998, %v1994
    %v2879 = vpack.c.b16 %v1999, %v1995
    %v2880 = vpack.c.b16 %v2000, %v1996
    %v2881 = vpack.c.b16 %v2001, %v1997
    %v2882 = vpack.c.b16 %v2006, %v2002
    %v2883 = vpack.c.b16 %v2007, %v2003
    %v2884 = vpack.c.b16 %v2008, %v2004
    %v2885 = vpack.c.b16 %v2009, %v2005
    %v2886 = vpack.c.b16 %v2014, %v2010
    %v2887 = vpack.c.b16 %v2015, %v2011
    %v2888 = vpack.c.b16 %v2016, %v2012
    %v2889 = vpack.c.b16 %v2017, %v2013
    %v2890 = vpack.c.b16 %v2022, %v2018
    %v2891 = vpack.c.b16 %v2023, %v2019
    %v2892 = vpack.c.b16 %v2024, %v2020
    %v2893 = vpack.c.b16 %v2025, %v2021
    %v2894 = vpack.c.b16 %v2030, %v2026
    %v2895 = vpack.c.b16 %v2031, %v2027
    %v2896 = vpack.c.b16 %v2032, %v2028
    %v2897 = vpack.c.b16 %v2033, %v2029
    %v2898 = vpack.c.b16 %v2038, %v2034
    %v2899 = vpack.c.b16 %v2039, %v2035
    %v2900 = vpack.c.b16 %v2040, %v2036
    %v2901 = vpack.c.b16 %v2041, %v2037
    %v2902 = vpack.c.b16 %v2046, %v2042
    %v2903 = vpack.c.b16 %v2047, %v2043
    %v2904 = vpack.c.b16 %v2048, %v2044
    %v2905 = vpack.c.b16 %v2049, %v2045
    %v2906 = vpack.c.b16 %v2054, %v2050
    %v2907 = vpack.c.b16 %v2055, %v2051
    %v2908 = vpack.c.b16 %v2056, %v2052
    %v2909 = vpack.c.b16 %v2057, %v2053
    %v2910 = vpack.c.b16 %v2062, %v2058
    %v2911 = vpack.c.b16 %v2063, %v2059
    %v2912 = vpack.c.b16 %v2064, %v2060
    %v2913 = vpack.c.b16 %v2065, %v2061
    %v2914 = vpack.c.b16 %v2070, %v2066
    %v2915 = vpack.c.b16 %v2071, %v2067
    %v2916 = vpack.c.b16 %v2072, %v2068
    %v2917 = vpack.c.b16 %v2073, %v2069
    %v2918 = vpack.c.b16 %v2078, %v2074
    %v2919 = vpack.c.b16 %v2079, %v2075
    %v2920 = vpack.c.b16 %v2080, %v2076
    %v2921 = vpack.c.b16 %v2081, %v2077
    %v2922 = vpack.c.b16 %v2086, %v2082
    %v2923 = vpack.c.b16 %v2087, %v2083
    %v2924 = vpack.c.b16 %v2088, %v2084
    %v2925 = vpack.c.b16 %v2089, %v2085
    %v2926 = vpack.c.b16 %v2094, %v2090
    %v2927 = vpack.c.b16 %v2095, %v2091
    %v2928 = vpack.c.b16 %v2096, %v2092
    %v2929 = vpack.c.b16 %v2097, %v2093
    %v2930 = vpack.c.b16 %v2102, %v2098
    %v2931 = vpack.c.b16 %v2103, %v2099
    %v2932 = vpack.c.b16 %v2104, %v2100
    %v2933 = vpack.c.b16 %v2105, %v2101
    %v2934 = vpack.c.b16 %v2110, %v2106
    %v2935 = vpack.c.b16 %v2111, %v2107
    %v2936 = vpack.c.b16 %v2112, %v2108
    %v2937 = vpack.c.b16 %v2113, %v2109
    %v2938 = vpack.c.b16 %v2118, %v2114
    %v2939 = vpack.c.b16 %v2119, %v2115
    %v2940 = vpack.c.b16 %v2120, %v2116
    %v2941 = vpack.c.b16 %v2121, %v2117
    %v2942 = vpack.c.b16 %v2126, %v2122
    %v2943 = vpack.c.b16 %v2127, %v2123
    %v2944 = vpack.c.b16 %v2128, %v2124
    %v2945 = vpack.c.b16 %v2129, %v2125
    %v2946 = vpack.c.b16 %v2134, %v2130
    %v2947 = vpack.c.b16 %v2135, %v2131
    %v2948 = vpack.c.b16 %v2136, %v2132
    %v2949 = vpack.c.b16 %v2137, %v2133
    %v2950 = vpack.c.b16 %v2142, %v2138
    %v2951 = vpack.c.b16 %v2143, %v2139
    %v2952 = vpack.c.b16 %v2144, %v2140
    %v2953 = vpack.c.b16 %v2145, %v2141
    %v2954 = vpack.c.b16 %v2150, %v2146
    %v2955 = vpack.c.b16 %v2151, %v2147
    %v2956 = vpack.c.b16 %v2152, %v2148
    %v2957 = vpack.c.b16 %v2153, %v2149
    %v2958 = vpack.c.b16 %v2158, %v2154
    %v2959 = vpack.c.b16 %v2159, %v2155
    %v2960 = vpack.c.b16 %v2160, %v2156
    %v2961 = vpack.c.b16 %v2161, %v2157
    %v2962 = vpack.c.b16 %v2166, %v2162
    %v2963 = vpack.c.b16 %v2167, %v2163
    %v2964 = vpack.c.b16 %v2168, %v2164
    %v2965 = vpack.c.b16 %v2169, %v2165
    %v2966 = vpack.c.b16 %v2174, %v2170
    %v2967 = vpack.c.b16 %v2175, %v2171
    %v2968 = vpack.c.b16 %v2176, %v2172
    %v2969 = vpack.c.b16 %v2177, %v2173
    %v2970 = vpack.c.b16 %v2182, %v2178
    %v2971 = vpack.c.b16 %v2183, %v2179
    %v2972 = vpack.c.b16 %v2184, %v2180
    %v2973 = vpack.c.b16 %v2185, %v2181
    %v2974 = vpack.c.b16 %v2190, %v2186
    %v2975 = vpack.c.b16 %v2191, %v2187
    %v2976 = vpack.c.b16 %v2192, %v2188
    %v2977 = vpack.c.b16 %v2193, %v2189
    %v2978 = vpack.c.b16 %v2198, %v2194
    %v2979 = vpack.c.b16 %v2199, %v2195
    %v2980 = vpack.c.b16 %v2200, %v2196
    %v2981 = vpack.c.b16 %v2201, %v2197
    %v2982 = vpack.c.b16 %v2206, %v2202
    %v2983 = vpack.c.b16 %v2207, %v2203
    %v2984 = vpack.c.b16 %v2208, %v2204
    %v2985 = vpack.c.b16 %v2209, %v2205
    %v2986 = vpack.c.b16 %v2214, %v2210
    %v2987 = vpack.c.b16 %v2215, %v2211
    %v2988 = vpack.c.b16 %v2216, %v2212
    %v2989 = vpack.c.b16 %v2217, %v2213
    %v2990 = vpack.c.b16 %v2222, %v2218
    %v2991 = vpack.c.b16 %v2223, %v2219
    %v2992 = vpack.c.b16 %v2224, %v2220
    %v2993 = vpack.c.b16 %v2225, %v2221
    %v2994 = vpack.c.b16 %v2230, %v2226
    %v2995 = vpack.c.b16 %v2231, %v2227
    %v2996 = vpack.c.b16 %v2232, %v2228
    %v2997 = vpack.c.b16 %v2233, %v2229
    %v2998 = vpack.c.b16 %v2238, %v2234
    %v2999 = vpack.c.b16 %v2239, %v2235
    %v3000 = vpack.c.b16 %v2240, %v2236
    %v3001 = vpack.c.b16 %v2241, %v2237
    %v3002 = vpack.c.b16 %v2246, %v2242
    %v3003 = vpack.c.b16 %v2247, %v2243
    %v3004 = vpack.c.b16 %v2248, %v2244
    %v3005 = vpack.c.b16 %v2249, %v2245
    %v3006 = vpack.c.b16 %v2254, %v2250
    %v3007 = vpack.c.b16 %v2255, %v2251
    %v3008 = vpack.c.b16 %v2256, %v2252
    %v3009 = vpack.c.b16 %v2257, %v2253
    %v3010 = vpack.c.b16 %v2262, %v2258
    %v3011 = vpack.c.b16 %v2263, %v2259
    %v3012 = vpack.c.b16 %v2264, %v2260
    %v3013 = vpack.c.b16 %v2265, %v2261
    %v3014 = vpack.c.b16 %v2270, %v2266
    %v3015 = vpack.c.b16 %v2271, %v2267
    %v3016 = vpack.c.b16 %v2272, %v2268
    %v3017 = vpack.c.b16 %v2273, %v2269
    %v3018 = vpack.c.b16 %v2278, %v2274
    %v3019 = vpack.c.b16 %v2279, %v2275
    %v3020 = vpack.c.b16 %v2280, %v2276
    %v3021 = vpack.c.b16 %v2281, %v2277
    %v3022 = vpack.c.b16 %v2286, %v2282
    %v3023 = vpack.c.b16 %v2287, %v2283
    %v3024 = vpack.c.b16 %v2288, %v2284
    %v3025 = vpack.c.b16 %v2289, %v2285
    %v3026 = vpack.c.b16 %v2294, %v2290
    %v3027 = vpack.c.b16 %v2295, %v2291
    %v3028 = vpack.c.b16 %v2296, %v2292
    %v3029 = vpack.c.b16 %v2297, %v2293
    %v3030 = vpack.c.b16 %v2302, %v2298
    %v3031 = vpack.c.b16 %v2303, %v2299
    %v3032 = vpack.c.b16 %v2304, %v2300
    %v3033 = vpack.c.b16 %v2305, %v2301
    %v3034 = vpack.c.b16 %v2310, %v2306
    %v3035 = vpack.c.b16 %v2311, %v2307
    %v3036 = vpack.c.b16 %v2312, %v2308
    %v3037 = vpack.c.b16 %v2313, %v2309
    %v3038 = vpack.c.b16 %v2318, %v2314
    %v3039 = vpack.c.b16 %v2319, %v2315
    %v3040 = vpack.c.b16 %v2320, %v2316
    %v3041 = vpack.c.b16 %v2321, %v2317
    %v3042 = vpack.c.b16 %v2326, %v2322
    %v3043 = vpack.c.b16 %v2327, %v2323
    %v3044 = vpack.c.b16 %v2328, %v2324
    %v3045 = vpack.c.b16 %v2329, %v2325
    %v3046 = vpack.c.b16 %v2334, %v2330
    %v3047 = vpack.c.b16 %v2335, %v2331
    %v3048 = vpack.c.b16 %v2336, %v2332
    %v3049 = vpack.c.b16 %v2337, %v2333
    %v3050 = vpack.c.b16 %v2342, %v2338
    %v3051 = vpack.c.b16 %v2343, %v2339
    %v3052 = vpack.c.b16 %v2344, %v2340
    %v3053 = vpack.c.b16 %v2345, %v2341
    %v3054 = vpack.c.b16 %v2350, %v2346
    %v3055 = vpack.c.b16 %v2351, %v2347
    %v3056 = vpack.c.b16 %v2352, %v2348
    %v3057 = vpack.c.b16 %v2353, %v2349
    %v3058 = vpack.c.b16 %v2358, %v2354
    %v3059 = vpack.c.b16 %v2359, %v2355
    %v3060 = vpack.c.b16 %v2360, %v2356
    %v3061 = vpack.c.b16 %v2361, %v2357
    %v3062 = vpack.c.b16 %v2366, %v2362
    %v3063 = vpack.c.b16 %v2367, %v2363
    %v3064 = vpack.c.b16 %v2368, %v2364
    %v3065 = vpack.c.b16 %v2369, %v2365
    %v3066 = vpack.c.b16 %v2374, %v2370
    %v3067 = vpack.c.b16 %v2375, %v2371
    %v3068 = vpack.c.b16 %v2376, %v2372
    %v3069 = vpack.c.b16 %v2377, %v2373
    %v3070 = vpack.c.b16 %v2382, %v2378
    %v3071 = vpack.c.b16 %v2383, %v2379
    %v3072 = vpack.c.b16 %v2384, %v2380
    %v3073 = vpack.c.b16 %v2385, %v2381
    %v3074 = vpack.c.b16 %v2390, %v2386
    %v3075 = vpack.c.b16 %v2391, %v2387
    %v3076 = vpack.c.b16 %v2392, %v2388
    %v3077 = vpack.c.b16 %v2393, %v2389
    %v3078 = vpack.c.b16 %v2398, %v2394
    %v3079 = vpack.c.b16 %v2399, %v2395
    %v3080 = vpack.c.b16 %v2400, %v2396
    %v3081 = vpack.c.b16 %v2401, %v2397
    %v3082 = vpack.c.b16 %v2406, %v2402
    %v3083 = vpack.c.b16 %v2407, %v2403
    %v3084 = vpack.c.b16 %v2408, %v2404
    %v3085 = vpack.c.b16 %v2409, %v2405
    %v3086 = vpack.c.b16 %v2414, %v2410
    %v3087 = vpack.c.b16 %v2415, %v2411
    %v3088 = vpack.c.b16 %v2416, %v2412
    %v3089 = vpack.c.b16 %v2417, %v2413
    %v3090 = vpack.c.b16 %v2422, %v2418
    %v3091 = vpack.c.b16 %v2423, %v2419
    %v3092 = vpack.c.b16 %v2424, %v2420
    %v3093 = vpack.c.b16 %v2425, %v2421
    %v3094 = vpack.c.b16 %v2430, %v2426
    %v3095 = vpack.c.b16 %v2431, %v2427
    %v3096 = vpack.c.b16 %v2432, %v2428
    %v3097 = vpack.c.b16 %v2433, %v2429
    %v3098 = vpack.c.b16 %v2438, %v2434
    %v3099 = vpack.c.b16 %v2439, %v2435
    %v3100 = vpack.c.b16 %v2440, %v2436
    %v3101 = vpack.c.b16 %v2441, %v2437
    %v3102 = vpack.c.b16 %v2446, %v2442
    %v3103 = vpack.c.b16 %v2447, %v2443
    %v3104 = vpack.c.b16 %v2448, %v2444
    %v3105 = vpack.c.b16 %v2449, %v2445
    %v3106 = vpack.c.b16 %v2454, %v2450
    %v3107 = vpack.c.b16 %v2455, %v2451
    %v3108 = vpack.c.b16 %v2456, %v2452
    %v3109 = vpack.c.b16 %v2457, %v2453
    %v3110 = vpack.c.b16 %v2462, %v2458
    %v3111 = vpack.c.b16 %v2463, %v2459
    %v3112 = vpack.c.b16 %v2464, %v2460
    %v3113 = vpack.c.b16 %v2465, %v2461
    %v3114 = vpack.c.b16 %v2470, %v2466
    %v3115 = vpack.c.b16 %v2471, %v2467
    %v3116 = vpack.c.b16 %v2472, %v2468
    %v3117 = vpack.c.b16 %v2473, %v2469
    %v3118 = vpack.c.b16 %v2478, %v2474
    %v3119 = vpack.c.b16 %v2479, %v2475
    %v3120 = vpack.c.b16 %v2480, %v2476
    %v3121 = vpack.c.b16 %v2481, %v2477
    %v3122 = vpack.c.b16 %v2486, %v2482
    %v3123 = vpack.c.b16 %v2487, %v2483
    %v3124 = vpack.c.b16 %v2488, %v2484
    %v3125 = vpack.c.b16 %v2489, %v2485
    %v3126 = vpack.c.b16 %v2494, %v2490
    %v3127 = vpack.c.b16 %v2495, %v2491
    %v3128 = vpack.c.b16 %v2496, %v2492
    %v3129 = vpack.c.b16 %v2497, %v2493
    %v3130 = vpack.c.b16 %v2502, %v2498
    %v3131 = vpack.c.b16 %v2503, %v2499
    %v3132 = vpack.c.b16 %v2504, %v2500
    %v3133 = vpack.c.b16 %v2505, %v2501
    %v3134 = vpack.c.b16 %v2510, %v2506
    %v3135 = vpack.c.b16 %v2511, %v2507
    %v3136 = vpack.c.b16 %v2512, %v2508
    %v3137 = vpack.c.b16 %v2513, %v2509
    %v3138 = vpack.c.b16 %v2518, %v2514
    %v3139 = vpack.c.b16 %v2519, %v2515
    %v3140 = vpack.c.b16 %v2520, %v2516
    %v3141 = vpack.c.b16 %v2521, %v2517
    %v3142 = vpack.c.b16 %v2526, %v2522
    %v3143 = vpack.c.b16 %v2527, %v2523
    %v3144 = vpack.c.b16 %v2528, %v2524
    %v3145 = vpack.c.b16 %v2529, %v2525
    %v3146 = vpack.c.b16 %v2534, %v2530
    %v3147 = vpack.c.b16 %v2535, %v2531
    %v3148 = vpack.c.b16 %v2536, %v2532
    %v3149 = vpack.c.b16 %v2537, %v2533
    %v3150 = vpack.c.b16 %v2542, %v2538
    %v3151 = vpack.c.b16 %v2543, %v2539
    %v3152 = vpack.c.b16 %v2544, %v2540
    %v3153 = vpack.c.b16 %v2545, %v2541
    %v3154 = vpack.c.b16 %v2550, %v2546
    %v3155 = vpack.c.b16 %v2551, %v2547
    %v3156 = vpack.c.b16 %v2552, %v2548
    %v3157 = vpack.c.b16 %v2553, %v2549
    %v3158 = vpack.c.b16 %v2558, %v2554
    %v3159 = vpack.c.b16 %v2559, %v2555
    %v3160 = vpack.c.b16 %v2560, %v2556
    %v3161 = vpack.c.b16 %v2561, %v2557
    %v3162 = vpack.c.b16 %v2566, %v2562
    %v3163 = vpack.c.b16 %v2567, %v2563
    %v3164 = vpack.c.b16 %v2568, %v2564
    %v3165 = vpack.c.b16 %v2569, %v2565
    %v3166 = vpack.c.b16 %v2574, %v2570
    %v3167 = vpack.c.b16 %v2575, %v2571
    %v3168 = vpack.c.b16 %v2576, %v2572
    %v3169 = vpack.c.b16 %v2577, %v2573
    %v3170 = vpack.c.b16 %v2582, %v2578
    %v3171 = vpack.c.b16 %v2583, %v2579
    %v3172 = vpack.c.b16 %v2584, %v2580
    %v3173 = vpack.c.b16 %v2585, %v2581
    %v3174 = vpack.c.b16 %v2590, %v2586
    %v3175 = vpack.c.b16 %v2591, %v2587
    %v3176 = vpack.c.b16 %v2592, %v2588
    %v3177 = vpack.c.b16 %v2593, %v2589
    %v3178 = vpack.c.b16 %v2598, %v2594
    %v3179 = vpack.c.b16 %v2599, %v2595
    %v3180 = vpack.c.b16 %v2600, %v2596
    %v3181 = vpack.c.b16 %v2601, %v2597
    %v3182 = vpack.c.b16 %v2606, %v2602
    %v3183 = vpack.c.b16 %v2607, %v2603
    %v3184 = vpack.c.b16 %v2608, %v2604
    %v3185 = vpack.c.b16 %v2609, %v2605
    %v3186 = vpack.c.b16 %v2614, %v2610
    %v3187 = vpack.c.b16 %v2615, %v2611
    %v3188 = vpack.c.b16 %v2616, %v2612
    %v3189 = vpack.c.b16 %v2617, %v2613
    %v3190 = vpack.c.b16 %v2622, %v2618
    %v3191 = vpack.c.b16 %v2623, %v2619
    %v3192 = vpack.c.b16 %v2624, %v2620
    %v3193 = vpack.c.b16 %v2625, %v2621
    %v3194 = vpack.c.b16 %v2630, %v2626
    %v3195 = vpack.c.b16 %v2631, %v2627
    %v3196 = vpack.c.b16 %v2632, %v2628
    %v3197 = vpack.c.b16 %v2633, %v2629
    %v3198 = vpack.c.b16 %v2638, %v2634
    %v3199 = vpack.c.b16 %v2639, %v2635
    %v3200 = vpack.c.b16 %v2640, %v2636
    %v3201 = vpack.c.b16 %v2641, %v2637
    %v3202 = vpack.c.b16 %v2646, %v2642
    %v3203 = vpack.c.b16 %v2647, %v2643
    %v3204 = vpack.c.b16 %v2648, %v2644
    %v3205 = vpack.c.b16 %v2649, %v2645
    %v3206 = vpack.c.b16 %v2654, %v2650
    %v3207 = vpack.c.b16 %v2655, %v2651
    %v3208 = vpack.c.b16 %v2656, %v2652
    %v3209 = vpack.c.b16 %v2657, %v2653
    %v3210 = vpack.c.b16 %v2662, %v2658
    %v3211 = vpack.c.b16 %v2663, %v2659
    %v3212 = vpack.c.b16 %v2664, %v2660
    %v3213 = vpack.c.b16 %v2665, %v2661
    %v3214 = vpack.c.b16 %v2670, %v2666
    %v3215 = vpack.c.b16 %v2671, %v2667
    %v3216 = vpack.c.b16 %v2672, %v2668
    %v3217 = vpack.c.b16 %v2673, %v2669
    %v3218 = vpack.c.b16 %v2678, %v2674
    %v3219 = vpack.c.b16 %v2679, %v2675
    %v3220 = vpack.c.b16 %v2680, %v2676
    %v3221 = vpack.c.b16 %v2681, %v2677
    %v3222 = vpack.c.b16 %v2686, %v2682
    %v3223 = vpack.c.b16 %v2687, %v2683
    %v3224 = vpack.c.b16 %v2688, %v2684
    %v3225 = vpack.c.b16 %v2689, %v2685
    %v3226 = vpack.c.b16 %v2694, %v2690
    %v3227 = vpack.c.b16 %v2695, %v2691
    %v3228 = vpack.c.b16 %v2696, %v2692
    %v3229 = vpack.c.b16 %v2697, %v2693
    %v3230 = vpack.c.b16 %v2702, %v2698
    %v3231 = vpack.c.b16 %v2703, %v2699
    %v3232 = vpack.c.b16 %v2704, %v2700
    %v3233 = vpack.c.b16 %v2705, %v2701
    %v3234 = vpack.c.b16 %v2710, %v2706
    %v3235 = vpack.c.b16 %v2711, %v2707
    %v3236 = vpack.c.b16 %v2712, %v2708
    %v3237 = vpack.c.b16 %v2713, %v2709
    %v3238 = vpack.c.b16 %v2718, %v2714
    %v3239 = vpack.c.b16 %v2719, %v2715
    %v3240 = vpack.c.b16 %v2720, %v2716
    %v3241 = vpack.c.b16 %v2721, %v2717
    %v3242 = vpack.c.b16 %v2726, %v2722
    %v3243 = vpack.c.b16 %v2727, %v2723
    %v3244 = vpack.c.b16 %v2728, %v2724
    %v3245 = vpack.c.b16 %v2729, %v2725
    %v3246 = vpack.c.b16 %v2734, %v2730
    %v3247 = vpack.c.b16 %v2735, %v2731
    %v3248 = vpack.c.b16 %v2736, %v2732
    %v3249 = vpack.c.b16 %v2737, %v2733
    %3762 = vmatpush.bf16.msra.mxu0 %v2766
    %3763 = vmatpush.bf16.msra.mxu0 %v2762
    %3764 = vmatpush.bf16.msra.mxu0 %v2758
    %3765 = vmatpush.bf16.msra.mxu0 %v2754
    %3766 = vmatpush.bf16.msra.mxu0 %v2750
    %3767 = vmatpush.bf16.msra.mxu0 %v2746
    %3768 = vmatpush.bf16.msra.mxu0 %v2742
    %3769 = vmatpush.bf16.msra.mxu0 %v2738
    %3770 = vmatmul.bf16.gmra.mxu0 %v674
    %v3771 = vpop.f32.mrf.mxu0
    %v3772 = vadd.f32 0.0, %v3771
    %v3773 = vpop.f32.mrf.mxu0
    %3774 = vdwg.mxu0
    %3775 = vmatpush.bf16.msra.mxu0 %v2798
    %3776 = vmatpush.bf16.msra.mxu0 %v2794
    %3777 = vmatpush.bf16.msra.mxu0 %v2790
    %3778 = vmatpush.bf16.msra.mxu0 %v2786
    %3779 = vmatpush.bf16.msra.mxu0 %v2782
    %3780 = vmatpush.bf16.msra.mxu0 %v2778
    %3781 = vmatpush.bf16.msra.mxu0 %v2774
    %3782 = vmatpush.bf16.msra.mxu0 %v2770
    %3783 = vmatmul.bf16.gmra.mxu0 %v675
    %v3784 = vpop.f32.mrf.mxu0
    %v3785 = vadd.f32 %v3772, %v3784
    %v3786 = vpop.f32.mrf.mxu0
    %3787 = vdwg.mxu0
    %3788 = vmatpush.bf16.msra.mxu0 %v2830
    %3789 = vmatpush.bf16.msra.mxu0 %v2826
    %3790 = vmatpush.bf16.msra.mxu0 %v2822
    %3791 = vmatpush.bf16.msra.mxu0 %v2818
    %3792 = vmatpush.bf16.msra.mxu0 %v2814
    %3793 = vmatpush.bf16.msra.mxu0 %v2810
    %3794 = vmatpush.bf16.msra.mxu0 %v2806
    %3795 = vmatpush.bf16.msra.mxu0 %v2802
    %3796 = vmatmul.bf16.gmra.mxu0 %v676
    %v3797 = vpop.f32.mrf.mxu0
    %v3798 = vadd.f32 %v3785, %v3797
    %v3799 = vpop.f32.mrf.mxu0
    %3800 = vdwg.mxu0
    %3801 = vmatpush.bf16.msra.mxu0 %v2862
    %3802 = vmatpush.bf16.msra.mxu0 %v2858
    %3803 = vmatpush.bf16.msra.mxu0 %v2854
    %3804 = vmatpush.bf16.msra.mxu0 %v2850
    %3805 = vmatpush.bf16.msra.mxu0 %v2846
    %3806 = vmatpush.bf16.msra.mxu0 %v2842
    %3807 = vmatpush.bf16.msra.mxu0 %v2838
    %3808 = vmatpush.bf16.msra.mxu0 %v2834
    %3809 = vmatmul.bf16.gmra.mxu0 %v677
    %v3810 = vpop.f32.mrf.mxu0
    %v3811 = vadd.f32 %v3798, %v3810
    %v3812 = vpop.f32.mrf.mxu0
    %3813 = vdwg.mxu0
    %3814 = vmatpush.bf16.msra.mxu0 %v2894
    %3815 = vmatpush.bf16.msra.mxu0 %v2890
    %3816 = vmatpush.bf16.msra.mxu0 %v2886
    %3817 = vmatpush.bf16.msra.mxu0 %v2882
    %3818 = vmatpush.bf16.msra.mxu0 %v2878
    %3819 = vmatpush.bf16.msra.mxu0 %v2874
    %3820 = vmatpush.bf16.msra.mxu0 %v2870
    %3821 = vmatpush.bf16.msra.mxu0 %v2866
    %3822 = vmatmul.bf16.gmra.mxu0 %v678
    %v3823 = vpop.f32.mrf.mxu0
    %v3824 = vadd.f32 %v3811, %v3823
    %v3825 = vpop.f32.mrf.mxu0
    %3826 = vdwg.mxu0
    %3827 = vmatpush.bf16.msra.mxu0 %v2926
    %3828 = vmatpush.bf16.msra.mxu0 %v2922
    %3829 = vmatpush.bf16.msra.mxu0 %v2918
    %3830 = vmatpush.bf16.msra.mxu0 %v2914
    %3831 = vmatpush.bf16.msra.mxu0 %v2910
    %3832 = vmatpush.bf16.msra.mxu0 %v2906
    %3833 = vmatpush.bf16.msra.mxu0 %v2902
    %3834 = vmatpush.bf16.msra.mxu0 %v2898
    %3835 = vmatmul.bf16.gmra.mxu0 %v679
    %v3836 = vpop.f32.mrf.mxu0
    %v3837 = vadd.f32 %v3824, %v3836
    %v3838 = vpop.f32.mrf.mxu0
    %3839 = vdwg.mxu0
    %3840 = vmatpush.bf16.msra.mxu0 %v2958
    %3841 = vmatpush.bf16.msra.mxu0 %v2954
    %3842 = vmatpush.bf16.msra.mxu0 %v2950
    %3843 = vmatpush.bf16.msra.mxu0 %v2946
    %3844 = vmatpush.bf16.msra.mxu0 %v2942
    %3845 = vmatpush.bf16.msra.mxu0 %v2938
    %3846 = vmatpush.bf16.msra.mxu0 %v2934
    %3847 = vmatpush.bf16.msra.mxu0 %v2930
    %3848 = vmatmul.bf16.gmra.mxu0 %v680
    %v3849 = vpop.f32.mrf.mxu0
    %v3850 = vadd.f32 %v3837, %v3849
    %v3851 = vpop.f32.mrf.mxu0
    %3852 = vdwg.mxu0
    %3853 = vmatpush.bf16.msra.mxu0 %v2990
    %3854 = vmatpush.bf16.msra.mxu0 %v2986
    %3855 = vmatpush.bf16.msra.mxu0 %v2982
    %3856 = vmatpush.bf16.msra.mxu0 %v2978
    %3857 = vmatpush.bf16.msra.mxu0 %v2974
    %3858 = vmatpush.bf16.msra.mxu0 %v2970
    %3859 = vmatpush.bf16.msra.mxu0 %v2966
    %3860 = vmatpush.bf16.msra.mxu0 %v2962
    %3861 = vmatmul.bf16.gmra.mxu0 %v681
    %v3862 = vpop.f32.mrf.mxu0
    %v3863 = vadd.f32 %v3850, %v3862
    %v3864 = vpop.f32.mrf.mxu0
    %3865 = vdwg.mxu0
    %3866 = vmatpush.bf16.msra.mxu0 %v3022
    %3867 = vmatpush.bf16.msra.mxu0 %v3018
    %3868 = vmatpush.bf16.msra.mxu0 %v3014
    %3869 = vmatpush.bf16.msra.mxu0 %v3010
    %3870 = vmatpush.bf16.msra.mxu0 %v3006
    %3871 = vmatpush.bf16.msra.mxu0 %v3002
    %3872 = vmatpush.bf16.msra.mxu0 %v2998
    %3873 = vmatpush.bf16.msra.mxu0 %v2994
    %3874 = vmatmul.bf16.gmra.mxu0 %v682
    %v3875 = vpop.f32.mrf.mxu0
    %v3876 = vadd.f32 %v3863, %v3875
    %v3877 = vpop.f32.mrf.mxu0
    %3878 = vdwg.mxu0
    %3879 = vmatpush.bf16.msra.mxu0 %v3054
    %3880 = vmatpush.bf16.msra.mxu0 %v3050
    %3881 = vmatpush.bf16.msra.mxu0 %v3046
    %3882 = vmatpush.bf16.msra.mxu0 %v3042
    %3883 = vmatpush.bf16.msra.mxu0 %v3038
    %3884 = vmatpush.bf16.msra.mxu0 %v3034
    %3885 = vmatpush.bf16.msra.mxu0 %v3030
    %3886 = vmatpush.bf16.msra.mxu0 %v3026
    %3887 = vmatmul.bf16.gmra.mxu0 %v683
    %v3888 = vpop.f32.mrf.mxu0
    %v3889 = vadd.f32 %v3876, %v3888
    %v3890 = vpop.f32.mrf.mxu0
    %3891 = vdwg.mxu0
    %3892 = vmatpush.bf16.msra.mxu0 %v3086
    %3893 = vmatpush.bf16.msra.mxu0 %v3082
    %3894 = vmatpush.bf16.msra.mxu0 %v3078
    %3895 = vmatpush.bf16.msra.mxu0 %v3074
    %3896 = vmatpush.bf16.msra.mxu0 %v3070
    %3897 = vmatpush.bf16.msra.mxu0 %v3066
    %3898 = vmatpush.bf16.msra.mxu0 %v3062
    %3899 = vmatpush.bf16.msra.mxu0 %v3058
    %3900 = vmatmul.bf16.gmra.mxu0 %v684
    %v3901 = vpop.f32.mrf.mxu0
    %v3902 = vadd.f32 %v3889, %v3901
    %v3903 = vpop.f32.mrf.mxu0
    %3904 = vdwg.mxu0
    %3905 = vmatpush.bf16.msra.mxu0 %v3118
    %3906 = vmatpush.bf16.msra.mxu0 %v3114
    %3907 = vmatpush.bf16.msra.mxu0 %v3110
    %3908 = vmatpush.bf16.msra.mxu0 %v3106
    %3909 = vmatpush.bf16.msra.mxu0 %v3102
    %3910 = vmatpush.bf16.msra.mxu0 %v3098
    %3911 = vmatpush.bf16.msra.mxu0 %v3094
    %3912 = vmatpush.bf16.msra.mxu0 %v3090
    %3913 = vmatmul.bf16.gmra.mxu0 %v685
    %v3914 = vpop.f32.mrf.mxu0
    %v3915 = vadd.f32 %v3902, %v3914
    %v3916 = vpop.f32.mrf.mxu0
    %3917 = vdwg.mxu0
    %3918 = vmatpush.bf16.msra.mxu0 %v3150
    %3919 = vmatpush.bf16.msra.mxu0 %v3146
    %3920 = vmatpush.bf16.msra.mxu0 %v3142
    %3921 = vmatpush.bf16.msra.mxu0 %v3138
    %3922 = vmatpush.bf16.msra.mxu0 %v3134
    %3923 = vmatpush.bf16.msra.mxu0 %v3130
    %3924 = vmatpush.bf16.msra.mxu0 %v3126
    %3925 = vmatpush.bf16.msra.mxu0 %v3122
    %3926 = vmatmul.bf16.gmra.mxu0 %v686
    %v3927 = vpop.f32.mrf.mxu0
    %v3928 = vadd.f32 %v3915, %v3927
    %v3929 = vpop.f32.mrf.mxu0
    %3930 = vdwg.mxu0
    %3931 = vmatpush.bf16.msra.mxu0 %v3182
    %3932 = vmatpush.bf16.msra.mxu0 %v3178
    %3933 = vmatpush.bf16.msra.mxu0 %v3174
    %3934 = vmatpush.bf16.msra.mxu0 %v3170
    %3935 = vmatpush.bf16.msra.mxu0 %v3166
    %3936 = vmatpush.bf16.msra.mxu0 %v3162
    %3937 = vmatpush.bf16.msra.mxu0 %v3158
    %3938 = vmatpush.bf16.msra.mxu0 %v3154
    %3939 = vmatmul.bf16.gmra.mxu0 %v687
    %v3940 = vpop.f32.mrf.mxu0
    %v3941 = vadd.f32 %v3928, %v3940
    %v3942 = vpop.f32.mrf.mxu0
    %3943 = vdwg.mxu0
    %3944 = vmatpush.bf16.msra.mxu0 %v3214
    %3945 = vmatpush.bf16.msra.mxu0 %v3210
    %3946 = vmatpush.bf16.msra.mxu0 %v3206
    %3947 = vmatpush.bf16.msra.mxu0 %v3202
    %3948 = vmatpush.bf16.msra.mxu0 %v3198
    %3949 = vmatpush.bf16.msra.mxu0 %v3194
    %3950 = vmatpush.bf16.msra.mxu0 %v3190
    %3951 = vmatpush.bf16.msra.mxu0 %v3186
    %3952 = vmatmul.bf16.gmra.mxu0 %v688
    %v3953 = vpop.f32.mrf.mxu0
    %v3954 = vadd.f32 %v3941, %v3953
    %v3955 = vpop.f32.mrf.mxu0
    %3956 = vdwg.mxu0
    %3957 = vmatpush.bf16.msra.mxu0 %v3246
    %3958 = vmatpush.bf16.msra.mxu0 %v3242
    %3959 = vmatpush.bf16.msra.mxu0 %v3238
    %3960 = vmatpush.bf16.msra.mxu0 %v3234
    %3961 = vmatpush.bf16.msra.mxu0 %v3230
    %3962 = vmatpush.bf16.msra.mxu0 %v3226
    %3963 = vmatpush.bf16.msra.mxu0 %v3222
    %3964 = vmatpush.bf16.msra.mxu0 %v3218
    %3965 = vmatmul.bf16.gmra.mxu0 %v689
    %v3966 = vpop.f32.mrf.mxu0
    %v3967 = vadd.f32 %v3954, %v3966
    %v3968 = vpop.f32.mrf.mxu0
    %3969 = vdwg.mxu0
    %3970 = vmatpush.bf16.msra.mxu0 %v2767
    %3971 = vmatpush.bf16.msra.mxu0 %v2763
    %3972 = vmatpush.bf16.msra.mxu0 %v2759
    %3973 = vmatpush.bf16.msra.mxu0 %v2755
    %3974 = vmatpush.bf16.msra.mxu0 %v2751
    %3975 = vmatpush.bf16.msra.mxu0 %v2747
    %3976 = vmatpush.bf16.msra.mxu0 %v2743
    %3977 = vmatpush.bf16.msra.mxu0 %v2739
    %3978 = vmatmul.bf16.gmra.mxu0 %v674
    %v3979 = vpop.f32.mrf.mxu0
    %v3980 = vadd.f32 0.0, %v3979
    %v3981 = vpop.f32.mrf.mxu0
    %3982 = vdwg.mxu0
    %3983 = vmatpush.bf16.msra.mxu0 %v2799
    %3984 = vmatpush.bf16.msra.mxu0 %v2795
    %3985 = vmatpush.bf16.msra.mxu0 %v2791
    %3986 = vmatpush.bf16.msra.mxu0 %v2787
    %3987 = vmatpush.bf16.msra.mxu0 %v2783
    %3988 = vmatpush.bf16.msra.mxu0 %v2779
    %3989 = vmatpush.bf16.msra.mxu0 %v2775
    %3990 = vmatpush.bf16.msra.mxu0 %v2771
    %3991 = vmatmul.bf16.gmra.mxu0 %v675
    %v3992 = vpop.f32.mrf.mxu0
    %v3993 = vadd.f32 %v3980, %v3992
    %v3994 = vpop.f32.mrf.mxu0
    %3995 = vdwg.mxu0
    %3996 = vmatpush.bf16.msra.mxu0 %v2831
    %3997 = vmatpush.bf16.msra.mxu0 %v2827
    %3998 = vmatpush.bf16.msra.mxu0 %v2823
    %3999 = vmatpush.bf16.msra.mxu0 %v2819
    %4000 = vmatpush.bf16.msra.mxu0 %v2815
    %4001 = vmatpush.bf16.msra.mxu0 %v2811
    %4002 = vmatpush.bf16.msra.mxu0 %v2807
    %4003 = vmatpush.bf16.msra.mxu0 %v2803
    %4004 = vmatmul.bf16.gmra.mxu0 %v676
    %v4005 = vpop.f32.mrf.mxu0
    %v4006 = vadd.f32 %v3993, %v4005
    %v4007 = vpop.f32.mrf.mxu0
    %4008 = vdwg.mxu0
    %4009 = vmatpush.bf16.msra.mxu0 %v2863
    %4010 = vmatpush.bf16.msra.mxu0 %v2859
    %4011 = vmatpush.bf16.msra.mxu0 %v2855
    %4012 = vmatpush.bf16.msra.mxu0 %v2851
    %4013 = vmatpush.bf16.msra.mxu0 %v2847
    %4014 = vmatpush.bf16.msra.mxu0 %v2843
    %4015 = vmatpush.bf16.msra.mxu0 %v2839
    %4016 = vmatpush.bf16.msra.mxu0 %v2835
    %4017 = vmatmul.bf16.gmra.mxu0 %v677
    %v4018 = vpop.f32.mrf.mxu0
    %v4019 = vadd.f32 %v4006, %v4018
    %v4020 = vpop.f32.mrf.mxu0
    %4021 = vdwg.mxu0
    %4022 = vmatpush.bf16.msra.mxu0 %v2895
    %4023 = vmatpush.bf16.msra.mxu0 %v2891
    %4024 = vmatpush.bf16.msra.mxu0 %v2887
    %4025 = vmatpush.bf16.msra.mxu0 %v2883
    %4026 = vmatpush.bf16.msra.mxu0 %v2879
    %4027 = vmatpush.bf16.msra.mxu0 %v2875
    %4028 = vmatpush.bf16.msra.mxu0 %v2871
    %4029 = vmatpush.bf16.msra.mxu0 %v2867
    %4030 = vmatmul.bf16.gmra.mxu0 %v678
    %v4031 = vpop.f32.mrf.mxu0
    %v4032 = vadd.f32 %v4019, %v4031
    %v4033 = vpop.f32.mrf.mxu0
    %4034 = vdwg.mxu0
    %4035 = vmatpush.bf16.msra.mxu0 %v2927
    %4036 = vmatpush.bf16.msra.mxu0 %v2923
    %4037 = vmatpush.bf16.msra.mxu0 %v2919
    %4038 = vmatpush.bf16.msra.mxu0 %v2915
    %4039 = vmatpush.bf16.msra.mxu0 %v2911
    %4040 = vmatpush.bf16.msra.mxu0 %v2907
    %4041 = vmatpush.bf16.msra.mxu0 %v2903
    %4042 = vmatpush.bf16.msra.mxu0 %v2899
    %4043 = vmatmul.bf16.gmra.mxu0 %v679
    %v4044 = vpop.f32.mrf.mxu0
    %v4045 = vadd.f32 %v4032, %v4044
    %v4046 = vpop.f32.mrf.mxu0
    %4047 = vdwg.mxu0
    %4048 = vmatpush.bf16.msra.mxu0 %v2959
    %4049 = vmatpush.bf16.msra.mxu0 %v2955
    %4050 = vmatpush.bf16.msra.mxu0 %v2951
    %4051 = vmatpush.bf16.msra.mxu0 %v2947
    %4052 = vmatpush.bf16.msra.mxu0 %v2943
    %4053 = vmatpush.bf16.msra.mxu0 %v2939
    %4054 = vmatpush.bf16.msra.mxu0 %v2935
    %4055 = vmatpush.bf16.msra.mxu0 %v2931
    %4056 = vmatmul.bf16.gmra.mxu0 %v680
    %v4057 = vpop.f32.mrf.mxu0
    %v4058 = vadd.f32 %v4045, %v4057
    %v4059 = vpop.f32.mrf.mxu0
    %4060 = vdwg.mxu0
    %4061 = vmatpush.bf16.msra.mxu0 %v2991
    %4062 = vmatpush.bf16.msra.mxu0 %v2987
    %4063 = vmatpush.bf16.msra.mxu0 %v2983
    %4064 = vmatpush.bf16.msra.mxu0 %v2979
    %4065 = vmatpush.bf16.msra.mxu0 %v2975
    %4066 = vmatpush.bf16.msra.mxu0 %v2971
    %4067 = vmatpush.bf16.msra.mxu0 %v2967
    %4068 = vmatpush.bf16.msra.mxu0 %v2963
    %4069 = vmatmul.bf16.gmra.mxu0 %v681
    %v4070 = vpop.f32.mrf.mxu0
    %v4071 = vadd.f32 %v4058, %v4070
    %v4072 = vpop.f32.mrf.mxu0
    %4073 = vdwg.mxu0
    %4074 = vmatpush.bf16.msra.mxu0 %v3023
    %4075 = vmatpush.bf16.msra.mxu0 %v3019
    %4076 = vmatpush.bf16.msra.mxu0 %v3015
    %4077 = vmatpush.bf16.msra.mxu0 %v3011
    %4078 = vmatpush.bf16.msra.mxu0 %v3007
    %4079 = vmatpush.bf16.msra.mxu0 %v3003
    %4080 = vmatpush.bf16.msra.mxu0 %v2999
    %4081 = vmatpush.bf16.msra.mxu0 %v2995
    %4082 = vmatmul.bf16.gmra.mxu0 %v682
    %v4083 = vpop.f32.mrf.mxu0
    %v4084 = vadd.f32 %v4071, %v4083
    %v4085 = vpop.f32.mrf.mxu0
    %4086 = vdwg.mxu0
    %4087 = vmatpush.bf16.msra.mxu0 %v3055
    %4088 = vmatpush.bf16.msra.mxu0 %v3051
    %4089 = vmatpush.bf16.msra.mxu0 %v3047
    %4090 = vmatpush.bf16.msra.mxu0 %v3043
    %4091 = vmatpush.bf16.msra.mxu0 %v3039
    %4092 = vmatpush.bf16.msra.mxu0 %v3035
    %4093 = vmatpush.bf16.msra.mxu0 %v3031
    %4094 = vmatpush.bf16.msra.mxu0 %v3027
    %4095 = vmatmul.bf16.gmra.mxu0 %v683
    %v4096 = vpop.f32.mrf.mxu0
    %v4097 = vadd.f32 %v4084, %v4096
    %v4098 = vpop.f32.mrf.mxu0
    %4099 = vdwg.mxu0
    %4100 = vmatpush.bf16.msra.mxu0 %v3087
    %4101 = vmatpush.bf16.msra.mxu0 %v3083
    %4102 = vmatpush.bf16.msra.mxu0 %v3079
    %4103 = vmatpush.bf16.msra.mxu0 %v3075
    %4104 = vmatpush.bf16.msra.mxu0 %v3071
    %4105 = vmatpush.bf16.msra.mxu0 %v3067
    %4106 = vmatpush.bf16.msra.mxu0 %v3063
    %4107 = vmatpush.bf16.msra.mxu0 %v3059
    %4108 = vmatmul.bf16.gmra.mxu0 %v684
    %v4109 = vpop.f32.mrf.mxu0
    %v4110 = vadd.f32 %v4097, %v4109
    %v4111 = vpop.f32.mrf.mxu0
    %4112 = vdwg.mxu0
    %4113 = vmatpush.bf16.msra.mxu0 %v3119
    %4114 = vmatpush.bf16.msra.mxu0 %v3115
    %4115 = vmatpush.bf16.msra.mxu0 %v3111
    %4116 = vmatpush.bf16.msra.mxu0 %v3107
    %4117 = vmatpush.bf16.msra.mxu0 %v3103
    %4118 = vmatpush.bf16.msra.mxu0 %v3099
    %4119 = vmatpush.bf16.msra.mxu0 %v3095
    %4120 = vmatpush.bf16.msra.mxu0 %v3091
    %4121 = vmatmul.bf16.gmra.mxu0 %v685
    %v4122 = vpop.f32.mrf.mxu0
    %v4123 = vadd.f32 %v4110, %v4122
    %v4124 = vpop.f32.mrf.mxu0
    %4125 = vdwg.mxu0
    %4126 = vmatpush.bf16.msra.mxu0 %v3151
    %4127 = vmatpush.bf16.msra.mxu0 %v3147
    %4128 = vmatpush.bf16.msra.mxu0 %v3143
    %4129 = vmatpush.bf16.msra.mxu0 %v3139
    %4130 = vmatpush.bf16.msra.mxu0 %v3135
    %4131 = vmatpush.bf16.msra.mxu0 %v3131
    %4132 = vmatpush.bf16.msra.mxu0 %v3127
    %4133 = vmatpush.bf16.msra.mxu0 %v3123
    %4134 = vmatmul.bf16.gmra.mxu0 %v686
    %v4135 = vpop.f32.mrf.mxu0
    %v4136 = vadd.f32 %v4123, %v4135
    %v4137 = vpop.f32.mrf.mxu0
    %4138 = vdwg.mxu0
    %4139 = vmatpush.bf16.msra.mxu0 %v3183
    %4140 = vmatpush.bf16.msra.mxu0 %v3179
    %4141 = vmatpush.bf16.msra.mxu0 %v3175
    %4142 = vmatpush.bf16.msra.mxu0 %v3171
    %4143 = vmatpush.bf16.msra.mxu0 %v3167
    %4144 = vmatpush.bf16.msra.mxu0 %v3163
    %4145 = vmatpush.bf16.msra.mxu0 %v3159
    %4146 = vmatpush.bf16.msra.mxu0 %v3155
    %4147 = vmatmul.bf16.gmra.mxu0 %v687
    %v4148 = vpop.f32.mrf.mxu0
    %v4149 = vadd.f32 %v4136, %v4148
    %v4150 = vpop.f32.mrf.mxu0
    %4151 = vdwg.mxu0
    %4152 = vmatpush.bf16.msra.mxu0 %v3215
    %4153 = vmatpush.bf16.msra.mxu0 %v3211
    %4154 = vmatpush.bf16.msra.mxu0 %v3207
    %4155 = vmatpush.bf16.msra.mxu0 %v3203
    %4156 = vmatpush.bf16.msra.mxu0 %v3199
    %4157 = vmatpush.bf16.msra.mxu0 %v3195
    %4158 = vmatpush.bf16.msra.mxu0 %v3191
    %4159 = vmatpush.bf16.msra.mxu0 %v3187
    %4160 = vmatmul.bf16.gmra.mxu0 %v688
    %v4161 = vpop.f32.mrf.mxu0
    %v4162 = vadd.f32 %v4149, %v4161
    %v4163 = vpop.f32.mrf.mxu0
    %4164 = vdwg.mxu0
    %4165 = vmatpush.bf16.msra.mxu0 %v3247
    %4166 = vmatpush.bf16.msra.mxu0 %v3243
    %4167 = vmatpush.bf16.msra.mxu0 %v3239
    %4168 = vmatpush.bf16.msra.mxu0 %v3235
    %4169 = vmatpush.bf16.msra.mxu0 %v3231
    %4170 = vmatpush.bf16.msra.mxu0 %v3227
    %4171 = vmatpush.bf16.msra.mxu0 %v3223
    %4172 = vmatpush.bf16.msra.mxu0 %v3219
    %4173 = vmatmul.bf16.gmra.mxu0 %v689
    %v4174 = vpop.f32.mrf.mxu0
    %v4175 = vadd.f32 %v4162, %v4174
    %v4176 = vpop.f32.mrf.mxu0
    %4177 = vdwg.mxu0
    %4178 = vmatpush.bf16.msra.mxu0 %v2768
    %4179 = vmatpush.bf16.msra.mxu0 %v2764
    %4180 = vmatpush.bf16.msra.mxu0 %v2760
    %4181 = vmatpush.bf16.msra.mxu0 %v2756
    %4182 = vmatpush.bf16.msra.mxu0 %v2752
    %4183 = vmatpush.bf16.msra.mxu0 %v2748
    %4184 = vmatpush.bf16.msra.mxu0 %v2744
    %4185 = vmatpush.bf16.msra.mxu0 %v2740
    %4186 = vmatmul.bf16.gmra.mxu0 %v674
    %v4187 = vpop.f32.mrf.mxu0
    %v4188 = vadd.f32 0.0, %v4187
    %v4189 = vpop.f32.mrf.mxu0
    %4190 = vdwg.mxu0
    %4191 = vmatpush.bf16.msra.mxu0 %v2800
    %4192 = vmatpush.bf16.msra.mxu0 %v2796
    %4193 = vmatpush.bf16.msra.mxu0 %v2792
    %4194 = vmatpush.bf16.msra.mxu0 %v2788
    %4195 = vmatpush.bf16.msra.mxu0 %v2784
    %4196 = vmatpush.bf16.msra.mxu0 %v2780
    %4197 = vmatpush.bf16.msra.mxu0 %v2776
    %4198 = vmatpush.bf16.msra.mxu0 %v2772
    %4199 = vmatmul.bf16.gmra.mxu0 %v675
    %v4200 = vpop.f32.mrf.mxu0
    %v4201 = vadd.f32 %v4188, %v4200
    %v4202 = vpop.f32.mrf.mxu0
    %4203 = vdwg.mxu0
    %4204 = vmatpush.bf16.msra.mxu0 %v2832
    %4205 = vmatpush.bf16.msra.mxu0 %v2828
    %4206 = vmatpush.bf16.msra.mxu0 %v2824
    %4207 = vmatpush.bf16.msra.mxu0 %v2820
    %4208 = vmatpush.bf16.msra.mxu0 %v2816
    %4209 = vmatpush.bf16.msra.mxu0 %v2812
    %4210 = vmatpush.bf16.msra.mxu0 %v2808
    %4211 = vmatpush.bf16.msra.mxu0 %v2804
    %4212 = vmatmul.bf16.gmra.mxu0 %v676
    %v4213 = vpop.f32.mrf.mxu0
    %v4214 = vadd.f32 %v4201, %v4213
    %v4215 = vpop.f32.mrf.mxu0
    %4216 = vdwg.mxu0
    %4217 = vmatpush.bf16.msra.mxu0 %v2864
    %4218 = vmatpush.bf16.msra.mxu0 %v2860
    %4219 = vmatpush.bf16.msra.mxu0 %v2856
    %4220 = vmatpush.bf16.msra.mxu0 %v2852
    %4221 = vmatpush.bf16.msra.mxu0 %v2848
    %4222 = vmatpush.bf16.msra.mxu0 %v2844
    %4223 = vmatpush.bf16.msra.mxu0 %v2840
    %4224 = vmatpush.bf16.msra.mxu0 %v2836
    %4225 = vmatmul.bf16.gmra.mxu0 %v677
    %v4226 = vpop.f32.mrf.mxu0
    %v4227 = vadd.f32 %v4214, %v4226
    %v4228 = vpop.f32.mrf.mxu0
    %4229 = vdwg.mxu0
    %4230 = vmatpush.bf16.msra.mxu0 %v2896
    %4231 = vmatpush.bf16.msra.mxu0 %v2892
    %4232 = vmatpush.bf16.msra.mxu0 %v2888
    %4233 = vmatpush.bf16.msra.mxu0 %v2884
    %4234 = vmatpush.bf16.msra.mxu0 %v2880
    %4235 = vmatpush.bf16.msra.mxu0 %v2876
    %4236 = vmatpush.bf16.msra.mxu0 %v2872
    %4237 = vmatpush.bf16.msra.mxu0 %v2868
    %4238 = vmatmul.bf16.gmra.mxu0 %v678
    %v4239 = vpop.f32.mrf.mxu0
    %v4240 = vadd.f32 %v4227, %v4239
    %v4241 = vpop.f32.mrf.mxu0
    %4242 = vdwg.mxu0
    %4243 = vmatpush.bf16.msra.mxu0 %v2928
    %4244 = vmatpush.bf16.msra.mxu0 %v2924
    %4245 = vmatpush.bf16.msra.mxu0 %v2920
    %4246 = vmatpush.bf16.msra.mxu0 %v2916
    %4247 = vmatpush.bf16.msra.mxu0 %v2912
    %4248 = vmatpush.bf16.msra.mxu0 %v2908
    %4249 = vmatpush.bf16.msra.mxu0 %v2904
    %4250 = vmatpush.bf16.msra.mxu0 %v2900
    %4251 = vmatmul.bf16.gmra.mxu0 %v679
    %v4252 = vpop.f32.mrf.mxu0
    %v4253 = vadd.f32 %v4240, %v4252
    %v4254 = vpop.f32.mrf.mxu0
    %4255 = vdwg.mxu0
    %4256 = vmatpush.bf16.msra.mxu0 %v2960
    %4257 = vmatpush.bf16.msra.mxu0 %v2956
    %4258 = vmatpush.bf16.msra.mxu0 %v2952
    %4259 = vmatpush.bf16.msra.mxu0 %v2948
    %4260 = vmatpush.bf16.msra.mxu0 %v2944
    %4261 = vmatpush.bf16.msra.mxu0 %v2940
    %4262 = vmatpush.bf16.msra.mxu0 %v2936
    %4263 = vmatpush.bf16.msra.mxu0 %v2932
    %4264 = vmatmul.bf16.gmra.mxu0 %v680
    %v4265 = vpop.f32.mrf.mxu0
    %v4266 = vadd.f32 %v4253, %v4265
    %v4267 = vpop.f32.mrf.mxu0
    %4268 = vdwg.mxu0
    %4269 = vmatpush.bf16.msra.mxu0 %v2992
    %4270 = vmatpush.bf16.msra.mxu0 %v2988
    %4271 = vmatpush.bf16.msra.mxu0 %v2984
    %4272 = vmatpush.bf16.msra.mxu0 %v2980
    %4273 = vmatpush.bf16.msra.mxu0 %v2976
    %4274 = vmatpush.bf16.msra.mxu0 %v2972
    %4275 = vmatpush.bf16.msra.mxu0 %v2968
    %4276 = vmatpush.bf16.msra.mxu0 %v2964
    %4277 = vmatmul.bf16.gmra.mxu0 %v681
    %v4278 = vpop.f32.mrf.mxu0
    %v4279 = vadd.f32 %v4266, %v4278
    %v4280 = vpop.f32.mrf.mxu0
    %4281 = vdwg.mxu0
    %4282 = vmatpush.bf16.msra.mxu0 %v3024
    %4283 = vmatpush.bf16.msra.mxu0 %v3020
    %4284 = vmatpush.bf16.msra.mxu0 %v3016
    %4285 = vmatpush.bf16.msra.mxu0 %v3012
    %4286 = vmatpush.bf16.msra.mxu0 %v3008
    %4287 = vmatpush.bf16.msra.mxu0 %v3004
    %4288 = vmatpush.bf16.msra.mxu0 %v3000
    %4289 = vmatpush.bf16.msra.mxu0 %v2996
    %4290 = vmatmul.bf16.gmra.mxu0 %v682
    %v4291 = vpop.f32.mrf.mxu0
    %v4292 = vadd.f32 %v4279, %v4291
    %v4293 = vpop.f32.mrf.mxu0
    %4294 = vdwg.mxu0
    %4295 = vmatpush.bf16.msra.mxu0 %v3056
    %4296 = vmatpush.bf16.msra.mxu0 %v3052
    %4297 = vmatpush.bf16.msra.mxu0 %v3048
    %4298 = vmatpush.bf16.msra.mxu0 %v3044
    %4299 = vmatpush.bf16.msra.mxu0 %v3040
    %4300 = vmatpush.bf16.msra.mxu0 %v3036
    %4301 = vmatpush.bf16.msra.mxu0 %v3032
    %4302 = vmatpush.bf16.msra.mxu0 %v3028
    %4303 = vmatmul.bf16.gmra.mxu0 %v683
    %v4304 = vpop.f32.mrf.mxu0
    %v4305 = vadd.f32 %v4292, %v4304
    %v4306 = vpop.f32.mrf.mxu0
    %4307 = vdwg.mxu0
    %4308 = vmatpush.bf16.msra.mxu0 %v3088
    %4309 = vmatpush.bf16.msra.mxu0 %v3084
    %4310 = vmatpush.bf16.msra.mxu0 %v3080
    %4311 = vmatpush.bf16.msra.mxu0 %v3076
    %4312 = vmatpush.bf16.msra.mxu0 %v3072
    %4313 = vmatpush.bf16.msra.mxu0 %v3068
    %4314 = vmatpush.bf16.msra.mxu0 %v3064
    %4315 = vmatpush.bf16.msra.mxu0 %v3060
    %4316 = vmatmul.bf16.gmra.mxu0 %v684
    %v4317 = vpop.f32.mrf.mxu0
    %v4318 = vadd.f32 %v4305, %v4317
    %v4319 = vpop.f32.mrf.mxu0
    %4320 = vdwg.mxu0
    %4321 = vmatpush.bf16.msra.mxu0 %v3120
    %4322 = vmatpush.bf16.msra.mxu0 %v3116
    %4323 = vmatpush.bf16.msra.mxu0 %v3112
    %4324 = vmatpush.bf16.msra.mxu0 %v3108
    %4325 = vmatpush.bf16.msra.mxu0 %v3104
    %4326 = vmatpush.bf16.msra.mxu0 %v3100
    %4327 = vmatpush.bf16.msra.mxu0 %v3096
    %4328 = vmatpush.bf16.msra.mxu0 %v3092
    %4329 = vmatmul.bf16.gmra.mxu0 %v685
    %v4330 = vpop.f32.mrf.mxu0
    %v4331 = vadd.f32 %v4318, %v4330
    %v4332 = vpop.f32.mrf.mxu0
    %4333 = vdwg.mxu0
    %4334 = vmatpush.bf16.msra.mxu0 %v3152
    %4335 = vmatpush.bf16.msra.mxu0 %v3148
    %4336 = vmatpush.bf16.msra.mxu0 %v3144
    %4337 = vmatpush.bf16.msra.mxu0 %v3140
    %4338 = vmatpush.bf16.msra.mxu0 %v3136
    %4339 = vmatpush.bf16.msra.mxu0 %v3132
    %4340 = vmatpush.bf16.msra.mxu0 %v3128
    %4341 = vmatpush.bf16.msra.mxu0 %v3124
    %4342 = vmatmul.bf16.gmra.mxu0 %v686
    %v4343 = vpop.f32.mrf.mxu0
    %v4344 = vadd.f32 %v4331, %v4343
    %v4345 = vpop.f32.mrf.mxu0
    %4346 = vdwg.mxu0
    %4347 = vmatpush.bf16.msra.mxu0 %v3184
    %4348 = vmatpush.bf16.msra.mxu0 %v3180
    %4349 = vmatpush.bf16.msra.mxu0 %v3176
    %4350 = vmatpush.bf16.msra.mxu0 %v3172
    %4351 = vmatpush.bf16.msra.mxu0 %v3168
    %4352 = vmatpush.bf16.msra.mxu0 %v3164
    %4353 = vmatpush.bf16.msra.mxu0 %v3160
    %4354 = vmatpush.bf16.msra.mxu0 %v3156
    %4355 = vmatmul.bf16.gmra.mxu0 %v687
    %v4356 = vpop.f32.mrf.mxu0
    %v4357 = vadd.f32 %v4344, %v4356
    %v4358 = vpop.f32.mrf.mxu0
    %4359 = vdwg.mxu0
    %4360 = vmatpush.bf16.msra.mxu0 %v3216
    %4361 = vmatpush.bf16.msra.mxu0 %v3212
    %4362 = vmatpush.bf16.msra.mxu0 %v3208
    %4363 = vmatpush.bf16.msra.mxu0 %v3204
    %4364 = vmatpush.bf16.msra.mxu0 %v3200
    %4365 = vmatpush.bf16.msra.mxu0 %v3196
    %4366 = vmatpush.bf16.msra.mxu0 %v3192
    %4367 = vmatpush.bf16.msra.mxu0 %v3188
    %4368 = vmatmul.bf16.gmra.mxu0 %v688
    %v4369 = vpop.f32.mrf.mxu0
    %v4370 = vadd.f32 %v4357, %v4369
    %v4371 = vpop.f32.mrf.mxu0
    %4372 = vdwg.mxu0
    %4373 = vmatpush.bf16.msra.mxu0 %v3248
    %4374 = vmatpush.bf16.msra.mxu0 %v3244
    %4375 = vmatpush.bf16.msra.mxu0 %v3240
    %4376 = vmatpush.bf16.msra.mxu0 %v3236
    %4377 = vmatpush.bf16.msra.mxu0 %v3232
    %4378 = vmatpush.bf16.msra.mxu0 %v3228
    %4379 = vmatpush.bf16.msra.mxu0 %v3224
    %4380 = vmatpush.bf16.msra.mxu0 %v3220
    %4381 = vmatmul.bf16.gmra.mxu0 %v689
    %v4382 = vpop.f32.mrf.mxu0
    %v4383 = vadd.f32 %v4370, %v4382
    %v4384 = vpop.f32.mrf.mxu0
    %4385 = vdwg.mxu0
    %4386 = vmatpush.bf16.msra.mxu0 %v2769
    %4387 = vmatpush.bf16.msra.mxu0 %v2765
    %4388 = vmatpush.bf16.msra.mxu0 %v2761
    %4389 = vmatpush.bf16.msra.mxu0 %v2757
    %4390 = vmatpush.bf16.msra.mxu0 %v2753
    %4391 = vmatpush.bf16.msra.mxu0 %v2749
    %4392 = vmatpush.bf16.msra.mxu0 %v2745
    %4393 = vmatpush.bf16.msra.mxu0 %v2741
    %4394 = vmatmul.bf16.gmra.mxu0 %v674
    %v4395 = vpop.f32.mrf.mxu0
    %v4396 = vadd.f32 0.0, %v4395
    %v4397 = vpop.f32.mrf.mxu0
    %4398 = vdwg.mxu0
    %4399 = vmatpush.bf16.msra.mxu0 %v2801
    %4400 = vmatpush.bf16.msra.mxu0 %v2797
    %4401 = vmatpush.bf16.msra.mxu0 %v2793
    %4402 = vmatpush.bf16.msra.mxu0 %v2789
    %4403 = vmatpush.bf16.msra.mxu0 %v2785
    %4404 = vmatpush.bf16.msra.mxu0 %v2781
    %4405 = vmatpush.bf16.msra.mxu0 %v2777
    %4406 = vmatpush.bf16.msra.mxu0 %v2773
    %4407 = vmatmul.bf16.gmra.mxu0 %v675
    %v4408 = vpop.f32.mrf.mxu0
    %v4409 = vadd.f32 %v4396, %v4408
    %v4410 = vpop.f32.mrf.mxu0
    %4411 = vdwg.mxu0
    %4412 = vmatpush.bf16.msra.mxu0 %v2833
    %4413 = vmatpush.bf16.msra.mxu0 %v2829
    %4414 = vmatpush.bf16.msra.mxu0 %v2825
    %4415 = vmatpush.bf16.msra.mxu0 %v2821
    %4416 = vmatpush.bf16.msra.mxu0 %v2817
    %4417 = vmatpush.bf16.msra.mxu0 %v2813
    %4418 = vmatpush.bf16.msra.mxu0 %v2809
    %4419 = vmatpush.bf16.msra.mxu0 %v2805
    %4420 = vmatmul.bf16.gmra.mxu0 %v676
    %v4421 = vpop.f32.mrf.mxu0
    %v4422 = vadd.f32 %v4409, %v4421
    %v4423 = vpop.f32.mrf.mxu0
    %4424 = vdwg.mxu0
    %4425 = vmatpush.bf16.msra.mxu0 %v2865
    %4426 = vmatpush.bf16.msra.mxu0 %v2861
    %4427 = vmatpush.bf16.msra.mxu0 %v2857
    %4428 = vmatpush.bf16.msra.mxu0 %v2853
    %4429 = vmatpush.bf16.msra.mxu0 %v2849
    %4430 = vmatpush.bf16.msra.mxu0 %v2845
    %4431 = vmatpush.bf16.msra.mxu0 %v2841
    %4432 = vmatpush.bf16.msra.mxu0 %v2837
    %4433 = vmatmul.bf16.gmra.mxu0 %v677
    %v4434 = vpop.f32.mrf.mxu0
    %v4435 = vadd.f32 %v4422, %v4434
    %v4436 = vpop.f32.mrf.mxu0
    %4437 = vdwg.mxu0
    %4438 = vmatpush.bf16.msra.mxu0 %v2897
    %4439 = vmatpush.bf16.msra.mxu0 %v2893
    %4440 = vmatpush.bf16.msra.mxu0 %v2889
    %4441 = vmatpush.bf16.msra.mxu0 %v2885
    %4442 = vmatpush.bf16.msra.mxu0 %v2881
    %4443 = vmatpush.bf16.msra.mxu0 %v2877
    %4444 = vmatpush.bf16.msra.mxu0 %v2873
    %4445 = vmatpush.bf16.msra.mxu0 %v2869
    %4446 = vmatmul.bf16.gmra.mxu0 %v678
    %v4447 = vpop.f32.mrf.mxu0
    %v4448 = vadd.f32 %v4435, %v4447
    %v4449 = vpop.f32.mrf.mxu0
    %4450 = vdwg.mxu0
    %4451 = vmatpush.bf16.msra.mxu0 %v2929
    %4452 = vmatpush.bf16.msra.mxu0 %v2925
    %4453 = vmatpush.bf16.msra.mxu0 %v2921
    %4454 = vmatpush.bf16.msra.mxu0 %v2917
    %4455 = vmatpush.bf16.msra.mxu0 %v2913
    %4456 = vmatpush.bf16.msra.mxu0 %v2909
    %4457 = vmatpush.bf16.msra.mxu0 %v2905
    %4458 = vmatpush.bf16.msra.mxu0 %v2901
    %4459 = vmatmul.bf16.gmra.mxu0 %v679
    %v4460 = vpop.f32.mrf.mxu0
    %v4461 = vadd.f32 %v4448, %v4460
    %v4462 = vpop.f32.mrf.mxu0
    %4463 = vdwg.mxu0
    %4464 = vmatpush.bf16.msra.mxu0 %v2961
    %4465 = vmatpush.bf16.msra.mxu0 %v2957
    %4466 = vmatpush.bf16.msra.mxu0 %v2953
    %4467 = vmatpush.bf16.msra.mxu0 %v2949
    %4468 = vmatpush.bf16.msra.mxu0 %v2945
    %4469 = vmatpush.bf16.msra.mxu0 %v2941
    %4470 = vmatpush.bf16.msra.mxu0 %v2937
    %4471 = vmatpush.bf16.msra.mxu0 %v2933
    %4472 = vmatmul.bf16.gmra.mxu0 %v680
    %v4473 = vpop.f32.mrf.mxu0
    %v4474 = vadd.f32 %v4461, %v4473
    %v4475 = vpop.f32.mrf.mxu0
    %4476 = vdwg.mxu0
    %4477 = vmatpush.bf16.msra.mxu0 %v2993
    %4478 = vmatpush.bf16.msra.mxu0 %v2989
    %4479 = vmatpush.bf16.msra.mxu0 %v2985
    %4480 = vmatpush.bf16.msra.mxu0 %v2981
    %4481 = vmatpush.bf16.msra.mxu0 %v2977
    %4482 = vmatpush.bf16.msra.mxu0 %v2973
    %4483 = vmatpush.bf16.msra.mxu0 %v2969
    %4484 = vmatpush.bf16.msra.mxu0 %v2965
    %4485 = vmatmul.bf16.gmra.mxu0 %v681
    %v4486 = vpop.f32.mrf.mxu0
    %v4487 = vadd.f32 %v4474, %v4486
    %v4488 = vpop.f32.mrf.mxu0
    %4489 = vdwg.mxu0
    %4490 = vmatpush.bf16.msra.mxu0 %v3025
    %4491 = vmatpush.bf16.msra.mxu0 %v3021
    %4492 = vmatpush.bf16.msra.mxu0 %v3017
    %4493 = vmatpush.bf16.msra.mxu0 %v3013
    %4494 = vmatpush.bf16.msra.mxu0 %v3009
    %4495 = vmatpush.bf16.msra.mxu0 %v3005
    %4496 = vmatpush.bf16.msra.mxu0 %v3001
    %4497 = vmatpush.bf16.msra.mxu0 %v2997
    %4498 = vmatmul.bf16.gmra.mxu0 %v682
    %v4499 = vpop.f32.mrf.mxu0
    %v4500 = vadd.f32 %v4487, %v4499
    %v4501 = vpop.f32.mrf.mxu0
    %4502 = vdwg.mxu0
    %4503 = vmatpush.bf16.msra.mxu0 %v3057
    %4504 = vmatpush.bf16.msra.mxu0 %v3053
    %4505 = vmatpush.bf16.msra.mxu0 %v3049
    %4506 = vmatpush.bf16.msra.mxu0 %v3045
    %4507 = vmatpush.bf16.msra.mxu0 %v3041
    %4508 = vmatpush.bf16.msra.mxu0 %v3037
    %4509 = vmatpush.bf16.msra.mxu0 %v3033
    %4510 = vmatpush.bf16.msra.mxu0 %v3029
    %4511 = vmatmul.bf16.gmra.mxu0 %v683
    %v4512 = vpop.f32.mrf.mxu0
    %v4513 = vadd.f32 %v4500, %v4512
    %v4514 = vpop.f32.mrf.mxu0
    %4515 = vdwg.mxu0
    %4516 = vmatpush.bf16.msra.mxu0 %v3089
    %4517 = vmatpush.bf16.msra.mxu0 %v3085
    %4518 = vmatpush.bf16.msra.mxu0 %v3081
    %4519 = vmatpush.bf16.msra.mxu0 %v3077
    %4520 = vmatpush.bf16.msra.mxu0 %v3073
    %4521 = vmatpush.bf16.msra.mxu0 %v3069
    %4522 = vmatpush.bf16.msra.mxu0 %v3065
    %4523 = vmatpush.bf16.msra.mxu0 %v3061
    %4524 = vmatmul.bf16.gmra.mxu0 %v684
    %v4525 = vpop.f32.mrf.mxu0
    %v4526 = vadd.f32 %v4513, %v4525
    %v4527 = vpop.f32.mrf.mxu0
    %4528 = vdwg.mxu0
    %4529 = vmatpush.bf16.msra.mxu0 %v3121
    %4530 = vmatpush.bf16.msra.mxu0 %v3117
    %4531 = vmatpush.bf16.msra.mxu0 %v3113
    %4532 = vmatpush.bf16.msra.mxu0 %v3109
    %4533 = vmatpush.bf16.msra.mxu0 %v3105
    %4534 = vmatpush.bf16.msra.mxu0 %v3101
    %4535 = vmatpush.bf16.msra.mxu0 %v3097
    %4536 = vmatpush.bf16.msra.mxu0 %v3093
    %4537 = vmatmul.bf16.gmra.mxu0 %v685
    %v4538 = vpop.f32.mrf.mxu0
    %v4539 = vadd.f32 %v4526, %v4538
    %v4540 = vpop.f32.mrf.mxu0
    %4541 = vdwg.mxu0
    %4542 = vmatpush.bf16.msra.mxu0 %v3153
    %4543 = vmatpush.bf16.msra.mxu0 %v3149
    %4544 = vmatpush.bf16.msra.mxu0 %v3145
    %4545 = vmatpush.bf16.msra.mxu0 %v3141
    %4546 = vmatpush.bf16.msra.mxu0 %v3137
    %4547 = vmatpush.bf16.msra.mxu0 %v3133
    %4548 = vmatpush.bf16.msra.mxu0 %v3129
    %4549 = vmatpush.bf16.msra.mxu0 %v3125
    %4550 = vmatmul.bf16.gmra.mxu0 %v686
    %v4551 = vpop.f32.mrf.mxu0
    %v4552 = vadd.f32 %v4539, %v4551
    %v4553 = vpop.f32.mrf.mxu0
    %4554 = vdwg.mxu0
    %4555 = vmatpush.bf16.msra.mxu0 %v3185
    %4556 = vmatpush.bf16.msra.mxu0 %v3181
    %4557 = vmatpush.bf16.msra.mxu0 %v3177
    %4558 = vmatpush.bf16.msra.mxu0 %v3173
    %4559 = vmatpush.bf16.msra.mxu0 %v3169
    %4560 = vmatpush.bf16.msra.mxu0 %v3165
    %4561 = vmatpush.bf16.msra.mxu0 %v3161
    %4562 = vmatpush.bf16.msra.mxu0 %v3157
    %4563 = vmatmul.bf16.gmra.mxu0 %v687
    %v4564 = vpop.f32.mrf.mxu0
    %v4565 = vadd.f32 %v4552, %v4564
    %v4566 = vpop.f32.mrf.mxu0
    %4567 = vdwg.mxu0
    %4568 = vmatpush.bf16.msra.mxu0 %v3217
    %4569 = vmatpush.bf16.msra.mxu0 %v3213
    %4570 = vmatpush.bf16.msra.mxu0 %v3209
    %4571 = vmatpush.bf16.msra.mxu0 %v3205
    %4572 = vmatpush.bf16.msra.mxu0 %v3201
    %4573 = vmatpush.bf16.msra.mxu0 %v3197
    %4574 = vmatpush.bf16.msra.mxu0 %v3193
    %4575 = vmatpush.bf16.msra.mxu0 %v3189
    %4576 = vmatmul.bf16.gmra.mxu0 %v688
    %v4577 = vpop.f32.mrf.mxu0
    %v4578 = vadd.f32 %v4565, %v4577
    %v4579 = vpop.f32.mrf.mxu0
    %4580 = vdwg.mxu0
    %4581 = vmatpush.bf16.msra.mxu0 %v3249
    %4582 = vmatpush.bf16.msra.mxu0 %v3245
    %4583 = vmatpush.bf16.msra.mxu0 %v3241
    %4584 = vmatpush.bf16.msra.mxu0 %v3237
    %4585 = vmatpush.bf16.msra.mxu0 %v3233
    %4586 = vmatpush.bf16.msra.mxu0 %v3229
    %4587 = vmatpush.bf16.msra.mxu0 %v3225
    %4588 = vmatpush.bf16.msra.mxu0 %v3221
    %4589 = vmatmul.bf16.gmra.mxu0 %v689
    %v4590 = vpop.f32.mrf.mxu0
    %v4591 = vadd.f32 %v4578, %v4590
    %v4592 = vpop.f32.mrf.mxu0
    %4593 = vdwg.mxu0
    %v5106 = vunpack.c.l.b16 %v146
    %v5107 = vunpack.c.h.b16 %v146
    %v5108 = vunpack.c.l.b16 %v147
    %v5109 = vunpack.c.h.b16 %v147
    %v5110 = vunpack.c.l.b16 %v148
    %v5111 = vunpack.c.h.b16 %v148
    %v5112 = vunpack.c.l.b16 %v149
    %v5113 = vunpack.c.h.b16 %v149
    %v5114 = vunpack.c.l.b16 %v150
    %v5115 = vunpack.c.h.b16 %v150
    %v5116 = vunpack.c.l.b16 %v151
    %v5117 = vunpack.c.h.b16 %v151
    %v5118 = vunpack.c.l.b16 %v152
    %v5119 = vunpack.c.h.b16 %v152
    %v5120 = vunpack.c.l.b16 %v153
    %v5121 = vunpack.c.h.b16 %v153
    %v5122 = vunpack.c.l.b16 %v154
    %v5123 = vunpack.c.h.b16 %v154
    %v5124 = vunpack.c.l.b16 %v155
    %v5125 = vunpack.c.h.b16 %v155
    %v5126 = vunpack.c.l.b16 %v156
    %v5127 = vunpack.c.h.b16 %v156
    %v5128 = vunpack.c.l.b16 %v157
    %v5129 = vunpack.c.h.b16 %v157
    %v5130 = vunpack.c.l.b16 %v158
    %v5131 = vunpack.c.h.b16 %v158
    %v5132 = vunpack.c.l.b16 %v159
    %v5133 = vunpack.c.h.b16 %v159
    %v5134 = vunpack.c.l.b16 %v160
    %v5135 = vunpack.c.h.b16 %v160
    %v5136 = vunpack.c.l.b16 %v161
    %v5137 = vunpack.c.h.b16 %v161
    %v5138 = vunpack.c.l.b16 %v162
    %v5139 = vunpack.c.h.b16 %v162
    %v5140 = vunpack.c.l.b16 %v163
    %v5141 = vunpack.c.h.b16 %v163
    %v5142 = vunpack.c.l.b16 %v164
    %v5143 = vunpack.c.h.b16 %v164
    %v5144 = vunpack.c.l.b16 %v165
    %v5145 = vunpack.c.h.b16 %v165
    %v5146 = vunpack.c.l.b16 %v166
    %v5147 = vunpack.c.h.b16 %v166
    %v5148 = vunpack.c.l.b16 %v167
    %v5149 = vunpack.c.h.b16 %v167
    %v5150 = vunpack.c.l.b16 %v168
    %v5151 = vunpack.c.h.b16 %v168
    %v5152 = vunpack.c.l.b16 %v169
    %v5153 = vunpack.c.h.b16 %v169
    %v5154 = vunpack.c.l.b16 %v170
    %v5155 = vunpack.c.h.b16 %v170
    %v5156 = vunpack.c.l.b16 %v171
    %v5157 = vunpack.c.h.b16 %v171
    %v5158 = vunpack.c.l.b16 %v172
    %v5159 = vunpack.c.h.b16 %v172
    %v5160 = vunpack.c.l.b16 %v173
    %v5161 = vunpack.c.h.b16 %v173
    %v5162 = vunpack.c.l.b16 %v174
    %v5163 = vunpack.c.h.b16 %v174
    %v5164 = vunpack.c.l.b16 %v175
    %v5165 = vunpack.c.h.b16 %v175
    %v5166 = vunpack.c.l.b16 %v176
    %v5167 = vunpack.c.h.b16 %v176
    %v5168 = vunpack.c.l.b16 %v177
    %v5169 = vunpack.c.h.b16 %v177
    %v5170 = vunpack.c.l.b16 %v178
    %v5171 = vunpack.c.h.b16 %v178
    %v5172 = vunpack.c.l.b16 %v179
    %v5173 = vunpack.c.h.b16 %v179
    %v5174 = vunpack.c.l.b16 %v180
    %v5175 = vunpack.c.h.b16 %v180
    %v5176 = vunpack.c.l.b16 %v181
    %v5177 = vunpack.c.h.b16 %v181
    %v5178 = vunpack.c.l.b16 %v182
    %v5179 = vunpack.c.h.b16 %v182
    %v5180 = vunpack.c.l.b16 %v183
    %v5181 = vunpack.c.h.b16 %v183
    %v5182 = vunpack.c.l.b16 %v184
    %v5183 = vunpack.c.h.b16 %v184
    %v5184 = vunpack.c.l.b16 %v185
    %v5185 = vunpack.c.h.b16 %v185
    %v5186 = vunpack.c.l.b16 %v186
    %v5187 = vunpack.c.h.b16 %v186
    %v5188 = vunpack.c.l.b16 %v187
    %v5189 = vunpack.c.h.b16 %v187
    %v5190 = vunpack.c.l.b16 %v188
    %v5191 = vunpack.c.h.b16 %v188
    %v5192 = vunpack.c.l.b16 %v189
    %v5193 = vunpack.c.h.b16 %v189
    %v5194 = vunpack.c.l.b16 %v190
    %v5195 = vunpack.c.h.b16 %v190
    %v5196 = vunpack.c.l.b16 %v191
    %v5197 = vunpack.c.h.b16 %v191
    %v5198 = vunpack.c.l.b16 %v192
    %v5199 = vunpack.c.h.b16 %v192
    %v5200 = vunpack.c.l.b16 %v193
    %v5201 = vunpack.c.h.b16 %v193
    %v5202 = vunpack.c.l.b16 %v194
    %v5203 = vunpack.c.h.b16 %v194
    %v5204 = vunpack.c.l.b16 %v195
    %v5205 = vunpack.c.h.b16 %v195
    %v5206 = vunpack.c.l.b16 %v196
    %v5207 = vunpack.c.h.b16 %v196
    %v5208 = vunpack.c.l.b16 %v197
    %v5209 = vunpack.c.h.b16 %v197
    %v5210 = vunpack.c.l.b16 %v198
    %v5211 = vunpack.c.h.b16 %v198
    %v5212 = vunpack.c.l.b16 %v199
    %v5213 = vunpack.c.h.b16 %v199
    %v5214 = vunpack.c.l.b16 %v200
    %v5215 = vunpack.c.h.b16 %v200
    %v5216 = vunpack.c.l.b16 %v201
    %v5217 = vunpack.c.h.b16 %v201
    %v5218 = vunpack.c.l.b16 %v202
    %v5219 = vunpack.c.h.b16 %v202
    %v5220 = vunpack.c.l.b16 %v203
    %v5221 = vunpack.c.h.b16 %v203
    %v5222 = vunpack.c.l.b16 %v204
    %v5223 = vunpack.c.h.b16 %v204
    %v5224 = vunpack.c.l.b16 %v205
    %v5225 = vunpack.c.h.b16 %v205
    %v5226 = vunpack.c.l.b16 %v206
    %v5227 = vunpack.c.h.b16 %v206
    %v5228 = vunpack.c.l.b16 %v207
    %v5229 = vunpack.c.h.b16 %v207
    %v5230 = vunpack.c.l.b16 %v208
    %v5231 = vunpack.c.h.b16 %v208
    %v5232 = vunpack.c.l.b16 %v209
    %v5233 = vunpack.c.h.b16 %v209
    %v5234 = vunpack.c.l.b16 %v210
    %v5235 = vunpack.c.h.b16 %v210
    %v5236 = vunpack.c.l.b16 %v211
    %v5237 = vunpack.c.h.b16 %v211
    %v5238 = vunpack.c.l.b16 %v212
    %v5239 = vunpack.c.h.b16 %v212
    %v5240 = vunpack.c.l.b16 %v213
    %v5241 = vunpack.c.h.b16 %v213
    %v5242 = vunpack.c.l.b16 %v214
    %v5243 = vunpack.c.h.b16 %v214
    %v5244 = vunpack.c.l.b16 %v215
    %v5245 = vunpack.c.h.b16 %v215
    %v5246 = vunpack.c.l.b16 %v216
    %v5247 = vunpack.c.h.b16 %v216
    %v5248 = vunpack.c.l.b16 %v217
    %v5249 = vunpack.c.h.b16 %v217
    %v5250 = vunpack.c.l.b16 %v218
    %v5251 = vunpack.c.h.b16 %v218
    %v5252 = vunpack.c.l.b16 %v219
    %v5253 = vunpack.c.h.b16 %v219
    %v5254 = vunpack.c.l.b16 %v220
    %v5255 = vunpack.c.h.b16 %v220
    %v5256 = vunpack.c.l.b16 %v221
    %v5257 = vunpack.c.h.b16 %v221
    %v5258 = vunpack.c.l.b16 %v222
    %v5259 = vunpack.c.h.b16 %v222
    %v5260 = vunpack.c.l.b16 %v223
    %v5261 = vunpack.c.h.b16 %v223
    %v5262 = vunpack.c.l.b16 %v224
    %v5263 = vunpack.c.h.b16 %v224
    %v5264 = vunpack.c.l.b16 %v225
    %v5265 = vunpack.c.h.b16 %v225
    %v5266 = vunpack.c.l.b16 %v226
    %v5267 = vunpack.c.h.b16 %v226
    %v5268 = vunpack.c.l.b16 %v227
    %v5269 = vunpack.c.h.b16 %v227
    %v5270 = vunpack.c.l.b16 %v228
    %v5271 = vunpack.c.h.b16 %v228
    %v5272 = vunpack.c.l.b16 %v229
    %v5273 = vunpack.c.h.b16 %v229
    %v5274 = vunpack.c.l.b16 %v230
    %v5275 = vunpack.c.h.b16 %v230
    %v5276 = vunpack.c.l.b16 %v231
    %v5277 = vunpack.c.h.b16 %v231
    %v5278 = vunpack.c.l.b16 %v232
    %v5279 = vunpack.c.h.b16 %v232
    %v5280 = vunpack.c.l.b16 %v233
    %v5281 = vunpack.c.h.b16 %v233
    %v5282 = vunpack.c.l.b16 %v234
    %v5283 = vunpack.c.h.b16 %v234
    %v5284 = vunpack.c.l.b16 %v235
    %v5285 = vunpack.c.h.b16 %v235
    %v5286 = vunpack.c.l.b16 %v236
    %v5287 = vunpack.c.h.b16 %v236
    %v5288 = vunpack.c.l.b16 %v237
    %v5289 = vunpack.c.h.b16 %v237
    %v5290 = vunpack.c.l.b16 %v238
    %v5291 = vunpack.c.h.b16 %v238
    %v5292 = vunpack.c.l.b16 %v239
    %v5293 = vunpack.c.h.b16 %v239
    %v5294 = vunpack.c.l.b16 %v240
    %v5295 = vunpack.c.h.b16 %v240
    %v5296 = vunpack.c.l.b16 %v241
    %v5297 = vunpack.c.h.b16 %v241
    %v5298 = vunpack.c.l.b16 %v242
    %v5299 = vunpack.c.h.b16 %v242
    %v5300 = vunpack.c.l.b16 %v243
    %v5301 = vunpack.c.h.b16 %v243
    %v5302 = vunpack.c.l.b16 %v244
    %v5303 = vunpack.c.h.b16 %v244
    %v5304 = vunpack.c.l.b16 %v245
    %v5305 = vunpack.c.h.b16 %v245
    %v5306 = vunpack.c.l.b16 %v246
    %v5307 = vunpack.c.h.b16 %v246
    %v5308 = vunpack.c.l.b16 %v247
    %v5309 = vunpack.c.h.b16 %v247
    %v5310 = vunpack.c.l.b16 %v248
    %v5311 = vunpack.c.h.b16 %v248
    %v5312 = vunpack.c.l.b16 %v249
    %v5313 = vunpack.c.h.b16 %v249
    %v5314 = vunpack.c.l.b16 %v250
    %v5315 = vunpack.c.h.b16 %v250
    %v5316 = vunpack.c.l.b16 %v251
    %v5317 = vunpack.c.h.b16 %v251
    %v5318 = vunpack.c.l.b16 %v252
    %v5319 = vunpack.c.h.b16 %v252
    %v5320 = vunpack.c.l.b16 %v253
    %v5321 = vunpack.c.h.b16 %v253
    %v5322 = vunpack.c.l.b16 %v254
    %v5323 = vunpack.c.h.b16 %v254
    %v5324 = vunpack.c.l.b16 %v255
    %v5325 = vunpack.c.h.b16 %v255
    %v5326 = vunpack.c.l.b16 %v256
    %v5327 = vunpack.c.h.b16 %v256
    %v5328 = vunpack.c.l.b16 %v257
    %v5329 = vunpack.c.h.b16 %v257
    %v5330 = vunpack.c.l.b16 %v258
    %v5331 = vunpack.c.h.b16 %v258
    %v5332 = vunpack.c.l.b16 %v259
    %v5333 = vunpack.c.h.b16 %v259
    %v5334 = vunpack.c.l.b16 %v260
    %v5335 = vunpack.c.h.b16 %v260
    %v5336 = vunpack.c.l.b16 %v261
    %v5337 = vunpack.c.h.b16 %v261
    %v5338 = vunpack.c.l.b16 %v262
    %v5339 = vunpack.c.h.b16 %v262
    %v5340 = vunpack.c.l.b16 %v263
    %v5341 = vunpack.c.h.b16 %v263
    %v5342 = vunpack.c.l.b16 %v264
    %v5343 = vunpack.c.h.b16 %v264
    %v5344 = vunpack.c.l.b16 %v265
    %v5345 = vunpack.c.h.b16 %v265
    %v5346 = vunpack.c.l.b16 %v266
    %v5347 = vunpack.c.h.b16 %v266
    %v5348 = vunpack.c.l.b16 %v267
    %v5349 = vunpack.c.h.b16 %v267
    %v5350 = vunpack.c.l.b16 %v268
    %v5351 = vunpack.c.h.b16 %v268
    %v5352 = vunpack.c.l.b16 %v269
    %v5353 = vunpack.c.h.b16 %v269
    %v5354 = vunpack.c.l.b16 %v270
    %v5355 = vunpack.c.h.b16 %v270
    %v5356 = vunpack.c.l.b16 %v271
    %v5357 = vunpack.c.h.b16 %v271
    %v5358 = vunpack.c.l.b16 %v272
    %v5359 = vunpack.c.h.b16 %v272
    %v5360 = vunpack.c.l.b16 %v273
    %v5361 = vunpack.c.h.b16 %v273
    %v5362 = vunpack.c.l.b16 %v274
    %v5363 = vunpack.c.h.b16 %v274
    %v5364 = vunpack.c.l.b16 %v275
    %v5365 = vunpack.c.h.b16 %v275
    %v5366 = vunpack.c.l.b16 %v276
    %v5367 = vunpack.c.h.b16 %v276
    %v5368 = vunpack.c.l.b16 %v277
    %v5369 = vunpack.c.h.b16 %v277
    %v5370 = vunpack.c.l.b16 %v278
    %v5371 = vunpack.c.h.b16 %v278
    %v5372 = vunpack.c.l.b16 %v279
    %v5373 = vunpack.c.h.b16 %v279
    %v5374 = vunpack.c.l.b16 %v280
    %v5375 = vunpack.c.h.b16 %v280
    %v5376 = vunpack.c.l.b16 %v281
    %v5377 = vunpack.c.h.b16 %v281
    %v5378 = vunpack.c.l.b16 %v282
    %v5379 = vunpack.c.h.b16 %v282
    %v5380 = vunpack.c.l.b16 %v283
    %v5381 = vunpack.c.h.b16 %v283
    %v5382 = vunpack.c.l.b16 %v284
    %v5383 = vunpack.c.h.b16 %v284
    %v5384 = vunpack.c.l.b16 %v285
    %v5385 = vunpack.c.h.b16 %v285
    %v5386 = vunpack.c.l.b16 %v286
    %v5387 = vunpack.c.h.b16 %v286
    %v5388 = vunpack.c.l.b16 %v287
    %v5389 = vunpack.c.h.b16 %v287
    %v5390 = vunpack.c.l.b16 %v288
    %v5391 = vunpack.c.h.b16 %v288
    %v5392 = vunpack.c.l.b16 %v289
    %v5393 = vunpack.c.h.b16 %v289
    %v5394 = vunpack.c.l.b16 %v290
    %v5395 = vunpack.c.h.b16 %v290
    %v5396 = vunpack.c.l.b16 %v291
    %v5397 = vunpack.c.h.b16 %v291
    %v5398 = vunpack.c.l.b16 %v292
    %v5399 = vunpack.c.h.b16 %v292
    %v5400 = vunpack.c.l.b16 %v293
    %v5401 = vunpack.c.h.b16 %v293
    %v5402 = vunpack.c.l.b16 %v294
    %v5403 = vunpack.c.h.b16 %v294
    %v5404 = vunpack.c.l.b16 %v295
    %v5405 = vunpack.c.h.b16 %v295
    %v5406 = vunpack.c.l.b16 %v296
    %v5407 = vunpack.c.h.b16 %v296
    %v5408 = vunpack.c.l.b16 %v297
    %v5409 = vunpack.c.h.b16 %v297
    %v5410 = vunpack.c.l.b16 %v298
    %v5411 = vunpack.c.h.b16 %v298
    %v5412 = vunpack.c.l.b16 %v299
    %v5413 = vunpack.c.h.b16 %v299
    %v5414 = vunpack.c.l.b16 %v300
    %v5415 = vunpack.c.h.b16 %v300
    %v5416 = vunpack.c.l.b16 %v301
    %v5417 = vunpack.c.h.b16 %v301
    %v5418 = vunpack.c.l.b16 %v302
    %v5419 = vunpack.c.h.b16 %v302
    %v5420 = vunpack.c.l.b16 %v303
    %v5421 = vunpack.c.h.b16 %v303
    %v5422 = vunpack.c.l.b16 %v304
    %v5423 = vunpack.c.h.b16 %v304
    %v5424 = vunpack.c.l.b16 %v305
    %v5425 = vunpack.c.h.b16 %v305
    %v5426 = vunpack.c.l.b16 %v306
    %v5427 = vunpack.c.h.b16 %v306
    %v5428 = vunpack.c.l.b16 %v307
    %v5429 = vunpack.c.h.b16 %v307
    %v5430 = vunpack.c.l.b16 %v308
    %v5431 = vunpack.c.h.b16 %v308
    %v5432 = vunpack.c.l.b16 %v309
    %v5433 = vunpack.c.h.b16 %v309
    %v5434 = vunpack.c.l.b16 %v310
    %v5435 = vunpack.c.h.b16 %v310
    %v5436 = vunpack.c.l.b16 %v311
    %v5437 = vunpack.c.h.b16 %v311
    %v5438 = vunpack.c.l.b16 %v312
    %v5439 = vunpack.c.h.b16 %v312
    %v5440 = vunpack.c.l.b16 %v313
    %v5441 = vunpack.c.h.b16 %v313
    %v5442 = vunpack.c.l.b16 %v314
    %v5443 = vunpack.c.h.b16 %v314
    %v5444 = vunpack.c.l.b16 %v315
    %v5445 = vunpack.c.h.b16 %v315
    %v5446 = vunpack.c.l.b16 %v316
    %v5447 = vunpack.c.h.b16 %v316
    %v5448 = vunpack.c.l.b16 %v317
    %v5449 = vunpack.c.h.b16 %v317
    %v5450 = vunpack.c.l.b16 %v318
    %v5451 = vunpack.c.h.b16 %v318
    %v5452 = vunpack.c.l.b16 %v319
    %v5453 = vunpack.c.h.b16 %v319
    %v5454 = vunpack.c.l.b16 %v320
    %v5455 = vunpack.c.h.b16 %v320
    %v5456 = vunpack.c.l.b16 %v321
    %v5457 = vunpack.c.h.b16 %v321
    %v5458 = vunpack.c.l.b16 %v322
    %v5459 = vunpack.c.h.b16 %v322
    %v5460 = vunpack.c.l.b16 %v323
    %v5461 = vunpack.c.h.b16 %v323
    %v5462 = vunpack.c.l.b16 %v324
    %v5463 = vunpack.c.h.b16 %v324
    %v5464 = vunpack.c.l.b16 %v325
    %v5465 = vunpack.c.h.b16 %v325
    %v5466 = vunpack.c.l.b16 %v326
    %v5467 = vunpack.c.h.b16 %v326
    %v5468 = vunpack.c.l.b16 %v327
    %v5469 = vunpack.c.h.b16 %v327
    %v5470 = vunpack.c.l.b16 %v328
    %v5471 = vunpack.c.h.b16 %v328
    %v5472 = vunpack.c.l.b16 %v329
    %v5473 = vunpack.c.h.b16 %v329
    %v5474 = vunpack.c.l.b16 %v330
    %v5475 = vunpack.c.h.b16 %v330
    %v5476 = vunpack.c.l.b16 %v331
    %v5477 = vunpack.c.h.b16 %v331
    %v5478 = vunpack.c.l.b16 %v332
    %v5479 = vunpack.c.h.b16 %v332
    %v5480 = vunpack.c.l.b16 %v333
    %v5481 = vunpack.c.h.b16 %v333
    %v5482 = vunpack.c.l.b16 %v334
    %v5483 = vunpack.c.h.b16 %v334
    %v5484 = vunpack.c.l.b16 %v335
    %v5485 = vunpack.c.h.b16 %v335
    %v5486 = vunpack.c.l.b16 %v336
    %v5487 = vunpack.c.h.b16 %v336
    %v5488 = vunpack.c.l.b16 %v337
    %v5489 = vunpack.c.h.b16 %v337
    %v5490 = vunpack.c.l.b16 %v338
    %v5491 = vunpack.c.h.b16 %v338
    %v5492 = vunpack.c.l.b16 %v339
    %v5493 = vunpack.c.h.b16 %v339
    %v5494 = vunpack.c.l.b16 %v340
    %v5495 = vunpack.c.h.b16 %v340
    %v5496 = vunpack.c.l.b16 %v341
    %v5497 = vunpack.c.h.b16 %v341
    %v5498 = vunpack.c.l.b16 %v342
    %v5499 = vunpack.c.h.b16 %v342
    %v5500 = vunpack.c.l.b16 %v343
    %v5501 = vunpack.c.h.b16 %v343
    %v5502 = vunpack.c.l.b16 %v344
    %v5503 = vunpack.c.h.b16 %v344
    %v5504 = vunpack.c.l.b16 %v345
    %v5505 = vunpack.c.h.b16 %v345
    %v5506 = vunpack.c.l.b16 %v346
    %v5507 = vunpack.c.h.b16 %v346
    %v5508 = vunpack.c.l.b16 %v347
    %v5509 = vunpack.c.h.b16 %v347
    %v5510 = vunpack.c.l.b16 %v348
    %v5511 = vunpack.c.h.b16 %v348
    %v5512 = vunpack.c.l.b16 %v349
    %v5513 = vunpack.c.h.b16 %v349
    %v5514 = vunpack.c.l.b16 %v350
    %v5515 = vunpack.c.h.b16 %v350
    %v5516 = vunpack.c.l.b16 %v351
    %v5517 = vunpack.c.h.b16 %v351
    %v5518 = vunpack.c.l.b16 %v352
    %v5519 = vunpack.c.h.b16 %v352
    %v5520 = vunpack.c.l.b16 %v353
    %v5521 = vunpack.c.h.b16 %v353
    %v5522 = vunpack.c.l.b16 %v354
    %v5523 = vunpack.c.h.b16 %v354
    %v5524 = vunpack.c.l.b16 %v355
    %v5525 = vunpack.c.h.b16 %v355
    %v5526 = vunpack.c.l.b16 %v356
    %v5527 = vunpack.c.h.b16 %v356
    %v5528 = vunpack.c.l.b16 %v357
    %v5529 = vunpack.c.h.b16 %v357
    %v5530 = vunpack.c.l.b16 %v358
    %v5531 = vunpack.c.h.b16 %v358
    %v5532 = vunpack.c.l.b16 %v359
    %v5533 = vunpack.c.h.b16 %v359
    %v5534 = vunpack.c.l.b16 %v360
    %v5535 = vunpack.c.h.b16 %v360
    %v5536 = vunpack.c.l.b16 %v361
    %v5537 = vunpack.c.h.b16 %v361
    %v5538 = vunpack.c.l.b16 %v362
    %v5539 = vunpack.c.h.b16 %v362
    %v5540 = vunpack.c.l.b16 %v363
    %v5541 = vunpack.c.h.b16 %v363
    %v5542 = vunpack.c.l.b16 %v364
    %v5543 = vunpack.c.h.b16 %v364
    %v5544 = vunpack.c.l.b16 %v365
    %v5545 = vunpack.c.h.b16 %v365
    %v5546 = vunpack.c.l.b16 %v366
    %v5547 = vunpack.c.h.b16 %v366
    %v5548 = vunpack.c.l.b16 %v367
    %v5549 = vunpack.c.h.b16 %v367
    %v5550 = vunpack.c.l.b16 %v368
    %v5551 = vunpack.c.h.b16 %v368
    %v5552 = vunpack.c.l.b16 %v369
    %v5553 = vunpack.c.h.b16 %v369
    %v5554 = vunpack.c.l.b16 %v370
    %v5555 = vunpack.c.h.b16 %v370
    %v5556 = vunpack.c.l.b16 %v371
    %v5557 = vunpack.c.h.b16 %v371
    %v5558 = vunpack.c.l.b16 %v372
    %v5559 = vunpack.c.h.b16 %v372
    %v5560 = vunpack.c.l.b16 %v373
    %v5561 = vunpack.c.h.b16 %v373
    %v5562 = vunpack.c.l.b16 %v374
    %v5563 = vunpack.c.h.b16 %v374
    %v5564 = vunpack.c.l.b16 %v375
    %v5565 = vunpack.c.h.b16 %v375
    %v5566 = vunpack.c.l.b16 %v376
    %v5567 = vunpack.c.h.b16 %v376
    %v5568 = vunpack.c.l.b16 %v377
    %v5569 = vunpack.c.h.b16 %v377
    %v5570 = vunpack.c.l.b16 %v378
    %v5571 = vunpack.c.h.b16 %v378
    %v5572 = vunpack.c.l.b16 %v379
    %v5573 = vunpack.c.h.b16 %v379
    %v5574 = vunpack.c.l.b16 %v380
    %v5575 = vunpack.c.h.b16 %v380
    %v5576 = vunpack.c.l.b16 %v381
    %v5577 = vunpack.c.h.b16 %v381
    %v5578 = vunpack.c.l.b16 %v382
    %v5579 = vunpack.c.h.b16 %v382
    %v5580 = vunpack.c.l.b16 %v383
    %v5581 = vunpack.c.h.b16 %v383
    %v5582 = vunpack.c.l.b16 %v384
    %v5583 = vunpack.c.h.b16 %v384
    %v5584 = vunpack.c.l.b16 %v385
    %v5585 = vunpack.c.h.b16 %v385
    %v5586 = vunpack.c.l.b16 %v386
    %v5587 = vunpack.c.h.b16 %v386
    %v5588 = vunpack.c.l.b16 %v387
    %v5589 = vunpack.c.h.b16 %v387
    %v5590 = vunpack.c.l.b16 %v388
    %v5591 = vunpack.c.h.b16 %v388
    %v5592 = vunpack.c.l.b16 %v389
    %v5593 = vunpack.c.h.b16 %v389
    %v5594 = vunpack.c.l.b16 %v390
    %v5595 = vunpack.c.h.b16 %v390
    %v5596 = vunpack.c.l.b16 %v391
    %v5597 = vunpack.c.h.b16 %v391
    %v5598 = vunpack.c.l.b16 %v392
    %v5599 = vunpack.c.h.b16 %v392
    %v5600 = vunpack.c.l.b16 %v393
    %v5601 = vunpack.c.h.b16 %v393
    %v5602 = vunpack.c.l.b16 %v394
    %v5603 = vunpack.c.h.b16 %v394
    %v5604 = vunpack.c.l.b16 %v395
    %v5605 = vunpack.c.h.b16 %v395
    %v5606 = vunpack.c.l.b16 %v396
    %v5607 = vunpack.c.h.b16 %v396
    %v5608 = vunpack.c.l.b16 %v397
    %v5609 = vunpack.c.h.b16 %v397
    %v5610 = vunpack.c.l.b16 %v398
    %v5611 = vunpack.c.h.b16 %v398
    %v5612 = vunpack.c.l.b16 %v399
    %v5613 = vunpack.c.h.b16 %v399
    %v5614 = vunpack.c.l.b16 %v400
    %v5615 = vunpack.c.h.b16 %v400
    %v5616 = vunpack.c.l.b16 %v401
    %v5617 = vunpack.c.h.b16 %v401
    %v5618 = vunpack.c.l.b16 %v402
    %v5619 = vunpack.c.h.b16 %v402
    %v5620 = vunpack.c.l.b16 %v403
    %v5621 = vunpack.c.h.b16 %v403
    %v5622 = vunpack.c.l.b16 %v404
    %v5623 = vunpack.c.h.b16 %v404
    %v5624 = vunpack.c.l.b16 %v405
    %v5625 = vunpack.c.h.b16 %v405
    %v5626 = vunpack.c.l.b16 %v406
    %v5627 = vunpack.c.h.b16 %v406
    %v5628 = vunpack.c.l.b16 %v407
    %v5629 = vunpack.c.h.b16 %v407
    %v5630 = vunpack.c.l.b16 %v408
    %v5631 = vunpack.c.h.b16 %v408
    %v5632 = vunpack.c.l.b16 %v409
    %v5633 = vunpack.c.h.b16 %v409
    %v5634 = vunpack.c.l.b16 %v410
    %v5635 = vunpack.c.h.b16 %v410
    %v5636 = vunpack.c.l.b16 %v411
    %v5637 = vunpack.c.h.b16 %v411
    %v5638 = vunpack.c.l.b16 %v412
    %v5639 = vunpack.c.h.b16 %v412
    %v5640 = vunpack.c.l.b16 %v413
    %v5641 = vunpack.c.h.b16 %v413
    %v5642 = vunpack.c.l.b16 %v414
    %v5643 = vunpack.c.h.b16 %v414
    %v5644 = vunpack.c.l.b16 %v415
    %v5645 = vunpack.c.h.b16 %v415
    %v5646 = vunpack.c.l.b16 %v416
    %v5647 = vunpack.c.h.b16 %v416
    %v5648 = vunpack.c.l.b16 %v417
    %v5649 = vunpack.c.h.b16 %v417
    %v5650 = vunpack.c.l.b16 %v418
    %v5651 = vunpack.c.h.b16 %v418
    %v5652 = vunpack.c.l.b16 %v419
    %v5653 = vunpack.c.h.b16 %v419
    %v5654 = vunpack.c.l.b16 %v420
    %v5655 = vunpack.c.h.b16 %v420
    %v5656 = vunpack.c.l.b16 %v421
    %v5657 = vunpack.c.h.b16 %v421
    %v5658 = vunpack.c.l.b16 %v422
    %v5659 = vunpack.c.h.b16 %v422
    %v5660 = vunpack.c.l.b16 %v423
    %v5661 = vunpack.c.h.b16 %v423
    %v5662 = vunpack.c.l.b16 %v424
    %v5663 = vunpack.c.h.b16 %v424
    %v5664 = vunpack.c.l.b16 %v425
    %v5665 = vunpack.c.h.b16 %v425
    %v5666 = vunpack.c.l.b16 %v426
    %v5667 = vunpack.c.h.b16 %v426
    %v5668 = vunpack.c.l.b16 %v427
    %v5669 = vunpack.c.h.b16 %v427
    %v5670 = vunpack.c.l.b16 %v428
    %v5671 = vunpack.c.h.b16 %v428
    %v5672 = vunpack.c.l.b16 %v429
    %v5673 = vunpack.c.h.b16 %v429
    %v5674 = vunpack.c.l.b16 %v430
    %v5675 = vunpack.c.h.b16 %v430
    %v5676 = vunpack.c.l.b16 %v431
    %v5677 = vunpack.c.h.b16 %v431
    %v5678 = vunpack.c.l.b16 %v432
    %v5679 = vunpack.c.h.b16 %v432
    %v5680 = vunpack.c.l.b16 %v433
    %v5681 = vunpack.c.h.b16 %v433
    %v5682 = vunpack.c.l.b16 %v434
    %v5683 = vunpack.c.h.b16 %v434
    %v5684 = vunpack.c.l.b16 %v435
    %v5685 = vunpack.c.h.b16 %v435
    %v5686 = vunpack.c.l.b16 %v436
    %v5687 = vunpack.c.h.b16 %v436
    %v5688 = vunpack.c.l.b16 %v437
    %v5689 = vunpack.c.h.b16 %v437
    %v5690 = vunpack.c.l.b16 %v438
    %v5691 = vunpack.c.h.b16 %v438
    %v5692 = vunpack.c.l.b16 %v439
    %v5693 = vunpack.c.h.b16 %v439
    %v5694 = vunpack.c.l.b16 %v440
    %v5695 = vunpack.c.h.b16 %v440
    %v5696 = vunpack.c.l.b16 %v441
    %v5697 = vunpack.c.h.b16 %v441
    %v5698 = vunpack.c.l.b16 %v442
    %v5699 = vunpack.c.h.b16 %v442
    %v5700 = vunpack.c.l.b16 %v443
    %v5701 = vunpack.c.h.b16 %v443
    %v5702 = vunpack.c.l.b16 %v444
    %v5703 = vunpack.c.h.b16 %v444
    %v5704 = vunpack.c.l.b16 %v445
    %v5705 = vunpack.c.h.b16 %v445
    %v5706 = vunpack.c.l.b16 %v446
    %v5707 = vunpack.c.h.b16 %v446
    %v5708 = vunpack.c.l.b16 %v447
    %v5709 = vunpack.c.h.b16 %v447
    %v5710 = vunpack.c.l.b16 %v448
    %v5711 = vunpack.c.h.b16 %v448
    %v5712 = vunpack.c.l.b16 %v449
    %v5713 = vunpack.c.h.b16 %v449
    %v5714 = vunpack.c.l.b16 %v450
    %v5715 = vunpack.c.h.b16 %v450
    %v5716 = vunpack.c.l.b16 %v451
    %v5717 = vunpack.c.h.b16 %v451
    %v5718 = vunpack.c.l.b16 %v452
    %v5719 = vunpack.c.h.b16 %v452
    %v5720 = vunpack.c.l.b16 %v453
    %v5721 = vunpack.c.h.b16 %v453
    %v5722 = vunpack.c.l.b16 %v454
    %v5723 = vunpack.c.h.b16 %v454
    %v5724 = vunpack.c.l.b16 %v455
    %v5725 = vunpack.c.h.b16 %v455
    %v5726 = vunpack.c.l.b16 %v456
    %v5727 = vunpack.c.h.b16 %v456
    %v5728 = vunpack.c.l.b16 %v457
    %v5729 = vunpack.c.h.b16 %v457
    %v5730 = vunpack.c.l.b16 %v458
    %v5731 = vunpack.c.h.b16 %v458
    %v5732 = vunpack.c.l.b16 %v459
    %v5733 = vunpack.c.h.b16 %v459
    %v5734 = vunpack.c.l.b16 %v460
    %v5735 = vunpack.c.h.b16 %v460
    %v5736 = vunpack.c.l.b16 %v461
    %v5737 = vunpack.c.h.b16 %v461
    %v5738 = vunpack.c.l.b16 %v462
    %v5739 = vunpack.c.h.b16 %v462
    %v5740 = vunpack.c.l.b16 %v463
    %v5741 = vunpack.c.h.b16 %v463
    %v5742 = vunpack.c.l.b16 %v464
    %v5743 = vunpack.c.h.b16 %v464
    %v5744 = vunpack.c.l.b16 %v465
    %v5745 = vunpack.c.h.b16 %v465
    %v5746 = vunpack.c.l.b16 %v466
    %v5747 = vunpack.c.h.b16 %v466
    %v5748 = vunpack.c.l.b16 %v467
    %v5749 = vunpack.c.h.b16 %v467
    %v5750 = vunpack.c.l.b16 %v468
    %v5751 = vunpack.c.h.b16 %v468
    %v5752 = vunpack.c.l.b16 %v469
    %v5753 = vunpack.c.h.b16 %v469
    %v5754 = vunpack.c.l.b16 %v470
    %v5755 = vunpack.c.h.b16 %v470
    %v5756 = vunpack.c.l.b16 %v471
    %v5757 = vunpack.c.h.b16 %v471
    %v5758 = vunpack.c.l.b16 %v472
    %v5759 = vunpack.c.h.b16 %v472
    %v5760 = vunpack.c.l.b16 %v473
    %v5761 = vunpack.c.h.b16 %v473
    %v5762 = vunpack.c.l.b16 %v474
    %v5763 = vunpack.c.h.b16 %v474
    %v5764 = vunpack.c.l.b16 %v475
    %v5765 = vunpack.c.h.b16 %v475
    %v5766 = vunpack.c.l.b16 %v476
    %v5767 = vunpack.c.h.b16 %v476
    %v5768 = vunpack.c.l.b16 %v477
    %v5769 = vunpack.c.h.b16 %v477
    %v5770 = vunpack.c.l.b16 %v478
    %v5771 = vunpack.c.h.b16 %v478
    %v5772 = vunpack.c.l.b16 %v479
    %v5773 = vunpack.c.h.b16 %v479
    %v5774 = vunpack.c.l.b16 %v480
    %v5775 = vunpack.c.h.b16 %v480
    %v5776 = vunpack.c.l.b16 %v481
    %v5777 = vunpack.c.h.b16 %v481
    %v5778 = vunpack.c.l.b16 %v482
    %v5779 = vunpack.c.h.b16 %v482
    %v5780 = vunpack.c.l.b16 %v483
    %v5781 = vunpack.c.h.b16 %v483
    %v5782 = vunpack.c.l.b16 %v484
    %v5783 = vunpack.c.h.b16 %v484
    %v5784 = vunpack.c.l.b16 %v485
    %v5785 = vunpack.c.h.b16 %v485
    %v5786 = vunpack.c.l.b16 %v486
    %v5787 = vunpack.c.h.b16 %v486
    %v5788 = vunpack.c.l.b16 %v487
    %v5789 = vunpack.c.h.b16 %v487
    %v5790 = vunpack.c.l.b16 %v488
    %v5791 = vunpack.c.h.b16 %v488
    %v5792 = vunpack.c.l.b16 %v489
    %v5793 = vunpack.c.h.b16 %v489
    %v5794 = vunpack.c.l.b16 %v490
    %v5795 = vunpack.c.h.b16 %v490
    %v5796 = vunpack.c.l.b16 %v491
    %v5797 = vunpack.c.h.b16 %v491
    %v5798 = vunpack.c.l.b16 %v492
    %v5799 = vunpack.c.h.b16 %v492
    %v5800 = vunpack.c.l.b16 %v493
    %v5801 = vunpack.c.h.b16 %v493
    %v5802 = vunpack.c.l.b16 %v494
    %v5803 = vunpack.c.h.b16 %v494
    %v5804 = vunpack.c.l.b16 %v495
    %v5805 = vunpack.c.h.b16 %v495
    %v5806 = vunpack.c.l.b16 %v496
    %v5807 = vunpack.c.h.b16 %v496
    %v5808 = vunpack.c.l.b16 %v497
    %v5809 = vunpack.c.h.b16 %v497
    %v5810 = vunpack.c.l.b16 %v498
    %v5811 = vunpack.c.h.b16 %v498
    %v5812 = vunpack.c.l.b16 %v499
    %v5813 = vunpack.c.h.b16 %v499
    %v5814 = vunpack.c.l.b16 %v500
    %v5815 = vunpack.c.h.b16 %v500
    %v5816 = vunpack.c.l.b16 %v501
    %v5817 = vunpack.c.h.b16 %v501
    %v5818 = vunpack.c.l.b16 %v502
    %v5819 = vunpack.c.h.b16 %v502
    %v5820 = vunpack.c.l.b16 %v503
    %v5821 = vunpack.c.h.b16 %v503
    %v5822 = vunpack.c.l.b16 %v504
    %v5823 = vunpack.c.h.b16 %v504
    %v5824 = vunpack.c.l.b16 %v505
    %v5825 = vunpack.c.h.b16 %v505
    %v5826 = vunpack.c.l.b16 %v506
    %v5827 = vunpack.c.h.b16 %v506
    %v5828 = vunpack.c.l.b16 %v507
    %v5829 = vunpack.c.h.b16 %v507
    %v5830 = vunpack.c.l.b16 %v508
    %v5831 = vunpack.c.h.b16 %v508
    %v5832 = vunpack.c.l.b16 %v509
    %v5833 = vunpack.c.h.b16 %v509
    %v5834 = vunpack.c.l.b16 %v510
    %v5835 = vunpack.c.h.b16 %v510
    %v5836 = vunpack.c.l.b16 %v511
    %v5837 = vunpack.c.h.b16 %v511
    %v5838 = vunpack.c.l.b16 %v512
    %v5839 = vunpack.c.h.b16 %v512
    %v5840 = vunpack.c.l.b16 %v513
    %v5841 = vunpack.c.h.b16 %v513
    %v5842 = vunpack.c.l.b16 %v514
    %v5843 = vunpack.c.h.b16 %v514
    %v5844 = vunpack.c.l.b16 %v515
    %v5845 = vunpack.c.h.b16 %v515
    %v5846 = vunpack.c.l.b16 %v516
    %v5847 = vunpack.c.h.b16 %v516
    %v5848 = vunpack.c.l.b16 %v517
    %v5849 = vunpack.c.h.b16 %v517
    %v5850 = vunpack.c.l.b16 %v518
    %v5851 = vunpack.c.h.b16 %v518
    %v5852 = vunpack.c.l.b16 %v519
    %v5853 = vunpack.c.h.b16 %v519
    %v5854 = vunpack.c.l.b16 %v520
    %v5855 = vunpack.c.h.b16 %v520
    %v5856 = vunpack.c.l.b16 %v521
    %v5857 = vunpack.c.h.b16 %v521
    %v5858 = vunpack.c.l.b16 %v522
    %v5859 = vunpack.c.h.b16 %v522
    %v5860 = vunpack.c.l.b16 %v523
    %v5861 = vunpack.c.h.b16 %v523
    %v5862 = vunpack.c.l.b16 %v524
    %v5863 = vunpack.c.h.b16 %v524
    %v5864 = vunpack.c.l.b16 %v525
    %v5865 = vunpack.c.h.b16 %v525
    %v5866 = vunpack.c.l.b16 %v526
    %v5867 = vunpack.c.h.b16 %v526
    %v5868 = vunpack.c.l.b16 %v527
    %v5869 = vunpack.c.h.b16 %v527
    %v5870 = vunpack.c.l.b16 %v528
    %v5871 = vunpack.c.h.b16 %v528
    %v5872 = vunpack.c.l.b16 %v529
    %v5873 = vunpack.c.h.b16 %v529
    %v5874 = vunpack.c.l.b16 %v530
    %v5875 = vunpack.c.h.b16 %v530
    %v5876 = vunpack.c.l.b16 %v531
    %v5877 = vunpack.c.h.b16 %v531
    %v5878 = vunpack.c.l.b16 %v532
    %v5879 = vunpack.c.h.b16 %v532
    %v5880 = vunpack.c.l.b16 %v533
    %v5881 = vunpack.c.h.b16 %v533
    %v5882 = vunpack.c.l.b16 %v534
    %v5883 = vunpack.c.h.b16 %v534
    %v5884 = vunpack.c.l.b16 %v535
    %v5885 = vunpack.c.h.b16 %v535
    %v5886 = vunpack.c.l.b16 %v536
    %v5887 = vunpack.c.h.b16 %v536
    %v5888 = vunpack.c.l.b16 %v537
    %v5889 = vunpack.c.h.b16 %v537
    %v5890 = vunpack.c.l.b16 %v538
    %v5891 = vunpack.c.h.b16 %v538
    %v5892 = vunpack.c.l.b16 %v539
    %v5893 = vunpack.c.h.b16 %v539
    %v5894 = vunpack.c.l.b16 %v540
    %v5895 = vunpack.c.h.b16 %v540
    %v5896 = vunpack.c.l.b16 %v541
    %v5897 = vunpack.c.h.b16 %v541
    %v5898 = vunpack.c.l.b16 %v542
    %v5899 = vunpack.c.h.b16 %v542
    %v5900 = vunpack.c.l.b16 %v543
    %v5901 = vunpack.c.h.b16 %v543
    %v5902 = vunpack.c.l.b16 %v544
    %v5903 = vunpack.c.h.b16 %v544
    %v5904 = vunpack.c.l.b16 %v545
    %v5905 = vunpack.c.h.b16 %v545
    %v5906 = vunpack.c.l.b16 %v546
    %v5907 = vunpack.c.h.b16 %v546
    %v5908 = vunpack.c.l.b16 %v547
    %v5909 = vunpack.c.h.b16 %v547
    %v5910 = vunpack.c.l.b16 %v548
    %v5911 = vunpack.c.h.b16 %v548
    %v5912 = vunpack.c.l.b16 %v549
    %v5913 = vunpack.c.h.b16 %v549
    %v5914 = vunpack.c.l.b16 %v550
    %v5915 = vunpack.c.h.b16 %v550
    %v5916 = vunpack.c.l.b16 %v551
    %v5917 = vunpack.c.h.b16 %v551
    %v5918 = vunpack.c.l.b16 %v552
    %v5919 = vunpack.c.h.b16 %v552
    %v5920 = vunpack.c.l.b16 %v553
    %v5921 = vunpack.c.h.b16 %v553
    %v5922 = vunpack.c.l.b16 %v554
    %v5923 = vunpack.c.h.b16 %v554
    %v5924 = vunpack.c.l.b16 %v555
    %v5925 = vunpack.c.h.b16 %v555
    %v5926 = vunpack.c.l.b16 %v556
    %v5927 = vunpack.c.h.b16 %v556
    %v5928 = vunpack.c.l.b16 %v557
    %v5929 = vunpack.c.h.b16 %v557
    %v5930 = vunpack.c.l.b16 %v558
    %v5931 = vunpack.c.h.b16 %v558
    %v5932 = vunpack.c.l.b16 %v559
    %v5933 = vunpack.c.h.b16 %v559
    %v5934 = vunpack.c.l.b16 %v560
    %v5935 = vunpack.c.h.b16 %v560
    %v5936 = vunpack.c.l.b16 %v561
    %v5937 = vunpack.c.h.b16 %v561
    %v5938 = vunpack.c.l.b16 %v562
    %v5939 = vunpack.c.h.b16 %v562
    %v5940 = vunpack.c.l.b16 %v563
    %v5941 = vunpack.c.h.b16 %v563
    %v5942 = vunpack.c.l.b16 %v564
    %v5943 = vunpack.c.h.b16 %v564
    %v5944 = vunpack.c.l.b16 %v565
    %v5945 = vunpack.c.h.b16 %v565
    %v5946 = vunpack.c.l.b16 %v566
    %v5947 = vunpack.c.h.b16 %v566
    %v5948 = vunpack.c.l.b16 %v567
    %v5949 = vunpack.c.h.b16 %v567
    %v5950 = vunpack.c.l.b16 %v568
    %v5951 = vunpack.c.h.b16 %v568
    %v5952 = vunpack.c.l.b16 %v569
    %v5953 = vunpack.c.h.b16 %v569
    %v5954 = vunpack.c.l.b16 %v570
    %v5955 = vunpack.c.h.b16 %v570
    %v5956 = vunpack.c.l.b16 %v571
    %v5957 = vunpack.c.h.b16 %v571
    %v5958 = vunpack.c.l.b16 %v572
    %v5959 = vunpack.c.h.b16 %v572
    %v5960 = vunpack.c.l.b16 %v573
    %v5961 = vunpack.c.h.b16 %v573
    %v5962 = vunpack.c.l.b16 %v574
    %v5963 = vunpack.c.h.b16 %v574
    %v5964 = vunpack.c.l.b16 %v575
    %v5965 = vunpack.c.h.b16 %v575
    %v5966 = vunpack.c.l.b16 %v576
    %v5967 = vunpack.c.h.b16 %v576
    %v5968 = vunpack.c.l.b16 %v577
    %v5969 = vunpack.c.h.b16 %v577
    %v5970 = vunpack.c.l.b16 %v578
    %v5971 = vunpack.c.h.b16 %v578
    %v5972 = vunpack.c.l.b16 %v579
    %v5973 = vunpack.c.h.b16 %v579
    %v5974 = vunpack.c.l.b16 %v580
    %v5975 = vunpack.c.h.b16 %v580
    %v5976 = vunpack.c.l.b16 %v581
    %v5977 = vunpack.c.h.b16 %v581
    %v5978 = vunpack.c.l.b16 %v582
    %v5979 = vunpack.c.h.b16 %v582
    %v5980 = vunpack.c.l.b16 %v583
    %v5981 = vunpack.c.h.b16 %v583
    %v5982 = vunpack.c.l.b16 %v584
    %v5983 = vunpack.c.h.b16 %v584
    %v5984 = vunpack.c.l.b16 %v585
    %v5985 = vunpack.c.h.b16 %v585
    %v5986 = vunpack.c.l.b16 %v586
    %v5987 = vunpack.c.h.b16 %v586
    %v5988 = vunpack.c.l.b16 %v587
    %v5989 = vunpack.c.h.b16 %v587
    %v5990 = vunpack.c.l.b16 %v588
    %v5991 = vunpack.c.h.b16 %v588
    %v5992 = vunpack.c.l.b16 %v589
    %v5993 = vunpack.c.h.b16 %v589
    %v5994 = vunpack.c.l.b16 %v590
    %v5995 = vunpack.c.h.b16 %v590
    %v5996 = vunpack.c.l.b16 %v591
    %v5997 = vunpack.c.h.b16 %v591
    %v5998 = vunpack.c.l.b16 %v592
    %v5999 = vunpack.c.h.b16 %v592
    %v6000 = vunpack.c.l.b16 %v593
    %v6001 = vunpack.c.h.b16 %v593
    %v6002 = vunpack.c.l.b16 %v594
    %v6003 = vunpack.c.h.b16 %v594
    %v6004 = vunpack.c.l.b16 %v595
    %v6005 = vunpack.c.h.b16 %v595
    %v6006 = vunpack.c.l.b16 %v596
    %v6007 = vunpack.c.h.b16 %v596
    %v6008 = vunpack.c.l.b16 %v597
    %v6009 = vunpack.c.h.b16 %v597
    %v6010 = vunpack.c.l.b16 %v598
    %v6011 = vunpack.c.h.b16 %v598
    %v6012 = vunpack.c.l.b16 %v599
    %v6013 = vunpack.c.h.b16 %v599
    %v6014 = vunpack.c.l.b16 %v600
    %v6015 = vunpack.c.h.b16 %v600
    %v6016 = vunpack.c.l.b16 %v601
    %v6017 = vunpack.c.h.b16 %v601
    %v6018 = vunpack.c.l.b16 %v602
    %v6019 = vunpack.c.h.b16 %v602
    %v6020 = vunpack.c.l.b16 %v603
    %v6021 = vunpack.c.h.b16 %v603
    %v6022 = vunpack.c.l.b16 %v604
    %v6023 = vunpack.c.h.b16 %v604
    %v6024 = vunpack.c.l.b16 %v605
    %v6025 = vunpack.c.h.b16 %v605
    %v6026 = vunpack.c.l.b16 %v606
    %v6027 = vunpack.c.h.b16 %v606
    %v6028 = vunpack.c.l.b16 %v607
    %v6029 = vunpack.c.h.b16 %v607
    %v6030 = vunpack.c.l.b16 %v608
    %v6031 = vunpack.c.h.b16 %v608
    %v6032 = vunpack.c.l.b16 %v609
    %v6033 = vunpack.c.h.b16 %v609
    %v6034 = vunpack.c.l.b16 %v610
    %v6035 = vunpack.c.h.b16 %v610
    %v6036 = vunpack.c.l.b16 %v611
    %v6037 = vunpack.c.h.b16 %v611
    %v6038 = vunpack.c.l.b16 %v612
    %v6039 = vunpack.c.h.b16 %v612
    %v6040 = vunpack.c.l.b16 %v613
    %v6041 = vunpack.c.h.b16 %v613
    %v6042 = vunpack.c.l.b16 %v614
    %v6043 = vunpack.c.h.b16 %v614
    %v6044 = vunpack.c.l.b16 %v615
    %v6045 = vunpack.c.h.b16 %v615
    %v6046 = vunpack.c.l.b16 %v616
    %v6047 = vunpack.c.h.b16 %v616
    %v6048 = vunpack.c.l.b16 %v617
    %v6049 = vunpack.c.h.b16 %v617
    %v6050 = vunpack.c.l.b16 %v618
    %v6051 = vunpack.c.h.b16 %v618
    %v6052 = vunpack.c.l.b16 %v619
    %v6053 = vunpack.c.h.b16 %v619
    %v6054 = vunpack.c.l.b16 %v620
    %v6055 = vunpack.c.h.b16 %v620
    %v6056 = vunpack.c.l.b16 %v621
    %v6057 = vunpack.c.h.b16 %v621
    %v6058 = vunpack.c.l.b16 %v622
    %v6059 = vunpack.c.h.b16 %v622
    %v6060 = vunpack.c.l.b16 %v623
    %v6061 = vunpack.c.h.b16 %v623
    %v6062 = vunpack.c.l.b16 %v624
    %v6063 = vunpack.c.h.b16 %v624
    %v6064 = vunpack.c.l.b16 %v625
    %v6065 = vunpack.c.h.b16 %v625
    %v6066 = vunpack.c.l.b16 %v626
    %v6067 = vunpack.c.h.b16 %v626
    %v6068 = vunpack.c.l.b16 %v627
    %v6069 = vunpack.c.h.b16 %v627
    %v6070 = vunpack.c.l.b16 %v628
    %v6071 = vunpack.c.h.b16 %v628
    %v6072 = vunpack.c.l.b16 %v629
    %v6073 = vunpack.c.h.b16 %v629
    %v6074 = vunpack.c.l.b16 %v630
    %v6075 = vunpack.c.h.b16 %v630
    %v6076 = vunpack.c.l.b16 %v631
    %v6077 = vunpack.c.h.b16 %v631
    %v6078 = vunpack.c.l.b16 %v632
    %v6079 = vunpack.c.h.b16 %v632
    %v6080 = vunpack.c.l.b16 %v633
    %v6081 = vunpack.c.h.b16 %v633
    %v6082 = vunpack.c.l.b16 %v634
    %v6083 = vunpack.c.h.b16 %v634
    %v6084 = vunpack.c.l.b16 %v635
    %v6085 = vunpack.c.h.b16 %v635
    %v6086 = vunpack.c.l.b16 %v636
    %v6087 = vunpack.c.h.b16 %v636
    %v6088 = vunpack.c.l.b16 %v637
    %v6089 = vunpack.c.h.b16 %v637
    %v6090 = vunpack.c.l.b16 %v638
    %v6091 = vunpack.c.h.b16 %v638
    %v6092 = vunpack.c.l.b16 %v639
    %v6093 = vunpack.c.h.b16 %v639
    %v6094 = vunpack.c.l.b16 %v640
    %v6095 = vunpack.c.h.b16 %v640
    %v6096 = vunpack.c.l.b16 %v641
    %v6097 = vunpack.c.h.b16 %v641
    %v6098 = vunpack.c.l.b16 %v642
    %v6099 = vunpack.c.h.b16 %v642
    %v6100 = vunpack.c.l.b16 %v643
    %v6101 = vunpack.c.h.b16 %v643
    %v6102 = vunpack.c.l.b16 %v644
    %v6103 = vunpack.c.h.b16 %v644
    %v6104 = vunpack.c.l.b16 %v645
    %v6105 = vunpack.c.h.b16 %v645
    %v6106 = vunpack.c.l.b16 %v646
    %v6107 = vunpack.c.h.b16 %v646
    %v6108 = vunpack.c.l.b16 %v647
    %v6109 = vunpack.c.h.b16 %v647
    %v6110 = vunpack.c.l.b16 %v648
    %v6111 = vunpack.c.h.b16 %v648
    %v6112 = vunpack.c.l.b16 %v649
    %v6113 = vunpack.c.h.b16 %v649
    %v6114 = vunpack.c.l.b16 %v650
    %v6115 = vunpack.c.h.b16 %v650
    %v6116 = vunpack.c.l.b16 %v651
    %v6117 = vunpack.c.h.b16 %v651
    %v6118 = vunpack.c.l.b16 %v652
    %v6119 = vunpack.c.h.b16 %v652
    %v6120 = vunpack.c.l.b16 %v653
    %v6121 = vunpack.c.h.b16 %v653
    %v6122 = vunpack.c.l.b16 %v654
    %v6123 = vunpack.c.h.b16 %v654
    %v6124 = vunpack.c.l.b16 %v655
    %v6125 = vunpack.c.h.b16 %v655
    %v6126 = vunpack.c.l.b16 %v656
    %v6127 = vunpack.c.h.b16 %v656
    %v6128 = vunpack.c.l.b16 %v657
    %v6129 = vunpack.c.h.b16 %v657
    %v6130 = vpack.c.b16 %v5110, %v5106
    %v6131 = vpack.c.b16 %v5111, %v5107
    %v6132 = vpack.c.b16 %v5112, %v5108
    %v6133 = vpack.c.b16 %v5113, %v5109
    %v6134 = vpack.c.b16 %v5118, %v5114
    %v6135 = vpack.c.b16 %v5119, %v5115
    %v6136 = vpack.c.b16 %v5120, %v5116
    %v6137 = vpack.c.b16 %v5121, %v5117
    %v6138 = vpack.c.b16 %v5126, %v5122
    %v6139 = vpack.c.b16 %v5127, %v5123
    %v6140 = vpack.c.b16 %v5128, %v5124
    %v6141 = vpack.c.b16 %v5129, %v5125
    %v6142 = vpack.c.b16 %v5134, %v5130
    %v6143 = vpack.c.b16 %v5135, %v5131
    %v6144 = vpack.c.b16 %v5136, %v5132
    %v6145 = vpack.c.b16 %v5137, %v5133
    %v6146 = vpack.c.b16 %v5142, %v5138
    %v6147 = vpack.c.b16 %v5143, %v5139
    %v6148 = vpack.c.b16 %v5144, %v5140
    %v6149 = vpack.c.b16 %v5145, %v5141
    %v6150 = vpack.c.b16 %v5150, %v5146
    %v6151 = vpack.c.b16 %v5151, %v5147
    %v6152 = vpack.c.b16 %v5152, %v5148
    %v6153 = vpack.c.b16 %v5153, %v5149
    %v6154 = vpack.c.b16 %v5158, %v5154
    %v6155 = vpack.c.b16 %v5159, %v5155
    %v6156 = vpack.c.b16 %v5160, %v5156
    %v6157 = vpack.c.b16 %v5161, %v5157
    %v6158 = vpack.c.b16 %v5166, %v5162
    %v6159 = vpack.c.b16 %v5167, %v5163
    %v6160 = vpack.c.b16 %v5168, %v5164
    %v6161 = vpack.c.b16 %v5169, %v5165
    %v6162 = vpack.c.b16 %v5174, %v5170
    %v6163 = vpack.c.b16 %v5175, %v5171
    %v6164 = vpack.c.b16 %v5176, %v5172
    %v6165 = vpack.c.b16 %v5177, %v5173
    %v6166 = vpack.c.b16 %v5182, %v5178
    %v6167 = vpack.c.b16 %v5183, %v5179
    %v6168 = vpack.c.b16 %v5184, %v5180
    %v6169 = vpack.c.b16 %v5185, %v5181
    %v6170 = vpack.c.b16 %v5190, %v5186
    %v6171 = vpack.c.b16 %v5191, %v5187
    %v6172 = vpack.c.b16 %v5192, %v5188
    %v6173 = vpack.c.b16 %v5193, %v5189
    %v6174 = vpack.c.b16 %v5198, %v5194
    %v6175 = vpack.c.b16 %v5199, %v5195
    %v6176 = vpack.c.b16 %v5200, %v5196
    %v6177 = vpack.c.b16 %v5201, %v5197
    %v6178 = vpack.c.b16 %v5206, %v5202
    %v6179 = vpack.c.b16 %v5207, %v5203
    %v6180 = vpack.c.b16 %v5208, %v5204
    %v6181 = vpack.c.b16 %v5209, %v5205
    %v6182 = vpack.c.b16 %v5214, %v5210
    %v6183 = vpack.c.b16 %v5215, %v5211
    %v6184 = vpack.c.b16 %v5216, %v5212
    %v6185 = vpack.c.b16 %v5217, %v5213
    %v6186 = vpack.c.b16 %v5222, %v5218
    %v6187 = vpack.c.b16 %v5223, %v5219
    %v6188 = vpack.c.b16 %v5224, %v5220
    %v6189 = vpack.c.b16 %v5225, %v5221
    %v6190 = vpack.c.b16 %v5230, %v5226
    %v6191 = vpack.c.b16 %v5231, %v5227
    %v6192 = vpack.c.b16 %v5232, %v5228
    %v6193 = vpack.c.b16 %v5233, %v5229
    %v6194 = vpack.c.b16 %v5238, %v5234
    %v6195 = vpack.c.b16 %v5239, %v5235
    %v6196 = vpack.c.b16 %v5240, %v5236
    %v6197 = vpack.c.b16 %v5241, %v5237
    %v6198 = vpack.c.b16 %v5246, %v5242
    %v6199 = vpack.c.b16 %v5247, %v5243
    %v6200 = vpack.c.b16 %v5248, %v5244
    %v6201 = vpack.c.b16 %v5249, %v5245
    %v6202 = vpack.c.b16 %v5254, %v5250
    %v6203 = vpack.c.b16 %v5255, %v5251
    %v6204 = vpack.c.b16 %v5256, %v5252
    %v6205 = vpack.c.b16 %v5257, %v5253
    %v6206 = vpack.c.b16 %v5262, %v5258
    %v6207 = vpack.c.b16 %v5263, %v5259
    %v6208 = vpack.c.b16 %v5264, %v5260
    %v6209 = vpack.c.b16 %v5265, %v5261
    %v6210 = vpack.c.b16 %v5270, %v5266
    %v6211 = vpack.c.b16 %v5271, %v5267
    %v6212 = vpack.c.b16 %v5272, %v5268
    %v6213 = vpack.c.b16 %v5273, %v5269
    %v6214 = vpack.c.b16 %v5278, %v5274
    %v6215 = vpack.c.b16 %v5279, %v5275
    %v6216 = vpack.c.b16 %v5280, %v5276
    %v6217 = vpack.c.b16 %v5281, %v5277
    %v6218 = vpack.c.b16 %v5286, %v5282
    %v6219 = vpack.c.b16 %v5287, %v5283
    %v6220 = vpack.c.b16 %v5288, %v5284
    %v6221 = vpack.c.b16 %v5289, %v5285
    %v6222 = vpack.c.b16 %v5294, %v5290
    %v6223 = vpack.c.b16 %v5295, %v5291
    %v6224 = vpack.c.b16 %v5296, %v5292
    %v6225 = vpack.c.b16 %v5297, %v5293
    %v6226 = vpack.c.b16 %v5302, %v5298
    %v6227 = vpack.c.b16 %v5303, %v5299
    %v6228 = vpack.c.b16 %v5304, %v5300
    %v6229 = vpack.c.b16 %v5305, %v5301
    %v6230 = vpack.c.b16 %v5310, %v5306
    %v6231 = vpack.c.b16 %v5311, %v5307
    %v6232 = vpack.c.b16 %v5312, %v5308
    %v6233 = vpack.c.b16 %v5313, %v5309
    %v6234 = vpack.c.b16 %v5318, %v5314
    %v6235 = vpack.c.b16 %v5319, %v5315
    %v6236 = vpack.c.b16 %v5320, %v5316
    %v6237 = vpack.c.b16 %v5321, %v5317
    %v6238 = vpack.c.b16 %v5326, %v5322
    %v6239 = vpack.c.b16 %v5327, %v5323
    %v6240 = vpack.c.b16 %v5328, %v5324
    %v6241 = vpack.c.b16 %v5329, %v5325
    %v6242 = vpack.c.b16 %v5334, %v5330
    %v6243 = vpack.c.b16 %v5335, %v5331
    %v6244 = vpack.c.b16 %v5336, %v5332
    %v6245 = vpack.c.b16 %v5337, %v5333
    %v6246 = vpack.c.b16 %v5342, %v5338
    %v6247 = vpack.c.b16 %v5343, %v5339
    %v6248 = vpack.c.b16 %v5344, %v5340
    %v6249 = vpack.c.b16 %v5345, %v5341
    %v6250 = vpack.c.b16 %v5350, %v5346
    %v6251 = vpack.c.b16 %v5351, %v5347
    %v6252 = vpack.c.b16 %v5352, %v5348
    %v6253 = vpack.c.b16 %v5353, %v5349
    %v6254 = vpack.c.b16 %v5358, %v5354
    %v6255 = vpack.c.b16 %v5359, %v5355
    %v6256 = vpack.c.b16 %v5360, %v5356
    %v6257 = vpack.c.b16 %v5361, %v5357
    %v6258 = vpack.c.b16 %v5366, %v5362
    %v6259 = vpack.c.b16 %v5367, %v5363
    %v6260 = vpack.c.b16 %v5368, %v5364
    %v6261 = vpack.c.b16 %v5369, %v5365
    %v6262 = vpack.c.b16 %v5374, %v5370
    %v6263 = vpack.c.b16 %v5375, %v5371
    %v6264 = vpack.c.b16 %v5376, %v5372
    %v6265 = vpack.c.b16 %v5377, %v5373
    %v6266 = vpack.c.b16 %v5382, %v5378
    %v6267 = vpack.c.b16 %v5383, %v5379
    %v6268 = vpack.c.b16 %v5384, %v5380
    %v6269 = vpack.c.b16 %v5385, %v5381
    %v6270 = vpack.c.b16 %v5390, %v5386
    %v6271 = vpack.c.b16 %v5391, %v5387
    %v6272 = vpack.c.b16 %v5392, %v5388
    %v6273 = vpack.c.b16 %v5393, %v5389
    %v6274 = vpack.c.b16 %v5398, %v5394
    %v6275 = vpack.c.b16 %v5399, %v5395
    %v6276 = vpack.c.b16 %v5400, %v5396
    %v6277 = vpack.c.b16 %v5401, %v5397
    %v6278 = vpack.c.b16 %v5406, %v5402
    %v6279 = vpack.c.b16 %v5407, %v5403
    %v6280 = vpack.c.b16 %v5408, %v5404
    %v6281 = vpack.c.b16 %v5409, %v5405
    %v6282 = vpack.c.b16 %v5414, %v5410
    %v6283 = vpack.c.b16 %v5415, %v5411
    %v6284 = vpack.c.b16 %v5416, %v5412
    %v6285 = vpack.c.b16 %v5417, %v5413
    %v6286 = vpack.c.b16 %v5422, %v5418
    %v6287 = vpack.c.b16 %v5423, %v5419
    %v6288 = vpack.c.b16 %v5424, %v5420
    %v6289 = vpack.c.b16 %v5425, %v5421
    %v6290 = vpack.c.b16 %v5430, %v5426
    %v6291 = vpack.c.b16 %v5431, %v5427
    %v6292 = vpack.c.b16 %v5432, %v5428
    %v6293 = vpack.c.b16 %v5433, %v5429
    %v6294 = vpack.c.b16 %v5438, %v5434
    %v6295 = vpack.c.b16 %v5439, %v5435
    %v6296 = vpack.c.b16 %v5440, %v5436
    %v6297 = vpack.c.b16 %v5441, %v5437
    %v6298 = vpack.c.b16 %v5446, %v5442
    %v6299 = vpack.c.b16 %v5447, %v5443
    %v6300 = vpack.c.b16 %v5448, %v5444
    %v6301 = vpack.c.b16 %v5449, %v5445
    %v6302 = vpack.c.b16 %v5454, %v5450
    %v6303 = vpack.c.b16 %v5455, %v5451
    %v6304 = vpack.c.b16 %v5456, %v5452
    %v6305 = vpack.c.b16 %v5457, %v5453
    %v6306 = vpack.c.b16 %v5462, %v5458
    %v6307 = vpack.c.b16 %v5463, %v5459
    %v6308 = vpack.c.b16 %v5464, %v5460
    %v6309 = vpack.c.b16 %v5465, %v5461
    %v6310 = vpack.c.b16 %v5470, %v5466
    %v6311 = vpack.c.b16 %v5471, %v5467
    %v6312 = vpack.c.b16 %v5472, %v5468
    %v6313 = vpack.c.b16 %v5473, %v5469
    %v6314 = vpack.c.b16 %v5478, %v5474
    %v6315 = vpack.c.b16 %v5479, %v5475
    %v6316 = vpack.c.b16 %v5480, %v5476
    %v6317 = vpack.c.b16 %v5481, %v5477
    %v6318 = vpack.c.b16 %v5486, %v5482
    %v6319 = vpack.c.b16 %v5487, %v5483
    %v6320 = vpack.c.b16 %v5488, %v5484
    %v6321 = vpack.c.b16 %v5489, %v5485
    %v6322 = vpack.c.b16 %v5494, %v5490
    %v6323 = vpack.c.b16 %v5495, %v5491
    %v6324 = vpack.c.b16 %v5496, %v5492
    %v6325 = vpack.c.b16 %v5497, %v5493
    %v6326 = vpack.c.b16 %v5502, %v5498
    %v6327 = vpack.c.b16 %v5503, %v5499
    %v6328 = vpack.c.b16 %v5504, %v5500
    %v6329 = vpack.c.b16 %v5505, %v5501
    %v6330 = vpack.c.b16 %v5510, %v5506
    %v6331 = vpack.c.b16 %v5511, %v5507
    %v6332 = vpack.c.b16 %v5512, %v5508
    %v6333 = vpack.c.b16 %v5513, %v5509
    %v6334 = vpack.c.b16 %v5518, %v5514
    %v6335 = vpack.c.b16 %v5519, %v5515
    %v6336 = vpack.c.b16 %v5520, %v5516
    %v6337 = vpack.c.b16 %v5521, %v5517
    %v6338 = vpack.c.b16 %v5526, %v5522
    %v6339 = vpack.c.b16 %v5527, %v5523
    %v6340 = vpack.c.b16 %v5528, %v5524
    %v6341 = vpack.c.b16 %v5529, %v5525
    %v6342 = vpack.c.b16 %v5534, %v5530
    %v6343 = vpack.c.b16 %v5535, %v5531
    %v6344 = vpack.c.b16 %v5536, %v5532
    %v6345 = vpack.c.b16 %v5537, %v5533
    %v6346 = vpack.c.b16 %v5542, %v5538
    %v6347 = vpack.c.b16 %v5543, %v5539
    %v6348 = vpack.c.b16 %v5544, %v5540
    %v6349 = vpack.c.b16 %v5545, %v5541
    %v6350 = vpack.c.b16 %v5550, %v5546
    %v6351 = vpack.c.b16 %v5551, %v5547
    %v6352 = vpack.c.b16 %v5552, %v5548
    %v6353 = vpack.c.b16 %v5553, %v5549
    %v6354 = vpack.c.b16 %v5558, %v5554
    %v6355 = vpack.c.b16 %v5559, %v5555
    %v6356 = vpack.c.b16 %v5560, %v5556
    %v6357 = vpack.c.b16 %v5561, %v5557
    %v6358 = vpack.c.b16 %v5566, %v5562
    %v6359 = vpack.c.b16 %v5567, %v5563
    %v6360 = vpack.c.b16 %v5568, %v5564
    %v6361 = vpack.c.b16 %v5569, %v5565
    %v6362 = vpack.c.b16 %v5574, %v5570
    %v6363 = vpack.c.b16 %v5575, %v5571
    %v6364 = vpack.c.b16 %v5576, %v5572
    %v6365 = vpack.c.b16 %v5577, %v5573
    %v6366 = vpack.c.b16 %v5582, %v5578
    %v6367 = vpack.c.b16 %v5583, %v5579
    %v6368 = vpack.c.b16 %v5584, %v5580
    %v6369 = vpack.c.b16 %v5585, %v5581
    %v6370 = vpack.c.b16 %v5590, %v5586
    %v6371 = vpack.c.b16 %v5591, %v5587
    %v6372 = vpack.c.b16 %v5592, %v5588
    %v6373 = vpack.c.b16 %v5593, %v5589
    %v6374 = vpack.c.b16 %v5598, %v5594
    %v6375 = vpack.c.b16 %v5599, %v5595
    %v6376 = vpack.c.b16 %v5600, %v5596
    %v6377 = vpack.c.b16 %v5601, %v5597
    %v6378 = vpack.c.b16 %v5606, %v5602
    %v6379 = vpack.c.b16 %v5607, %v5603
    %v6380 = vpack.c.b16 %v5608, %v5604
    %v6381 = vpack.c.b16 %v5609, %v5605
    %v6382 = vpack.c.b16 %v5614, %v5610
    %v6383 = vpack.c.b16 %v5615, %v5611
    %v6384 = vpack.c.b16 %v5616, %v5612
    %v6385 = vpack.c.b16 %v5617, %v5613
    %v6386 = vpack.c.b16 %v5622, %v5618
    %v6387 = vpack.c.b16 %v5623, %v5619
    %v6388 = vpack.c.b16 %v5624, %v5620
    %v6389 = vpack.c.b16 %v5625, %v5621
    %v6390 = vpack.c.b16 %v5630, %v5626
    %v6391 = vpack.c.b16 %v5631, %v5627
    %v6392 = vpack.c.b16 %v5632, %v5628
    %v6393 = vpack.c.b16 %v5633, %v5629
    %v6394 = vpack.c.b16 %v5638, %v5634
    %v6395 = vpack.c.b16 %v5639, %v5635
    %v6396 = vpack.c.b16 %v5640, %v5636
    %v6397 = vpack.c.b16 %v5641, %v5637
    %v6398 = vpack.c.b16 %v5646, %v5642
    %v6399 = vpack.c.b16 %v5647, %v5643
    %v6400 = vpack.c.b16 %v5648, %v5644
    %v6401 = vpack.c.b16 %v5649, %v5645
    %v6402 = vpack.c.b16 %v5654, %v5650
    %v6403 = vpack.c.b16 %v5655, %v5651
    %v6404 = vpack.c.b16 %v5656, %v5652
    %v6405 = vpack.c.b16 %v5657, %v5653
    %v6406 = vpack.c.b16 %v5662, %v5658
    %v6407 = vpack.c.b16 %v5663, %v5659
    %v6408 = vpack.c.b16 %v5664, %v5660
    %v6409 = vpack.c.b16 %v5665, %v5661
    %v6410 = vpack.c.b16 %v5670, %v5666
    %v6411 = vpack.c.b16 %v5671, %v5667
    %v6412 = vpack.c.b16 %v5672, %v5668
    %v6413 = vpack.c.b16 %v5673, %v5669
    %v6414 = vpack.c.b16 %v5678, %v5674
    %v6415 = vpack.c.b16 %v5679, %v5675
    %v6416 = vpack.c.b16 %v5680, %v5676
    %v6417 = vpack.c.b16 %v5681, %v5677
    %v6418 = vpack.c.b16 %v5686, %v5682
    %v6419 = vpack.c.b16 %v5687, %v5683
    %v6420 = vpack.c.b16 %v5688, %v5684
    %v6421 = vpack.c.b16 %v5689, %v5685
    %v6422 = vpack.c.b16 %v5694, %v5690
    %v6423 = vpack.c.b16 %v5695, %v5691
    %v6424 = vpack.c.b16 %v5696, %v5692
    %v6425 = vpack.c.b16 %v5697, %v5693
    %v6426 = vpack.c.b16 %v5702, %v5698
    %v6427 = vpack.c.b16 %v5703, %v5699
    %v6428 = vpack.c.b16 %v5704, %v5700
    %v6429 = vpack.c.b16 %v5705, %v5701
    %v6430 = vpack.c.b16 %v5710, %v5706
    %v6431 = vpack.c.b16 %v5711, %v5707
    %v6432 = vpack.c.b16 %v5712, %v5708
    %v6433 = vpack.c.b16 %v5713, %v5709
    %v6434 = vpack.c.b16 %v5718, %v5714
    %v6435 = vpack.c.b16 %v5719, %v5715
    %v6436 = vpack.c.b16 %v5720, %v5716
    %v6437 = vpack.c.b16 %v5721, %v5717
    %v6438 = vpack.c.b16 %v5726, %v5722
    %v6439 = vpack.c.b16 %v5727, %v5723
    %v6440 = vpack.c.b16 %v5728, %v5724
    %v6441 = vpack.c.b16 %v5729, %v5725
    %v6442 = vpack.c.b16 %v5734, %v5730
    %v6443 = vpack.c.b16 %v5735, %v5731
    %v6444 = vpack.c.b16 %v5736, %v5732
    %v6445 = vpack.c.b16 %v5737, %v5733
    %v6446 = vpack.c.b16 %v5742, %v5738
    %v6447 = vpack.c.b16 %v5743, %v5739
    %v6448 = vpack.c.b16 %v5744, %v5740
    %v6449 = vpack.c.b16 %v5745, %v5741
    %v6450 = vpack.c.b16 %v5750, %v5746
    %v6451 = vpack.c.b16 %v5751, %v5747
    %v6452 = vpack.c.b16 %v5752, %v5748
    %v6453 = vpack.c.b16 %v5753, %v5749
    %v6454 = vpack.c.b16 %v5758, %v5754
    %v6455 = vpack.c.b16 %v5759, %v5755
    %v6456 = vpack.c.b16 %v5760, %v5756
    %v6457 = vpack.c.b16 %v5761, %v5757
    %v6458 = vpack.c.b16 %v5766, %v5762
    %v6459 = vpack.c.b16 %v5767, %v5763
    %v6460 = vpack.c.b16 %v5768, %v5764
    %v6461 = vpack.c.b16 %v5769, %v5765
    %v6462 = vpack.c.b16 %v5774, %v5770
    %v6463 = vpack.c.b16 %v5775, %v5771
    %v6464 = vpack.c.b16 %v5776, %v5772
    %v6465 = vpack.c.b16 %v5777, %v5773
    %v6466 = vpack.c.b16 %v5782, %v5778
    %v6467 = vpack.c.b16 %v5783, %v5779
    %v6468 = vpack.c.b16 %v5784, %v5780
    %v6469 = vpack.c.b16 %v5785, %v5781
    %v6470 = vpack.c.b16 %v5790, %v5786
    %v6471 = vpack.c.b16 %v5791, %v5787
    %v6472 = vpack.c.b16 %v5792, %v5788
    %v6473 = vpack.c.b16 %v5793, %v5789
    %v6474 = vpack.c.b16 %v5798, %v5794
    %v6475 = vpack.c.b16 %v5799, %v5795
    %v6476 = vpack.c.b16 %v5800, %v5796
    %v6477 = vpack.c.b16 %v5801, %v5797
    %v6478 = vpack.c.b16 %v5806, %v5802
    %v6479 = vpack.c.b16 %v5807, %v5803
    %v6480 = vpack.c.b16 %v5808, %v5804
    %v6481 = vpack.c.b16 %v5809, %v5805
    %v6482 = vpack.c.b16 %v5814, %v5810
    %v6483 = vpack.c.b16 %v5815, %v5811
    %v6484 = vpack.c.b16 %v5816, %v5812
    %v6485 = vpack.c.b16 %v5817, %v5813
    %v6486 = vpack.c.b16 %v5822, %v5818
    %v6487 = vpack.c.b16 %v5823, %v5819
    %v6488 = vpack.c.b16 %v5824, %v5820
    %v6489 = vpack.c.b16 %v5825, %v5821
    %v6490 = vpack.c.b16 %v5830, %v5826
    %v6491 = vpack.c.b16 %v5831, %v5827
    %v6492 = vpack.c.b16 %v5832, %v5828
    %v6493 = vpack.c.b16 %v5833, %v5829
    %v6494 = vpack.c.b16 %v5838, %v5834
    %v6495 = vpack.c.b16 %v5839, %v5835
    %v6496 = vpack.c.b16 %v5840, %v5836
    %v6497 = vpack.c.b16 %v5841, %v5837
    %v6498 = vpack.c.b16 %v5846, %v5842
    %v6499 = vpack.c.b16 %v5847, %v5843
    %v6500 = vpack.c.b16 %v5848, %v5844
    %v6501 = vpack.c.b16 %v5849, %v5845
    %v6502 = vpack.c.b16 %v5854, %v5850
    %v6503 = vpack.c.b16 %v5855, %v5851
    %v6504 = vpack.c.b16 %v5856, %v5852
    %v6505 = vpack.c.b16 %v5857, %v5853
    %v6506 = vpack.c.b16 %v5862, %v5858
    %v6507 = vpack.c.b16 %v5863, %v5859
    %v6508 = vpack.c.b16 %v5864, %v5860
    %v6509 = vpack.c.b16 %v5865, %v5861
    %v6510 = vpack.c.b16 %v5870, %v5866
    %v6511 = vpack.c.b16 %v5871, %v5867
    %v6512 = vpack.c.b16 %v5872, %v5868
    %v6513 = vpack.c.b16 %v5873, %v5869
    %v6514 = vpack.c.b16 %v5878, %v5874
    %v6515 = vpack.c.b16 %v5879, %v5875
    %v6516 = vpack.c.b16 %v5880, %v5876
    %v6517 = vpack.c.b16 %v5881, %v5877
    %v6518 = vpack.c.b16 %v5886, %v5882
    %v6519 = vpack.c.b16 %v5887, %v5883
    %v6520 = vpack.c.b16 %v5888, %v5884
    %v6521 = vpack.c.b16 %v5889, %v5885
    %v6522 = vpack.c.b16 %v5894, %v5890
    %v6523 = vpack.c.b16 %v5895, %v5891
    %v6524 = vpack.c.b16 %v5896, %v5892
    %v6525 = vpack.c.b16 %v5897, %v5893
    %v6526 = vpack.c.b16 %v5902, %v5898
    %v6527 = vpack.c.b16 %v5903, %v5899
    %v6528 = vpack.c.b16 %v5904, %v5900
    %v6529 = vpack.c.b16 %v5905, %v5901
    %v6530 = vpack.c.b16 %v5910, %v5906
    %v6531 = vpack.c.b16 %v5911, %v5907
    %v6532 = vpack.c.b16 %v5912, %v5908
    %v6533 = vpack.c.b16 %v5913, %v5909
    %v6534 = vpack.c.b16 %v5918, %v5914
    %v6535 = vpack.c.b16 %v5919, %v5915
    %v6536 = vpack.c.b16 %v5920, %v5916
    %v6537 = vpack.c.b16 %v5921, %v5917
    %v6538 = vpack.c.b16 %v5926, %v5922
    %v6539 = vpack.c.b16 %v5927, %v5923
    %v6540 = vpack.c.b16 %v5928, %v5924
    %v6541 = vpack.c.b16 %v5929, %v5925
    %v6542 = vpack.c.b16 %v5934, %v5930
    %v6543 = vpack.c.b16 %v5935, %v5931
    %v6544 = vpack.c.b16 %v5936, %v5932
    %v6545 = vpack.c.b16 %v5937, %v5933
    %v6546 = vpack.c.b16 %v5942, %v5938
    %v6547 = vpack.c.b16 %v5943, %v5939
    %v6548 = vpack.c.b16 %v5944, %v5940
    %v6549 = vpack.c.b16 %v5945, %v5941
    %v6550 = vpack.c.b16 %v5950, %v5946
    %v6551 = vpack.c.b16 %v5951, %v5947
    %v6552 = vpack.c.b16 %v5952, %v5948
    %v6553 = vpack.c.b16 %v5953, %v5949
    %v6554 = vpack.c.b16 %v5958, %v5954
    %v6555 = vpack.c.b16 %v5959, %v5955
    %v6556 = vpack.c.b16 %v5960, %v5956
    %v6557 = vpack.c.b16 %v5961, %v5957
    %v6558 = vpack.c.b16 %v5966, %v5962
    %v6559 = vpack.c.b16 %v5967, %v5963
    %v6560 = vpack.c.b16 %v5968, %v5964
    %v6561 = vpack.c.b16 %v5969, %v5965
    %v6562 = vpack.c.b16 %v5974, %v5970
    %v6563 = vpack.c.b16 %v5975, %v5971
    %v6564 = vpack.c.b16 %v5976, %v5972
    %v6565 = vpack.c.b16 %v5977, %v5973
    %v6566 = vpack.c.b16 %v5982, %v5978
    %v6567 = vpack.c.b16 %v5983, %v5979
    %v6568 = vpack.c.b16 %v5984, %v5980
    %v6569 = vpack.c.b16 %v5985, %v5981
    %v6570 = vpack.c.b16 %v5990, %v5986
    %v6571 = vpack.c.b16 %v5991, %v5987
    %v6572 = vpack.c.b16 %v5992, %v5988
    %v6573 = vpack.c.b16 %v5993, %v5989
    %v6574 = vpack.c.b16 %v5998, %v5994
    %v6575 = vpack.c.b16 %v5999, %v5995
    %v6576 = vpack.c.b16 %v6000, %v5996
    %v6577 = vpack.c.b16 %v6001, %v5997
    %v6578 = vpack.c.b16 %v6006, %v6002
    %v6579 = vpack.c.b16 %v6007, %v6003
    %v6580 = vpack.c.b16 %v6008, %v6004
    %v6581 = vpack.c.b16 %v6009, %v6005
    %v6582 = vpack.c.b16 %v6014, %v6010
    %v6583 = vpack.c.b16 %v6015, %v6011
    %v6584 = vpack.c.b16 %v6016, %v6012
    %v6585 = vpack.c.b16 %v6017, %v6013
    %v6586 = vpack.c.b16 %v6022, %v6018
    %v6587 = vpack.c.b16 %v6023, %v6019
    %v6588 = vpack.c.b16 %v6024, %v6020
    %v6589 = vpack.c.b16 %v6025, %v6021
    %v6590 = vpack.c.b16 %v6030, %v6026
    %v6591 = vpack.c.b16 %v6031, %v6027
    %v6592 = vpack.c.b16 %v6032, %v6028
    %v6593 = vpack.c.b16 %v6033, %v6029
    %v6594 = vpack.c.b16 %v6038, %v6034
    %v6595 = vpack.c.b16 %v6039, %v6035
    %v6596 = vpack.c.b16 %v6040, %v6036
    %v6597 = vpack.c.b16 %v6041, %v6037
    %v6598 = vpack.c.b16 %v6046, %v6042
    %v6599 = vpack.c.b16 %v6047, %v6043
    %v6600 = vpack.c.b16 %v6048, %v6044
    %v6601 = vpack.c.b16 %v6049, %v6045
    %v6602 = vpack.c.b16 %v6054, %v6050
    %v6603 = vpack.c.b16 %v6055, %v6051
    %v6604 = vpack.c.b16 %v6056, %v6052
    %v6605 = vpack.c.b16 %v6057, %v6053
    %v6606 = vpack.c.b16 %v6062, %v6058
    %v6607 = vpack.c.b16 %v6063, %v6059
    %v6608 = vpack.c.b16 %v6064, %v6060
    %v6609 = vpack.c.b16 %v6065, %v6061
    %v6610 = vpack.c.b16 %v6070, %v6066
    %v6611 = vpack.c.b16 %v6071, %v6067
    %v6612 = vpack.c.b16 %v6072, %v6068
    %v6613 = vpack.c.b16 %v6073, %v6069
    %v6614 = vpack.c.b16 %v6078, %v6074
    %v6615 = vpack.c.b16 %v6079, %v6075
    %v6616 = vpack.c.b16 %v6080, %v6076
    %v6617 = vpack.c.b16 %v6081, %v6077
    %v6618 = vpack.c.b16 %v6086, %v6082
    %v6619 = vpack.c.b16 %v6087, %v6083
    %v6620 = vpack.c.b16 %v6088, %v6084
    %v6621 = vpack.c.b16 %v6089, %v6085
    %v6622 = vpack.c.b16 %v6094, %v6090
    %v6623 = vpack.c.b16 %v6095, %v6091
    %v6624 = vpack.c.b16 %v6096, %v6092
    %v6625 = vpack.c.b16 %v6097, %v6093
    %v6626 = vpack.c.b16 %v6102, %v6098
    %v6627 = vpack.c.b16 %v6103, %v6099
    %v6628 = vpack.c.b16 %v6104, %v6100
    %v6629 = vpack.c.b16 %v6105, %v6101
    %v6630 = vpack.c.b16 %v6110, %v6106
    %v6631 = vpack.c.b16 %v6111, %v6107
    %v6632 = vpack.c.b16 %v6112, %v6108
    %v6633 = vpack.c.b16 %v6113, %v6109
    %v6634 = vpack.c.b16 %v6118, %v6114
    %v6635 = vpack.c.b16 %v6119, %v6115
    %v6636 = vpack.c.b16 %v6120, %v6116
    %v6637 = vpack.c.b16 %v6121, %v6117
    %v6638 = vpack.c.b16 %v6126, %v6122
    %v6639 = vpack.c.b16 %v6127, %v6123
    %v6640 = vpack.c.b16 %v6128, %v6124
    %v6641 = vpack.c.b16 %v6129, %v6125
    %7154 = vmatpush.bf16.msra.mxu0 %v6158
    %7155 = vmatpush.bf16.msra.mxu0 %v6154
    %7156 = vmatpush.bf16.msra.mxu0 %v6150
    %7157 = vmatpush.bf16.msra.mxu0 %v6146
    %7158 = vmatpush.bf16.msra.mxu0 %v6142
    %7159 = vmatpush.bf16.msra.mxu0 %v6138
    %7160 = vmatpush.bf16.msra.mxu0 %v6134
    %7161 = vmatpush.bf16.msra.mxu0 %v6130
    %7162 = vmatmul.bf16.gmra.mxu0 %v130
    %v7163 = vpop.f32.mrf.mxu0
    %v7164 = vadd.f32 %v3967, %v7163
    %v7165 = vpop.f32.mrf.mxu0
    %7166 = vdwg.mxu0
    %7167 = vmatpush.bf16.msra.mxu0 %v6190
    %7168 = vmatpush.bf16.msra.mxu0 %v6186
    %7169 = vmatpush.bf16.msra.mxu0 %v6182
    %7170 = vmatpush.bf16.msra.mxu0 %v6178
    %7171 = vmatpush.bf16.msra.mxu0 %v6174
    %7172 = vmatpush.bf16.msra.mxu0 %v6170
    %7173 = vmatpush.bf16.msra.mxu0 %v6166
    %7174 = vmatpush.bf16.msra.mxu0 %v6162
    %7175 = vmatmul.bf16.gmra.mxu0 %v131
    %v7176 = vpop.f32.mrf.mxu0
    %v7177 = vadd.f32 %v7164, %v7176
    %v7178 = vpop.f32.mrf.mxu0
    %7179 = vdwg.mxu0
    %7180 = vmatpush.bf16.msra.mxu0 %v6222
    %7181 = vmatpush.bf16.msra.mxu0 %v6218
    %7182 = vmatpush.bf16.msra.mxu0 %v6214
    %7183 = vmatpush.bf16.msra.mxu0 %v6210
    %7184 = vmatpush.bf16.msra.mxu0 %v6206
    %7185 = vmatpush.bf16.msra.mxu0 %v6202
    %7186 = vmatpush.bf16.msra.mxu0 %v6198
    %7187 = vmatpush.bf16.msra.mxu0 %v6194
    %7188 = vmatmul.bf16.gmra.mxu0 %v132
    %v7189 = vpop.f32.mrf.mxu0
    %v7190 = vadd.f32 %v7177, %v7189
    %v7191 = vpop.f32.mrf.mxu0
    %7192 = vdwg.mxu0
    %7193 = vmatpush.bf16.msra.mxu0 %v6254
    %7194 = vmatpush.bf16.msra.mxu0 %v6250
    %7195 = vmatpush.bf16.msra.mxu0 %v6246
    %7196 = vmatpush.bf16.msra.mxu0 %v6242
    %7197 = vmatpush.bf16.msra.mxu0 %v6238
    %7198 = vmatpush.bf16.msra.mxu0 %v6234
    %7199 = vmatpush.bf16.msra.mxu0 %v6230
    %7200 = vmatpush.bf16.msra.mxu0 %v6226
    %7201 = vmatmul.bf16.gmra.mxu0 %v133
    %v7202 = vpop.f32.mrf.mxu0
    %v7203 = vadd.f32 %v7190, %v7202
    %v7204 = vpop.f32.mrf.mxu0
    %7205 = vdwg.mxu0
    %7206 = vmatpush.bf16.msra.mxu0 %v6286
    %7207 = vmatpush.bf16.msra.mxu0 %v6282
    %7208 = vmatpush.bf16.msra.mxu0 %v6278
    %7209 = vmatpush.bf16.msra.mxu0 %v6274
    %7210 = vmatpush.bf16.msra.mxu0 %v6270
    %7211 = vmatpush.bf16.msra.mxu0 %v6266
    %7212 = vmatpush.bf16.msra.mxu0 %v6262
    %7213 = vmatpush.bf16.msra.mxu0 %v6258
    %7214 = vmatmul.bf16.gmra.mxu0 %v134
    %v7215 = vpop.f32.mrf.mxu0
    %v7216 = vadd.f32 %v7203, %v7215
    %v7217 = vpop.f32.mrf.mxu0
    %7218 = vdwg.mxu0
    %7219 = vmatpush.bf16.msra.mxu0 %v6318
    %7220 = vmatpush.bf16.msra.mxu0 %v6314
    %7221 = vmatpush.bf16.msra.mxu0 %v6310
    %7222 = vmatpush.bf16.msra.mxu0 %v6306
    %7223 = vmatpush.bf16.msra.mxu0 %v6302
    %7224 = vmatpush.bf16.msra.mxu0 %v6298
    %7225 = vmatpush.bf16.msra.mxu0 %v6294
    %7226 = vmatpush.bf16.msra.mxu0 %v6290
    %7227 = vmatmul.bf16.gmra.mxu0 %v135
    %v7228 = vpop.f32.mrf.mxu0
    %v7229 = vadd.f32 %v7216, %v7228
    %v7230 = vpop.f32.mrf.mxu0
    %7231 = vdwg.mxu0
    %7232 = vmatpush.bf16.msra.mxu0 %v6350
    %7233 = vmatpush.bf16.msra.mxu0 %v6346
    %7234 = vmatpush.bf16.msra.mxu0 %v6342
    %7235 = vmatpush.bf16.msra.mxu0 %v6338
    %7236 = vmatpush.bf16.msra.mxu0 %v6334
    %7237 = vmatpush.bf16.msra.mxu0 %v6330
    %7238 = vmatpush.bf16.msra.mxu0 %v6326
    %7239 = vmatpush.bf16.msra.mxu0 %v6322
    %7240 = vmatmul.bf16.gmra.mxu0 %v136
    %v7241 = vpop.f32.mrf.mxu0
    %v7242 = vadd.f32 %v7229, %v7241
    %v7243 = vpop.f32.mrf.mxu0
    %7244 = vdwg.mxu0
    %7245 = vmatpush.bf16.msra.mxu0 %v6382
    %7246 = vmatpush.bf16.msra.mxu0 %v6378
    %7247 = vmatpush.bf16.msra.mxu0 %v6374
    %7248 = vmatpush.bf16.msra.mxu0 %v6370
    %7249 = vmatpush.bf16.msra.mxu0 %v6366
    %7250 = vmatpush.bf16.msra.mxu0 %v6362
    %7251 = vmatpush.bf16.msra.mxu0 %v6358
    %7252 = vmatpush.bf16.msra.mxu0 %v6354
    %7253 = vmatmul.bf16.gmra.mxu0 %v137
    %v7254 = vpop.f32.mrf.mxu0
    %v7255 = vadd.f32 %v7242, %v7254
    %v7256 = vpop.f32.mrf.mxu0
    %7257 = vdwg.mxu0
    %7258 = vmatpush.bf16.msra.mxu0 %v6414
    %7259 = vmatpush.bf16.msra.mxu0 %v6410
    %7260 = vmatpush.bf16.msra.mxu0 %v6406
    %7261 = vmatpush.bf16.msra.mxu0 %v6402
    %7262 = vmatpush.bf16.msra.mxu0 %v6398
    %7263 = vmatpush.bf16.msra.mxu0 %v6394
    %7264 = vmatpush.bf16.msra.mxu0 %v6390
    %7265 = vmatpush.bf16.msra.mxu0 %v6386
    %7266 = vmatmul.bf16.gmra.mxu0 %v138
    %v7267 = vpop.f32.mrf.mxu0
    %v7268 = vadd.f32 %v7255, %v7267
    %v7269 = vpop.f32.mrf.mxu0
    %7270 = vdwg.mxu0
    %7271 = vmatpush.bf16.msra.mxu0 %v6446
    %7272 = vmatpush.bf16.msra.mxu0 %v6442
    %7273 = vmatpush.bf16.msra.mxu0 %v6438
    %7274 = vmatpush.bf16.msra.mxu0 %v6434
    %7275 = vmatpush.bf16.msra.mxu0 %v6430
    %7276 = vmatpush.bf16.msra.mxu0 %v6426
    %7277 = vmatpush.bf16.msra.mxu0 %v6422
    %7278 = vmatpush.bf16.msra.mxu0 %v6418
    %7279 = vmatmul.bf16.gmra.mxu0 %v139
    %v7280 = vpop.f32.mrf.mxu0
    %v7281 = vadd.f32 %v7268, %v7280
    %v7282 = vpop.f32.mrf.mxu0
    %7283 = vdwg.mxu0
    %7284 = vmatpush.bf16.msra.mxu0 %v6478
    %7285 = vmatpush.bf16.msra.mxu0 %v6474
    %7286 = vmatpush.bf16.msra.mxu0 %v6470
    %7287 = vmatpush.bf16.msra.mxu0 %v6466
    %7288 = vmatpush.bf16.msra.mxu0 %v6462
    %7289 = vmatpush.bf16.msra.mxu0 %v6458
    %7290 = vmatpush.bf16.msra.mxu0 %v6454
    %7291 = vmatpush.bf16.msra.mxu0 %v6450
    %7292 = vmatmul.bf16.gmra.mxu0 %v140
    %v7293 = vpop.f32.mrf.mxu0
    %v7294 = vadd.f32 %v7281, %v7293
    %v7295 = vpop.f32.mrf.mxu0
    %7296 = vdwg.mxu0
    %7297 = vmatpush.bf16.msra.mxu0 %v6510
    %7298 = vmatpush.bf16.msra.mxu0 %v6506
    %7299 = vmatpush.bf16.msra.mxu0 %v6502
    %7300 = vmatpush.bf16.msra.mxu0 %v6498
    %7301 = vmatpush.bf16.msra.mxu0 %v6494
    %7302 = vmatpush.bf16.msra.mxu0 %v6490
    %7303 = vmatpush.bf16.msra.mxu0 %v6486
    %7304 = vmatpush.bf16.msra.mxu0 %v6482
    %7305 = vmatmul.bf16.gmra.mxu0 %v141
    %v7306 = vpop.f32.mrf.mxu0
    %v7307 = vadd.f32 %v7294, %v7306
    %v7308 = vpop.f32.mrf.mxu0
    %7309 = vdwg.mxu0
    %7310 = vmatpush.bf16.msra.mxu0 %v6542
    %7311 = vmatpush.bf16.msra.mxu0 %v6538
    %7312 = vmatpush.bf16.msra.mxu0 %v6534
    %7313 = vmatpush.bf16.msra.mxu0 %v6530
    %7314 = vmatpush.bf16.msra.mxu0 %v6526
    %7315 = vmatpush.bf16.msra.mxu0 %v6522
    %7316 = vmatpush.bf16.msra.mxu0 %v6518
    %7317 = vmatpush.bf16.msra.mxu0 %v6514
    %7318 = vmatmul.bf16.gmra.mxu0 %v142
    %v7319 = vpop.f32.mrf.mxu0
    %v7320 = vadd.f32 %v7307, %v7319
    %v7321 = vpop.f32.mrf.mxu0
    %7322 = vdwg.mxu0
    %7323 = vmatpush.bf16.msra.mxu0 %v6574
    %7324 = vmatpush.bf16.msra.mxu0 %v6570
    %7325 = vmatpush.bf16.msra.mxu0 %v6566
    %7326 = vmatpush.bf16.msra.mxu0 %v6562
    %7327 = vmatpush.bf16.msra.mxu0 %v6558
    %7328 = vmatpush.bf16.msra.mxu0 %v6554
    %7329 = vmatpush.bf16.msra.mxu0 %v6550
    %7330 = vmatpush.bf16.msra.mxu0 %v6546
    %7331 = vmatmul.bf16.gmra.mxu0 %v143
    %v7332 = vpop.f32.mrf.mxu0
    %v7333 = vadd.f32 %v7320, %v7332
    %v7334 = vpop.f32.mrf.mxu0
    %7335 = vdwg.mxu0
    %7336 = vmatpush.bf16.msra.mxu0 %v6606
    %7337 = vmatpush.bf16.msra.mxu0 %v6602
    %7338 = vmatpush.bf16.msra.mxu0 %v6598
    %7339 = vmatpush.bf16.msra.mxu0 %v6594
    %7340 = vmatpush.bf16.msra.mxu0 %v6590
    %7341 = vmatpush.bf16.msra.mxu0 %v6586
    %7342 = vmatpush.bf16.msra.mxu0 %v6582
    %7343 = vmatpush.bf16.msra.mxu0 %v6578
    %7344 = vmatmul.bf16.gmra.mxu0 %v144
    %v7345 = vpop.f32.mrf.mxu0
    %v7346 = vadd.f32 %v7333, %v7345
    %v7347 = vpop.f32.mrf.mxu0
    %7348 = vdwg.mxu0
    %7349 = vmatpush.bf16.msra.mxu0 %v6638
    %7350 = vmatpush.bf16.msra.mxu0 %v6634
    %7351 = vmatpush.bf16.msra.mxu0 %v6630
    %7352 = vmatpush.bf16.msra.mxu0 %v6626
    %7353 = vmatpush.bf16.msra.mxu0 %v6622
    %7354 = vmatpush.bf16.msra.mxu0 %v6618
    %7355 = vmatpush.bf16.msra.mxu0 %v6614
    %7356 = vmatpush.bf16.msra.mxu0 %v6610
    %7357 = vmatmul.bf16.gmra.mxu0 %v145
    %v7358 = vpop.f32.mrf.mxu0
    %v7359 = vadd.f32 %v7346, %v7358
    %v7360 = vpop.f32.mrf.mxu0
    %7361 = vdwg.mxu0
    %7362 = vmatpush.bf16.msra.mxu0 %v6159
    %7363 = vmatpush.bf16.msra.mxu0 %v6155
    %7364 = vmatpush.bf16.msra.mxu0 %v6151
    %7365 = vmatpush.bf16.msra.mxu0 %v6147
    %7366 = vmatpush.bf16.msra.mxu0 %v6143
    %7367 = vmatpush.bf16.msra.mxu0 %v6139
    %7368 = vmatpush.bf16.msra.mxu0 %v6135
    %7369 = vmatpush.bf16.msra.mxu0 %v6131
    %7370 = vmatmul.bf16.gmra.mxu0 %v130
    %v7371 = vpop.f32.mrf.mxu0
    %v7372 = vadd.f32 %v4175, %v7371
    %v7373 = vpop.f32.mrf.mxu0
    %7374 = vdwg.mxu0
    %7375 = vmatpush.bf16.msra.mxu0 %v6191
    %7376 = vmatpush.bf16.msra.mxu0 %v6187
    %7377 = vmatpush.bf16.msra.mxu0 %v6183
    %7378 = vmatpush.bf16.msra.mxu0 %v6179
    %7379 = vmatpush.bf16.msra.mxu0 %v6175
    %7380 = vmatpush.bf16.msra.mxu0 %v6171
    %7381 = vmatpush.bf16.msra.mxu0 %v6167
    %7382 = vmatpush.bf16.msra.mxu0 %v6163
    %7383 = vmatmul.bf16.gmra.mxu0 %v131
    %v7384 = vpop.f32.mrf.mxu0
    %v7385 = vadd.f32 %v7372, %v7384
    %v7386 = vpop.f32.mrf.mxu0
    %7387 = vdwg.mxu0
    %7388 = vmatpush.bf16.msra.mxu0 %v6223
    %7389 = vmatpush.bf16.msra.mxu0 %v6219
    %7390 = vmatpush.bf16.msra.mxu0 %v6215
    %7391 = vmatpush.bf16.msra.mxu0 %v6211
    %7392 = vmatpush.bf16.msra.mxu0 %v6207
    %7393 = vmatpush.bf16.msra.mxu0 %v6203
    %7394 = vmatpush.bf16.msra.mxu0 %v6199
    %7395 = vmatpush.bf16.msra.mxu0 %v6195
    %7396 = vmatmul.bf16.gmra.mxu0 %v132
    %v7397 = vpop.f32.mrf.mxu0
    %v7398 = vadd.f32 %v7385, %v7397
    %v7399 = vpop.f32.mrf.mxu0
    %7400 = vdwg.mxu0
    %7401 = vmatpush.bf16.msra.mxu0 %v6255
    %7402 = vmatpush.bf16.msra.mxu0 %v6251
    %7403 = vmatpush.bf16.msra.mxu0 %v6247
    %7404 = vmatpush.bf16.msra.mxu0 %v6243
    %7405 = vmatpush.bf16.msra.mxu0 %v6239
    %7406 = vmatpush.bf16.msra.mxu0 %v6235
    %7407 = vmatpush.bf16.msra.mxu0 %v6231
    %7408 = vmatpush.bf16.msra.mxu0 %v6227
    %7409 = vmatmul.bf16.gmra.mxu0 %v133
    %v7410 = vpop.f32.mrf.mxu0
    %v7411 = vadd.f32 %v7398, %v7410
    %v7412 = vpop.f32.mrf.mxu0
    %7413 = vdwg.mxu0
    %7414 = vmatpush.bf16.msra.mxu0 %v6287
    %7415 = vmatpush.bf16.msra.mxu0 %v6283
    %7416 = vmatpush.bf16.msra.mxu0 %v6279
    %7417 = vmatpush.bf16.msra.mxu0 %v6275
    %7418 = vmatpush.bf16.msra.mxu0 %v6271
    %7419 = vmatpush.bf16.msra.mxu0 %v6267
    %7420 = vmatpush.bf16.msra.mxu0 %v6263
    %7421 = vmatpush.bf16.msra.mxu0 %v6259
    %7422 = vmatmul.bf16.gmra.mxu0 %v134
    %v7423 = vpop.f32.mrf.mxu0
    %v7424 = vadd.f32 %v7411, %v7423
    %v7425 = vpop.f32.mrf.mxu0
    %7426 = vdwg.mxu0
    %7427 = vmatpush.bf16.msra.mxu0 %v6319
    %7428 = vmatpush.bf16.msra.mxu0 %v6315
    %7429 = vmatpush.bf16.msra.mxu0 %v6311
    %7430 = vmatpush.bf16.msra.mxu0 %v6307
    %7431 = vmatpush.bf16.msra.mxu0 %v6303
    %7432 = vmatpush.bf16.msra.mxu0 %v6299
    %7433 = vmatpush.bf16.msra.mxu0 %v6295
    %7434 = vmatpush.bf16.msra.mxu0 %v6291
    %7435 = vmatmul.bf16.gmra.mxu0 %v135
    %v7436 = vpop.f32.mrf.mxu0
    %v7437 = vadd.f32 %v7424, %v7436
    %v7438 = vpop.f32.mrf.mxu0
    %7439 = vdwg.mxu0
    %7440 = vmatpush.bf16.msra.mxu0 %v6351
    %7441 = vmatpush.bf16.msra.mxu0 %v6347
    %7442 = vmatpush.bf16.msra.mxu0 %v6343
    %7443 = vmatpush.bf16.msra.mxu0 %v6339
    %7444 = vmatpush.bf16.msra.mxu0 %v6335
    %7445 = vmatpush.bf16.msra.mxu0 %v6331
    %7446 = vmatpush.bf16.msra.mxu0 %v6327
    %7447 = vmatpush.bf16.msra.mxu0 %v6323
    %7448 = vmatmul.bf16.gmra.mxu0 %v136
    %v7449 = vpop.f32.mrf.mxu0
    %v7450 = vadd.f32 %v7437, %v7449
    %v7451 = vpop.f32.mrf.mxu0
    %7452 = vdwg.mxu0
    %7453 = vmatpush.bf16.msra.mxu0 %v6383
    %7454 = vmatpush.bf16.msra.mxu0 %v6379
    %7455 = vmatpush.bf16.msra.mxu0 %v6375
    %7456 = vmatpush.bf16.msra.mxu0 %v6371
    %7457 = vmatpush.bf16.msra.mxu0 %v6367
    %7458 = vmatpush.bf16.msra.mxu0 %v6363
    %7459 = vmatpush.bf16.msra.mxu0 %v6359
    %7460 = vmatpush.bf16.msra.mxu0 %v6355
    %7461 = vmatmul.bf16.gmra.mxu0 %v137
    %v7462 = vpop.f32.mrf.mxu0
    %v7463 = vadd.f32 %v7450, %v7462
    %v7464 = vpop.f32.mrf.mxu0
    %7465 = vdwg.mxu0
    %7466 = vmatpush.bf16.msra.mxu0 %v6415
    %7467 = vmatpush.bf16.msra.mxu0 %v6411
    %7468 = vmatpush.bf16.msra.mxu0 %v6407
    %7469 = vmatpush.bf16.msra.mxu0 %v6403
    %7470 = vmatpush.bf16.msra.mxu0 %v6399
    %7471 = vmatpush.bf16.msra.mxu0 %v6395
    %7472 = vmatpush.bf16.msra.mxu0 %v6391
    %7473 = vmatpush.bf16.msra.mxu0 %v6387
    %7474 = vmatmul.bf16.gmra.mxu0 %v138
    %v7475 = vpop.f32.mrf.mxu0
    %v7476 = vadd.f32 %v7463, %v7475
    %v7477 = vpop.f32.mrf.mxu0
    %7478 = vdwg.mxu0
    %7479 = vmatpush.bf16.msra.mxu0 %v6447
    %7480 = vmatpush.bf16.msra.mxu0 %v6443
    %7481 = vmatpush.bf16.msra.mxu0 %v6439
    %7482 = vmatpush.bf16.msra.mxu0 %v6435
    %7483 = vmatpush.bf16.msra.mxu0 %v6431
    %7484 = vmatpush.bf16.msra.mxu0 %v6427
    %7485 = vmatpush.bf16.msra.mxu0 %v6423
    %7486 = vmatpush.bf16.msra.mxu0 %v6419
    %7487 = vmatmul.bf16.gmra.mxu0 %v139
    %v7488 = vpop.f32.mrf.mxu0
    %v7489 = vadd.f32 %v7476, %v7488
    %v7490 = vpop.f32.mrf.mxu0
    %7491 = vdwg.mxu0
    %7492 = vmatpush.bf16.msra.mxu0 %v6479
    %7493 = vmatpush.bf16.msra.mxu0 %v6475
    %7494 = vmatpush.bf16.msra.mxu0 %v6471
    %7495 = vmatpush.bf16.msra.mxu0 %v6467
    %7496 = vmatpush.bf16.msra.mxu0 %v6463
    %7497 = vmatpush.bf16.msra.mxu0 %v6459
    %7498 = vmatpush.bf16.msra.mxu0 %v6455
    %7499 = vmatpush.bf16.msra.mxu0 %v6451
    %7500 = vmatmul.bf16.gmra.mxu0 %v140
    %v7501 = vpop.f32.mrf.mxu0
    %v7502 = vadd.f32 %v7489, %v7501
    %v7503 = vpop.f32.mrf.mxu0
    %7504 = vdwg.mxu0
    %7505 = vmatpush.bf16.msra.mxu0 %v6511
    %7506 = vmatpush.bf16.msra.mxu0 %v6507
    %7507 = vmatpush.bf16.msra.mxu0 %v6503
    %7508 = vmatpush.bf16.msra.mxu0 %v6499
    %7509 = vmatpush.bf16.msra.mxu0 %v6495
    %7510 = vmatpush.bf16.msra.mxu0 %v6491
    %7511 = vmatpush.bf16.msra.mxu0 %v6487
    %7512 = vmatpush.bf16.msra.mxu0 %v6483
    %7513 = vmatmul.bf16.gmra.mxu0 %v141
    %v7514 = vpop.f32.mrf.mxu0
    %v7515 = vadd.f32 %v7502, %v7514
    %v7516 = vpop.f32.mrf.mxu0
    %7517 = vdwg.mxu0
    %7518 = vmatpush.bf16.msra.mxu0 %v6543
    %7519 = vmatpush.bf16.msra.mxu0 %v6539
    %7520 = vmatpush.bf16.msra.mxu0 %v6535
    %7521 = vmatpush.bf16.msra.mxu0 %v6531
    %7522 = vmatpush.bf16.msra.mxu0 %v6527
    %7523 = vmatpush.bf16.msra.mxu0 %v6523
    %7524 = vmatpush.bf16.msra.mxu0 %v6519
    %7525 = vmatpush.bf16.msra.mxu0 %v6515
    %7526 = vmatmul.bf16.gmra.mxu0 %v142
    %v7527 = vpop.f32.mrf.mxu0
    %v7528 = vadd.f32 %v7515, %v7527
    %v7529 = vpop.f32.mrf.mxu0
    %7530 = vdwg.mxu0
    %7531 = vmatpush.bf16.msra.mxu0 %v6575
    %7532 = vmatpush.bf16.msra.mxu0 %v6571
    %7533 = vmatpush.bf16.msra.mxu0 %v6567
    %7534 = vmatpush.bf16.msra.mxu0 %v6563
    %7535 = vmatpush.bf16.msra.mxu0 %v6559
    %7536 = vmatpush.bf16.msra.mxu0 %v6555
    %7537 = vmatpush.bf16.msra.mxu0 %v6551
    %7538 = vmatpush.bf16.msra.mxu0 %v6547
    %7539 = vmatmul.bf16.gmra.mxu0 %v143
    %v7540 = vpop.f32.mrf.mxu0
    %v7541 = vadd.f32 %v7528, %v7540
    %v7542 = vpop.f32.mrf.mxu0
    %7543 = vdwg.mxu0
    %7544 = vmatpush.bf16.msra.mxu0 %v6607
    %7545 = vmatpush.bf16.msra.mxu0 %v6603
    %7546 = vmatpush.bf16.msra.mxu0 %v6599
    %7547 = vmatpush.bf16.msra.mxu0 %v6595
    %7548 = vmatpush.bf16.msra.mxu0 %v6591
    %7549 = vmatpush.bf16.msra.mxu0 %v6587
    %7550 = vmatpush.bf16.msra.mxu0 %v6583
    %7551 = vmatpush.bf16.msra.mxu0 %v6579
    %7552 = vmatmul.bf16.gmra.mxu0 %v144
    %v7553 = vpop.f32.mrf.mxu0
    %v7554 = vadd.f32 %v7541, %v7553
    %v7555 = vpop.f32.mrf.mxu0
    %7556 = vdwg.mxu0
    %7557 = vmatpush.bf16.msra.mxu0 %v6639
    %7558 = vmatpush.bf16.msra.mxu0 %v6635
    %7559 = vmatpush.bf16.msra.mxu0 %v6631
    %7560 = vmatpush.bf16.msra.mxu0 %v6627
    %7561 = vmatpush.bf16.msra.mxu0 %v6623
    %7562 = vmatpush.bf16.msra.mxu0 %v6619
    %7563 = vmatpush.bf16.msra.mxu0 %v6615
    %7564 = vmatpush.bf16.msra.mxu0 %v6611
    %7565 = vmatmul.bf16.gmra.mxu0 %v145
    %v7566 = vpop.f32.mrf.mxu0
    %v7567 = vadd.f32 %v7554, %v7566
    %v7568 = vpop.f32.mrf.mxu0
    %7569 = vdwg.mxu0
    %7570 = vmatpush.bf16.msra.mxu0 %v6160
    %7571 = vmatpush.bf16.msra.mxu0 %v6156
    %7572 = vmatpush.bf16.msra.mxu0 %v6152
    %7573 = vmatpush.bf16.msra.mxu0 %v6148
    %7574 = vmatpush.bf16.msra.mxu0 %v6144
    %7575 = vmatpush.bf16.msra.mxu0 %v6140
    %7576 = vmatpush.bf16.msra.mxu0 %v6136
    %7577 = vmatpush.bf16.msra.mxu0 %v6132
    %7578 = vmatmul.bf16.gmra.mxu0 %v130
    %v7579 = vpop.f32.mrf.mxu0
    %v7580 = vadd.f32 %v4383, %v7579
    %v7581 = vpop.f32.mrf.mxu0
    %7582 = vdwg.mxu0
    %7583 = vmatpush.bf16.msra.mxu0 %v6192
    %7584 = vmatpush.bf16.msra.mxu0 %v6188
    %7585 = vmatpush.bf16.msra.mxu0 %v6184
    %7586 = vmatpush.bf16.msra.mxu0 %v6180
    %7587 = vmatpush.bf16.msra.mxu0 %v6176
    %7588 = vmatpush.bf16.msra.mxu0 %v6172
    %7589 = vmatpush.bf16.msra.mxu0 %v6168
    %7590 = vmatpush.bf16.msra.mxu0 %v6164
    %7591 = vmatmul.bf16.gmra.mxu0 %v131
    %v7592 = vpop.f32.mrf.mxu0
    %v7593 = vadd.f32 %v7580, %v7592
    %v7594 = vpop.f32.mrf.mxu0
    %7595 = vdwg.mxu0
    %7596 = vmatpush.bf16.msra.mxu0 %v6224
    %7597 = vmatpush.bf16.msra.mxu0 %v6220
    %7598 = vmatpush.bf16.msra.mxu0 %v6216
    %7599 = vmatpush.bf16.msra.mxu0 %v6212
    %7600 = vmatpush.bf16.msra.mxu0 %v6208
    %7601 = vmatpush.bf16.msra.mxu0 %v6204
    %7602 = vmatpush.bf16.msra.mxu0 %v6200
    %7603 = vmatpush.bf16.msra.mxu0 %v6196
    %7604 = vmatmul.bf16.gmra.mxu0 %v132
    %v7605 = vpop.f32.mrf.mxu0
    %v7606 = vadd.f32 %v7593, %v7605
    %v7607 = vpop.f32.mrf.mxu0
    %7608 = vdwg.mxu0
    %7609 = vmatpush.bf16.msra.mxu0 %v6256
    %7610 = vmatpush.bf16.msra.mxu0 %v6252
    %7611 = vmatpush.bf16.msra.mxu0 %v6248
    %7612 = vmatpush.bf16.msra.mxu0 %v6244
    %7613 = vmatpush.bf16.msra.mxu0 %v6240
    %7614 = vmatpush.bf16.msra.mxu0 %v6236
    %7615 = vmatpush.bf16.msra.mxu0 %v6232
    %7616 = vmatpush.bf16.msra.mxu0 %v6228
    %7617 = vmatmul.bf16.gmra.mxu0 %v133
    %v7618 = vpop.f32.mrf.mxu0
    %v7619 = vadd.f32 %v7606, %v7618
    %v7620 = vpop.f32.mrf.mxu0
    %7621 = vdwg.mxu0
    %7622 = vmatpush.bf16.msra.mxu0 %v6288
    %7623 = vmatpush.bf16.msra.mxu0 %v6284
    %7624 = vmatpush.bf16.msra.mxu0 %v6280
    %7625 = vmatpush.bf16.msra.mxu0 %v6276
    %7626 = vmatpush.bf16.msra.mxu0 %v6272
    %7627 = vmatpush.bf16.msra.mxu0 %v6268
    %7628 = vmatpush.bf16.msra.mxu0 %v6264
    %7629 = vmatpush.bf16.msra.mxu0 %v6260
    %7630 = vmatmul.bf16.gmra.mxu0 %v134
    %v7631 = vpop.f32.mrf.mxu0
    %v7632 = vadd.f32 %v7619, %v7631
    %v7633 = vpop.f32.mrf.mxu0
    %7634 = vdwg.mxu0
    %7635 = vmatpush.bf16.msra.mxu0 %v6320
    %7636 = vmatpush.bf16.msra.mxu0 %v6316
    %7637 = vmatpush.bf16.msra.mxu0 %v6312
    %7638 = vmatpush.bf16.msra.mxu0 %v6308
    %7639 = vmatpush.bf16.msra.mxu0 %v6304
    %7640 = vmatpush.bf16.msra.mxu0 %v6300
    %7641 = vmatpush.bf16.msra.mxu0 %v6296
    %7642 = vmatpush.bf16.msra.mxu0 %v6292
    %7643 = vmatmul.bf16.gmra.mxu0 %v135
    %v7644 = vpop.f32.mrf.mxu0
    %v7645 = vadd.f32 %v7632, %v7644
    %v7646 = vpop.f32.mrf.mxu0
    %7647 = vdwg.mxu0
    %7648 = vmatpush.bf16.msra.mxu0 %v6352
    %7649 = vmatpush.bf16.msra.mxu0 %v6348
    %7650 = vmatpush.bf16.msra.mxu0 %v6344
    %7651 = vmatpush.bf16.msra.mxu0 %v6340
    %7652 = vmatpush.bf16.msra.mxu0 %v6336
    %7653 = vmatpush.bf16.msra.mxu0 %v6332
    %7654 = vmatpush.bf16.msra.mxu0 %v6328
    %7655 = vmatpush.bf16.msra.mxu0 %v6324
    %7656 = vmatmul.bf16.gmra.mxu0 %v136
    %v7657 = vpop.f32.mrf.mxu0
    %v7658 = vadd.f32 %v7645, %v7657
    %v7659 = vpop.f32.mrf.mxu0
    %7660 = vdwg.mxu0
    %7661 = vmatpush.bf16.msra.mxu0 %v6384
    %7662 = vmatpush.bf16.msra.mxu0 %v6380
    %7663 = vmatpush.bf16.msra.mxu0 %v6376
    %7664 = vmatpush.bf16.msra.mxu0 %v6372
    %7665 = vmatpush.bf16.msra.mxu0 %v6368
    %7666 = vmatpush.bf16.msra.mxu0 %v6364
    %7667 = vmatpush.bf16.msra.mxu0 %v6360
    %7668 = vmatpush.bf16.msra.mxu0 %v6356
    %7669 = vmatmul.bf16.gmra.mxu0 %v137
    %v7670 = vpop.f32.mrf.mxu0
    %v7671 = vadd.f32 %v7658, %v7670
    %v7672 = vpop.f32.mrf.mxu0
    %7673 = vdwg.mxu0
    %7674 = vmatpush.bf16.msra.mxu0 %v6416
    %7675 = vmatpush.bf16.msra.mxu0 %v6412
    %7676 = vmatpush.bf16.msra.mxu0 %v6408
    %7677 = vmatpush.bf16.msra.mxu0 %v6404
    %7678 = vmatpush.bf16.msra.mxu0 %v6400
    %7679 = vmatpush.bf16.msra.mxu0 %v6396
    %7680 = vmatpush.bf16.msra.mxu0 %v6392
    %7681 = vmatpush.bf16.msra.mxu0 %v6388
    %7682 = vmatmul.bf16.gmra.mxu0 %v138
    %v7683 = vpop.f32.mrf.mxu0
    %v7684 = vadd.f32 %v7671, %v7683
    %v7685 = vpop.f32.mrf.mxu0
    %7686 = vdwg.mxu0
    %7687 = vmatpush.bf16.msra.mxu0 %v6448
    %7688 = vmatpush.bf16.msra.mxu0 %v6444
    %7689 = vmatpush.bf16.msra.mxu0 %v6440
    %7690 = vmatpush.bf16.msra.mxu0 %v6436
    %7691 = vmatpush.bf16.msra.mxu0 %v6432
    %7692 = vmatpush.bf16.msra.mxu0 %v6428
    %7693 = vmatpush.bf16.msra.mxu0 %v6424
    %7694 = vmatpush.bf16.msra.mxu0 %v6420
    %7695 = vmatmul.bf16.gmra.mxu0 %v139
    %v7696 = vpop.f32.mrf.mxu0
    %v7697 = vadd.f32 %v7684, %v7696
    %v7698 = vpop.f32.mrf.mxu0
    %7699 = vdwg.mxu0
    %7700 = vmatpush.bf16.msra.mxu0 %v6480
    %7701 = vmatpush.bf16.msra.mxu0 %v6476
    %7702 = vmatpush.bf16.msra.mxu0 %v6472
    %7703 = vmatpush.bf16.msra.mxu0 %v6468
    %7704 = vmatpush.bf16.msra.mxu0 %v6464
    %7705 = vmatpush.bf16.msra.mxu0 %v6460
    %7706 = vmatpush.bf16.msra.mxu0 %v6456
    %7707 = vmatpush.bf16.msra.mxu0 %v6452
    %7708 = vmatmul.bf16.gmra.mxu0 %v140
    %v7709 = vpop.f32.mrf.mxu0
    %v7710 = vadd.f32 %v7697, %v7709
    %v7711 = vpop.f32.mrf.mxu0
    %7712 = vdwg.mxu0
    %7713 = vmatpush.bf16.msra.mxu0 %v6512
    %7714 = vmatpush.bf16.msra.mxu0 %v6508
    %7715 = vmatpush.bf16.msra.mxu0 %v6504
    %7716 = vmatpush.bf16.msra.mxu0 %v6500
    %7717 = vmatpush.bf16.msra.mxu0 %v6496
    %7718 = vmatpush.bf16.msra.mxu0 %v6492
    %7719 = vmatpush.bf16.msra.mxu0 %v6488
    %7720 = vmatpush.bf16.msra.mxu0 %v6484
    %7721 = vmatmul.bf16.gmra.mxu0 %v141
    %v7722 = vpop.f32.mrf.mxu0
    %v7723 = vadd.f32 %v7710, %v7722
    %v7724 = vpop.f32.mrf.mxu0
    %7725 = vdwg.mxu0
    %7726 = vmatpush.bf16.msra.mxu0 %v6544
    %7727 = vmatpush.bf16.msra.mxu0 %v6540
    %7728 = vmatpush.bf16.msra.mxu0 %v6536
    %7729 = vmatpush.bf16.msra.mxu0 %v6532
    %7730 = vmatpush.bf16.msra.mxu0 %v6528
    %7731 = vmatpush.bf16.msra.mxu0 %v6524
    %7732 = vmatpush.bf16.msra.mxu0 %v6520
    %7733 = vmatpush.bf16.msra.mxu0 %v6516
    %7734 = vmatmul.bf16.gmra.mxu0 %v142
    %v7735 = vpop.f32.mrf.mxu0
    %v7736 = vadd.f32 %v7723, %v7735
    %v7737 = vpop.f32.mrf.mxu0
    %7738 = vdwg.mxu0
    %7739 = vmatpush.bf16.msra.mxu0 %v6576
    %7740 = vmatpush.bf16.msra.mxu0 %v6572
    %7741 = vmatpush.bf16.msra.mxu0 %v6568
    %7742 = vmatpush.bf16.msra.mxu0 %v6564
    %7743 = vmatpush.bf16.msra.mxu0 %v6560
    %7744 = vmatpush.bf16.msra.mxu0 %v6556
    %7745 = vmatpush.bf16.msra.mxu0 %v6552
    %7746 = vmatpush.bf16.msra.mxu0 %v6548
    %7747 = vmatmul.bf16.gmra.mxu0 %v143
    %v7748 = vpop.f32.mrf.mxu0
    %v7749 = vadd.f32 %v7736, %v7748
    %v7750 = vpop.f32.mrf.mxu0
    %7751 = vdwg.mxu0
    %7752 = vmatpush.bf16.msra.mxu0 %v6608
    %7753 = vmatpush.bf16.msra.mxu0 %v6604
    %7754 = vmatpush.bf16.msra.mxu0 %v6600
    %7755 = vmatpush.bf16.msra.mxu0 %v6596
    %7756 = vmatpush.bf16.msra.mxu0 %v6592
    %7757 = vmatpush.bf16.msra.mxu0 %v6588
    %7758 = vmatpush.bf16.msra.mxu0 %v6584
    %7759 = vmatpush.bf16.msra.mxu0 %v6580
    %7760 = vmatmul.bf16.gmra.mxu0 %v144
    %v7761 = vpop.f32.mrf.mxu0
    %v7762 = vadd.f32 %v7749, %v7761
    %v7763 = vpop.f32.mrf.mxu0
    %7764 = vdwg.mxu0
    %7765 = vmatpush.bf16.msra.mxu0 %v6640
    %7766 = vmatpush.bf16.msra.mxu0 %v6636
    %7767 = vmatpush.bf16.msra.mxu0 %v6632
    %7768 = vmatpush.bf16.msra.mxu0 %v6628
    %7769 = vmatpush.bf16.msra.mxu0 %v6624
    %7770 = vmatpush.bf16.msra.mxu0 %v6620
    %7771 = vmatpush.bf16.msra.mxu0 %v6616
    %7772 = vmatpush.bf16.msra.mxu0 %v6612
    %7773 = vmatmul.bf16.gmra.mxu0 %v145
    %v7774 = vpop.f32.mrf.mxu0
    %v7775 = vadd.f32 %v7762, %v7774
    %v7776 = vpop.f32.mrf.mxu0
    %7777 = vdwg.mxu0
    %7778 = vmatpush.bf16.msra.mxu0 %v6161
    %7779 = vmatpush.bf16.msra.mxu0 %v6157
    %7780 = vmatpush.bf16.msra.mxu0 %v6153
    %7781 = vmatpush.bf16.msra.mxu0 %v6149
    %7782 = vmatpush.bf16.msra.mxu0 %v6145
    %7783 = vmatpush.bf16.msra.mxu0 %v6141
    %7784 = vmatpush.bf16.msra.mxu0 %v6137
    %7785 = vmatpush.bf16.msra.mxu0 %v6133
    %7786 = vmatmul.bf16.gmra.mxu0 %v130
    %v7787 = vpop.f32.mrf.mxu0
    %v7788 = vadd.f32 %v4591, %v7787
    %v7789 = vpop.f32.mrf.mxu0
    %7790 = vdwg.mxu0
    %7791 = vmatpush.bf16.msra.mxu0 %v6193
    %7792 = vmatpush.bf16.msra.mxu0 %v6189
    %7793 = vmatpush.bf16.msra.mxu0 %v6185
    %7794 = vmatpush.bf16.msra.mxu0 %v6181
    %7795 = vmatpush.bf16.msra.mxu0 %v6177
    %7796 = vmatpush.bf16.msra.mxu0 %v6173
    %7797 = vmatpush.bf16.msra.mxu0 %v6169
    %7798 = vmatpush.bf16.msra.mxu0 %v6165
    %7799 = vmatmul.bf16.gmra.mxu0 %v131
    %v7800 = vpop.f32.mrf.mxu0
    %v7801 = vadd.f32 %v7788, %v7800
    %v7802 = vpop.f32.mrf.mxu0
    %7803 = vdwg.mxu0
    %7804 = vmatpush.bf16.msra.mxu0 %v6225
    %7805 = vmatpush.bf16.msra.mxu0 %v6221
    %7806 = vmatpush.bf16.msra.mxu0 %v6217
    %7807 = vmatpush.bf16.msra.mxu0 %v6213
    %7808 = vmatpush.bf16.msra.mxu0 %v6209
    %7809 = vmatpush.bf16.msra.mxu0 %v6205
    %7810 = vmatpush.bf16.msra.mxu0 %v6201
    %7811 = vmatpush.bf16.msra.mxu0 %v6197
    %7812 = vmatmul.bf16.gmra.mxu0 %v132
    %v7813 = vpop.f32.mrf.mxu0
    %v7814 = vadd.f32 %v7801, %v7813
    %v7815 = vpop.f32.mrf.mxu0
    %7816 = vdwg.mxu0
    %7817 = vmatpush.bf16.msra.mxu0 %v6257
    %7818 = vmatpush.bf16.msra.mxu0 %v6253
    %7819 = vmatpush.bf16.msra.mxu0 %v6249
    %7820 = vmatpush.bf16.msra.mxu0 %v6245
    %7821 = vmatpush.bf16.msra.mxu0 %v6241
    %7822 = vmatpush.bf16.msra.mxu0 %v6237
    %7823 = vmatpush.bf16.msra.mxu0 %v6233
    %7824 = vmatpush.bf16.msra.mxu0 %v6229
    %7825 = vmatmul.bf16.gmra.mxu0 %v133
    %v7826 = vpop.f32.mrf.mxu0
    %v7827 = vadd.f32 %v7814, %v7826
    %v7828 = vpop.f32.mrf.mxu0
    %7829 = vdwg.mxu0
    %7830 = vmatpush.bf16.msra.mxu0 %v6289
    %7831 = vmatpush.bf16.msra.mxu0 %v6285
    %7832 = vmatpush.bf16.msra.mxu0 %v6281
    %7833 = vmatpush.bf16.msra.mxu0 %v6277
    %7834 = vmatpush.bf16.msra.mxu0 %v6273
    %7835 = vmatpush.bf16.msra.mxu0 %v6269
    %7836 = vmatpush.bf16.msra.mxu0 %v6265
    %7837 = vmatpush.bf16.msra.mxu0 %v6261
    %7838 = vmatmul.bf16.gmra.mxu0 %v134
    %v7839 = vpop.f32.mrf.mxu0
    %v7840 = vadd.f32 %v7827, %v7839
    %v7841 = vpop.f32.mrf.mxu0
    %7842 = vdwg.mxu0
    %7843 = vmatpush.bf16.msra.mxu0 %v6321
    %7844 = vmatpush.bf16.msra.mxu0 %v6317
    %7845 = vmatpush.bf16.msra.mxu0 %v6313
    %7846 = vmatpush.bf16.msra.mxu0 %v6309
    %7847 = vmatpush.bf16.msra.mxu0 %v6305
    %7848 = vmatpush.bf16.msra.mxu0 %v6301
    %7849 = vmatpush.bf16.msra.mxu0 %v6297
    %7850 = vmatpush.bf16.msra.mxu0 %v6293
    %7851 = vmatmul.bf16.gmra.mxu0 %v135
    %v7852 = vpop.f32.mrf.mxu0
    %v7853 = vadd.f32 %v7840, %v7852
    %v7854 = vpop.f32.mrf.mxu0
    %7855 = vdwg.mxu0
    %7856 = vmatpush.bf16.msra.mxu0 %v6353
    %7857 = vmatpush.bf16.msra.mxu0 %v6349
    %7858 = vmatpush.bf16.msra.mxu0 %v6345
    %7859 = vmatpush.bf16.msra.mxu0 %v6341
    %7860 = vmatpush.bf16.msra.mxu0 %v6337
    %7861 = vmatpush.bf16.msra.mxu0 %v6333
    %7862 = vmatpush.bf16.msra.mxu0 %v6329
    %7863 = vmatpush.bf16.msra.mxu0 %v6325
    %7864 = vmatmul.bf16.gmra.mxu0 %v136
    %v7865 = vpop.f32.mrf.mxu0
    %v7866 = vadd.f32 %v7853, %v7865
    %v7867 = vpop.f32.mrf.mxu0
    %7868 = vdwg.mxu0
    %7869 = vmatpush.bf16.msra.mxu0 %v6385
    %7870 = vmatpush.bf16.msra.mxu0 %v6381
    %7871 = vmatpush.bf16.msra.mxu0 %v6377
    %7872 = vmatpush.bf16.msra.mxu0 %v6373
    %7873 = vmatpush.bf16.msra.mxu0 %v6369
    %7874 = vmatpush.bf16.msra.mxu0 %v6365
    %7875 = vmatpush.bf16.msra.mxu0 %v6361
    %7876 = vmatpush.bf16.msra.mxu0 %v6357
    %7877 = vmatmul.bf16.gmra.mxu0 %v137
    %v7878 = vpop.f32.mrf.mxu0
    %v7879 = vadd.f32 %v7866, %v7878
    %v7880 = vpop.f32.mrf.mxu0
    %7881 = vdwg.mxu0
    %7882 = vmatpush.bf16.msra.mxu0 %v6417
    %7883 = vmatpush.bf16.msra.mxu0 %v6413
    %7884 = vmatpush.bf16.msra.mxu0 %v6409
    %7885 = vmatpush.bf16.msra.mxu0 %v6405
    %7886 = vmatpush.bf16.msra.mxu0 %v6401
    %7887 = vmatpush.bf16.msra.mxu0 %v6397
    %7888 = vmatpush.bf16.msra.mxu0 %v6393
    %7889 = vmatpush.bf16.msra.mxu0 %v6389
    %7890 = vmatmul.bf16.gmra.mxu0 %v138
    %v7891 = vpop.f32.mrf.mxu0
    %v7892 = vadd.f32 %v7879, %v7891
    %v7893 = vpop.f32.mrf.mxu0
    %7894 = vdwg.mxu0
    %7895 = vmatpush.bf16.msra.mxu0 %v6449
    %7896 = vmatpush.bf16.msra.mxu0 %v6445
    %7897 = vmatpush.bf16.msra.mxu0 %v6441
    %7898 = vmatpush.bf16.msra.mxu0 %v6437
    %7899 = vmatpush.bf16.msra.mxu0 %v6433
    %7900 = vmatpush.bf16.msra.mxu0 %v6429
    %7901 = vmatpush.bf16.msra.mxu0 %v6425
    %7902 = vmatpush.bf16.msra.mxu0 %v6421
    %7903 = vmatmul.bf16.gmra.mxu0 %v139
    %v7904 = vpop.f32.mrf.mxu0
    %v7905 = vadd.f32 %v7892, %v7904
    %v7906 = vpop.f32.mrf.mxu0
    %7907 = vdwg.mxu0
    %7908 = vmatpush.bf16.msra.mxu0 %v6481
    %7909 = vmatpush.bf16.msra.mxu0 %v6477
    %7910 = vmatpush.bf16.msra.mxu0 %v6473
    %7911 = vmatpush.bf16.msra.mxu0 %v6469
    %7912 = vmatpush.bf16.msra.mxu0 %v6465
    %7913 = vmatpush.bf16.msra.mxu0 %v6461
    %7914 = vmatpush.bf16.msra.mxu0 %v6457
    %7915 = vmatpush.bf16.msra.mxu0 %v6453
    %7916 = vmatmul.bf16.gmra.mxu0 %v140
    %v7917 = vpop.f32.mrf.mxu0
    %v7918 = vadd.f32 %v7905, %v7917
    %v7919 = vpop.f32.mrf.mxu0
    %7920 = vdwg.mxu0
    %7921 = vmatpush.bf16.msra.mxu0 %v6513
    %7922 = vmatpush.bf16.msra.mxu0 %v6509
    %7923 = vmatpush.bf16.msra.mxu0 %v6505
    %7924 = vmatpush.bf16.msra.mxu0 %v6501
    %7925 = vmatpush.bf16.msra.mxu0 %v6497
    %7926 = vmatpush.bf16.msra.mxu0 %v6493
    %7927 = vmatpush.bf16.msra.mxu0 %v6489
    %7928 = vmatpush.bf16.msra.mxu0 %v6485
    %7929 = vmatmul.bf16.gmra.mxu0 %v141
    %v7930 = vpop.f32.mrf.mxu0
    %v7931 = vadd.f32 %v7918, %v7930
    %v7932 = vpop.f32.mrf.mxu0
    %7933 = vdwg.mxu0
    %7934 = vmatpush.bf16.msra.mxu0 %v6545
    %7935 = vmatpush.bf16.msra.mxu0 %v6541
    %7936 = vmatpush.bf16.msra.mxu0 %v6537
    %7937 = vmatpush.bf16.msra.mxu0 %v6533
    %7938 = vmatpush.bf16.msra.mxu0 %v6529
    %7939 = vmatpush.bf16.msra.mxu0 %v6525
    %7940 = vmatpush.bf16.msra.mxu0 %v6521
    %7941 = vmatpush.bf16.msra.mxu0 %v6517
    %7942 = vmatmul.bf16.gmra.mxu0 %v142
    %v7943 = vpop.f32.mrf.mxu0
    %v7944 = vadd.f32 %v7931, %v7943
    %v7945 = vpop.f32.mrf.mxu0
    %7946 = vdwg.mxu0
    %7947 = vmatpush.bf16.msra.mxu0 %v6577
    %7948 = vmatpush.bf16.msra.mxu0 %v6573
    %7949 = vmatpush.bf16.msra.mxu0 %v6569
    %7950 = vmatpush.bf16.msra.mxu0 %v6565
    %7951 = vmatpush.bf16.msra.mxu0 %v6561
    %7952 = vmatpush.bf16.msra.mxu0 %v6557
    %7953 = vmatpush.bf16.msra.mxu0 %v6553
    %7954 = vmatpush.bf16.msra.mxu0 %v6549
    %7955 = vmatmul.bf16.gmra.mxu0 %v143
    %v7956 = vpop.f32.mrf.mxu0
    %v7957 = vadd.f32 %v7944, %v7956
    %v7958 = vpop.f32.mrf.mxu0
    %7959 = vdwg.mxu0
    %7960 = vmatpush.bf16.msra.mxu0 %v6609
    %7961 = vmatpush.bf16.msra.mxu0 %v6605
    %7962 = vmatpush.bf16.msra.mxu0 %v6601
    %7963 = vmatpush.bf16.msra.mxu0 %v6597
    %7964 = vmatpush.bf16.msra.mxu0 %v6593
    %7965 = vmatpush.bf16.msra.mxu0 %v6589
    %7966 = vmatpush.bf16.msra.mxu0 %v6585
    %7967 = vmatpush.bf16.msra.mxu0 %v6581
    %7968 = vmatmul.bf16.gmra.mxu0 %v144
    %v7969 = vpop.f32.mrf.mxu0
    %v7970 = vadd.f32 %v7957, %v7969
    %v7971 = vpop.f32.mrf.mxu0
    %7972 = vdwg.mxu0
    %7973 = vmatpush.bf16.msra.mxu0 %v6641
    %7974 = vmatpush.bf16.msra.mxu0 %v6637
    %7975 = vmatpush.bf16.msra.mxu0 %v6633
    %7976 = vmatpush.bf16.msra.mxu0 %v6629
    %7977 = vmatpush.bf16.msra.mxu0 %v6625
    %7978 = vmatpush.bf16.msra.mxu0 %v6621
    %7979 = vmatpush.bf16.msra.mxu0 %v6617
    %7980 = vmatpush.bf16.msra.mxu0 %v6613
    %7981 = vmatmul.bf16.gmra.mxu0 %v145
    %v7982 = vpop.f32.mrf.mxu0
    %v7983 = vadd.f32 %v7970, %v7982
    %v7984 = vpop.f32.mrf.mxu0
    %7985 = vdwg.mxu0
    %v7986 = vld [vmem:[#allocation10] sm:$0xf]
    %v7988 = vperm.slane %v7986, 0
    %v7989 = vperm.slane %v7986, 1
    %v7990 = vperm.slane %v7986, 2
    %v7991 = vperm.slane %v7986, 3
    %v7996 = vadd.f32 %v7359, %v7988
    %v7997 = vadd.f32 %v7567, %v7989
    %v7998 = vadd.f32 %v7775, %v7990
    %v7999 = vadd.f32 %v7983, %v7991
    %v8000 = vmul.f32 %v7996, 0.01
    %v8001 = vmul.f32 %v7997, 0.01
    %v8002 = vmul.f32 %v7998, 0.01
    %v8003 = vmul.f32 %v7999, 0.01
    %v8004 = vmax.f32 %v7996, %v8000
    %v8005 = vmax.f32 %v7997, %v8001
    %v8006 = vmax.f32 %v7998, %v8002
    %v8007 = vmax.f32 %v7999, %v8003
    %v8008 = vld [vmem:[#allocation11] sm:$0xf]
    %v8010 = vperm.slane %v8008, 0
    %v8011 = vperm.slane %v8008, 1
    %v8012 = vperm.slane %v8008, 2
    %v8013 = vperm.slane %v8008, 3
    %v8018 = vmul.f32 %v8004, %v8010
    %v8019 = vmul.f32 %v8005, %v8011
    %v8020 = vmul.f32 %v8006, %v8012
    %v8021 = vmul.f32 %v8007, %v8013
    %v8022 = vadd.f32 %v8018, %v8019
    %v8023 = vadd.f32 %v8022, %v8020
    %v8024 = vadd.f32 %v8023, %v8021
    %8025 = vadd.xlane.f32.xlu0 %v8024
    %v8026 = vpop.xlane.xlu0 %8025
    %v8027 = vld [vmem:[#allocation2] sm:$0x1]
    %v8029 = vperm.slane %v8027, 0
    %v8031 = vadd.f32 %v8026, %v8029
    %vm8032 = vcmask 7168
    %8033 = vst.msk [vmem:[%s7] sm:$0xff] %vm8032, %v8031
    // Predicated region
    $region54: #{tpu_custom_call.1} parent=1 // pred_check
      _
    $region55: #{tpu_custom_call.1} parent=1 // pred_check_branch
      %8035 = sbr.rel (0) target = $region57
    $region56: #{tpu_custom_call.1} parent=1 // pred_region
      _
    $region57: #{tpu_custom_call.1} parent=1 // pred_fallthru
      _
    // Predicated region
    $region58: #{tpu_custom_call.1} parent=1 // pred_check
      _
    $region59: #{tpu_custom_call.1} parent=1 // pred_check_branch
      %8037 = sbr.rel (0) target = $region61
    $region60: #{tpu_custom_call.1} parent=1 // pred_region
      _
    $region61: #{tpu_custom_call.1} parent=1 // pred_fallthru
      _
    %8038 = vsyncpa [#allocation4], 1
    %8039 = vsyncpa [#allocation6], 1
    %8040 = vsyncpa [#allocation9], 1
    %8041 = vsyncpa [#allocation12], 1

</llo_original>
